<compile_context>
chip_gen: v7x
topology: tpu7x:2x2x1
jax: 0.10.0
libtpu: 0.0.40
codegen_flags: <defaults>
</compile_context>

<pallas_src>
import jax
import jax.numpy as jnp
from jax.experimental import pallas as pl
from jax.experimental.pallas import tpu as pltpu


def _dual_channel_block_kernel(
        x_ref,                       # (1, H, W, Cin)
        w1_ref, b1_ref,              # (9*Cin, 2C), (1, 2C)  upconv1|dconv1 fused
        w2u_ref, b2u_ref,            # (9*C, C),   (1, C)    upconv2
        w3u_ref, b3u_ref,            # (9*C, C),   (1, C)    upconv3
        w2d_ref, b2d_ref,            # (9*C, C),   (1, C)    dconv2
        w3d_ref, b3d_ref,            # (9*C, C),   (1, C)    dconv3
        w4_ref, b4_ref,              # (54*C, C),  (1, C)    up_out|d_out fused (+sum)
        o_ref,                       # (1, H, W, C)
        x_pad, cat_pad):             # VMEM scratch: (H+2,W+2,Cin), (H+2,W+2,6C)
    _, H, W, Cin = x_ref.shape
    C = o_ref.shape[-1]
    HW = H * W
    f32 = jnp.float32

    # Zero the scratch slabs (only the 1-pixel halo must stay zero; the
    # interiors are fully rewritten below before being read).
    x_pad[...] = jnp.zeros_like(x_pad)
    cat_pad[...] = jnp.zeros_like(cat_pad)

    # Place the input inside its halo (replaces the old per-conv jnp.pad in HBM).
    x_pad[1:H + 1, 1:W + 1, :] = x_ref[0].astype(f32)

    def im2col(ref, lo, sz):
        """(HW, 9*sz) im2col slab for a 3x3 'same' conv whose input is channels
        [lo, lo+sz) of the zero-padded scratch `ref`."""
        taps = []
        for dy in range(3):
            for dx in range(3):
                taps.append(ref[dy:dy + H, dx:dx + W, lo:lo + sz].reshape(HW, sz))
        return jnp.concatenate(taps, axis=-1)

    def put(lo, val):
        """Write a (HW, C) conv result into channel slice [lo, lo+C) of cat_pad."""
        cat_pad[1:H + 1, 1:W + 1, lo:lo + C] = val.reshape(H, W, C)

    # cat_pad channel layout: [up1 | up2 | up3 | d1 | d2 | d3], each C wide.

    # ---- stage 1: upconv1 & dconv1 share input x -> one matmul, 2C out columns
    p1 = im2col(x_pad, 0, Cin)                                   # (HW, 9*Cin)
    r1 = jnp.dot(p1, w1_ref[...], preferred_element_type=f32) + b1_ref[...]
    put(0 * C, r1[:, :C])          # up1
    put(3 * C, r1[:, C:2 * C])     # d1

    # ---- stage 2
    up2 = jnp.dot(im2col(cat_pad, 0 * C, C), w2u_ref[...],
                  preferred_element_type=f32) + b2u_ref[...]
    put(1 * C, up2)
    d2 = jnp.dot(im2col(cat_pad, 3 * C, C), w2d_ref[...],
                 preferred_element_type=f32) + b2d_ref[...]
    put(4 * C, d2)

    # ---- stage 3
    up3 = jnp.dot(im2col(cat_pad, 1 * C, C), w3u_ref[...],
                  preferred_element_type=f32) + b3u_ref[...]
    put(2 * C, up3)
    d3 = jnp.dot(im2col(cat_pad, 4 * C, C), w3d_ref[...],
                 preferred_element_type=f32) + b3d_ref[...]
    put(5 * C, d3)

    # ---- stage 4: up_out_conv(up_cat) + d_out_conv(d_cat) + final add, fused
    # into a single matmul over the 6C-channel cat slab (biases pre-summed).
    p4 = im2col(cat_pad, 0, 6 * C)                               # (HW, 54*C)
    out = jnp.dot(p4, w4_ref[...], preferred_element_type=f32) + b4_ref[...]

    o_ref[0] = out.reshape(H, W, C).astype(o_ref.dtype)


def _pack_params(params, in_channel, out_channel):
    """Re-pack the 8 independent convs into the fused layout used by the kernel."""
    C = out_channel
    w_up1, b_up1 = params["upconv1"]
    w_d1, b_d1 = params["dconv1"]
    # upconv1 & dconv1 read the same input -> concat their output channels.
    w1 = jnp.concatenate([w_up1, w_d1], axis=-1).reshape(9 * in_channel, 2 * C)
    b1 = jnp.concatenate([b_up1, b_d1]).reshape(1, 2 * C)

    def flat(name):
        w, b = params[name]
        cin = w.shape[2]
        return w.reshape(9 * cin, C), b.reshape(1, C)

    w2u, b2u = flat("upconv2")
    w3u, b3u = flat("upconv3")
    w2d, b2d = flat("dconv2")
    w3d, b3d = flat("dconv3")

    # up_out_conv(up_cat) + d_out_conv(d_cat): concat along input channels to
    # match the cat_pad layout [up1,up2,up3,d1,d2,d3]; the "+" sums the biases.
    w_uo, b_uo = params["up_out_conv"]       # (3,3,3C,C)
    w_do, b_do = params["d_out_conv"]
    w4 = jnp.concatenate([w_uo, w_do], axis=2).reshape(9 * 6 * C, C)
    b4 = (b_uo + b_do).reshape(1, C)

    return [w1, b1, w2u, b2u, w3u, b3u, w2d, b2d, w3d, b3d, w4, b4]


def dual_channel_block(params, x_nhwc, out_channel):
    """Forward pass matching Dual_Channel_Block.forward (NHWC activations)."""
    N, H, W, Cin = x_nhwc.shape
    C = out_channel
    packed = _pack_params(params, Cin, C)

    in_specs = [pl.BlockSpec((1, H, W, Cin), lambda n: (n, 0, 0, 0))]
    in_specs += [pl.BlockSpec(p.shape, lambda n: (0, 0)) for p in packed]

    return pl.pallas_call(
        _dual_channel_block_kernel,
        out_shape=jax.ShapeDtypeStruct((N, H, W, C), x_nhwc.dtype),
        grid_spec=pltpu.PrefetchScalarGridSpec(
            num_scalar_prefetch=0,
            grid=(N,),
            in_specs=in_specs,
            out_specs=pl.BlockSpec((1, H, W, C), lambda n: (n, 0, 0, 0)),
            scratch_shapes=[
                pltpu.VMEM((H + 2, W + 2, Cin), jnp.float32),     # padded input
                pltpu.VMEM((H + 2, W + 2, 6 * C), jnp.float32),   # padded cat slab
            ]),
        compiler_params=pltpu.CompilerParams(
            dimension_semantics=("parallel",)),   # batch axis -> both v7x cores
    )(x_nhwc, *packed)


def init_conv_params(key, cin, cout, dtype=jnp.float32):
    """Deterministic synthetic init (roughly PyTorch's fan_in uniform scale)."""
    kw, kb = jax.random.split(key)
    fan_in = cin * 9
    bound = 1.0 / jnp.sqrt(fan_in)
    w = jax.random.uniform(kw, (3, 3, cin, cout), dtype, -bound, bound)
    b = jax.random.uniform(kb, (cout,), dtype, -bound, bound)
    return w, b


def make_dual_channel_block_params(key, in_channel, out_channel):
    names = ["upconv1", "upconv2", "upconv3",
             "dconv1", "dconv2", "dconv3",
             "up_out_conv", "d_out_conv"]
    cins = [in_channel, out_channel, out_channel,
            in_channel, out_channel, out_channel,
            3 * out_channel, 3 * out_channel]
    keys = jax.random.split(key, len(names))
    return {n: init_conv_params(k, ci, out_channel)
            for n, ci, k in zip(names, cins, keys)}


# ----------------------- pure-JAX reference (correctness) ----------------------
def _ref_conv3x3(x_nhwc, w_hwio, bias):
    y = jax.lax.conv_general_dilated(
        x_nhwc, w_hwio, window_strides=(1, 1), padding="SAME",
        dimension_numbers=("NHWC", "HWIO", "NHWC"))
    return y + bias


def _ref_block(params, x_nhwc):
    up1 = _ref_conv3x3(x_nhwc, *params["upconv1"])
    up2 = _ref_conv3x3(up1, *params["upconv2"])
    up3 = _ref_conv3x3(up2, *params["upconv3"])
    up = _ref_conv3x3(jnp.concatenate([up1, up2, up3], -1), *params["up_out_conv"])
    d1 = _ref_conv3x3(x_nhwc, *params["dconv1"])
    d2 = _ref_conv3x3(d1, *params["dconv2"])
    d3 = _ref_conv3x3(d2, *params["dconv3"])
    d = _ref_conv3x3(jnp.concatenate([d1, d2, d3], -1), *params["d_out_conv"])
    return up + d


if __name__ == "__main__":
    key = jax.random.PRNGKey(0)
    k_params, k_x = jax.random.split(key)

    N, Cin, H, W = 2, 4, 16, 16
    Cout = 8

    # PyTorch-style NCHW input, transposed to NHWC at the boundary.
    x_nchw = jax.random.normal(k_x, (N, Cin, H, W), jnp.float32)
    x_nhwc = jnp.transpose(x_nchw, (0, 2, 3, 1))

    params = make_dual_channel_block_params(k_params, Cin, Cout)

    out = jax.block_until_ready(dual_channel_block(params, x_nhwc, Cout))

    # sanity check against pure-JAX reference
    ref = jax.block_until_ready(_ref_block(params, x_nhwc))
    assert out.shape == (N, H, W, Cout)
    assert jnp.max(jnp.abs(out - ref)) < 1e-3, "mismatch vs reference conv"

    print("KERNEL_OK")
</pallas_src>

<mosaic_0001>
module attributes {stable_mosaic.version = 11 : i64} {
  func.func @_dual_channel_block_kernel(%arg0: i32, %arg1: memref<1x16x16x4xf32, #tpu.memory_space<vmem>>, %arg2: memref<36x16xf32, #tpu.memory_space<vmem>>, %arg3: memref<1x16xf32, #tpu.memory_space<vmem>>, %arg4: memref<72x8xf32, #tpu.memory_space<vmem>>, %arg5: memref<1x8xf32, #tpu.memory_space<vmem>>, %arg6: memref<72x8xf32, #tpu.memory_space<vmem>>, %arg7: memref<1x8xf32, #tpu.memory_space<vmem>>, %arg8: memref<72x8xf32, #tpu.memory_space<vmem>>, %arg9: memref<1x8xf32, #tpu.memory_space<vmem>>, %arg10: memref<72x8xf32, #tpu.memory_space<vmem>>, %arg11: memref<1x8xf32, #tpu.memory_space<vmem>>, %arg12: memref<432x8xf32, #tpu.memory_space<vmem>>, %arg13: memref<1x8xf32, #tpu.memory_space<vmem>>, %arg14: memref<1x16x16x8xf32, #tpu.memory_space<vmem>>, %arg15: memref<18x18x4xf32, #tpu.memory_space<vmem>>, %arg16: memref<18x18x48xf32, #tpu.memory_space<vmem>>) attributes {dimension_semantics = [#tpu.dimension_semantics<parallel>], iteration_bounds = array<i64: 2>, scalar_prefetch = 0 : i64, scratch_operands = 2 : i64, tpu.core_type = #tpu.core_type<tc>, window_params = [{transform_indices = @transform_0, window_bounds = array<i64: 1, 16, 16, 4>}, {pipeline_mode = #tpu.pipeline_mode<synchronous>, transform_indices = @transform_1, window_bounds = array<i64: 36, 16>}, {pipeline_mode = #tpu.pipeline_mode<synchronous>, transform_indices = @transform_2, window_bounds = array<i64: 1, 16>}, {pipeline_mode = #tpu.pipeline_mode<synchronous>, transform_indices = @transform_3, window_bounds = array<i64: 72, 8>}, {pipeline_mode = #tpu.pipeline_mode<synchronous>, transform_indices = @transform_4, window_bounds = array<i64: 1, 8>}, {pipeline_mode = #tpu.pipeline_mode<synchronous>, transform_indices = @transform_5, window_bounds = array<i64: 72, 8>}, {pipeline_mode = #tpu.pipeline_mode<synchronous>, transform_indices = @transform_6, window_bounds = array<i64: 1, 8>}, {pipeline_mode = #tpu.pipeline_mode<synchronous>, transform_indices = @transform_7, window_bounds = array<i64: 72, 8>}, {pipeline_mode = #tpu.pipeline_mode<synchronous>, transform_indices = @transform_8, window_bounds = array<i64: 1, 8>}, {pipeline_mode = #tpu.pipeline_mode<synchronous>, transform_indices = @transform_9, window_bounds = array<i64: 72, 8>}, {pipeline_mode = #tpu.pipeline_mode<synchronous>, transform_indices = @transform_10, window_bounds = array<i64: 1, 8>}, {pipeline_mode = #tpu.pipeline_mode<synchronous>, transform_indices = @transform_11, window_bounds = array<i64: 432, 8>}, {pipeline_mode = #tpu.pipeline_mode<synchronous>, transform_indices = @transform_12, window_bounds = array<i64: 1, 8>}, {transform_indices = @transform_13, window_bounds = array<i64: 1, 16, 16, 8>}]} {
    %cst = arith.constant 0.000000e+00 : f32
    %0 = vector.broadcast %cst : f32 to vector<18x18x4xf32>
    %c0 = arith.constant 0 : index
    %c0_0 = arith.constant 0 : index
    %c0_1 = arith.constant 0 : index
    %1 = vector.load %arg15[%c0, %c0_0, %c0_1] : memref<18x18x4xf32, #tpu.memory_space<vmem>>, vector<18x18x4xf32>
    tpu.vector_store %arg15[%c0, %c0_0, %c0_1], %0 {strides = array<i32>} : memref<18x18x4xf32, #tpu.memory_space<vmem>>, vector<18x18x4xf32>,
    %cst_2 = arith.constant 0.000000e+00 : f32
    %2 = vector.broadcast %cst_2 : f32 to vector<18x18x48xf32>
    %c0_3 = arith.constant 0 : index
    %c0_4 = arith.constant 0 : index
    %c0_5 = arith.constant 0 : index
    %3 = vector.load %arg16[%c0_3, %c0_4, %c0_5] : memref<18x18x48xf32, #tpu.memory_space<vmem>>, vector<18x18x48xf32>
    tpu.vector_store %arg16[%c0_3, %c0_4, %c0_5], %2 {strides = array<i32>} : memref<18x18x48xf32, #tpu.memory_space<vmem>>, vector<18x18x48xf32>,
    %c0_6 = arith.constant 0 : index
    %c0_7 = arith.constant 0 : index
    %c0_8 = arith.constant 0 : index
    %c0_9 = arith.constant 0 : index
    %4 = vector.load %arg1[%c0_6, %c0_7, %c0_8, %c0_9] : memref<1x16x16x4xf32, #tpu.memory_space<vmem>>, vector<1x16x16x4xf32>
    %5 = vector.shape_cast %4 : vector<1x16x16x4xf32> to vector<16x16x4xf32>
    %c1 = arith.constant 1 : index
    %c1_10 = arith.constant 1 : index
    %c0_11 = arith.constant 0 : index
    %6 = vector.load %arg15[%c1, %c1_10, %c0_11] : memref<18x18x4xf32, #tpu.memory_space<vmem>>, vector<16x16x4xf32>
    tpu.vector_store %arg15[%c1, %c1_10, %c0_11], %5 {strides = array<i32>} : memref<18x18x4xf32, #tpu.memory_space<vmem>>, vector<16x16x4xf32>,
    %c0_12 = arith.constant 0 : index
    %c0_13 = arith.constant 0 : index
    %c0_14 = arith.constant 0 : index
    %7 = vector.load %arg15[%c0_12, %c0_13, %c0_14] : memref<18x18x4xf32, #tpu.memory_space<vmem>>, vector<16x16x4xf32>
    %8 = vector.shape_cast %7 : vector<16x16x4xf32> to vector<256x4xf32>
    %c0_15 = arith.constant 0 : index
    %c1_16 = arith.constant 1 : index
    %c0_17 = arith.constant 0 : index
    %9 = vector.load %arg15[%c0_15, %c1_16, %c0_17] : memref<18x18x4xf32, #tpu.memory_space<vmem>>, vector<16x16x4xf32>
    %10 = vector.shape_cast %9 : vector<16x16x4xf32> to vector<256x4xf32>
    %c0_18 = arith.constant 0 : index
    %c2 = arith.constant 2 : index
    %c0_19 = arith.constant 0 : index
    %11 = vector.load %arg15[%c0_18, %c2, %c0_19] : memref<18x18x4xf32, #tpu.memory_space<vmem>>, vector<16x16x4xf32>
    %12 = vector.shape_cast %11 : vector<16x16x4xf32> to vector<256x4xf32>
    %c1_20 = arith.constant 1 : index
    %c0_21 = arith.constant 0 : index
    %c0_22 = arith.constant 0 : index
    %13 = vector.load %arg15[%c1_20, %c0_21, %c0_22] : memref<18x18x4xf32, #tpu.memory_space<vmem>>, vector<16x16x4xf32>
    %14 = vector.shape_cast %13 : vector<16x16x4xf32> to vector<256x4xf32>
    %c1_23 = arith.constant 1 : index
    %c1_24 = arith.constant 1 : index
    %c0_25 = arith.constant 0 : index
    %15 = vector.load %arg15[%c1_23, %c1_24, %c0_25] : memref<18x18x4xf32, #tpu.memory_space<vmem>>, vector<16x16x4xf32>
    %16 = vector.shape_cast %15 : vector<16x16x4xf32> to vector<256x4xf32>
    %c1_26 = arith.constant 1 : index
    %c2_27 = arith.constant 2 : index
    %c0_28 = arith.constant 0 : index
    %17 = vector.load %arg15[%c1_26, %c2_27, %c0_28] : memref<18x18x4xf32, #tpu.memory_space<vmem>>, vector<16x16x4xf32>
    %18 = vector.shape_cast %17 : vector<16x16x4xf32> to vector<256x4xf32>
    %c2_29 = arith.constant 2 : index
    %c0_30 = arith.constant 0 : index
    %c0_31 = arith.constant 0 : index
    %19 = vector.load %arg15[%c2_29, %c0_30, %c0_31] : memref<18x18x4xf32, #tpu.memory_space<vmem>>, vector<16x16x4xf32>
    %20 = vector.shape_cast %19 : vector<16x16x4xf32> to vector<256x4xf32>
    %c2_32 = arith.constant 2 : index
    %c1_33 = arith.constant 1 : index
    %c0_34 = arith.constant 0 : index
    %21 = vector.load %arg15[%c2_32, %c1_33, %c0_34] : memref<18x18x4xf32, #tpu.memory_space<vmem>>, vector<16x16x4xf32>
    %22 = vector.shape_cast %21 : vector<16x16x4xf32> to vector<256x4xf32>
    %c2_35 = arith.constant 2 : index
    %c2_36 = arith.constant 2 : index
    %c0_37 = arith.constant 0 : index
    %23 = vector.load %arg15[%c2_35, %c2_36, %c0_37] : memref<18x18x4xf32, #tpu.memory_space<vmem>>, vector<16x16x4xf32>
    %24 = vector.shape_cast %23 : vector<16x16x4xf32> to vector<256x4xf32>
    %25 = tpu.concatenate %8, %10, %12, %14, %16, %18, %20, %22, %24 in 1 : vector<256x4xf32>, vector<256x4xf32>, vector<256x4xf32>, vector<256x4xf32>, vector<256x4xf32>, vector<256x4xf32>, vector<256x4xf32>, vector<256x4xf32>, vector<256x4xf32> -> vector<256x36xf32>
    %c0_38 = arith.constant 0 : index
    %c0_39 = arith.constant 0 : index
    %26 = vector.load %arg2[%c0_38, %c0_39] : memref<36x16xf32, #tpu.memory_space<vmem>>, vector<36x16xf32>
    %cst_40 = arith.constant dense<0.000000e+00> : vector<256x16xf32>
    %27 = tpu.matmul %25, %26, %cst_40 {dimension_numbers = #tpu.dot_dimension_numbers<[1], [0], [0], [1], [0, 0, 1, 1], [], []>} : vector<256x36xf32>, vector<36x16xf32>, vector<256x16xf32> -> vector<256x16xf32>
    %c0_41 = arith.constant 0 : index
    %c0_42 = arith.constant 0 : index
    %28 = vector.load %arg3[%c0_41, %c0_42] : memref<1x16xf32, #tpu.memory_space<vmem>>, vector<1x16xf32>
    %29 = vector.broadcast %28 : vector<1x16xf32> to vector<256x16xf32>
    %30 = arith.addf %27, %29 : vector<256x16xf32>
    %31 = vector.extract_strided_slice %30 {offsets = [0, 0], sizes = [256, 8], strides = [1, 1]} : vector<256x16xf32> to vector<256x8xf32>
    %32 = vector.shape_cast %31 : vector<256x8xf32> to vector<16x16x8xf32>
    %c1_43 = arith.constant 1 : index
    %c1_44 = arith.constant 1 : index
    %c0_45 = arith.constant 0 : index
    %33 = vector.load %arg16[%c1_43, %c1_44, %c0_45] : memref<18x18x48xf32, #tpu.memory_space<vmem>>, vector<16x16x8xf32>
    tpu.vector_store %arg16[%c1_43, %c1_44, %c0_45], %32 {strides = array<i32>} : memref<18x18x48xf32, #tpu.memory_space<vmem>>, vector<16x16x8xf32>,
    %34 = vector.extract_strided_slice %30 {offsets = [0, 8], sizes = [256, 8], strides = [1, 1]} : vector<256x16xf32> to vector<256x8xf32>
    %35 = vector.shape_cast %34 : vector<256x8xf32> to vector<16x16x8xf32>
    %c1_46 = arith.constant 1 : index
    %c1_47 = arith.constant 1 : index
    %c24 = arith.constant 24 : index
    %36 = vector.load %arg16[%c1_46, %c1_47, %c24] : memref<18x18x48xf32, #tpu.memory_space<vmem>>, vector<16x16x8xf32>
    tpu.vector_store %arg16[%c1_46, %c1_47, %c24], %35 {strides = array<i32>} : memref<18x18x48xf32, #tpu.memory_space<vmem>>, vector<16x16x8xf32>,
    %c0_48 = arith.constant 0 : index
    %c0_49 = arith.constant 0 : index
    %c0_50 = arith.constant 0 : index
    %37 = vector.load %arg16[%c0_48, %c0_49, %c0_50] : memref<18x18x48xf32, #tpu.memory_space<vmem>>, vector<16x16x8xf32>
    %38 = vector.shape_cast %37 : vector<16x16x8xf32> to vector<256x8xf32>
    %c0_51 = arith.constant 0 : index
    %c1_52 = arith.constant 1 : index
    %c0_53 = arith.constant 0 : index
    %39 = vector.load %arg16[%c0_51, %c1_52, %c0_53] : memref<18x18x48xf32, #tpu.memory_space<vmem>>, vector<16x16x8xf32>
    %40 = vector.shape_cast %39 : vector<16x16x8xf32> to vector<256x8xf32>
    %c0_54 = arith.constant 0 : index
    %c2_55 = arith.constant 2 : index
    %c0_56 = arith.constant 0 : index
    %41 = vector.load %arg16[%c0_54, %c2_55, %c0_56] : memref<18x18x48xf32, #tpu.memory_space<vmem>>, vector<16x16x8xf32>
    %42 = vector.shape_cast %41 : vector<16x16x8xf32> to vector<256x8xf32>
    %c1_57 = arith.constant 1 : index
    %c0_58 = arith.constant 0 : index
    %c0_59 = arith.constant 0 : index
    %43 = vector.load %arg16[%c1_57, %c0_58, %c0_59] : memref<18x18x48xf32, #tpu.memory_space<vmem>>, vector<16x16x8xf32>
    %44 = vector.shape_cast %43 : vector<16x16x8xf32> to vector<256x8xf32>
    %c1_60 = arith.constant 1 : index
    %c1_61 = arith.constant 1 : index
    %c0_62 = arith.constant 0 : index
    %45 = vector.load %arg16[%c1_60, %c1_61, %c0_62] : memref<18x18x48xf32, #tpu.memory_space<vmem>>, vector<16x16x8xf32>
    %46 = vector.shape_cast %45 : vector<16x16x8xf32> to vector<256x8xf32>
    %c1_63 = arith.constant 1 : index
    %c2_64 = arith.constant 2 : index
    %c0_65 = arith.constant 0 : index
    %47 = vector.load %arg16[%c1_63, %c2_64, %c0_65] : memref<18x18x48xf32, #tpu.memory_space<vmem>>, vector<16x16x8xf32>
    %48 = vector.shape_cast %47 : vector<16x16x8xf32> to vector<256x8xf32>
    %c2_66 = arith.constant 2 : index
    %c0_67 = arith.constant 0 : index
    %c0_68 = arith.constant 0 : index
    %49 = vector.load %arg16[%c2_66, %c0_67, %c0_68] : memref<18x18x48xf32, #tpu.memory_space<vmem>>, vector<16x16x8xf32>
    %50 = vector.shape_cast %49 : vector<16x16x8xf32> to vector<256x8xf32>
    %c2_69 = arith.constant 2 : index
    %c1_70 = arith.constant 1 : index
    %c0_71 = arith.constant 0 : index
    %51 = vector.load %arg16[%c2_69, %c1_70, %c0_71] : memref<18x18x48xf32, #tpu.memory_space<vmem>>, vector<16x16x8xf32>
    %52 = vector.shape_cast %51 : vector<16x16x8xf32> to vector<256x8xf32>
    %c2_72 = arith.constant 2 : index
    %c2_73 = arith.constant 2 : index
    %c0_74 = arith.constant 0 : index
    %53 = vector.load %arg16[%c2_72, %c2_73, %c0_74] : memref<18x18x48xf32, #tpu.memory_space<vmem>>, vector<16x16x8xf32>
    %54 = vector.shape_cast %53 : vector<16x16x8xf32> to vector<256x8xf32>
    %55 = tpu.concatenate %38, %40, %42, %44, %46, %48, %50, %52, %54 in 1 : vector<256x8xf32>, vector<256x8xf32>, vector<256x8xf32>, vector<256x8xf32>, vector<256x8xf32>, vector<256x8xf32>, vector<256x8xf32>, vector<256x8xf32>, vector<256x8xf32> -> vector<256x72xf32>
    %c0_75 = arith.constant 0 : index
    %c0_76 = arith.constant 0 : index
    %56 = vector.load %arg4[%c0_75, %c0_76] : memref<72x8xf32, #tpu.memory_space<vmem>>, vector<72x8xf32>
    %cst_77 = arith.constant dense<0.000000e+00> : vector<256x8xf32>
    %57 = tpu.matmul %55, %56, %cst_77 {dimension_numbers = #tpu.dot_dimension_numbers<[1], [0], [0], [1], [0, 0, 1, 1], [], []>} : vector<256x72xf32>, vector<72x8xf32>, vector<256x8xf32> -> vector<256x8xf32>
    %c0_78 = arith.constant 0 : index
    %c0_79 = arith.constant 0 : index
    %58 = vector.load %arg5[%c0_78, %c0_79] : memref<1x8xf32, #tpu.memory_space<vmem>>, vector<1x8xf32>
    %59 = vector.broadcast %58 : vector<1x8xf32> to vector<256x8xf32>
    %60 = arith.addf %57, %59 : vector<256x8xf32>
    %61 = vector.shape_cast %60 : vector<256x8xf32> to vector<16x16x8xf32>
    %c1_80 = arith.constant 1 : index
    %c1_81 = arith.constant 1 : index
    %c8 = arith.constant 8 : index
    %62 = vector.load %arg16[%c1_80, %c1_81, %c8] : memref<18x18x48xf32, #tpu.memory_space<vmem>>, vector<16x16x8xf32>
    tpu.vector_store %arg16[%c1_80, %c1_81, %c8], %61 {strides = array<i32>} : memref<18x18x48xf32, #tpu.memory_space<vmem>>, vector<16x16x8xf32>,
    %c0_82 = arith.constant 0 : index
    %c0_83 = arith.constant 0 : index
    %c24_84 = arith.constant 24 : index
    %63 = vector.load %arg16[%c0_82, %c0_83, %c24_84] : memref<18x18x48xf32, #tpu.memory_space<vmem>>, vector<16x16x8xf32>
    %64 = vector.shape_cast %63 : vector<16x16x8xf32> to vector<256x8xf32>
    %c0_85 = arith.constant 0 : index
    %c1_86 = arith.constant 1 : index
    %c24_87 = arith.constant 24 : index
    %65 = vector.load %arg16[%c0_85, %c1_86, %c24_87] : memref<18x18x48xf32, #tpu.memory_space<vmem>>, vector<16x16x8xf32>
    %66 = vector.shape_cast %65 : vector<16x16x8xf32> to vector<256x8xf32>
    %c0_88 = arith.constant 0 : index
    %c2_89 = arith.constant 2 : index
    %c24_90 = arith.constant 24 : index
    %67 = vector.load %arg16[%c0_88, %c2_89, %c24_90] : memref<18x18x48xf32, #tpu.memory_space<vmem>>, vector<16x16x8xf32>
    %68 = vector.shape_cast %67 : vector<16x16x8xf32> to vector<256x8xf32>
    %c1_91 = arith.constant 1 : index
    %c0_92 = arith.constant 0 : index
    %c24_93 = arith.constant 24 : index
    %69 = vector.load %arg16[%c1_91, %c0_92, %c24_93] : memref<18x18x48xf32, #tpu.memory_space<vmem>>, vector<16x16x8xf32>
    %70 = vector.shape_cast %69 : vector<16x16x8xf32> to vector<256x8xf32>
    %c1_94 = arith.constant 1 : index
    %c1_95 = arith.constant 1 : index
    %c24_96 = arith.constant 24 : index
    %71 = vector.load %arg16[%c1_94, %c1_95, %c24_96] : memref<18x18x48xf32, #tpu.memory_space<vmem>>, vector<16x16x8xf32>
    %72 = vector.shape_cast %71 : vector<16x16x8xf32> to vector<256x8xf32>
    %c1_97 = arith.constant 1 : index
    %c2_98 = arith.constant 2 : index
    %c24_99 = arith.constant 24 : index
    %73 = vector.load %arg16[%c1_97, %c2_98, %c24_99] : memref<18x18x48xf32, #tpu.memory_space<vmem>>, vector<16x16x8xf32>
    %74 = vector.shape_cast %73 : vector<16x16x8xf32> to vector<256x8xf32>
    %c2_100 = arith.constant 2 : index
    %c0_101 = arith.constant 0 : index
    %c24_102 = arith.constant 24 : index
    %75 = vector.load %arg16[%c2_100, %c0_101, %c24_102] : memref<18x18x48xf32, #tpu.memory_space<vmem>>, vector<16x16x8xf32>
    %76 = vector.shape_cast %75 : vector<16x16x8xf32> to vector<256x8xf32>
    %c2_103 = arith.constant 2 : index
    %c1_104 = arith.constant 1 : index
    %c24_105 = arith.constant 24 : index
    %77 = vector.load %arg16[%c2_103, %c1_104, %c24_105] : memref<18x18x48xf32, #tpu.memory_space<vmem>>, vector<16x16x8xf32>
    %78 = vector.shape_cast %77 : vector<16x16x8xf32> to vector<256x8xf32>
    %c2_106 = arith.constant 2 : index
    %c2_107 = arith.constant 2 : index
    %c24_108 = arith.constant 24 : index
    %79 = vector.load %arg16[%c2_106, %c2_107, %c24_108] : memref<18x18x48xf32, #tpu.memory_space<vmem>>, vector<16x16x8xf32>
    %80 = vector.shape_cast %79 : vector<16x16x8xf32> to vector<256x8xf32>
    %81 = tpu.concatenate %64, %66, %68, %70, %72, %74, %76, %78, %80 in 1 : vector<256x8xf32>, vector<256x8xf32>, vector<256x8xf32>, vector<256x8xf32>, vector<256x8xf32>, vector<256x8xf32>, vector<256x8xf32>, vector<256x8xf32>, vector<256x8xf32> -> vector<256x72xf32>
    %c0_109 = arith.constant 0 : index
    %c0_110 = arith.constant 0 : index
    %82 = vector.load %arg8[%c0_109, %c0_110] : memref<72x8xf32, #tpu.memory_space<vmem>>, vector<72x8xf32>
    %cst_111 = arith.constant dense<0.000000e+00> : vector<256x8xf32>
    %83 = tpu.matmul %81, %82, %cst_111 {dimension_numbers = #tpu.dot_dimension_numbers<[1], [0], [0], [1], [0, 0, 1, 1], [], []>} : vector<256x72xf32>, vector<72x8xf32>, vector<256x8xf32> -> vector<256x8xf32>
    %c0_112 = arith.constant 0 : index
    %c0_113 = arith.constant 0 : index
    %84 = vector.load %arg9[%c0_112, %c0_113] : memref<1x8xf32, #tpu.memory_space<vmem>>, vector<1x8xf32>
    %85 = vector.broadcast %84 : vector<1x8xf32> to vector<256x8xf32>
    %86 = arith.addf %83, %85 : vector<256x8xf32>
    %87 = vector.shape_cast %86 : vector<256x8xf32> to vector<16x16x8xf32>
    %c1_114 = arith.constant 1 : index
    %c1_115 = arith.constant 1 : index
    %c32 = arith.constant 32 : index
    %88 = vector.load %arg16[%c1_114, %c1_115, %c32] : memref<18x18x48xf32, #tpu.memory_space<vmem>>, vector<16x16x8xf32>
    tpu.vector_store %arg16[%c1_114, %c1_115, %c32], %87 {strides = array<i32>} : memref<18x18x48xf32, #tpu.memory_space<vmem>>, vector<16x16x8xf32>,
    %c0_116 = arith.constant 0 : index
    %c0_117 = arith.constant 0 : index
    %c8_118 = arith.constant 8 : index
    %89 = vector.load %arg16[%c0_116, %c0_117, %c8_118] : memref<18x18x48xf32, #tpu.memory_space<vmem>>, vector<16x16x8xf32>
    %90 = vector.shape_cast %89 : vector<16x16x8xf32> to vector<256x8xf32>
    %c0_119 = arith.constant 0 : index
    %c1_120 = arith.constant 1 : index
    %c8_121 = arith.constant 8 : index
    %91 = vector.load %arg16[%c0_119, %c1_120, %c8_121] : memref<18x18x48xf32, #tpu.memory_space<vmem>>, vector<16x16x8xf32>
    %92 = vector.shape_cast %91 : vector<16x16x8xf32> to vector<256x8xf32>
    %c0_122 = arith.constant 0 : index
    %c2_123 = arith.constant 2 : index
    %c8_124 = arith.constant 8 : index
    %93 = vector.load %arg16[%c0_122, %c2_123, %c8_124] : memref<18x18x48xf32, #tpu.memory_space<vmem>>, vector<16x16x8xf32>
    %94 = vector.shape_cast %93 : vector<16x16x8xf32> to vector<256x8xf32>
    %c1_125 = arith.constant 1 : index
    %c0_126 = arith.constant 0 : index
    %c8_127 = arith.constant 8 : index
    %95 = vector.load %arg16[%c1_125, %c0_126, %c8_127] : memref<18x18x48xf32, #tpu.memory_space<vmem>>, vector<16x16x8xf32>
    %96 = vector.shape_cast %95 : vector<16x16x8xf32> to vector<256x8xf32>
    %c1_128 = arith.constant 1 : index
    %c1_129 = arith.constant 1 : index
    %c8_130 = arith.constant 8 : index
    %97 = vector.load %arg16[%c1_128, %c1_129, %c8_130] : memref<18x18x48xf32, #tpu.memory_space<vmem>>, vector<16x16x8xf32>
    %98 = vector.shape_cast %97 : vector<16x16x8xf32> to vector<256x8xf32>
    %c1_131 = arith.constant 1 : index
    %c2_132 = arith.constant 2 : index
    %c8_133 = arith.constant 8 : index
    %99 = vector.load %arg16[%c1_131, %c2_132, %c8_133] : memref<18x18x48xf32, #tpu.memory_space<vmem>>, vector<16x16x8xf32>
    %100 = vector.shape_cast %99 : vector<16x16x8xf32> to vector<256x8xf32>
    %c2_134 = arith.constant 2 : index
    %c0_135 = arith.constant 0 : index
    %c8_136 = arith.constant 8 : index
    %101 = vector.load %arg16[%c2_134, %c0_135, %c8_136] : memref<18x18x48xf32, #tpu.memory_space<vmem>>, vector<16x16x8xf32>
    %102 = vector.shape_cast %101 : vector<16x16x8xf32> to vector<256x8xf32>
    %c2_137 = arith.constant 2 : index
    %c1_138 = arith.constant 1 : index
    %c8_139 = arith.constant 8 : index
    %103 = vector.load %arg16[%c2_137, %c1_138, %c8_139] : memref<18x18x48xf32, #tpu.memory_space<vmem>>, vector<16x16x8xf32>
    %104 = vector.shape_cast %103 : vector<16x16x8xf32> to vector<256x8xf32>
    %c2_140 = arith.constant 2 : index
    %c2_141 = arith.constant 2 : index
    %c8_142 = arith.constant 8 : index
    %105 = vector.load %arg16[%c2_140, %c2_141, %c8_142] : memref<18x18x48xf32, #tpu.memory_space<vmem>>, vector<16x16x8xf32>
    %106 = vector.shape_cast %105 : vector<16x16x8xf32> to vector<256x8xf32>
    %107 = tpu.concatenate %90, %92, %94, %96, %98, %100, %102, %104, %106 in 1 : vector<256x8xf32>, vector<256x8xf32>, vector<256x8xf32>, vector<256x8xf32>, vector<256x8xf32>, vector<256x8xf32>, vector<256x8xf32>, vector<256x8xf32>, vector<256x8xf32> -> vector<256x72xf32>
    %c0_143 = arith.constant 0 : index
    %c0_144 = arith.constant 0 : index
    %108 = vector.load %arg6[%c0_143, %c0_144] : memref<72x8xf32, #tpu.memory_space<vmem>>, vector<72x8xf32>
    %cst_145 = arith.constant dense<0.000000e+00> : vector<256x8xf32>
    %109 = tpu.matmul %107, %108, %cst_145 {dimension_numbers = #tpu.dot_dimension_numbers<[1], [0], [0], [1], [0, 0, 1, 1], [], []>} : vector<256x72xf32>, vector<72x8xf32>, vector<256x8xf32> -> vector<256x8xf32>
    %c0_146 = arith.constant 0 : index
    %c0_147 = arith.constant 0 : index
    %110 = vector.load %arg7[%c0_146, %c0_147] : memref<1x8xf32, #tpu.memory_space<vmem>>, vector<1x8xf32>
    %111 = vector.broadcast %110 : vector<1x8xf32> to vector<256x8xf32>
    %112 = arith.addf %109, %111 : vector<256x8xf32>
    %113 = vector.shape_cast %112 : vector<256x8xf32> to vector<16x16x8xf32>
    %c1_148 = arith.constant 1 : index
    %c1_149 = arith.constant 1 : index
    %c16 = arith.constant 16 : index
    %114 = vector.load %arg16[%c1_148, %c1_149, %c16] : memref<18x18x48xf32, #tpu.memory_space<vmem>>, vector<16x16x8xf32>
    tpu.vector_store %arg16[%c1_148, %c1_149, %c16], %113 {strides = array<i32>} : memref<18x18x48xf32, #tpu.memory_space<vmem>>, vector<16x16x8xf32>,
    %c0_150 = arith.constant 0 : index
    %c0_151 = arith.constant 0 : index
    %c32_152 = arith.constant 32 : index
    %115 = vector.load %arg16[%c0_150, %c0_151, %c32_152] : memref<18x18x48xf32, #tpu.memory_space<vmem>>, vector<16x16x8xf32>
    %116 = vector.shape_cast %115 : vector<16x16x8xf32> to vector<256x8xf32>
    %c0_153 = arith.constant 0 : index
    %c1_154 = arith.constant 1 : index
    %c32_155 = arith.constant 32 : index
    %117 = vector.load %arg16[%c0_153, %c1_154, %c32_155] : memref<18x18x48xf32, #tpu.memory_space<vmem>>, vector<16x16x8xf32>
    %118 = vector.shape_cast %117 : vector<16x16x8xf32> to vector<256x8xf32>
    %c0_156 = arith.constant 0 : index
    %c2_157 = arith.constant 2 : index
    %c32_158 = arith.constant 32 : index
    %119 = vector.load %arg16[%c0_156, %c2_157, %c32_158] : memref<18x18x48xf32, #tpu.memory_space<vmem>>, vector<16x16x8xf32>
    %120 = vector.shape_cast %119 : vector<16x16x8xf32> to vector<256x8xf32>
    %c1_159 = arith.constant 1 : index
    %c0_160 = arith.constant 0 : index
    %c32_161 = arith.constant 32 : index
    %121 = vector.load %arg16[%c1_159, %c0_160, %c32_161] : memref<18x18x48xf32, #tpu.memory_space<vmem>>, vector<16x16x8xf32>
    %122 = vector.shape_cast %121 : vector<16x16x8xf32> to vector<256x8xf32>
    %c1_162 = arith.constant 1 : index
    %c1_163 = arith.constant 1 : index
    %c32_164 = arith.constant 32 : index
    %123 = vector.load %arg16[%c1_162, %c1_163, %c32_164] : memref<18x18x48xf32, #tpu.memory_space<vmem>>, vector<16x16x8xf32>
    %124 = vector.shape_cast %123 : vector<16x16x8xf32> to vector<256x8xf32>
    %c1_165 = arith.constant 1 : index
    %c2_166 = arith.constant 2 : index
    %c32_167 = arith.constant 32 : index
    %125 = vector.load %arg16[%c1_165, %c2_166, %c32_167] : memref<18x18x48xf32, #tpu.memory_space<vmem>>, vector<16x16x8xf32>
    %126 = vector.shape_cast %125 : vector<16x16x8xf32> to vector<256x8xf32>
    %c2_168 = arith.constant 2 : index
    %c0_169 = arith.constant 0 : index
    %c32_170 = arith.constant 32 : index
    %127 = vector.load %arg16[%c2_168, %c0_169, %c32_170] : memref<18x18x48xf32, #tpu.memory_space<vmem>>, vector<16x16x8xf32>
    %128 = vector.shape_cast %127 : vector<16x16x8xf32> to vector<256x8xf32>
    %c2_171 = arith.constant 2 : index
    %c1_172 = arith.constant 1 : index
    %c32_173 = arith.constant 32 : index
    %129 = vector.load %arg16[%c2_171, %c1_172, %c32_173] : memref<18x18x48xf32, #tpu.memory_space<vmem>>, vector<16x16x8xf32>
    %130 = vector.shape_cast %129 : vector<16x16x8xf32> to vector<256x8xf32>
    %c2_174 = arith.constant 2 : index
    %c2_175 = arith.constant 2 : index
    %c32_176 = arith.constant 32 : index
    %131 = vector.load %arg16[%c2_174, %c2_175, %c32_176] : memref<18x18x48xf32, #tpu.memory_space<vmem>>, vector<16x16x8xf32>
    %132 = vector.shape_cast %131 : vector<16x16x8xf32> to vector<256x8xf32>
    %133 = tpu.concatenate %116, %118, %120, %122, %124, %126, %128, %130, %132 in 1 : vector<256x8xf32>, vector<256x8xf32>, vector<256x8xf32>, vector<256x8xf32>, vector<256x8xf32>, vector<256x8xf32>, vector<256x8xf32>, vector<256x8xf32>, vector<256x8xf32> -> vector<256x72xf32>
    %c0_177 = arith.constant 0 : index
    %c0_178 = arith.constant 0 : index
    %134 = vector.load %arg10[%c0_177, %c0_178] : memref<72x8xf32, #tpu.memory_space<vmem>>, vector<72x8xf32>
    %cst_179 = arith.constant dense<0.000000e+00> : vector<256x8xf32>
    %135 = tpu.matmul %133, %134, %cst_179 {dimension_numbers = #tpu.dot_dimension_numbers<[1], [0], [0], [1], [0, 0, 1, 1], [], []>} : vector<256x72xf32>, vector<72x8xf32>, vector<256x8xf32> -> vector<256x8xf32>
    %c0_180 = arith.constant 0 : index
    %c0_181 = arith.constant 0 : index
    %136 = vector.load %arg11[%c0_180, %c0_181] : memref<1x8xf32, #tpu.memory_space<vmem>>, vector<1x8xf32>
    %137 = vector.broadcast %136 : vector<1x8xf32> to vector<256x8xf32>
    %138 = arith.addf %135, %137 : vector<256x8xf32>
    %139 = vector.shape_cast %138 : vector<256x8xf32> to vector<16x16x8xf32>
    %c1_182 = arith.constant 1 : index
    %c1_183 = arith.constant 1 : index
    %c40 = arith.constant 40 : index
    %140 = vector.load %arg16[%c1_182, %c1_183, %c40] : memref<18x18x48xf32, #tpu.memory_space<vmem>>, vector<16x16x8xf32>
    tpu.vector_store %arg16[%c1_182, %c1_183, %c40], %139 {strides = array<i32>} : memref<18x18x48xf32, #tpu.memory_space<vmem>>, vector<16x16x8xf32>,
    %c0_184 = arith.constant 0 : index
    %c0_185 = arith.constant 0 : index
    %c0_186 = arith.constant 0 : index
    %141 = vector.load %arg16[%c0_184, %c0_185, %c0_186] : memref<18x18x48xf32, #tpu.memory_space<vmem>>, vector<16x16x48xf32>
    %142 = vector.shape_cast %141 : vector<16x16x48xf32> to vector<256x48xf32>
    %c0_187 = arith.constant 0 : index
    %c1_188 = arith.constant 1 : index
    %c0_189 = arith.constant 0 : index
    %143 = vector.load %arg16[%c0_187, %c1_188, %c0_189] : memref<18x18x48xf32, #tpu.memory_space<vmem>>, vector<16x16x48xf32>
    %144 = vector.shape_cast %143 : vector<16x16x48xf32> to vector<256x48xf32>
    %c0_190 = arith.constant 0 : index
    %c2_191 = arith.constant 2 : index
    %c0_192 = arith.constant 0 : index
    %145 = vector.load %arg16[%c0_190, %c2_191, %c0_192] : memref<18x18x48xf32, #tpu.memory_space<vmem>>, vector<16x16x48xf32>
    %146 = vector.shape_cast %145 : vector<16x16x48xf32> to vector<256x48xf32>
    %c1_193 = arith.constant 1 : index
    %c0_194 = arith.constant 0 : index
    %c0_195 = arith.constant 0 : index
    %147 = vector.load %arg16[%c1_193, %c0_194, %c0_195] : memref<18x18x48xf32, #tpu.memory_space<vmem>>, vector<16x16x48xf32>
    %148 = vector.shape_cast %147 : vector<16x16x48xf32> to vector<256x48xf32>
    %c1_196 = arith.constant 1 : index
    %c1_197 = arith.constant 1 : index
    %c0_198 = arith.constant 0 : index
    %149 = vector.load %arg16[%c1_196, %c1_197, %c0_198] : memref<18x18x48xf32, #tpu.memory_space<vmem>>, vector<16x16x48xf32>
    %150 = vector.shape_cast %149 : vector<16x16x48xf32> to vector<256x48xf32>
    %c1_199 = arith.constant 1 : index
    %c2_200 = arith.constant 2 : index
    %c0_201 = arith.constant 0 : index
    %151 = vector.load %arg16[%c1_199, %c2_200, %c0_201] : memref<18x18x48xf32, #tpu.memory_space<vmem>>, vector<16x16x48xf32>
    %152 = vector.shape_cast %151 : vector<16x16x48xf32> to vector<256x48xf32>
    %c2_202 = arith.constant 2 : index
    %c0_203 = arith.constant 0 : index
    %c0_204 = arith.constant 0 : index
    %153 = vector.load %arg16[%c2_202, %c0_203, %c0_204] : memref<18x18x48xf32, #tpu.memory_space<vmem>>, vector<16x16x48xf32>
    %154 = vector.shape_cast %153 : vector<16x16x48xf32> to vector<256x48xf32>
    %c2_205 = arith.constant 2 : index
    %c1_206 = arith.constant 1 : index
    %c0_207 = arith.constant 0 : index
    %155 = vector.load %arg16[%c2_205, %c1_206, %c0_207] : memref<18x18x48xf32, #tpu.memory_space<vmem>>, vector<16x16x48xf32>
    %156 = vector.shape_cast %155 : vector<16x16x48xf32> to vector<256x48xf32>
    %c2_208 = arith.constant 2 : index
    %c2_209 = arith.constant 2 : index
    %c0_210 = arith.constant 0 : index
    %157 = vector.load %arg16[%c2_208, %c2_209, %c0_210] : memref<18x18x48xf32, #tpu.memory_space<vmem>>, vector<16x16x48xf32>
    %158 = vector.shape_cast %157 : vector<16x16x48xf32> to vector<256x48xf32>
    %159 = tpu.concatenate %142, %144, %146, %148, %150, %152, %154, %156, %158 in 1 : vector<256x48xf32>, vector<256x48xf32>, vector<256x48xf32>, vector<256x48xf32>, vector<256x48xf32>, vector<256x48xf32>, vector<256x48xf32>, vector<256x48xf32>, vector<256x48xf32> -> vector<256x432xf32>
    %c0_211 = arith.constant 0 : index
    %c0_212 = arith.constant 0 : index
    %160 = vector.load %arg12[%c0_211, %c0_212] : memref<432x8xf32, #tpu.memory_space<vmem>>, vector<432x8xf32>
    %cst_213 = arith.constant dense<0.000000e+00> : vector<256x8xf32>
    %161 = tpu.matmul %159, %160, %cst_213 {dimension_numbers = #tpu.dot_dimension_numbers<[1], [0], [0], [1], [0, 0, 1, 1], [], []>} : vector<256x432xf32>, vector<432x8xf32>, vector<256x8xf32> -> vector<256x8xf32>
    %c0_214 = arith.constant 0 : index
    %c0_215 = arith.constant 0 : index
    %162 = vector.load %arg13[%c0_214, %c0_215] : memref<1x8xf32, #tpu.memory_space<vmem>>, vector<1x8xf32>
    %163 = vector.broadcast %162 : vector<1x8xf32> to vector<256x8xf32>
    %164 = arith.addf %161, %163 : vector<256x8xf32>
    %165 = vector.shape_cast %164 : vector<256x8xf32> to vector<16x16x8xf32>
    %c0_216 = arith.constant 0 : index
    %c0_217 = arith.constant 0 : index
    %c0_218 = arith.constant 0 : index
    %c0_219 = arith.constant 0 : index
    %166 = vector.load %arg14[%c0_216, %c0_217, %c0_218, %c0_219] : memref<1x16x16x8xf32, #tpu.memory_space<vmem>>, vector<1x16x16x8xf32>
    %167 = vector.shape_cast %166 : vector<1x16x16x8xf32> to vector<16x16x8xf32>
    %168 = vector.shape_cast %165 : vector<16x16x8xf32> to vector<1x16x16x8xf32>
    tpu.vector_store %arg14[%c0_216, %c0_217, %c0_218, %c0_219], %168 {strides = array<i32>} : memref<1x16x16x8xf32, #tpu.memory_space<vmem>>, vector<1x16x16x8xf32>,
    return
  }
  func.func @transform_0(%arg0: i32) -> (i32, i32, i32, i32) {
    %c0_i32 = arith.constant 0 : i32
    %c0_i32_0 = arith.constant 0 : i32
    %c0_i32_1 = arith.constant 0 : i32
    %c0_i32_2 = arith.constant 0 : i32
    return %arg0, %c0_i32, %c0_i32_0, %c0_i32_1 : i32, i32, i32, i32
  }
  func.func @transform_1(%arg0: i32) -> (i32, i32) {
    %c0_i32 = arith.constant 0 : i32
    %c0_i32_0 = arith.constant 0 : i32
    %c0_i32_1 = arith.constant 0 : i32
    return %c0_i32, %c0_i32_0 : i32, i32
  }
  func.func @transform_2(%arg0: i32) -> (i32, i32) {
    %c0_i32 = arith.constant 0 : i32
    %c0_i32_0 = arith.constant 0 : i32
    %c0_i32_1 = arith.constant 0 : i32
    return %c0_i32, %c0_i32_0 : i32, i32
  }
  func.func @transform_3(%arg0: i32) -> (i32, i32) {
    %c0_i32 = arith.constant 0 : i32
    %c0_i32_0 = arith.constant 0 : i32
    %c0_i32_1 = arith.constant 0 : i32
    return %c0_i32, %c0_i32_0 : i32, i32
  }
  func.func @transform_4(%arg0: i32) -> (i32, i32) {
    %c0_i32 = arith.constant 0 : i32
    %c0_i32_0 = arith.constant 0 : i32
    %c0_i32_1 = arith.constant 0 : i32
    return %c0_i32, %c0_i32_0 : i32, i32
  }
  func.func @transform_5(%arg0: i32) -> (i32, i32) {
    %c0_i32 = arith.constant 0 : i32
    %c0_i32_0 = arith.constant 0 : i32
    %c0_i32_1 = arith.constant 0 : i32
    return %c0_i32, %c0_i32_0 : i32, i32
  }
  func.func @transform_6(%arg0: i32) -> (i32, i32) {
    %c0_i32 = arith.constant 0 : i32
    %c0_i32_0 = arith.constant 0 : i32
    %c0_i32_1 = arith.constant 0 : i32
    return %c0_i32, %c0_i32_0 : i32, i32
  }
  func.func @transform_7(%arg0: i32) -> (i32, i32) {
    %c0_i32 = arith.constant 0 : i32
    %c0_i32_0 = arith.constant 0 : i32
    %c0_i32_1 = arith.constant 0 : i32
    return %c0_i32, %c0_i32_0 : i32, i32
  }
  func.func @transform_8(%arg0: i32) -> (i32, i32) {
    %c0_i32 = arith.constant 0 : i32
    %c0_i32_0 = arith.constant 0 : i32
    %c0_i32_1 = arith.constant 0 : i32
    return %c0_i32, %c0_i32_0 : i32, i32
  }
  func.func @transform_9(%arg0: i32) -> (i32, i32) {
    %c0_i32 = arith.constant 0 : i32
    %c0_i32_0 = arith.constant 0 : i32
    %c0_i32_1 = arith.constant 0 : i32
    return %c0_i32, %c0_i32_0 : i32, i32
  }
  func.func @transform_10(%arg0: i32) -> (i32, i32) {
    %c0_i32 = arith.constant 0 : i32
    %c0_i32_0 = arith.constant 0 : i32
    %c0_i32_1 = arith.constant 0 : i32
    return %c0_i32, %c0_i32_0 : i32, i32
  }
  func.func @transform_11(%arg0: i32) -> (i32, i32) {
    %c0_i32 = arith.constant 0 : i32
    %c0_i32_0 = arith.constant 0 : i32
    %c0_i32_1 = arith.constant 0 : i32
    return %c0_i32, %c0_i32_0 : i32, i32
  }
  func.func @transform_12(%arg0: i32) -> (i32, i32) {
    %c0_i32 = arith.constant 0 : i32
    %c0_i32_0 = arith.constant 0 : i32
    %c0_i32_1 = arith.constant 0 : i32
    return %c0_i32, %c0_i32_0 : i32, i32
  }
  func.func @transform_13(%arg0: i32) -> (i32, i32, i32, i32) {
    %c0_i32 = arith.constant 0 : i32
    %c0_i32_0 = arith.constant 0 : i32
    %c0_i32_1 = arith.constant 0 : i32
    %c0_i32_2 = arith.constant 0 : i32
    return %arg0, %c0_i32, %c0_i32_0, %c0_i32_1 : i32, i32, i32, i32
  }
}

</mosaic_0001>

<llo_original>
// kernel: tpu_custom_call.1
$region0: #{tpu_custom_call.1}
  #allocation0 [shape = 'u32[]', space=smem, size = 0x4, offset = 0x4, fixed_abs, tag = 'smem constant byte address 0x4 - core index']
  #allocation1 [shape = 'u32[144,128]{1,0:T(1,128)}', space=vmem, size = 0x12000, scoped, tag = 'internal scratch']
  #allocation2 [shape = 'f32[18,18,4]{2,1,0:T(8,128)}', space=vmem, size = 0x36000, scoped, tag = 'scratch operand']
  #allocation3 [shape = 'f32[18,18,48]{2,1,0:T(8,128)}', space=vmem, size = 0x36000, scoped, tag = 'scratch operand']
  %s0 = inlined_call_operand.vmem [shape: f32[2,16,16,4], index: 0, kind: input, shape index: {}]
  %s1 = inlined_call_operand.vmem [shape: f32[36,16], index: 1, kind: input, shape index: {}]
  %s2 = inlined_call_operand.vmem [shape: f32[1,16], index: 2, kind: input, shape index: {}]
  %s3 = inlined_call_operand.vmem [shape: f32[72,8], index: 3, kind: input, shape index: {}]
  %s4 = inlined_call_operand.vmem [shape: f32[1,8], index: 4, kind: input, shape index: {}]
  %s5 = inlined_call_operand.vmem [shape: f32[72,8], index: 5, kind: input, shape index: {}]
  %s6 = inlined_call_operand.vmem [shape: f32[1,8], index: 6, kind: input, shape index: {}]
  %s7 = inlined_call_operand.vmem [shape: f32[72,8], index: 7, kind: input, shape index: {}]
  %s8 = inlined_call_operand.vmem [shape: f32[1,8], index: 8, kind: input, shape index: {}]
  %s9 = inlined_call_operand.vmem [shape: f32[72,8], index: 9, kind: input, shape index: {}]
  %s10 = inlined_call_operand.vmem [shape: f32[1,8], index: 10, kind: input, shape index: {}]
  %s11 = inlined_call_operand.vmem [shape: f32[432,8], index: 11, kind: input, shape index: {}]
  %s12 = inlined_call_operand.vmem [shape: f32[1,8], index: 12, kind: input, shape index: {}]
  %s13 = inlined_call_operand.vmem [shape: f32[2,16,16,8], index: 13, kind: output, shape index: {}]
  %s14 = sld [smem:[#allocation0]]
  $region85: #{tpu_custom_call.1} parent=0
    _
  %s16 = ssub.s32 1, %s14
  %s17 = scalar_select 0, %s16, %s14
  loop: start=0, step=1, limit=4
  $region2: #{tpu_custom_call.1} parent=0 // loop_pre_header
    _
  $region3: #{tpu_custom_call.1} parent=0 // loop_header
    %s19 = sphi 0, %s23
    %p20 = scmp.ge.s32.totalorder %s19, 4
    %s29 = sphi 0, %s31
    %s32 = sphi 0, %s29
    %s33 = sphi 0, %s32
    %s49 = sphi 0, %s33
    %s53 = sphi 0, %s53
    %s55 = sphi 0, %s53
    %s56 = sphi 0, %s55
    %s70 = sphi 0, %s56
    %s74 = sphi 0, %s74
    %s76 = sphi 0, %s74
    %s77 = sphi 0, %s76
    %s91 = sphi 0, %s77
    %s95 = sphi 0, %s95
    %s97 = sphi 0, %s95
    %s98 = sphi 0, %s97
    %s112 = sphi 0, %s98
    %s116 = sphi 0, %s116
    %s118 = sphi 0, %s116
    %s119 = sphi 0, %s118
    %s133 = sphi 0, %s119
    %s137 = sphi 0, %s137
    %s139 = sphi 0, %s137
    %s140 = sphi 0, %s139
    %s154 = sphi 0, %s140
    %s158 = sphi 0, %s158
    %s160 = sphi 0, %s158
    %s161 = sphi 0, %s160
    %s175 = sphi 0, %s161
    %s179 = sphi 0, %s179
    %s181 = sphi 0, %s179
    %s182 = sphi 0, %s181
    %s196 = sphi 0, %s182
    %s200 = sphi 0, %s200
    %s202 = sphi 0, %s200
    %s203 = sphi 0, %s202
    %s217 = sphi 0, %s203
    %s221 = sphi 0, %s221
    %s223 = sphi 0, %s221
    %s224 = sphi 0, %s223
    %s238 = sphi 0, %s224
    %s242 = sphi 0, %s242
    %s244 = sphi 0, %s242
    %s245 = sphi 0, %s244
    %s259 = sphi 0, %s245
    %s263 = sphi 0, %s263
    %s265 = sphi 0, %s263
    %s266 = sphi 0, %s265
    %s280 = sphi 0, %s266
    %s284 = sphi 0, %s284
    %s286 = sphi 0, %s284
    %s287 = sphi 0, %s286
    %s301 = sphi 0, %s287
    %s307 = sphi 0, %s309
    %s310 = sphi 0, %s307
    %s311 = sphi 0, %s310
    %s327 = sphi 0, %s311
  $region4: #{tpu_custom_call.1} parent=0 // loop_header_branch
    %22 = sbr.rel (%p20) target = $region8
  $region5: #{tpu_custom_call.1} parent=0 // loop_body
    %s24 = ssub.s32 %s19, 1
    %s25 = ssub.s32 %s19, 2
    %s26 = sadd.s32 %s19, 1
    %s27 = ssub.s32 %s19, %s26
    %p28 = scmp.eq.s32.totalorder %s27, 0
    %s30 = sadd.s32 %s29, 1
    %s31 = scalar_select %p28, %s29, %s30
    %p34 = pneg %p28
    %p35 = scmp.eq.s32.totalorder %s19, 1
    %p36 = por %p34, %p35
    %p37 = scmp.ne.s32.totalorder %s29, %s32
    %p38 = scmp.eq.s32.totalorder %s19, 0
    %p39 = por %p37, %p38
    %p40 = scmp.ne.s32.totalorder %s29, %s32
    %p41 = scmp.eq.s32.totalorder %s24, 1
    %p42 = por %p40, %p41
    %p43 = scmp.ne.s32.totalorder %s32, %s33
    %p44 = scmp.eq.s32.totalorder %s24, 0
    %p45 = por %p43, %p44
    %p46 = scmp.ne.s32.totalorder %s32, %s33
    %p47 = scmp.eq.s32.totalorder %s25, 1
    %p48 = por %p46, %p47
    %p50 = scmp.ne.s32.totalorder %s33, %s49
    %p51 = scmp.eq.s32.totalorder %s25, 0
    %p52 = por %p50, %p51
    %s54 = sadd.s32 %s53, 1
    %p57 = scmp.eq.s32.totalorder %s19, 1
    %p58 = scmp.ne.s32.totalorder %s53, %s55
    %p59 = scmp.eq.s32.totalorder %s19, 0
    %p60 = por %p58, %p59
    %p61 = scmp.ne.s32.totalorder %s53, %s55
    %p62 = scmp.eq.s32.totalorder %s24, 1
    %p63 = por %p61, %p62
    %p64 = scmp.ne.s32.totalorder %s55, %s56
    %p65 = scmp.eq.s32.totalorder %s24, 0
    %p66 = por %p64, %p65
    %p67 = scmp.ne.s32.totalorder %s55, %s56
    %p68 = scmp.eq.s32.totalorder %s25, 1
    %p69 = por %p67, %p68
    %p71 = scmp.ne.s32.totalorder %s56, %s70
    %p72 = scmp.eq.s32.totalorder %s25, 0
    %p73 = por %p71, %p72
    %s75 = sadd.s32 %s74, 1
    %p78 = scmp.eq.s32.totalorder %s19, 1
    %p79 = scmp.ne.s32.totalorder %s74, %s76
    %p80 = scmp.eq.s32.totalorder %s19, 0
    %p81 = por %p79, %p80
    %p82 = scmp.ne.s32.totalorder %s74, %s76
    %p83 = scmp.eq.s32.totalorder %s24, 1
    %p84 = por %p82, %p83
    %p85 = scmp.ne.s32.totalorder %s76, %s77
    %p86 = scmp.eq.s32.totalorder %s24, 0
    %p87 = por %p85, %p86
    %p88 = scmp.ne.s32.totalorder %s76, %s77
    %p89 = scmp.eq.s32.totalorder %s25, 1
    %p90 = por %p88, %p89
    %p92 = scmp.ne.s32.totalorder %s77, %s91
    %p93 = scmp.eq.s32.totalorder %s25, 0
    %p94 = por %p92, %p93
    %s96 = sadd.s32 %s95, 1
    %p99 = scmp.eq.s32.totalorder %s19, 1
    %p100 = scmp.ne.s32.totalorder %s95, %s97
    %p101 = scmp.eq.s32.totalorder %s19, 0
    %p102 = por %p100, %p101
    %p103 = scmp.ne.s32.totalorder %s95, %s97
    %p104 = scmp.eq.s32.totalorder %s24, 1
    %p105 = por %p103, %p104
    %p106 = scmp.ne.s32.totalorder %s97, %s98
    %p107 = scmp.eq.s32.totalorder %s24, 0
    %p108 = por %p106, %p107
    %p109 = scmp.ne.s32.totalorder %s97, %s98
    %p110 = scmp.eq.s32.totalorder %s25, 1
    %p111 = por %p109, %p110
    %p113 = scmp.ne.s32.totalorder %s98, %s112
    %p114 = scmp.eq.s32.totalorder %s25, 0
    %p115 = por %p113, %p114
    %s117 = sadd.s32 %s116, 1
    %p120 = scmp.eq.s32.totalorder %s19, 1
    %p121 = scmp.ne.s32.totalorder %s116, %s118
    %p122 = scmp.eq.s32.totalorder %s19, 0
    %p123 = por %p121, %p122
    %p124 = scmp.ne.s32.totalorder %s116, %s118
    %p125 = scmp.eq.s32.totalorder %s24, 1
    %p126 = por %p124, %p125
    %p127 = scmp.ne.s32.totalorder %s118, %s119
    %p128 = scmp.eq.s32.totalorder %s24, 0
    %p129 = por %p127, %p128
    %p130 = scmp.ne.s32.totalorder %s118, %s119
    %p131 = scmp.eq.s32.totalorder %s25, 1
    %p132 = por %p130, %p131
    %p134 = scmp.ne.s32.totalorder %s119, %s133
    %p135 = scmp.eq.s32.totalorder %s25, 0
    %p136 = por %p134, %p135
    %s138 = sadd.s32 %s137, 1
    %p141 = scmp.eq.s32.totalorder %s19, 1
    %p142 = scmp.ne.s32.totalorder %s137, %s139
    %p143 = scmp.eq.s32.totalorder %s19, 0
    %p144 = por %p142, %p143
    %p145 = scmp.ne.s32.totalorder %s137, %s139
    %p146 = scmp.eq.s32.totalorder %s24, 1
    %p147 = por %p145, %p146
    %p148 = scmp.ne.s32.totalorder %s139, %s140
    %p149 = scmp.eq.s32.totalorder %s24, 0
    %p150 = por %p148, %p149
    %p151 = scmp.ne.s32.totalorder %s139, %s140
    %p152 = scmp.eq.s32.totalorder %s25, 1
    %p153 = por %p151, %p152
    %p155 = scmp.ne.s32.totalorder %s140, %s154
    %p156 = scmp.eq.s32.totalorder %s25, 0
    %p157 = por %p155, %p156
    %s159 = sadd.s32 %s158, 1
    %p162 = scmp.eq.s32.totalorder %s19, 1
    %p163 = scmp.ne.s32.totalorder %s158, %s160
    %p164 = scmp.eq.s32.totalorder %s19, 0
    %p165 = por %p163, %p164
    %p166 = scmp.ne.s32.totalorder %s158, %s160
    %p167 = scmp.eq.s32.totalorder %s24, 1
    %p168 = por %p166, %p167
    %p169 = scmp.ne.s32.totalorder %s160, %s161
    %p170 = scmp.eq.s32.totalorder %s24, 0
    %p171 = por %p169, %p170
    %p172 = scmp.ne.s32.totalorder %s160, %s161
    %p173 = scmp.eq.s32.totalorder %s25, 1
    %p174 = por %p172, %p173
    %p176 = scmp.ne.s32.totalorder %s161, %s175
    %p177 = scmp.eq.s32.totalorder %s25, 0
    %p178 = por %p176, %p177
    %s180 = sadd.s32 %s179, 1
    %p183 = scmp.eq.s32.totalorder %s19, 1
    %p184 = scmp.ne.s32.totalorder %s179, %s181
    %p185 = scmp.eq.s32.totalorder %s19, 0
    %p186 = por %p184, %p185
    %p187 = scmp.ne.s32.totalorder %s179, %s181
    %p188 = scmp.eq.s32.totalorder %s24, 1
    %p189 = por %p187, %p188
    %p190 = scmp.ne.s32.totalorder %s181, %s182
    %p191 = scmp.eq.s32.totalorder %s24, 0
    %p192 = por %p190, %p191
    %p193 = scmp.ne.s32.totalorder %s181, %s182
    %p194 = scmp.eq.s32.totalorder %s25, 1
    %p195 = por %p193, %p194
    %p197 = scmp.ne.s32.totalorder %s182, %s196
    %p198 = scmp.eq.s32.totalorder %s25, 0
    %p199 = por %p197, %p198
    %s201 = sadd.s32 %s200, 1
    %p204 = scmp.eq.s32.totalorder %s19, 1
    %p205 = scmp.ne.s32.totalorder %s200, %s202
    %p206 = scmp.eq.s32.totalorder %s19, 0
    %p207 = por %p205, %p206
    %p208 = scmp.ne.s32.totalorder %s200, %s202
    %p209 = scmp.eq.s32.totalorder %s24, 1
    %p210 = por %p208, %p209
    %p211 = scmp.ne.s32.totalorder %s202, %s203
    %p212 = scmp.eq.s32.totalorder %s24, 0
    %p213 = por %p211, %p212
    %p214 = scmp.ne.s32.totalorder %s202, %s203
    %p215 = scmp.eq.s32.totalorder %s25, 1
    %p216 = por %p214, %p215
    %p218 = scmp.ne.s32.totalorder %s203, %s217
    %p219 = scmp.eq.s32.totalorder %s25, 0
    %p220 = por %p218, %p219
    %s222 = sadd.s32 %s221, 1
    %p225 = scmp.eq.s32.totalorder %s19, 1
    %p226 = scmp.ne.s32.totalorder %s221, %s223
    %p227 = scmp.eq.s32.totalorder %s19, 0
    %p228 = por %p226, %p227
    %p229 = scmp.ne.s32.totalorder %s221, %s223
    %p230 = scmp.eq.s32.totalorder %s24, 1
    %p231 = por %p229, %p230
    %p232 = scmp.ne.s32.totalorder %s223, %s224
    %p233 = scmp.eq.s32.totalorder %s24, 0
    %p234 = por %p232, %p233
    %p235 = scmp.ne.s32.totalorder %s223, %s224
    %p236 = scmp.eq.s32.totalorder %s25, 1
    %p237 = por %p235, %p236
    %p239 = scmp.ne.s32.totalorder %s224, %s238
    %p240 = scmp.eq.s32.totalorder %s25, 0
    %p241 = por %p239, %p240
    %s243 = sadd.s32 %s242, 1
    %p246 = scmp.eq.s32.totalorder %s19, 1
    %p247 = scmp.ne.s32.totalorder %s242, %s244
    %p248 = scmp.eq.s32.totalorder %s19, 0
    %p249 = por %p247, %p248
    %p250 = scmp.ne.s32.totalorder %s242, %s244
    %p251 = scmp.eq.s32.totalorder %s24, 1
    %p252 = por %p250, %p251
    %p253 = scmp.ne.s32.totalorder %s244, %s245
    %p254 = scmp.eq.s32.totalorder %s24, 0
    %p255 = por %p253, %p254
    %p256 = scmp.ne.s32.totalorder %s244, %s245
    %p257 = scmp.eq.s32.totalorder %s25, 1
    %p258 = por %p256, %p257
    %p260 = scmp.ne.s32.totalorder %s245, %s259
    %p261 = scmp.eq.s32.totalorder %s25, 0
    %p262 = por %p260, %p261
    %s264 = sadd.s32 %s263, 1
    %p267 = scmp.eq.s32.totalorder %s19, 1
    %p268 = scmp.ne.s32.totalorder %s263, %s265
    %p269 = scmp.eq.s32.totalorder %s19, 0
    %p270 = por %p268, %p269
    %p271 = scmp.ne.s32.totalorder %s263, %s265
    %p272 = scmp.eq.s32.totalorder %s24, 1
    %p273 = por %p271, %p272
    %p274 = scmp.ne.s32.totalorder %s265, %s266
    %p275 = scmp.eq.s32.totalorder %s24, 0
    %p276 = por %p274, %p275
    %p277 = scmp.ne.s32.totalorder %s265, %s266
    %p278 = scmp.eq.s32.totalorder %s25, 1
    %p279 = por %p277, %p278
    %p281 = scmp.ne.s32.totalorder %s266, %s280
    %p282 = scmp.eq.s32.totalorder %s25, 0
    %p283 = por %p281, %p282
    %s285 = sadd.s32 %s284, 1
    %p288 = scmp.eq.s32.totalorder %s19, 1
    %p289 = scmp.ne.s32.totalorder %s284, %s286
    %p290 = scmp.eq.s32.totalorder %s19, 0
    %p291 = por %p289, %p290
    %p292 = scmp.ne.s32.totalorder %s284, %s286
    %p293 = scmp.eq.s32.totalorder %s24, 1
    %p294 = por %p292, %p293
    %p295 = scmp.ne.s32.totalorder %s286, %s287
    %p296 = scmp.eq.s32.totalorder %s24, 0
    %p297 = por %p295, %p296
    %p298 = scmp.ne.s32.totalorder %s286, %s287
    %p299 = scmp.eq.s32.totalorder %s25, 1
    %p300 = por %p298, %p299
    %p302 = scmp.ne.s32.totalorder %s287, %s301
    %p303 = scmp.eq.s32.totalorder %s25, 0
    %p304 = por %p302, %p303
    %s305 = ssub.s32 %s19, %s26
    %p306 = scmp.eq.s32.totalorder %s305, 0
    %s308 = sadd.s32 %s307, 1
    %s309 = scalar_select %p306, %s307, %s308
    %p312 = pneg %p306
    %p313 = scmp.eq.s32.totalorder %s19, 1
    %p314 = por %p312, %p313
    %p315 = scmp.ne.s32.totalorder %s307, %s310
    %p316 = scmp.eq.s32.totalorder %s19, 0
    %p317 = por %p315, %p316
    %p318 = scmp.ne.s32.totalorder %s307, %s310
    %p319 = scmp.eq.s32.totalorder %s24, 1
    %p320 = por %p318, %p319
    %p321 = scmp.ne.s32.totalorder %s310, %s311
    %p322 = scmp.eq.s32.totalorder %s24, 0
    %p323 = por %p321, %p322
    %p324 = scmp.ne.s32.totalorder %s310, %s311
    %p325 = scmp.eq.s32.totalorder %s25, 1
    %p326 = por %p324, %p325
    %p328 = scmp.ne.s32.totalorder %s311, %s327
    %p329 = scmp.eq.s32.totalorder %s25, 0
    %p330 = por %p328, %p329
    %p331 = scmp.le.s32.totalorder 1, %s19
    %p332 = scmp.lt.s32.totalorder %s19, 3
    %p333 = pnand %p331, %p332
    %p334 = pneg %p333
    // Predicated region
    $region9: #{tpu_custom_call.1} parent=5 // pred_check
      _
    $region10: #{tpu_custom_call.1} parent=5 // pred_check_branch
      %336 = sbr.rel (%p333) target = $region12
    $region11: #{tpu_custom_call.1} parent=5 // pred_region
      %s337 = ssub.s32 %s19, 1
      // Predicated region
      $region13: #{tpu_custom_call.1} parent=11 // pred_check
        %p338 = pneg %p66
      $region14: #{tpu_custom_call.1} parent=11 // pred_check_branch
        %340 = sbr.rel (%p338) target = $region16
      $region15: #{tpu_custom_call.1} parent=11 // pred_region
        _
      $region16: #{tpu_custom_call.1} parent=11 // pred_fallthru
        _
      // Predicated region
      $region17: #{tpu_custom_call.1} parent=11 // pred_check
        %p341 = pneg %p87
      $region18: #{tpu_custom_call.1} parent=11 // pred_check_branch
        %343 = sbr.rel (%p341) target = $region20
      $region19: #{tpu_custom_call.1} parent=11 // pred_region
        _
      $region20: #{tpu_custom_call.1} parent=11 // pred_fallthru
        _
      // Predicated region
      $region21: #{tpu_custom_call.1} parent=11 // pred_check
        %p344 = pneg %p108
      $region22: #{tpu_custom_call.1} parent=11 // pred_check_branch
        %346 = sbr.rel (%p344) target = $region24
      $region23: #{tpu_custom_call.1} parent=11 // pred_region
        _
      $region24: #{tpu_custom_call.1} parent=11 // pred_fallthru
        _
      // Predicated region
      $region25: #{tpu_custom_call.1} parent=11 // pred_check
        %p347 = pneg %p129
      $region26: #{tpu_custom_call.1} parent=11 // pred_check_branch
        %349 = sbr.rel (%p347) target = $region28
      $region27: #{tpu_custom_call.1} parent=11 // pred_region
        _
      $region28: #{tpu_custom_call.1} parent=11 // pred_fallthru
        _
      // Predicated region
      $region29: #{tpu_custom_call.1} parent=11 // pred_check
        %p350 = pneg %p150
      $region30: #{tpu_custom_call.1} parent=11 // pred_check_branch
        %352 = sbr.rel (%p350) target = $region32
      $region31: #{tpu_custom_call.1} parent=11 // pred_region
        _
      $region32: #{tpu_custom_call.1} parent=11 // pred_fallthru
        _
      // Predicated region
      $region33: #{tpu_custom_call.1} parent=11 // pred_check
        %p353 = pneg %p171
      $region34: #{tpu_custom_call.1} parent=11 // pred_check_branch
        %355 = sbr.rel (%p353) target = $region36
      $region35: #{tpu_custom_call.1} parent=11 // pred_region
        _
      $region36: #{tpu_custom_call.1} parent=11 // pred_fallthru
        _
      // Predicated region
      $region37: #{tpu_custom_call.1} parent=11 // pred_check
        %p356 = pneg %p192
      $region38: #{tpu_custom_call.1} parent=11 // pred_check_branch
        %358 = sbr.rel (%p356) target = $region40
      $region39: #{tpu_custom_call.1} parent=11 // pred_region
        _
      $region40: #{tpu_custom_call.1} parent=11 // pred_fallthru
        _
      // Predicated region
      $region41: #{tpu_custom_call.1} parent=11 // pred_check
        %p359 = pneg %p213
      $region42: #{tpu_custom_call.1} parent=11 // pred_check_branch
        %361 = sbr.rel (%p359) target = $region44
      $region43: #{tpu_custom_call.1} parent=11 // pred_region
        _
      $region44: #{tpu_custom_call.1} parent=11 // pred_fallthru
        _
      // Predicated region
      $region45: #{tpu_custom_call.1} parent=11 // pred_check
        %p362 = pneg %p234
      $region46: #{tpu_custom_call.1} parent=11 // pred_check_branch
        %364 = sbr.rel (%p362) target = $region48
      $region47: #{tpu_custom_call.1} parent=11 // pred_region
        _
      $region48: #{tpu_custom_call.1} parent=11 // pred_fallthru
        _
      // Predicated region
      $region49: #{tpu_custom_call.1} parent=11 // pred_check
        %p365 = pneg %p255
      $region50: #{tpu_custom_call.1} parent=11 // pred_check_branch
        %367 = sbr.rel (%p365) target = $region52
      $region51: #{tpu_custom_call.1} parent=11 // pred_region
        _
      $region52: #{tpu_custom_call.1} parent=11 // pred_fallthru
        _
      // Predicated region
      $region53: #{tpu_custom_call.1} parent=11 // pred_check
        %p368 = pneg %p276
      $region54: #{tpu_custom_call.1} parent=11 // pred_check_branch
        %370 = sbr.rel (%p368) target = $region56
      $region55: #{tpu_custom_call.1} parent=11 // pred_region
        _
      $region56: #{tpu_custom_call.1} parent=11 // pred_fallthru
        _
      // Predicated region
      $region57: #{tpu_custom_call.1} parent=11 // pred_check
        %p371 = pneg %p297
      $region58: #{tpu_custom_call.1} parent=11 // pred_check_branch
        %373 = sbr.rel (%p371) target = $region60
      $region59: #{tpu_custom_call.1} parent=11 // pred_region
        _
      $region60: #{tpu_custom_call.1} parent=11 // pred_fallthru
        _
    $region12: #{tpu_custom_call.1} parent=5 // pred_fallthru
      _
    %p374 = scmp.lt.s32.totalorder %s19, 2
    // Predicated region
    $region61: #{tpu_custom_call.1} parent=5 // pred_check
      %p375 = pneg %p374
    $region62: #{tpu_custom_call.1} parent=5 // pred_check_branch
      %377 = sbr.rel (%p375) target = $region64
    $region63: #{tpu_custom_call.1} parent=5 // pred_region
      // Predicated region
      $region65: #{tpu_custom_call.1} parent=63 // pred_check
        %p378 = pneg %p39
      $region66: #{tpu_custom_call.1} parent=63 // pred_check_branch
        %380 = sbr.rel (%p378) target = $region68
      $region67: #{tpu_custom_call.1} parent=63 // pred_region
        %p381 = scmp.lt.s32.totalorder %s19, 1
        %s382 = scalar_select %p381, %s19, 1
        %s383 = smul.addr %s382, 32
        %s384 = smul.addr %s383, 8
        %s385 = scalar_lea.vmem %s0, %s384
      $region68: #{tpu_custom_call.1} parent=63 // pred_fallthru
        _
    $region64: #{tpu_custom_call.1} parent=5 // pred_fallthru
      _
    %p386 = scmp.le.s32.totalorder 1, %s19
    %p387 = scmp.lt.s32.totalorder %s19, 3
    %p388 = pnand %p386, %p387
    %p389 = pneg %p388
    // Predicated region
    $region69: #{tpu_custom_call.1} parent=5 // pred_check
      _
    $region70: #{tpu_custom_call.1} parent=5 // pred_check_branch
      %391 = sbr.rel (%p388) target = $region72
    $region71: #{tpu_custom_call.1} parent=5 // pred_region
      %s392 = ssub.s32 %s19, 1
      %p393 = scmp.lt.s32.totalorder %s24, 1
      %s394 = scalar_select %p393, %s24, 1
      %s395 = smul.addr %s394, 32
      %s396 = smul.addr %s395, 8
      %s397 = scalar_lea.vmem %s0, %s396
      %p398 = pneg %p45
      %p399 = pneg %p42
      %p400 = pneg %p66
      %p401 = pneg %p63
      %p402 = pneg %p87
      %p403 = pneg %p84
      %p404 = pneg %p108
      %p405 = pneg %p105
      %p406 = pneg %p129
      %p407 = pneg %p126
      %p408 = pneg %p150
      %p409 = pneg %p147
      %p410 = pneg %p171
      %p411 = pneg %p168
      %p412 = pneg %p192
      %p413 = pneg %p189
      %p414 = pneg %p213
      %p415 = pneg %p210
      %p416 = pneg %p234
      %p417 = pneg %p231
      %p418 = pneg %p255
      %p419 = pneg %p252
      %p420 = pneg %p276
      %p421 = pneg %p273
      %p422 = pneg %p297
      %p423 = pneg %p294
      %p424 = pneg %p323
      %p425 = pneg %p320
      %p426 = scmp.lt.s32.totalorder %s24, 1
      %s427 = scalar_select %p426, %s24, 1
      %s428 = smul.addr %s427, 32
      %s429 = smul.addr %s428, 8
      %s430 = scalar_lea.vmem %s13, %s429
      %p431 = scmp.lt.s32.totalorder %s24, 1
      %s432 = scalar_select %p431, %s24, 1
      %s433 = smul.addr %s432, 32
      %s434 = smul.addr %s433, 8
      %s435 = scalar_lea.vmem %s0, %s434
      %p436 = scmp.lt.s32.totalorder %s24, 1
      %s437 = scalar_select %p436, %s24, 1
      %s438 = smul.addr %s437, 32
      %s439 = smul.addr %s438, 8
      %s440 = scalar_lea.vmem %s13, %s439
      %vm441 = vcmask 31744
      %442 = vst.msk [vmem:[#allocation2] sm:$0xff] %vm441, 0.0
      %443 = vst.msk [vmem:[#allocation2 + $0x8] sm:$0xff] %vm441, 0.0
      %vm444 = vcmask 25600
      %445 = vst.msk [vmem:[#allocation2 + $0x10] sm:$0x3] %vm444, 0.0
      %446 = vst.msk [vmem:[#allocation2 + $0x18] sm:$0xff] %vm441, 0.0
      %447 = vst.msk [vmem:[#allocation2 + $0x20] sm:$0xff] %vm441, 0.0
      %448 = vst.msk [vmem:[#allocation2 + $0x28] sm:$0x3] %vm444, 0.0
      %449 = vst.msk [vmem:[#allocation2 + $0x30] sm:$0xff] %vm441, 0.0
      %450 = vst.msk [vmem:[#allocation2 + $0x38] sm:$0xff] %vm441, 0.0
      %451 = vst.msk [vmem:[#allocation2 + $0x40] sm:$0x3] %vm444, 0.0
      %452 = vst.msk [vmem:[#allocation2 + $0x48] sm:$0xff] %vm441, 0.0
      %453 = vst.msk [vmem:[#allocation2 + $0x50] sm:$0xff] %vm441, 0.0
      %454 = vst.msk [vmem:[#allocation2 + $0x58] sm:$0x3] %vm444, 0.0
      %455 = vst.msk [vmem:[#allocation2 + $0x60] sm:$0xff] %vm441, 0.0
      %456 = vst.msk [vmem:[#allocation2 + $0x68] sm:$0xff] %vm441, 0.0
      %457 = vst.msk [vmem:[#allocation2 + $0x70] sm:$0x3] %vm444, 0.0
      %458 = vst.msk [vmem:[#allocation2 + $0x78] sm:$0xff] %vm441, 0.0
      %459 = vst.msk [vmem:[#allocation2 + $0x80] sm:$0xff] %vm441, 0.0
      %460 = vst.msk [vmem:[#allocation2 + $0x88] sm:$0x3] %vm444, 0.0
      %461 = vst.msk [vmem:[#allocation2 + $0x90] sm:$0xff] %vm441, 0.0
      %462 = vst.msk [vmem:[#allocation2 + $0x98] sm:$0xff] %vm441, 0.0
      %463 = vst.msk [vmem:[#allocation2 + $0xa0] sm:$0x3] %vm444, 0.0
      %464 = vst.msk [vmem:[#allocation2 + $0xa8] sm:$0xff] %vm441, 0.0
      %465 = vst.msk [vmem:[#allocation2 + $0xb0] sm:$0xff] %vm441, 0.0
      %466 = vst.msk [vmem:[#allocation2 + $0xb8] sm:$0x3] %vm444, 0.0
      %467 = vst.msk [vmem:[#allocation2 + $0xc0] sm:$0xff] %vm441, 0.0
      %468 = vst.msk [vmem:[#allocation2 + $0xc8] sm:$0xff] %vm441, 0.0
      %469 = vst.msk [vmem:[#allocation2 + $0xd0] sm:$0x3] %vm444, 0.0
      %470 = vst.msk [vmem:[#allocation2 + $0xd8] sm:$0xff] %vm441, 0.0
      %471 = vst.msk [vmem:[#allocation2 + $0xe0] sm:$0xff] %vm441, 0.0
      %472 = vst.msk [vmem:[#allocation2 + $0xe8] sm:$0x3] %vm444, 0.0
      %473 = vst.msk [vmem:[#allocation2 + $0xf0] sm:$0xff] %vm441, 0.0
      %474 = vst.msk [vmem:[#allocation2 + $0xf8] sm:$0xff] %vm441, 0.0
      %475 = vst.msk [vmem:[#allocation2 + $0x100] sm:$0x3] %vm444, 0.0
      %476 = vst.msk [vmem:[#allocation2 + $0x108] sm:$0xff] %vm441, 0.0
      %477 = vst.msk [vmem:[#allocation2 + $0x110] sm:$0xff] %vm441, 0.0
      %478 = vst.msk [vmem:[#allocation2 + $0x118] sm:$0x3] %vm444, 0.0
      %479 = vst.msk [vmem:[#allocation2 + $0x120] sm:$0xff] %vm441, 0.0
      %480 = vst.msk [vmem:[#allocation2 + $0x128] sm:$0xff] %vm441, 0.0
      %481 = vst.msk [vmem:[#allocation2 + $0x130] sm:$0x3] %vm444, 0.0
      %482 = vst.msk [vmem:[#allocation2 + $0x138] sm:$0xff] %vm441, 0.0
      %483 = vst.msk [vmem:[#allocation2 + $0x140] sm:$0xff] %vm441, 0.0
      %484 = vst.msk [vmem:[#allocation2 + $0x148] sm:$0x3] %vm444, 0.0
      %485 = vst.msk [vmem:[#allocation2 + $0x150] sm:$0xff] %vm441, 0.0
      %486 = vst.msk [vmem:[#allocation2 + $0x158] sm:$0xff] %vm441, 0.0
      %487 = vst.msk [vmem:[#allocation2 + $0x160] sm:$0x3] %vm444, 0.0
      %488 = vst.msk [vmem:[#allocation2 + $0x168] sm:$0xff] %vm441, 0.0
      %489 = vst.msk [vmem:[#allocation2 + $0x170] sm:$0xff] %vm441, 0.0
      %490 = vst.msk [vmem:[#allocation2 + $0x178] sm:$0x3] %vm444, 0.0
      %491 = vst.msk [vmem:[#allocation2 + $0x180] sm:$0xff] %vm441, 0.0
      %492 = vst.msk [vmem:[#allocation2 + $0x188] sm:$0xff] %vm441, 0.0
      %493 = vst.msk [vmem:[#allocation2 + $0x190] sm:$0x3] %vm444, 0.0
      %494 = vst.msk [vmem:[#allocation2 + $0x198] sm:$0xff] %vm441, 0.0
      %495 = vst.msk [vmem:[#allocation2 + $0x1a0] sm:$0xff] %vm441, 0.0
      %496 = vst.msk [vmem:[#allocation2 + $0x1a8] sm:$0x3] %vm444, 0.0
      %vm497 = vcmask 392192
      %498 = vst.msk [vmem:[#allocation3] sm:$0xff] %vm497, 0.0
      %499 = vst.msk [vmem:[#allocation3 + $0x8] sm:$0xff] %vm497, 0.0
      %vm500 = vcmask 386048
      %501 = vst.msk [vmem:[#allocation3 + $0x10] sm:$0x3] %vm500, 0.0
      %502 = vst.msk [vmem:[#allocation3 + $0x18] sm:$0xff] %vm497, 0.0
      %503 = vst.msk [vmem:[#allocation3 + $0x20] sm:$0xff] %vm497, 0.0
      %504 = vst.msk [vmem:[#allocation3 + $0x28] sm:$0x3] %vm500, 0.0
      %505 = vst.msk [vmem:[#allocation3 + $0x30] sm:$0xff] %vm497, 0.0
      %506 = vst.msk [vmem:[#allocation3 + $0x38] sm:$0xff] %vm497, 0.0
      %507 = vst.msk [vmem:[#allocation3 + $0x40] sm:$0x3] %vm500, 0.0
      %508 = vst.msk [vmem:[#allocation3 + $0x48] sm:$0xff] %vm497, 0.0
      %509 = vst.msk [vmem:[#allocation3 + $0x50] sm:$0xff] %vm497, 0.0
      %510 = vst.msk [vmem:[#allocation3 + $0x58] sm:$0x3] %vm500, 0.0
      %511 = vst.msk [vmem:[#allocation3 + $0x60] sm:$0xff] %vm497, 0.0
      %512 = vst.msk [vmem:[#allocation3 + $0x68] sm:$0xff] %vm497, 0.0
      %513 = vst.msk [vmem:[#allocation3 + $0x70] sm:$0x3] %vm500, 0.0
      %514 = vst.msk [vmem:[#allocation3 + $0x78] sm:$0xff] %vm497, 0.0
      %515 = vst.msk [vmem:[#allocation3 + $0x80] sm:$0xff] %vm497, 0.0
      %516 = vst.msk [vmem:[#allocation3 + $0x88] sm:$0x3] %vm500, 0.0
      %517 = vst.msk [vmem:[#allocation3 + $0x90] sm:$0xff] %vm497, 0.0
      %518 = vst.msk [vmem:[#allocation3 + $0x98] sm:$0xff] %vm497, 0.0
      %519 = vst.msk [vmem:[#allocation3 + $0xa0] sm:$0x3] %vm500, 0.0
      %520 = vst.msk [vmem:[#allocation3 + $0xa8] sm:$0xff] %vm497, 0.0
      %521 = vst.msk [vmem:[#allocation3 + $0xb0] sm:$0xff] %vm497, 0.0
      %522 = vst.msk [vmem:[#allocation3 + $0xb8] sm:$0x3] %vm500, 0.0
      %523 = vst.msk [vmem:[#allocation3 + $0xc0] sm:$0xff] %vm497, 0.0
      %524 = vst.msk [vmem:[#allocation3 + $0xc8] sm:$0xff] %vm497, 0.0
      %525 = vst.msk [vmem:[#allocation3 + $0xd0] sm:$0x3] %vm500, 0.0
      %526 = vst.msk [vmem:[#allocation3 + $0xd8] sm:$0xff] %vm497, 0.0
      %527 = vst.msk [vmem:[#allocation3 + $0xe0] sm:$0xff] %vm497, 0.0
      %528 = vst.msk [vmem:[#allocation3 + $0xe8] sm:$0x3] %vm500, 0.0
      %529 = vst.msk [vmem:[#allocation3 + $0xf0] sm:$0xff] %vm497, 0.0
      %530 = vst.msk [vmem:[#allocation3 + $0xf8] sm:$0xff] %vm497, 0.0
      %531 = vst.msk [vmem:[#allocation3 + $0x100] sm:$0x3] %vm500, 0.0
      %532 = vst.msk [vmem:[#allocation3 + $0x108] sm:$0xff] %vm497, 0.0
      %533 = vst.msk [vmem:[#allocation3 + $0x110] sm:$0xff] %vm497, 0.0
      %534 = vst.msk [vmem:[#allocation3 + $0x118] sm:$0x3] %vm500, 0.0
      %535 = vst.msk [vmem:[#allocation3 + $0x120] sm:$0xff] %vm497, 0.0
      %536 = vst.msk [vmem:[#allocation3 + $0x128] sm:$0xff] %vm497, 0.0
      %537 = vst.msk [vmem:[#allocation3 + $0x130] sm:$0x3] %vm500, 0.0
      %538 = vst.msk [vmem:[#allocation3 + $0x138] sm:$0xff] %vm497, 0.0
      %539 = vst.msk [vmem:[#allocation3 + $0x140] sm:$0xff] %vm497, 0.0
      %540 = vst.msk [vmem:[#allocation3 + $0x148] sm:$0x3] %vm500, 0.0
      %541 = vst.msk [vmem:[#allocation3 + $0x150] sm:$0xff] %vm497, 0.0
      %542 = vst.msk [vmem:[#allocation3 + $0x158] sm:$0xff] %vm497, 0.0
      %543 = vst.msk [vmem:[#allocation3 + $0x160] sm:$0x3] %vm500, 0.0
      %544 = vst.msk [vmem:[#allocation3 + $0x168] sm:$0xff] %vm497, 0.0
      %545 = vst.msk [vmem:[#allocation3 + $0x170] sm:$0xff] %vm497, 0.0
      %546 = vst.msk [vmem:[#allocation3 + $0x178] sm:$0x3] %vm500, 0.0
      %547 = vst.msk [vmem:[#allocation3 + $0x180] sm:$0xff] %vm497, 0.0
      %548 = vst.msk [vmem:[#allocation3 + $0x188] sm:$0xff] %vm497, 0.0
      %549 = vst.msk [vmem:[#allocation3 + $0x190] sm:$0x3] %vm500, 0.0
      %550 = vst.msk [vmem:[#allocation3 + $0x198] sm:$0xff] %vm497, 0.0
      %551 = vst.msk [vmem:[#allocation3 + $0x1a0] sm:$0xff] %vm497, 0.0
      %552 = vst.msk [vmem:[#allocation3 + $0x1a8] sm:$0x3] %vm500, 0.0
      %v553 = vld [vmem:[%s435] sm:$0xff]
      %v554 = vld [vmem:[%s435 + $0x8] sm:$0xff]
      %v555 = vld [vmem:[%s435 + $0x10] sm:$0xff]
      %v556 = vld [vmem:[%s435 + $0x18] sm:$0xff]
      %v557 = vld [vmem:[%s435 + $0x20] sm:$0xff]
      %v558 = vld [vmem:[%s435 + $0x28] sm:$0xff]
      %v559 = vld [vmem:[%s435 + $0x30] sm:$0xff]
      %v560 = vld [vmem:[%s435 + $0x38] sm:$0xff]
      %v561 = vld [vmem:[%s435 + $0x40] sm:$0xff]
      %v562 = vld [vmem:[%s435 + $0x48] sm:$0xff]
      %v563 = vld [vmem:[%s435 + $0x50] sm:$0xff]
      %v564 = vld [vmem:[%s435 + $0x58] sm:$0xff]
      %v565 = vld [vmem:[%s435 + $0x60] sm:$0xff]
      %v566 = vld [vmem:[%s435 + $0x68] sm:$0xff]
      %v567 = vld [vmem:[%s435 + $0x70] sm:$0xff]
      %v568 = vld [vmem:[%s435 + $0x78] sm:$0xff]
      %v569 = vld [vmem:[%s435 + $0x80] sm:$0xff]
      %v570 = vld [vmem:[%s435 + $0x88] sm:$0xff]
      %v571 = vld [vmem:[%s435 + $0x90] sm:$0xff]
      %v572 = vld [vmem:[%s435 + $0x98] sm:$0xff]
      %v573 = vld [vmem:[%s435 + $0xa0] sm:$0xff]
      %v574 = vld [vmem:[%s435 + $0xa8] sm:$0xff]
      %v575 = vld [vmem:[%s435 + $0xb0] sm:$0xff]
      %v576 = vld [vmem:[%s435 + $0xb8] sm:$0xff]
      %v577 = vld [vmem:[%s435 + $0xc0] sm:$0xff]
      %v578 = vld [vmem:[%s435 + $0xc8] sm:$0xff]
      %v579 = vld [vmem:[%s435 + $0xd0] sm:$0xff]
      %v580 = vld [vmem:[%s435 + $0xd8] sm:$0xff]
      %v581 = vld [vmem:[%s435 + $0xe0] sm:$0xff]
      %v582 = vld [vmem:[%s435 + $0xe8] sm:$0xff]
      %v583 = vld [vmem:[%s435 + $0xf0] sm:$0xff]
      %v584 = vld [vmem:[%s435 + $0xf8] sm:$0xff]
      %s585 = scalar_lea.vmem [#allocation2], 24
      %586 = vst.msk [vmem:[%s585 + $0x1] sm:$0xff] %vm441, %v553
      %587 = vst.msk [vmem:[%s585 + $0x9] sm:$0xff] %vm441, %v554
      %588 = vst.msk [vmem:[%s585 + $0x19] sm:$0xff] %vm441, %v555
      %589 = vst.msk [vmem:[%s585 + $0x21] sm:$0xff] %vm441, %v556
      %590 = vst.msk [vmem:[%s585 + $0x31] sm:$0xff] %vm441, %v557
      %591 = vst.msk [vmem:[%s585 + $0x39] sm:$0xff] %vm441, %v558
      %592 = vst.msk [vmem:[%s585 + $0x49] sm:$0xff] %vm441, %v559
      %593 = vst.msk [vmem:[%s585 + $0x51] sm:$0xff] %vm441, %v560
      %594 = vst.msk [vmem:[%s585 + $0x61] sm:$0xff] %vm441, %v561
      %595 = vst.msk [vmem:[%s585 + $0x69] sm:$0xff] %vm441, %v562
      %596 = vst.msk [vmem:[%s585 + $0x79] sm:$0xff] %vm441, %v563
      %597 = vst.msk [vmem:[%s585 + $0x81] sm:$0xff] %vm441, %v564
      %598 = vst.msk [vmem:[%s585 + $0x91] sm:$0xff] %vm441, %v565
      %599 = vst.msk [vmem:[%s585 + $0x99] sm:$0xff] %vm441, %v566
      %600 = vst.msk [vmem:[%s585 + $0xa9] sm:$0xff] %vm441, %v567
      %601 = vst.msk [vmem:[%s585 + $0xb1] sm:$0xff] %vm441, %v568
      %602 = vst.msk [vmem:[%s585 + $0xc1] sm:$0xff] %vm441, %v569
      %603 = vst.msk [vmem:[%s585 + $0xc9] sm:$0xff] %vm441, %v570
      %604 = vst.msk [vmem:[%s585 + $0xd9] sm:$0xff] %vm441, %v571
      %605 = vst.msk [vmem:[%s585 + $0xe1] sm:$0xff] %vm441, %v572
      %606 = vst.msk [vmem:[%s585 + $0xf1] sm:$0xff] %vm441, %v573
      %607 = vst.msk [vmem:[%s585 + $0xf9] sm:$0xff] %vm441, %v574
      %608 = vst.msk [vmem:[%s585 + $0x109] sm:$0xff] %vm441, %v575
      %609 = vst.msk [vmem:[%s585 + $0x111] sm:$0xff] %vm441, %v576
      %610 = vst.msk [vmem:[%s585 + $0x121] sm:$0xff] %vm441, %v577
      %611 = vst.msk [vmem:[%s585 + $0x129] sm:$0xff] %vm441, %v578
      %612 = vst.msk [vmem:[%s585 + $0x139] sm:$0xff] %vm441, %v579
      %613 = vst.msk [vmem:[%s585 + $0x141] sm:$0xff] %vm441, %v580
      %614 = vst.msk [vmem:[%s585 + $0x151] sm:$0xff] %vm441, %v581
      %615 = vst.msk [vmem:[%s585 + $0x159] sm:$0xff] %vm441, %v582
      %616 = vst.msk [vmem:[%s585 + $0x169] sm:$0xff] %vm441, %v583
      %617 = vst.msk [vmem:[%s585 + $0x171] sm:$0xff] %vm441, %v584
      %v618 = vld [vmem:[#allocation2] sm:$0xff]
      %v619 = vld [vmem:[#allocation2 + $0x8] sm:$0xff]
      %v620 = vld [vmem:[#allocation2 + $0x18] sm:$0xff]
      %v621 = vld [vmem:[#allocation2 + $0x20] sm:$0xff]
      %v622 = vld [vmem:[#allocation2 + $0x30] sm:$0xff]
      %v623 = vld [vmem:[#allocation2 + $0x38] sm:$0xff]
      %v624 = vld [vmem:[#allocation2 + $0x48] sm:$0xff]
      %v625 = vld [vmem:[#allocation2 + $0x50] sm:$0xff]
      %v626 = vld [vmem:[#allocation2 + $0x60] sm:$0xff]
      %v627 = vld [vmem:[#allocation2 + $0x68] sm:$0xff]
      %v628 = vld [vmem:[#allocation2 + $0x78] sm:$0xff]
      %v629 = vld [vmem:[#allocation2 + $0x80] sm:$0xff]
      %v630 = vld [vmem:[#allocation2 + $0x90] sm:$0xff]
      %v631 = vld [vmem:[#allocation2 + $0x98] sm:$0xff]
      %v632 = vld [vmem:[#allocation2 + $0xa8] sm:$0xff]
      %v633 = vld [vmem:[#allocation2 + $0xb0] sm:$0xff]
      %v634 = vld [vmem:[#allocation2 + $0xc0] sm:$0xff]
      %v635 = vld [vmem:[#allocation2 + $0xc8] sm:$0xff]
      %v636 = vld [vmem:[#allocation2 + $0xd8] sm:$0xff]
      %v637 = vld [vmem:[#allocation2 + $0xe0] sm:$0xff]
      %v638 = vld [vmem:[#allocation2 + $0xf0] sm:$0xff]
      %v639 = vld [vmem:[#allocation2 + $0xf8] sm:$0xff]
      %v640 = vld [vmem:[#allocation2 + $0x108] sm:$0xff]
      %v641 = vld [vmem:[#allocation2 + $0x110] sm:$0xff]
      %v642 = vld [vmem:[#allocation2 + $0x120] sm:$0xff]
      %v643 = vld [vmem:[#allocation2 + $0x128] sm:$0xff]
      %v644 = vld [vmem:[#allocation2 + $0x138] sm:$0xff]
      %v645 = vld [vmem:[#allocation2 + $0x140] sm:$0xff]
      %v646 = vld [vmem:[#allocation2 + $0x150] sm:$0xff]
      %v647 = vld [vmem:[#allocation2 + $0x158] sm:$0xff]
      %v648 = vld [vmem:[#allocation2 + $0x168] sm:$0xff]
      %v649 = vld [vmem:[#allocation2 + $0x170] sm:$0xff]
      %v650 = vld [vmem:[#allocation2 + $0x1] sm:$0xff]
      %v651 = vld [vmem:[#allocation2 + $0x9] sm:$0xff]
      %v652 = vld [vmem:[#allocation2 + $0x19] sm:$0xff]
      %v653 = vld [vmem:[#allocation2 + $0x21] sm:$0xff]
      %v654 = vld [vmem:[#allocation2 + $0x31] sm:$0xff]
      %v655 = vld [vmem:[#allocation2 + $0x39] sm:$0xff]
      %v656 = vld [vmem:[#allocation2 + $0x49] sm:$0xff]
      %v657 = vld [vmem:[#allocation2 + $0x51] sm:$0xff]
      %v658 = vld [vmem:[#allocation2 + $0x61] sm:$0xff]
      %v659 = vld [vmem:[#allocation2 + $0x69] sm:$0xff]
      %v660 = vld [vmem:[#allocation2 + $0x79] sm:$0xff]
      %v661 = vld [vmem:[#allocation2 + $0x81] sm:$0xff]
      %v662 = vld [vmem:[#allocation2 + $0x91] sm:$0xff]
      %v663 = vld [vmem:[#allocation2 + $0x99] sm:$0xff]
      %v664 = vld [vmem:[#allocation2 + $0xa9] sm:$0xff]
      %v665 = vld [vmem:[#allocation2 + $0xb1] sm:$0xff]
      %v666 = vld [vmem:[#allocation2 + $0xc1] sm:$0xff]
      %v667 = vld [vmem:[#allocation2 + $0xc9] sm:$0xff]
      %v668 = vld [vmem:[#allocation2 + $0xd9] sm:$0xff]
      %v669 = vld [vmem:[#allocation2 + $0xe1] sm:$0xff]
      %v670 = vld [vmem:[#allocation2 + $0xf1] sm:$0xff]
      %v671 = vld [vmem:[#allocation2 + $0xf9] sm:$0xff]
      %v672 = vld [vmem:[#allocation2 + $0x109] sm:$0xff]
      %v673 = vld [vmem:[#allocation2 + $0x111] sm:$0xff]
      %v674 = vld [vmem:[#allocation2 + $0x121] sm:$0xff]
      %v675 = vld [vmem:[#allocation2 + $0x129] sm:$0xff]
      %v676 = vld [vmem:[#allocation2 + $0x139] sm:$0xff]
      %v677 = vld [vmem:[#allocation2 + $0x141] sm:$0xff]
      %v678 = vld [vmem:[#allocation2 + $0x151] sm:$0xff]
      %v679 = vld [vmem:[#allocation2 + $0x159] sm:$0xff]
      %v680 = vld [vmem:[#allocation2 + $0x169] sm:$0xff]
      %v681 = vld [vmem:[#allocation2 + $0x171] sm:$0xff]
      %v682 = vld [vmem:[#allocation2 + $0x2] sm:$0xff]
      %v683 = vld [vmem:[#allocation2 + $0xa] sm:$0xff]
      %v684 = vld [vmem:[#allocation2 + $0x1a] sm:$0xff]
      %v685 = vld [vmem:[#allocation2 + $0x22] sm:$0xff]
      %v686 = vld [vmem:[#allocation2 + $0x32] sm:$0xff]
      %v687 = vld [vmem:[#allocation2 + $0x3a] sm:$0xff]
      %v688 = vld [vmem:[#allocation2 + $0x4a] sm:$0xff]
      %v689 = vld [vmem:[#allocation2 + $0x52] sm:$0xff]
      %v690 = vld [vmem:[#allocation2 + $0x62] sm:$0xff]
      %v691 = vld [vmem:[#allocation2 + $0x6a] sm:$0xff]
      %v692 = vld [vmem:[#allocation2 + $0x7a] sm:$0xff]
      %v693 = vld [vmem:[#allocation2 + $0x82] sm:$0xff]
      %v694 = vld [vmem:[#allocation2 + $0x92] sm:$0xff]
      %v695 = vld [vmem:[#allocation2 + $0x9a] sm:$0xff]
      %v696 = vld [vmem:[#allocation2 + $0xaa] sm:$0xff]
      %v697 = vld [vmem:[#allocation2 + $0xb2] sm:$0xff]
      %v698 = vld [vmem:[#allocation2 + $0xc2] sm:$0xff]
      %v699 = vld [vmem:[#allocation2 + $0xca] sm:$0xff]
      %v700 = vld [vmem:[#allocation2 + $0xda] sm:$0xff]
      %v701 = vld [vmem:[#allocation2 + $0xe2] sm:$0xff]
      %v702 = vld [vmem:[#allocation2 + $0xf2] sm:$0xff]
      %v703 = vld [vmem:[#allocation2 + $0xfa] sm:$0xff]
      %v704 = vld [vmem:[#allocation2 + $0x10a] sm:$0xff]
      %v705 = vld [vmem:[#allocation2 + $0x112] sm:$0xff]
      %v706 = vld [vmem:[#allocation2 + $0x122] sm:$0xff]
      %v707 = vld [vmem:[#allocation2 + $0x12a] sm:$0xff]
      %v708 = vld [vmem:[#allocation2 + $0x13a] sm:$0xff]
      %v709 = vld [vmem:[#allocation2 + $0x142] sm:$0xff]
      %v710 = vld [vmem:[#allocation2 + $0x152] sm:$0xff]
      %v711 = vld [vmem:[#allocation2 + $0x15a] sm:$0xff]
      %v712 = vld [vmem:[#allocation2 + $0x16a] sm:$0xff]
      %v713 = vld [vmem:[#allocation2 + $0x172] sm:$0xff]
      %v714 = vld [vmem:[%s585] sm:$0xff]
      %v715 = vld [vmem:[%s585 + $0x8] sm:$0xff]
      %v716 = vld [vmem:[%s585 + $0x18] sm:$0xff]
      %v717 = vld [vmem:[%s585 + $0x20] sm:$0xff]
      %v718 = vld [vmem:[%s585 + $0x30] sm:$0xff]
      %v719 = vld [vmem:[%s585 + $0x38] sm:$0xff]
      %v720 = vld [vmem:[%s585 + $0x48] sm:$0xff]
      %v721 = vld [vmem:[%s585 + $0x50] sm:$0xff]
      %v722 = vld [vmem:[%s585 + $0x60] sm:$0xff]
      %v723 = vld [vmem:[%s585 + $0x68] sm:$0xff]
      %v724 = vld [vmem:[%s585 + $0x78] sm:$0xff]
      %v725 = vld [vmem:[%s585 + $0x80] sm:$0xff]
      %v726 = vld [vmem:[%s585 + $0x90] sm:$0xff]
      %v727 = vld [vmem:[%s585 + $0x98] sm:$0xff]
      %v728 = vld [vmem:[%s585 + $0xa8] sm:$0xff]
      %v729 = vld [vmem:[%s585 + $0xb0] sm:$0xff]
      %v730 = vld [vmem:[%s585 + $0xc0] sm:$0xff]
      %v731 = vld [vmem:[%s585 + $0xc8] sm:$0xff]
      %v732 = vld [vmem:[%s585 + $0xd8] sm:$0xff]
      %v733 = vld [vmem:[%s585 + $0xe0] sm:$0xff]
      %v734 = vld [vmem:[%s585 + $0xf0] sm:$0xff]
      %v735 = vld [vmem:[%s585 + $0xf8] sm:$0xff]
      %v736 = vld [vmem:[%s585 + $0x108] sm:$0xff]
      %v737 = vld [vmem:[%s585 + $0x110] sm:$0xff]
      %v738 = vld [vmem:[%s585 + $0x120] sm:$0xff]
      %v739 = vld [vmem:[%s585 + $0x128] sm:$0xff]
      %v740 = vld [vmem:[%s585 + $0x138] sm:$0xff]
      %v741 = vld [vmem:[%s585 + $0x140] sm:$0xff]
      %v742 = vld [vmem:[%s585 + $0x150] sm:$0xff]
      %v743 = vld [vmem:[%s585 + $0x158] sm:$0xff]
      %v744 = vld [vmem:[%s585 + $0x168] sm:$0xff]
      %v745 = vld [vmem:[%s585 + $0x170] sm:$0xff]
      %v746 = vld [vmem:[%s585 + $0x1] sm:$0xff]
      %v747 = vld [vmem:[%s585 + $0x9] sm:$0xff]
      %v748 = vld [vmem:[%s585 + $0x19] sm:$0xff]
      %v749 = vld [vmem:[%s585 + $0x21] sm:$0xff]
      %v750 = vld [vmem:[%s585 + $0x31] sm:$0xff]
      %v751 = vld [vmem:[%s585 + $0x39] sm:$0xff]
      %v752 = vld [vmem:[%s585 + $0x49] sm:$0xff]
      %v753 = vld [vmem:[%s585 + $0x51] sm:$0xff]
      %v754 = vld [vmem:[%s585 + $0x61] sm:$0xff]
      %v755 = vld [vmem:[%s585 + $0x69] sm:$0xff]
      %v756 = vld [vmem:[%s585 + $0x79] sm:$0xff]
      %v757 = vld [vmem:[%s585 + $0x81] sm:$0xff]
      %v758 = vld [vmem:[%s585 + $0x91] sm:$0xff]
      %v759 = vld [vmem:[%s585 + $0x99] sm:$0xff]
      %v760 = vld [vmem:[%s585 + $0xa9] sm:$0xff]
      %v761 = vld [vmem:[%s585 + $0xb1] sm:$0xff]
      %v762 = vld [vmem:[%s585 + $0xc1] sm:$0xff]
      %v763 = vld [vmem:[%s585 + $0xc9] sm:$0xff]
      %v764 = vld [vmem:[%s585 + $0xd9] sm:$0xff]
      %v765 = vld [vmem:[%s585 + $0xe1] sm:$0xff]
      %v766 = vld [vmem:[%s585 + $0xf1] sm:$0xff]
      %v767 = vld [vmem:[%s585 + $0xf9] sm:$0xff]
      %v768 = vld [vmem:[%s585 + $0x109] sm:$0xff]
      %v769 = vld [vmem:[%s585 + $0x111] sm:$0xff]
      %v770 = vld [vmem:[%s585 + $0x121] sm:$0xff]
      %v771 = vld [vmem:[%s585 + $0x129] sm:$0xff]
      %v772 = vld [vmem:[%s585 + $0x139] sm:$0xff]
      %v773 = vld [vmem:[%s585 + $0x141] sm:$0xff]
      %v774 = vld [vmem:[%s585 + $0x151] sm:$0xff]
      %v775 = vld [vmem:[%s585 + $0x159] sm:$0xff]
      %v776 = vld [vmem:[%s585 + $0x169] sm:$0xff]
      %v777 = vld [vmem:[%s585 + $0x171] sm:$0xff]
      %v778 = vld [vmem:[%s585 + $0x2] sm:$0xff]
      %v779 = vld [vmem:[%s585 + $0xa] sm:$0xff]
      %v780 = vld [vmem:[%s585 + $0x1a] sm:$0xff]
      %v781 = vld [vmem:[%s585 + $0x22] sm:$0xff]
      %v782 = vld [vmem:[%s585 + $0x32] sm:$0xff]
      %v783 = vld [vmem:[%s585 + $0x3a] sm:$0xff]
      %v784 = vld [vmem:[%s585 + $0x4a] sm:$0xff]
      %v785 = vld [vmem:[%s585 + $0x52] sm:$0xff]
      %v786 = vld [vmem:[%s585 + $0x62] sm:$0xff]
      %v787 = vld [vmem:[%s585 + $0x6a] sm:$0xff]
      %v788 = vld [vmem:[%s585 + $0x7a] sm:$0xff]
      %v789 = vld [vmem:[%s585 + $0x82] sm:$0xff]
      %v790 = vld [vmem:[%s585 + $0x92] sm:$0xff]
      %v791 = vld [vmem:[%s585 + $0x9a] sm:$0xff]
      %v792 = vld [vmem:[%s585 + $0xaa] sm:$0xff]
      %v793 = vld [vmem:[%s585 + $0xb2] sm:$0xff]
      %v794 = vld [vmem:[%s585 + $0xc2] sm:$0xff]
      %v795 = vld [vmem:[%s585 + $0xca] sm:$0xff]
      %v796 = vld [vmem:[%s585 + $0xda] sm:$0xff]
      %v797 = vld [vmem:[%s585 + $0xe2] sm:$0xff]
      %v798 = vld [vmem:[%s585 + $0xf2] sm:$0xff]
      %v799 = vld [vmem:[%s585 + $0xfa] sm:$0xff]
      %v800 = vld [vmem:[%s585 + $0x10a] sm:$0xff]
      %v801 = vld [vmem:[%s585 + $0x112] sm:$0xff]
      %v802 = vld [vmem:[%s585 + $0x122] sm:$0xff]
      %v803 = vld [vmem:[%s585 + $0x12a] sm:$0xff]
      %v804 = vld [vmem:[%s585 + $0x13a] sm:$0xff]
      %v805 = vld [vmem:[%s585 + $0x142] sm:$0xff]
      %v806 = vld [vmem:[%s585 + $0x152] sm:$0xff]
      %v807 = vld [vmem:[%s585 + $0x15a] sm:$0xff]
      %v808 = vld [vmem:[%s585 + $0x16a] sm:$0xff]
      %v809 = vld [vmem:[%s585 + $0x172] sm:$0xff]
      %s810 = scalar_lea.vmem [#allocation2], 48
      %v811 = vld [vmem:[%s810] sm:$0xff]
      %v812 = vld [vmem:[%s810 + $0x8] sm:$0xff]
      %v813 = vld [vmem:[%s810 + $0x18] sm:$0xff]
      %v814 = vld [vmem:[%s810 + $0x20] sm:$0xff]
      %v815 = vld [vmem:[%s810 + $0x30] sm:$0xff]
      %v816 = vld [vmem:[%s810 + $0x38] sm:$0xff]
      %v817 = vld [vmem:[%s810 + $0x48] sm:$0xff]
      %v818 = vld [vmem:[%s810 + $0x50] sm:$0xff]
      %v819 = vld [vmem:[%s810 + $0x60] sm:$0xff]
      %v820 = vld [vmem:[%s810 + $0x68] sm:$0xff]
      %v821 = vld [vmem:[%s810 + $0x78] sm:$0xff]
      %v822 = vld [vmem:[%s810 + $0x80] sm:$0xff]
      %v823 = vld [vmem:[%s810 + $0x90] sm:$0xff]
      %v824 = vld [vmem:[%s810 + $0x98] sm:$0xff]
      %v825 = vld [vmem:[%s810 + $0xa8] sm:$0xff]
      %v826 = vld [vmem:[%s810 + $0xb0] sm:$0xff]
      %v827 = vld [vmem:[%s810 + $0xc0] sm:$0xff]
      %v828 = vld [vmem:[%s810 + $0xc8] sm:$0xff]
      %v829 = vld [vmem:[%s810 + $0xd8] sm:$0xff]
      %v830 = vld [vmem:[%s810 + $0xe0] sm:$0xff]
      %v831 = vld [vmem:[%s810 + $0xf0] sm:$0xff]
      %v832 = vld [vmem:[%s810 + $0xf8] sm:$0xff]
      %v833 = vld [vmem:[%s810 + $0x108] sm:$0xff]
      %v834 = vld [vmem:[%s810 + $0x110] sm:$0xff]
      %v835 = vld [vmem:[%s810 + $0x120] sm:$0xff]
      %v836 = vld [vmem:[%s810 + $0x128] sm:$0xff]
      %v837 = vld [vmem:[%s810 + $0x138] sm:$0xff]
      %v838 = vld [vmem:[%s810 + $0x140] sm:$0xff]
      %v839 = vld [vmem:[%s810 + $0x150] sm:$0xff]
      %v840 = vld [vmem:[%s810 + $0x158] sm:$0xff]
      %v841 = vld [vmem:[%s810 + $0x168] sm:$0xff]
      %v842 = vld [vmem:[%s810 + $0x170] sm:$0xff]
      %v843 = vld [vmem:[%s810 + $0x1] sm:$0xff]
      %v844 = vld [vmem:[%s810 + $0x9] sm:$0xff]
      %v845 = vld [vmem:[%s810 + $0x19] sm:$0xff]
      %v846 = vld [vmem:[%s810 + $0x21] sm:$0xff]
      %v847 = vld [vmem:[%s810 + $0x31] sm:$0xff]
      %v848 = vld [vmem:[%s810 + $0x39] sm:$0xff]
      %v849 = vld [vmem:[%s810 + $0x49] sm:$0xff]
      %v850 = vld [vmem:[%s810 + $0x51] sm:$0xff]
      %v851 = vld [vmem:[%s810 + $0x61] sm:$0xff]
      %v852 = vld [vmem:[%s810 + $0x69] sm:$0xff]
      %v853 = vld [vmem:[%s810 + $0x79] sm:$0xff]
      %v854 = vld [vmem:[%s810 + $0x81] sm:$0xff]
      %v855 = vld [vmem:[%s810 + $0x91] sm:$0xff]
      %v856 = vld [vmem:[%s810 + $0x99] sm:$0xff]
      %v857 = vld [vmem:[%s810 + $0xa9] sm:$0xff]
      %v858 = vld [vmem:[%s810 + $0xb1] sm:$0xff]
      %v859 = vld [vmem:[%s810 + $0xc1] sm:$0xff]
      %v860 = vld [vmem:[%s810 + $0xc9] sm:$0xff]
      %v861 = vld [vmem:[%s810 + $0xd9] sm:$0xff]
      %v862 = vld [vmem:[%s810 + $0xe1] sm:$0xff]
      %v863 = vld [vmem:[%s810 + $0xf1] sm:$0xff]
      %v864 = vld [vmem:[%s810 + $0xf9] sm:$0xff]
      %v865 = vld [vmem:[%s810 + $0x109] sm:$0xff]
      %v866 = vld [vmem:[%s810 + $0x111] sm:$0xff]
      %v867 = vld [vmem:[%s810 + $0x121] sm:$0xff]
      %v868 = vld [vmem:[%s810 + $0x129] sm:$0xff]
      %v869 = vld [vmem:[%s810 + $0x139] sm:$0xff]
      %v870 = vld [vmem:[%s810 + $0x141] sm:$0xff]
      %v871 = vld [vmem:[%s810 + $0x151] sm:$0xff]
      %v872 = vld [vmem:[%s810 + $0x159] sm:$0xff]
      %v873 = vld [vmem:[%s810 + $0x169] sm:$0xff]
      %v874 = vld [vmem:[%s810 + $0x171] sm:$0xff]
      %v875 = vld [vmem:[%s810 + $0x2] sm:$0xff]
      %v876 = vld [vmem:[%s810 + $0xa] sm:$0xff]
      %v877 = vld [vmem:[%s810 + $0x1a] sm:$0xff]
      %v878 = vld [vmem:[%s810 + $0x22] sm:$0xff]
      %v879 = vld [vmem:[%s810 + $0x32] sm:$0xff]
      %v880 = vld [vmem:[%s810 + $0x3a] sm:$0xff]
      %v881 = vld [vmem:[%s810 + $0x4a] sm:$0xff]
      %v882 = vld [vmem:[%s810 + $0x52] sm:$0xff]
      %v883 = vld [vmem:[%s810 + $0x62] sm:$0xff]
      %v884 = vld [vmem:[%s810 + $0x6a] sm:$0xff]
      %v885 = vld [vmem:[%s810 + $0x7a] sm:$0xff]
      %v886 = vld [vmem:[%s810 + $0x82] sm:$0xff]
      %v887 = vld [vmem:[%s810 + $0x92] sm:$0xff]
      %v888 = vld [vmem:[%s810 + $0x9a] sm:$0xff]
      %v889 = vld [vmem:[%s810 + $0xaa] sm:$0xff]
      %v890 = vld [vmem:[%s810 + $0xb2] sm:$0xff]
      %v891 = vld [vmem:[%s810 + $0xc2] sm:$0xff]
      %v892 = vld [vmem:[%s810 + $0xca] sm:$0xff]
      %v893 = vld [vmem:[%s810 + $0xda] sm:$0xff]
      %v894 = vld [vmem:[%s810 + $0xe2] sm:$0xff]
      %v895 = vld [vmem:[%s810 + $0xf2] sm:$0xff]
      %v896 = vld [vmem:[%s810 + $0xfa] sm:$0xff]
      %v897 = vld [vmem:[%s810 + $0x10a] sm:$0xff]
      %v898 = vld [vmem:[%s810 + $0x112] sm:$0xff]
      %v899 = vld [vmem:[%s810 + $0x122] sm:$0xff]
      %v900 = vld [vmem:[%s810 + $0x12a] sm:$0xff]
      %v901 = vld [vmem:[%s810 + $0x13a] sm:$0xff]
      %v902 = vld [vmem:[%s810 + $0x142] sm:$0xff]
      %v903 = vld [vmem:[%s810 + $0x152] sm:$0xff]
      %v904 = vld [vmem:[%s810 + $0x15a] sm:$0xff]
      %v905 = vld [vmem:[%s810 + $0x16a] sm:$0xff]
      %v906 = vld [vmem:[%s810 + $0x172] sm:$0xff]
      %939 = vrot.lane.b32.xlu0 %v650, 4
      %v940 = vpop.permute.xlu0 %939
      %941 = vrot.lane.b32.xlu0 %v651, 4
      %v942 = vpop.permute.xlu0 %941
      %943 = vrot.lane.b32.xlu0 %v652, 4
      %v944 = vpop.permute.xlu0 %943
      %945 = vrot.lane.b32.xlu0 %v653, 4
      %v946 = vpop.permute.xlu0 %945
      %947 = vrot.lane.b32.xlu0 %v654, 4
      %v948 = vpop.permute.xlu0 %947
      %949 = vrot.lane.b32.xlu0 %v655, 4
      %v950 = vpop.permute.xlu0 %949
      %951 = vrot.lane.b32.xlu0 %v656, 4
      %v952 = vpop.permute.xlu0 %951
      %953 = vrot.lane.b32.xlu0 %v657, 4
      %v954 = vpop.permute.xlu0 %953
      %955 = vrot.lane.b32.xlu0 %v658, 4
      %v956 = vpop.permute.xlu0 %955
      %957 = vrot.lane.b32.xlu0 %v659, 4
      %v958 = vpop.permute.xlu0 %957
      %959 = vrot.lane.b32.xlu0 %v660, 4
      %v960 = vpop.permute.xlu0 %959
      %961 = vrot.lane.b32.xlu0 %v661, 4
      %v962 = vpop.permute.xlu0 %961
      %963 = vrot.lane.b32.xlu0 %v662, 4
      %v964 = vpop.permute.xlu0 %963
      %965 = vrot.lane.b32.xlu0 %v663, 4
      %v966 = vpop.permute.xlu0 %965
      %967 = vrot.lane.b32.xlu0 %v664, 4
      %v968 = vpop.permute.xlu0 %967
      %969 = vrot.lane.b32.xlu0 %v665, 4
      %v970 = vpop.permute.xlu0 %969
      %971 = vrot.lane.b32.xlu0 %v666, 4
      %v972 = vpop.permute.xlu0 %971
      %973 = vrot.lane.b32.xlu0 %v667, 4
      %v974 = vpop.permute.xlu0 %973
      %975 = vrot.lane.b32.xlu0 %v668, 4
      %v976 = vpop.permute.xlu0 %975
      %977 = vrot.lane.b32.xlu0 %v669, 4
      %v978 = vpop.permute.xlu0 %977
      %979 = vrot.lane.b32.xlu0 %v670, 4
      %v980 = vpop.permute.xlu0 %979
      %981 = vrot.lane.b32.xlu0 %v671, 4
      %v982 = vpop.permute.xlu0 %981
      %983 = vrot.lane.b32.xlu0 %v672, 4
      %v984 = vpop.permute.xlu0 %983
      %985 = vrot.lane.b32.xlu0 %v673, 4
      %v986 = vpop.permute.xlu0 %985
      %987 = vrot.lane.b32.xlu0 %v674, 4
      %v988 = vpop.permute.xlu0 %987
      %989 = vrot.lane.b32.xlu0 %v675, 4
      %v990 = vpop.permute.xlu0 %989
      %991 = vrot.lane.b32.xlu0 %v676, 4
      %v992 = vpop.permute.xlu0 %991
      %993 = vrot.lane.b32.xlu0 %v677, 4
      %v994 = vpop.permute.xlu0 %993
      %995 = vrot.lane.b32.xlu0 %v678, 4
      %v996 = vpop.permute.xlu0 %995
      %997 = vrot.lane.b32.xlu0 %v679, 4
      %v998 = vpop.permute.xlu0 %997
      %999 = vrot.lane.b32.xlu0 %v680, 4
      %v1000 = vpop.permute.xlu0 %999
      %1001 = vrot.lane.b32.xlu0 %v681, 4
      %v1002 = vpop.permute.xlu0 %1001
      %1067 = vrot.lane.b32.xlu0 %v682, 8
      %v1068 = vpop.permute.xlu0 %1067
      %1069 = vrot.lane.b32.xlu0 %v683, 8
      %v1070 = vpop.permute.xlu0 %1069
      %1071 = vrot.lane.b32.xlu0 %v684, 8
      %v1072 = vpop.permute.xlu0 %1071
      %1073 = vrot.lane.b32.xlu0 %v685, 8
      %v1074 = vpop.permute.xlu0 %1073
      %1075 = vrot.lane.b32.xlu0 %v686, 8
      %v1076 = vpop.permute.xlu0 %1075
      %1077 = vrot.lane.b32.xlu0 %v687, 8
      %v1078 = vpop.permute.xlu0 %1077
      %1079 = vrot.lane.b32.xlu0 %v688, 8
      %v1080 = vpop.permute.xlu0 %1079
      %1081 = vrot.lane.b32.xlu0 %v689, 8
      %v1082 = vpop.permute.xlu0 %1081
      %1083 = vrot.lane.b32.xlu0 %v690, 8
      %v1084 = vpop.permute.xlu0 %1083
      %1085 = vrot.lane.b32.xlu0 %v691, 8
      %v1086 = vpop.permute.xlu0 %1085
      %1087 = vrot.lane.b32.xlu0 %v692, 8
      %v1088 = vpop.permute.xlu0 %1087
      %1089 = vrot.lane.b32.xlu0 %v693, 8
      %v1090 = vpop.permute.xlu0 %1089
      %1091 = vrot.lane.b32.xlu0 %v694, 8
      %v1092 = vpop.permute.xlu0 %1091
      %1093 = vrot.lane.b32.xlu0 %v695, 8
      %v1094 = vpop.permute.xlu0 %1093
      %1095 = vrot.lane.b32.xlu0 %v696, 8
      %v1096 = vpop.permute.xlu0 %1095
      %1097 = vrot.lane.b32.xlu0 %v697, 8
      %v1098 = vpop.permute.xlu0 %1097
      %1099 = vrot.lane.b32.xlu0 %v698, 8
      %v1100 = vpop.permute.xlu0 %1099
      %1101 = vrot.lane.b32.xlu0 %v699, 8
      %v1102 = vpop.permute.xlu0 %1101
      %1103 = vrot.lane.b32.xlu0 %v700, 8
      %v1104 = vpop.permute.xlu0 %1103
      %1105 = vrot.lane.b32.xlu0 %v701, 8
      %v1106 = vpop.permute.xlu0 %1105
      %1107 = vrot.lane.b32.xlu0 %v702, 8
      %v1108 = vpop.permute.xlu0 %1107
      %1109 = vrot.lane.b32.xlu0 %v703, 8
      %v1110 = vpop.permute.xlu0 %1109
      %1111 = vrot.lane.b32.xlu0 %v704, 8
      %v1112 = vpop.permute.xlu0 %1111
      %1113 = vrot.lane.b32.xlu0 %v705, 8
      %v1114 = vpop.permute.xlu0 %1113
      %1115 = vrot.lane.b32.xlu0 %v706, 8
      %v1116 = vpop.permute.xlu0 %1115
      %1117 = vrot.lane.b32.xlu0 %v707, 8
      %v1118 = vpop.permute.xlu0 %1117
      %1119 = vrot.lane.b32.xlu0 %v708, 8
      %v1120 = vpop.permute.xlu0 %1119
      %1121 = vrot.lane.b32.xlu0 %v709, 8
      %v1122 = vpop.permute.xlu0 %1121
      %1123 = vrot.lane.b32.xlu0 %v710, 8
      %v1124 = vpop.permute.xlu0 %1123
      %1125 = vrot.lane.b32.xlu0 %v711, 8
      %v1126 = vpop.permute.xlu0 %1125
      %1127 = vrot.lane.b32.xlu0 %v712, 8
      %v1128 = vpop.permute.xlu0 %1127
      %1129 = vrot.lane.b32.xlu0 %v713, 8
      %v1130 = vpop.permute.xlu0 %1129
      %1195 = vrot.lane.b32.xlu0 %v714, 12
      %v1196 = vpop.permute.xlu0 %1195
      %1197 = vrot.lane.b32.xlu0 %v715, 12
      %v1198 = vpop.permute.xlu0 %1197
      %1199 = vrot.lane.b32.xlu0 %v716, 12
      %v1200 = vpop.permute.xlu0 %1199
      %1201 = vrot.lane.b32.xlu0 %v717, 12
      %v1202 = vpop.permute.xlu0 %1201
      %1203 = vrot.lane.b32.xlu0 %v718, 12
      %v1204 = vpop.permute.xlu0 %1203
      %1205 = vrot.lane.b32.xlu0 %v719, 12
      %v1206 = vpop.permute.xlu0 %1205
      %1207 = vrot.lane.b32.xlu0 %v720, 12
      %v1208 = vpop.permute.xlu0 %1207
      %1209 = vrot.lane.b32.xlu0 %v721, 12
      %v1210 = vpop.permute.xlu0 %1209
      %1211 = vrot.lane.b32.xlu0 %v722, 12
      %v1212 = vpop.permute.xlu0 %1211
      %1213 = vrot.lane.b32.xlu0 %v723, 12
      %v1214 = vpop.permute.xlu0 %1213
      %1215 = vrot.lane.b32.xlu0 %v724, 12
      %v1216 = vpop.permute.xlu0 %1215
      %1217 = vrot.lane.b32.xlu0 %v725, 12
      %v1218 = vpop.permute.xlu0 %1217
      %1219 = vrot.lane.b32.xlu0 %v726, 12
      %v1220 = vpop.permute.xlu0 %1219
      %1221 = vrot.lane.b32.xlu0 %v727, 12
      %v1222 = vpop.permute.xlu0 %1221
      %1223 = vrot.lane.b32.xlu0 %v728, 12
      %v1224 = vpop.permute.xlu0 %1223
      %1225 = vrot.lane.b32.xlu0 %v729, 12
      %v1226 = vpop.permute.xlu0 %1225
      %1227 = vrot.lane.b32.xlu0 %v730, 12
      %v1228 = vpop.permute.xlu0 %1227
      %1229 = vrot.lane.b32.xlu0 %v731, 12
      %v1230 = vpop.permute.xlu0 %1229
      %1231 = vrot.lane.b32.xlu0 %v732, 12
      %v1232 = vpop.permute.xlu0 %1231
      %1233 = vrot.lane.b32.xlu0 %v733, 12
      %v1234 = vpop.permute.xlu0 %1233
      %1235 = vrot.lane.b32.xlu0 %v734, 12
      %v1236 = vpop.permute.xlu0 %1235
      %1237 = vrot.lane.b32.xlu0 %v735, 12
      %v1238 = vpop.permute.xlu0 %1237
      %1239 = vrot.lane.b32.xlu0 %v736, 12
      %v1240 = vpop.permute.xlu0 %1239
      %1241 = vrot.lane.b32.xlu0 %v737, 12
      %v1242 = vpop.permute.xlu0 %1241
      %1243 = vrot.lane.b32.xlu0 %v738, 12
      %v1244 = vpop.permute.xlu0 %1243
      %1245 = vrot.lane.b32.xlu0 %v739, 12
      %v1246 = vpop.permute.xlu0 %1245
      %1247 = vrot.lane.b32.xlu0 %v740, 12
      %v1248 = vpop.permute.xlu0 %1247
      %1249 = vrot.lane.b32.xlu0 %v741, 12
      %v1250 = vpop.permute.xlu0 %1249
      %1251 = vrot.lane.b32.xlu0 %v742, 12
      %v1252 = vpop.permute.xlu0 %1251
      %1253 = vrot.lane.b32.xlu0 %v743, 12
      %v1254 = vpop.permute.xlu0 %1253
      %1255 = vrot.lane.b32.xlu0 %v744, 12
      %v1256 = vpop.permute.xlu0 %1255
      %1257 = vrot.lane.b32.xlu0 %v745, 12
      %v1258 = vpop.permute.xlu0 %1257
      %1323 = vrot.lane.b32.xlu0 %v746, 16
      %v1324 = vpop.permute.xlu0 %1323
      %1325 = vrot.lane.b32.xlu0 %v747, 16
      %v1326 = vpop.permute.xlu0 %1325
      %1327 = vrot.lane.b32.xlu0 %v748, 16
      %v1328 = vpop.permute.xlu0 %1327
      %1329 = vrot.lane.b32.xlu0 %v749, 16
      %v1330 = vpop.permute.xlu0 %1329
      %1331 = vrot.lane.b32.xlu0 %v750, 16
      %v1332 = vpop.permute.xlu0 %1331
      %1333 = vrot.lane.b32.xlu0 %v751, 16
      %v1334 = vpop.permute.xlu0 %1333
      %1335 = vrot.lane.b32.xlu0 %v752, 16
      %v1336 = vpop.permute.xlu0 %1335
      %1337 = vrot.lane.b32.xlu0 %v753, 16
      %v1338 = vpop.permute.xlu0 %1337
      %1339 = vrot.lane.b32.xlu0 %v754, 16
      %v1340 = vpop.permute.xlu0 %1339
      %1341 = vrot.lane.b32.xlu0 %v755, 16
      %v1342 = vpop.permute.xlu0 %1341
      %1343 = vrot.lane.b32.xlu0 %v756, 16
      %v1344 = vpop.permute.xlu0 %1343
      %1345 = vrot.lane.b32.xlu0 %v757, 16
      %v1346 = vpop.permute.xlu0 %1345
      %1347 = vrot.lane.b32.xlu0 %v758, 16
      %v1348 = vpop.permute.xlu0 %1347
      %1349 = vrot.lane.b32.xlu0 %v759, 16
      %v1350 = vpop.permute.xlu0 %1349
      %1351 = vrot.lane.b32.xlu0 %v760, 16
      %v1352 = vpop.permute.xlu0 %1351
      %1353 = vrot.lane.b32.xlu0 %v761, 16
      %v1354 = vpop.permute.xlu0 %1353
      %1355 = vrot.lane.b32.xlu0 %v762, 16
      %v1356 = vpop.permute.xlu0 %1355
      %1357 = vrot.lane.b32.xlu0 %v763, 16
      %v1358 = vpop.permute.xlu0 %1357
      %1359 = vrot.lane.b32.xlu0 %v764, 16
      %v1360 = vpop.permute.xlu0 %1359
      %1361 = vrot.lane.b32.xlu0 %v765, 16
      %v1362 = vpop.permute.xlu0 %1361
      %1363 = vrot.lane.b32.xlu0 %v766, 16
      %v1364 = vpop.permute.xlu0 %1363
      %1365 = vrot.lane.b32.xlu0 %v767, 16
      %v1366 = vpop.permute.xlu0 %1365
      %1367 = vrot.lane.b32.xlu0 %v768, 16
      %v1368 = vpop.permute.xlu0 %1367
      %1369 = vrot.lane.b32.xlu0 %v769, 16
      %v1370 = vpop.permute.xlu0 %1369
      %1371 = vrot.lane.b32.xlu0 %v770, 16
      %v1372 = vpop.permute.xlu0 %1371
      %1373 = vrot.lane.b32.xlu0 %v771, 16
      %v1374 = vpop.permute.xlu0 %1373
      %1375 = vrot.lane.b32.xlu0 %v772, 16
      %v1376 = vpop.permute.xlu0 %1375
      %1377 = vrot.lane.b32.xlu0 %v773, 16
      %v1378 = vpop.permute.xlu0 %1377
      %1379 = vrot.lane.b32.xlu0 %v774, 16
      %v1380 = vpop.permute.xlu0 %1379
      %1381 = vrot.lane.b32.xlu0 %v775, 16
      %v1382 = vpop.permute.xlu0 %1381
      %1383 = vrot.lane.b32.xlu0 %v776, 16
      %v1384 = vpop.permute.xlu0 %1383
      %1385 = vrot.lane.b32.xlu0 %v777, 16
      %v1386 = vpop.permute.xlu0 %1385
      %1451 = vrot.lane.b32.xlu0 %v778, 20
      %v1452 = vpop.permute.xlu0 %1451
      %1453 = vrot.lane.b32.xlu0 %v779, 20
      %v1454 = vpop.permute.xlu0 %1453
      %1455 = vrot.lane.b32.xlu0 %v780, 20
      %v1456 = vpop.permute.xlu0 %1455
      %1457 = vrot.lane.b32.xlu0 %v781, 20
      %v1458 = vpop.permute.xlu0 %1457
      %1459 = vrot.lane.b32.xlu0 %v782, 20
      %v1460 = vpop.permute.xlu0 %1459
      %1461 = vrot.lane.b32.xlu0 %v783, 20
      %v1462 = vpop.permute.xlu0 %1461
      %1463 = vrot.lane.b32.xlu0 %v784, 20
      %v1464 = vpop.permute.xlu0 %1463
      %1465 = vrot.lane.b32.xlu0 %v785, 20
      %v1466 = vpop.permute.xlu0 %1465
      %1467 = vrot.lane.b32.xlu0 %v786, 20
      %v1468 = vpop.permute.xlu0 %1467
      %1469 = vrot.lane.b32.xlu0 %v787, 20
      %v1470 = vpop.permute.xlu0 %1469
      %1471 = vrot.lane.b32.xlu0 %v788, 20
      %v1472 = vpop.permute.xlu0 %1471
      %1473 = vrot.lane.b32.xlu0 %v789, 20
      %v1474 = vpop.permute.xlu0 %1473
      %1475 = vrot.lane.b32.xlu0 %v790, 20
      %v1476 = vpop.permute.xlu0 %1475
      %1477 = vrot.lane.b32.xlu0 %v791, 20
      %v1478 = vpop.permute.xlu0 %1477
      %1479 = vrot.lane.b32.xlu0 %v792, 20
      %v1480 = vpop.permute.xlu0 %1479
      %1481 = vrot.lane.b32.xlu0 %v793, 20
      %v1482 = vpop.permute.xlu0 %1481
      %1483 = vrot.lane.b32.xlu0 %v794, 20
      %v1484 = vpop.permute.xlu0 %1483
      %1485 = vrot.lane.b32.xlu0 %v795, 20
      %v1486 = vpop.permute.xlu0 %1485
      %1487 = vrot.lane.b32.xlu0 %v796, 20
      %v1488 = vpop.permute.xlu0 %1487
      %1489 = vrot.lane.b32.xlu0 %v797, 20
      %v1490 = vpop.permute.xlu0 %1489
      %1491 = vrot.lane.b32.xlu0 %v798, 20
      %v1492 = vpop.permute.xlu0 %1491
      %1493 = vrot.lane.b32.xlu0 %v799, 20
      %v1494 = vpop.permute.xlu0 %1493
      %1495 = vrot.lane.b32.xlu0 %v800, 20
      %v1496 = vpop.permute.xlu0 %1495
      %1497 = vrot.lane.b32.xlu0 %v801, 20
      %v1498 = vpop.permute.xlu0 %1497
      %1499 = vrot.lane.b32.xlu0 %v802, 20
      %v1500 = vpop.permute.xlu0 %1499
      %1501 = vrot.lane.b32.xlu0 %v803, 20
      %v1502 = vpop.permute.xlu0 %1501
      %1503 = vrot.lane.b32.xlu0 %v804, 20
      %v1504 = vpop.permute.xlu0 %1503
      %1505 = vrot.lane.b32.xlu0 %v805, 20
      %v1506 = vpop.permute.xlu0 %1505
      %1507 = vrot.lane.b32.xlu0 %v806, 20
      %v1508 = vpop.permute.xlu0 %1507
      %1509 = vrot.lane.b32.xlu0 %v807, 20
      %v1510 = vpop.permute.xlu0 %1509
      %1511 = vrot.lane.b32.xlu0 %v808, 20
      %v1512 = vpop.permute.xlu0 %1511
      %1513 = vrot.lane.b32.xlu0 %v809, 20
      %v1514 = vpop.permute.xlu0 %1513
      %1579 = vrot.lane.b32.xlu0 %v811, 24
      %v1580 = vpop.permute.xlu0 %1579
      %1581 = vrot.lane.b32.xlu0 %v812, 24
      %v1582 = vpop.permute.xlu0 %1581
      %1583 = vrot.lane.b32.xlu0 %v813, 24
      %v1584 = vpop.permute.xlu0 %1583
      %1585 = vrot.lane.b32.xlu0 %v814, 24
      %v1586 = vpop.permute.xlu0 %1585
      %1587 = vrot.lane.b32.xlu0 %v815, 24
      %v1588 = vpop.permute.xlu0 %1587
      %1589 = vrot.lane.b32.xlu0 %v816, 24
      %v1590 = vpop.permute.xlu0 %1589
      %1591 = vrot.lane.b32.xlu0 %v817, 24
      %v1592 = vpop.permute.xlu0 %1591
      %1593 = vrot.lane.b32.xlu0 %v818, 24
      %v1594 = vpop.permute.xlu0 %1593
      %1595 = vrot.lane.b32.xlu0 %v819, 24
      %v1596 = vpop.permute.xlu0 %1595
      %1597 = vrot.lane.b32.xlu0 %v820, 24
      %v1598 = vpop.permute.xlu0 %1597
      %1599 = vrot.lane.b32.xlu0 %v821, 24
      %v1600 = vpop.permute.xlu0 %1599
      %1601 = vrot.lane.b32.xlu0 %v822, 24
      %v1602 = vpop.permute.xlu0 %1601
      %1603 = vrot.lane.b32.xlu0 %v823, 24
      %v1604 = vpop.permute.xlu0 %1603
      %1605 = vrot.lane.b32.xlu0 %v824, 24
      %v1606 = vpop.permute.xlu0 %1605
      %1607 = vrot.lane.b32.xlu0 %v825, 24
      %v1608 = vpop.permute.xlu0 %1607
      %1609 = vrot.lane.b32.xlu0 %v826, 24
      %v1610 = vpop.permute.xlu0 %1609
      %1611 = vrot.lane.b32.xlu0 %v827, 24
      %v1612 = vpop.permute.xlu0 %1611
      %1613 = vrot.lane.b32.xlu0 %v828, 24
      %v1614 = vpop.permute.xlu0 %1613
      %1615 = vrot.lane.b32.xlu0 %v829, 24
      %v1616 = vpop.permute.xlu0 %1615
      %1617 = vrot.lane.b32.xlu0 %v830, 24
      %v1618 = vpop.permute.xlu0 %1617
      %1619 = vrot.lane.b32.xlu0 %v831, 24
      %v1620 = vpop.permute.xlu0 %1619
      %1621 = vrot.lane.b32.xlu0 %v832, 24
      %v1622 = vpop.permute.xlu0 %1621
      %1623 = vrot.lane.b32.xlu0 %v833, 24
      %v1624 = vpop.permute.xlu0 %1623
      %1625 = vrot.lane.b32.xlu0 %v834, 24
      %v1626 = vpop.permute.xlu0 %1625
      %1627 = vrot.lane.b32.xlu0 %v835, 24
      %v1628 = vpop.permute.xlu0 %1627
      %1629 = vrot.lane.b32.xlu0 %v836, 24
      %v1630 = vpop.permute.xlu0 %1629
      %1631 = vrot.lane.b32.xlu0 %v837, 24
      %v1632 = vpop.permute.xlu0 %1631
      %1633 = vrot.lane.b32.xlu0 %v838, 24
      %v1634 = vpop.permute.xlu0 %1633
      %1635 = vrot.lane.b32.xlu0 %v839, 24
      %v1636 = vpop.permute.xlu0 %1635
      %1637 = vrot.lane.b32.xlu0 %v840, 24
      %v1638 = vpop.permute.xlu0 %1637
      %1639 = vrot.lane.b32.xlu0 %v841, 24
      %v1640 = vpop.permute.xlu0 %1639
      %1641 = vrot.lane.b32.xlu0 %v842, 24
      %v1642 = vpop.permute.xlu0 %1641
      %1707 = vrot.lane.b32.xlu0 %v843, 28
      %v1708 = vpop.permute.xlu0 %1707
      %1709 = vrot.lane.b32.xlu0 %v844, 28
      %v1710 = vpop.permute.xlu0 %1709
      %1711 = vrot.lane.b32.xlu0 %v845, 28
      %v1712 = vpop.permute.xlu0 %1711
      %1713 = vrot.lane.b32.xlu0 %v846, 28
      %v1714 = vpop.permute.xlu0 %1713
      %1715 = vrot.lane.b32.xlu0 %v847, 28
      %v1716 = vpop.permute.xlu0 %1715
      %1717 = vrot.lane.b32.xlu0 %v848, 28
      %v1718 = vpop.permute.xlu0 %1717
      %1719 = vrot.lane.b32.xlu0 %v849, 28
      %v1720 = vpop.permute.xlu0 %1719
      %1721 = vrot.lane.b32.xlu0 %v850, 28
      %v1722 = vpop.permute.xlu0 %1721
      %1723 = vrot.lane.b32.xlu0 %v851, 28
      %v1724 = vpop.permute.xlu0 %1723
      %1725 = vrot.lane.b32.xlu0 %v852, 28
      %v1726 = vpop.permute.xlu0 %1725
      %1727 = vrot.lane.b32.xlu0 %v853, 28
      %v1728 = vpop.permute.xlu0 %1727
      %1729 = vrot.lane.b32.xlu0 %v854, 28
      %v1730 = vpop.permute.xlu0 %1729
      %1731 = vrot.lane.b32.xlu0 %v855, 28
      %v1732 = vpop.permute.xlu0 %1731
      %1733 = vrot.lane.b32.xlu0 %v856, 28
      %v1734 = vpop.permute.xlu0 %1733
      %1735 = vrot.lane.b32.xlu0 %v857, 28
      %v1736 = vpop.permute.xlu0 %1735
      %1737 = vrot.lane.b32.xlu0 %v858, 28
      %v1738 = vpop.permute.xlu0 %1737
      %1739 = vrot.lane.b32.xlu0 %v859, 28
      %v1740 = vpop.permute.xlu0 %1739
      %1741 = vrot.lane.b32.xlu0 %v860, 28
      %v1742 = vpop.permute.xlu0 %1741
      %1743 = vrot.lane.b32.xlu0 %v861, 28
      %v1744 = vpop.permute.xlu0 %1743
      %1745 = vrot.lane.b32.xlu0 %v862, 28
      %v1746 = vpop.permute.xlu0 %1745
      %1747 = vrot.lane.b32.xlu0 %v863, 28
      %v1748 = vpop.permute.xlu0 %1747
      %1749 = vrot.lane.b32.xlu0 %v864, 28
      %v1750 = vpop.permute.xlu0 %1749
      %1751 = vrot.lane.b32.xlu0 %v865, 28
      %v1752 = vpop.permute.xlu0 %1751
      %1753 = vrot.lane.b32.xlu0 %v866, 28
      %v1754 = vpop.permute.xlu0 %1753
      %1755 = vrot.lane.b32.xlu0 %v867, 28
      %v1756 = vpop.permute.xlu0 %1755
      %1757 = vrot.lane.b32.xlu0 %v868, 28
      %v1758 = vpop.permute.xlu0 %1757
      %1759 = vrot.lane.b32.xlu0 %v869, 28
      %v1760 = vpop.permute.xlu0 %1759
      %1761 = vrot.lane.b32.xlu0 %v870, 28
      %v1762 = vpop.permute.xlu0 %1761
      %1763 = vrot.lane.b32.xlu0 %v871, 28
      %v1764 = vpop.permute.xlu0 %1763
      %1765 = vrot.lane.b32.xlu0 %v872, 28
      %v1766 = vpop.permute.xlu0 %1765
      %1767 = vrot.lane.b32.xlu0 %v873, 28
      %v1768 = vpop.permute.xlu0 %1767
      %1769 = vrot.lane.b32.xlu0 %v874, 28
      %v1770 = vpop.permute.xlu0 %1769
      %1835 = vrot.lane.b32.xlu0 %v875, 32
      %v1836 = vpop.permute.xlu0 %1835
      %1837 = vrot.lane.b32.xlu0 %v876, 32
      %v1838 = vpop.permute.xlu0 %1837
      %1839 = vrot.lane.b32.xlu0 %v877, 32
      %v1840 = vpop.permute.xlu0 %1839
      %1841 = vrot.lane.b32.xlu0 %v878, 32
      %v1842 = vpop.permute.xlu0 %1841
      %1843 = vrot.lane.b32.xlu0 %v879, 32
      %v1844 = vpop.permute.xlu0 %1843
      %1845 = vrot.lane.b32.xlu0 %v880, 32
      %v1846 = vpop.permute.xlu0 %1845
      %1847 = vrot.lane.b32.xlu0 %v881, 32
      %v1848 = vpop.permute.xlu0 %1847
      %1849 = vrot.lane.b32.xlu0 %v882, 32
      %v1850 = vpop.permute.xlu0 %1849
      %1851 = vrot.lane.b32.xlu0 %v883, 32
      %v1852 = vpop.permute.xlu0 %1851
      %1853 = vrot.lane.b32.xlu0 %v884, 32
      %v1854 = vpop.permute.xlu0 %1853
      %1855 = vrot.lane.b32.xlu0 %v885, 32
      %v1856 = vpop.permute.xlu0 %1855
      %1857 = vrot.lane.b32.xlu0 %v886, 32
      %v1858 = vpop.permute.xlu0 %1857
      %1859 = vrot.lane.b32.xlu0 %v887, 32
      %v1860 = vpop.permute.xlu0 %1859
      %1861 = vrot.lane.b32.xlu0 %v888, 32
      %v1862 = vpop.permute.xlu0 %1861
      %1863 = vrot.lane.b32.xlu0 %v889, 32
      %v1864 = vpop.permute.xlu0 %1863
      %1865 = vrot.lane.b32.xlu0 %v890, 32
      %v1866 = vpop.permute.xlu0 %1865
      %1867 = vrot.lane.b32.xlu0 %v891, 32
      %v1868 = vpop.permute.xlu0 %1867
      %1869 = vrot.lane.b32.xlu0 %v892, 32
      %v1870 = vpop.permute.xlu0 %1869
      %1871 = vrot.lane.b32.xlu0 %v893, 32
      %v1872 = vpop.permute.xlu0 %1871
      %1873 = vrot.lane.b32.xlu0 %v894, 32
      %v1874 = vpop.permute.xlu0 %1873
      %1875 = vrot.lane.b32.xlu0 %v895, 32
      %v1876 = vpop.permute.xlu0 %1875
      %1877 = vrot.lane.b32.xlu0 %v896, 32
      %v1878 = vpop.permute.xlu0 %1877
      %1879 = vrot.lane.b32.xlu0 %v897, 32
      %v1880 = vpop.permute.xlu0 %1879
      %1881 = vrot.lane.b32.xlu0 %v898, 32
      %v1882 = vpop.permute.xlu0 %1881
      %1883 = vrot.lane.b32.xlu0 %v899, 32
      %v1884 = vpop.permute.xlu0 %1883
      %1885 = vrot.lane.b32.xlu0 %v900, 32
      %v1886 = vpop.permute.xlu0 %1885
      %1887 = vrot.lane.b32.xlu0 %v901, 32
      %v1888 = vpop.permute.xlu0 %1887
      %1889 = vrot.lane.b32.xlu0 %v902, 32
      %v1890 = vpop.permute.xlu0 %1889
      %1891 = vrot.lane.b32.xlu0 %v903, 32
      %v1892 = vpop.permute.xlu0 %1891
      %1893 = vrot.lane.b32.xlu0 %v904, 32
      %v1894 = vpop.permute.xlu0 %1893
      %1895 = vrot.lane.b32.xlu0 %v905, 32
      %v1896 = vpop.permute.xlu0 %1895
      %1897 = vrot.lane.b32.xlu0 %v906, 32
      %v1898 = vpop.permute.xlu0 %1897
      %v1931 = vsel %vm441, %v618, %v940
      %v1932 = vsel %vm441, %v619, %v942
      %v1933 = vsel %vm441, %v620, %v944
      %v1934 = vsel %vm441, %v621, %v946
      %v1935 = vsel %vm441, %v622, %v948
      %v1936 = vsel %vm441, %v623, %v950
      %v1937 = vsel %vm441, %v624, %v952
      %v1938 = vsel %vm441, %v625, %v954
      %v1939 = vsel %vm441, %v626, %v956
      %v1940 = vsel %vm441, %v627, %v958
      %v1941 = vsel %vm441, %v628, %v960
      %v1942 = vsel %vm441, %v629, %v962
      %v1943 = vsel %vm441, %v630, %v964
      %v1944 = vsel %vm441, %v631, %v966
      %v1945 = vsel %vm441, %v632, %v968
      %v1946 = vsel %vm441, %v633, %v970
      %v1947 = vsel %vm441, %v634, %v972
      %v1948 = vsel %vm441, %v635, %v974
      %v1949 = vsel %vm441, %v636, %v976
      %v1950 = vsel %vm441, %v637, %v978
      %v1951 = vsel %vm441, %v638, %v980
      %v1952 = vsel %vm441, %v639, %v982
      %v1953 = vsel %vm441, %v640, %v984
      %v1954 = vsel %vm441, %v641, %v986
      %v1955 = vsel %vm441, %v642, %v988
      %v1956 = vsel %vm441, %v643, %v990
      %v1957 = vsel %vm441, %v644, %v992
      %v1958 = vsel %vm441, %v645, %v994
      %v1959 = vsel %vm441, %v646, %v996
      %v1960 = vsel %vm441, %v647, %v998
      %v1961 = vsel %vm441, %v648, %v1000
      %v1962 = vsel %vm441, %v649, %v1002
      %vm1963 = vcmask 64512
      %v1964 = vsel %vm1963, %v1931, %v1068
      %v1965 = vsel %vm1963, %v1932, %v1070
      %v1966 = vsel %vm1963, %v1933, %v1072
      %v1967 = vsel %vm1963, %v1934, %v1074
      %v1968 = vsel %vm1963, %v1935, %v1076
      %v1969 = vsel %vm1963, %v1936, %v1078
      %v1970 = vsel %vm1963, %v1937, %v1080
      %v1971 = vsel %vm1963, %v1938, %v1082
      %v1972 = vsel %vm1963, %v1939, %v1084
      %v1973 = vsel %vm1963, %v1940, %v1086
      %v1974 = vsel %vm1963, %v1941, %v1088
      %v1975 = vsel %vm1963, %v1942, %v1090
      %v1976 = vsel %vm1963, %v1943, %v1092
      %v1977 = vsel %vm1963, %v1944, %v1094
      %v1978 = vsel %vm1963, %v1945, %v1096
      %v1979 = vsel %vm1963, %v1946, %v1098
      %v1980 = vsel %vm1963, %v1947, %v1100
      %v1981 = vsel %vm1963, %v1948, %v1102
      %v1982 = vsel %vm1963, %v1949, %v1104
      %v1983 = vsel %vm1963, %v1950, %v1106
      %v1984 = vsel %vm1963, %v1951, %v1108
      %v1985 = vsel %vm1963, %v1952, %v1110
      %v1986 = vsel %vm1963, %v1953, %v1112
      %v1987 = vsel %vm1963, %v1954, %v1114
      %v1988 = vsel %vm1963, %v1955, %v1116
      %v1989 = vsel %vm1963, %v1956, %v1118
      %v1990 = vsel %vm1963, %v1957, %v1120
      %v1991 = vsel %vm1963, %v1958, %v1122
      %v1992 = vsel %vm1963, %v1959, %v1124
      %v1993 = vsel %vm1963, %v1960, %v1126
      %v1994 = vsel %vm1963, %v1961, %v1128
      %v1995 = vsel %vm1963, %v1962, %v1130
      %vm1996 = vcmask 97280
      %v1997 = vsel %vm1996, %v1964, %v1196
      %v1998 = vsel %vm1996, %v1965, %v1198
      %v1999 = vsel %vm1996, %v1966, %v1200
      %v2000 = vsel %vm1996, %v1967, %v1202
      %v2001 = vsel %vm1996, %v1968, %v1204
      %v2002 = vsel %vm1996, %v1969, %v1206
      %v2003 = vsel %vm1996, %v1970, %v1208
      %v2004 = vsel %vm1996, %v1971, %v1210
      %v2005 = vsel %vm1996, %v1972, %v1212
      %v2006 = vsel %vm1996, %v1973, %v1214
      %v2007 = vsel %vm1996, %v1974, %v1216
      %v2008 = vsel %vm1996, %v1975, %v1218
      %v2009 = vsel %vm1996, %v1976, %v1220
      %v2010 = vsel %vm1996, %v1977, %v1222
      %v2011 = vsel %vm1996, %v1978, %v1224
      %v2012 = vsel %vm1996, %v1979, %v1226
      %v2013 = vsel %vm1996, %v1980, %v1228
      %v2014 = vsel %vm1996, %v1981, %v1230
      %v2015 = vsel %vm1996, %v1982, %v1232
      %v2016 = vsel %vm1996, %v1983, %v1234
      %v2017 = vsel %vm1996, %v1984, %v1236
      %v2018 = vsel %vm1996, %v1985, %v1238
      %v2019 = vsel %vm1996, %v1986, %v1240
      %v2020 = vsel %vm1996, %v1987, %v1242
      %v2021 = vsel %vm1996, %v1988, %v1244
      %v2022 = vsel %vm1996, %v1989, %v1246
      %v2023 = vsel %vm1996, %v1990, %v1248
      %v2024 = vsel %vm1996, %v1991, %v1250
      %v2025 = vsel %vm1996, %v1992, %v1252
      %v2026 = vsel %vm1996, %v1993, %v1254
      %v2027 = vsel %vm1996, %v1994, %v1256
      %v2028 = vsel %vm1996, %v1995, %v1258
      %vm2029 = vcmask 130048
      %v2030 = vsel %vm2029, %v1997, %v1324
      %v2031 = vsel %vm2029, %v1998, %v1326
      %v2032 = vsel %vm2029, %v1999, %v1328
      %v2033 = vsel %vm2029, %v2000, %v1330
      %v2034 = vsel %vm2029, %v2001, %v1332
      %v2035 = vsel %vm2029, %v2002, %v1334
      %v2036 = vsel %vm2029, %v2003, %v1336
      %v2037 = vsel %vm2029, %v2004, %v1338
      %v2038 = vsel %vm2029, %v2005, %v1340
      %v2039 = vsel %vm2029, %v2006, %v1342
      %v2040 = vsel %vm2029, %v2007, %v1344
      %v2041 = vsel %vm2029, %v2008, %v1346
      %v2042 = vsel %vm2029, %v2009, %v1348
      %v2043 = vsel %vm2029, %v2010, %v1350
      %v2044 = vsel %vm2029, %v2011, %v1352
      %v2045 = vsel %vm2029, %v2012, %v1354
      %v2046 = vsel %vm2029, %v2013, %v1356
      %v2047 = vsel %vm2029, %v2014, %v1358
      %v2048 = vsel %vm2029, %v2015, %v1360
      %v2049 = vsel %vm2029, %v2016, %v1362
      %v2050 = vsel %vm2029, %v2017, %v1364
      %v2051 = vsel %vm2029, %v2018, %v1366
      %v2052 = vsel %vm2029, %v2019, %v1368
      %v2053 = vsel %vm2029, %v2020, %v1370
      %v2054 = vsel %vm2029, %v2021, %v1372
      %v2055 = vsel %vm2029, %v2022, %v1374
      %v2056 = vsel %vm2029, %v2023, %v1376
      %v2057 = vsel %vm2029, %v2024, %v1378
      %v2058 = vsel %vm2029, %v2025, %v1380
      %v2059 = vsel %vm2029, %v2026, %v1382
      %v2060 = vsel %vm2029, %v2027, %v1384
      %v2061 = vsel %vm2029, %v2028, %v1386
      %vm2062 = vcmask 162816
      %v2063 = vsel %vm2062, %v2030, %v1452
      %v2064 = vsel %vm2062, %v2031, %v1454
      %v2065 = vsel %vm2062, %v2032, %v1456
      %v2066 = vsel %vm2062, %v2033, %v1458
      %v2067 = vsel %vm2062, %v2034, %v1460
      %v2068 = vsel %vm2062, %v2035, %v1462
      %v2069 = vsel %vm2062, %v2036, %v1464
      %v2070 = vsel %vm2062, %v2037, %v1466
      %v2071 = vsel %vm2062, %v2038, %v1468
      %v2072 = vsel %vm2062, %v2039, %v1470
      %v2073 = vsel %vm2062, %v2040, %v1472
      %v2074 = vsel %vm2062, %v2041, %v1474
      %v2075 = vsel %vm2062, %v2042, %v1476
      %v2076 = vsel %vm2062, %v2043, %v1478
      %v2077 = vsel %vm2062, %v2044, %v1480
      %v2078 = vsel %vm2062, %v2045, %v1482
      %v2079 = vsel %vm2062, %v2046, %v1484
      %v2080 = vsel %vm2062, %v2047, %v1486
      %v2081 = vsel %vm2062, %v2048, %v1488
      %v2082 = vsel %vm2062, %v2049, %v1490
      %v2083 = vsel %vm2062, %v2050, %v1492
      %v2084 = vsel %vm2062, %v2051, %v1494
      %v2085 = vsel %vm2062, %v2052, %v1496
      %v2086 = vsel %vm2062, %v2053, %v1498
      %v2087 = vsel %vm2062, %v2054, %v1500
      %v2088 = vsel %vm2062, %v2055, %v1502
      %v2089 = vsel %vm2062, %v2056, %v1504
      %v2090 = vsel %vm2062, %v2057, %v1506
      %v2091 = vsel %vm2062, %v2058, %v1508
      %v2092 = vsel %vm2062, %v2059, %v1510
      %v2093 = vsel %vm2062, %v2060, %v1512
      %v2094 = vsel %vm2062, %v2061, %v1514
      %vm2095 = vcmask 195584
      %v2096 = vsel %vm2095, %v2063, %v1580
      %v2097 = vsel %vm2095, %v2064, %v1582
      %v2098 = vsel %vm2095, %v2065, %v1584
      %v2099 = vsel %vm2095, %v2066, %v1586
      %v2100 = vsel %vm2095, %v2067, %v1588
      %v2101 = vsel %vm2095, %v2068, %v1590
      %v2102 = vsel %vm2095, %v2069, %v1592
      %v2103 = vsel %vm2095, %v2070, %v1594
      %v2104 = vsel %vm2095, %v2071, %v1596
      %v2105 = vsel %vm2095, %v2072, %v1598
      %v2106 = vsel %vm2095, %v2073, %v1600
      %v2107 = vsel %vm2095, %v2074, %v1602
      %v2108 = vsel %vm2095, %v2075, %v1604
      %v2109 = vsel %vm2095, %v2076, %v1606
      %v2110 = vsel %vm2095, %v2077, %v1608
      %v2111 = vsel %vm2095, %v2078, %v1610
      %v2112 = vsel %vm2095, %v2079, %v1612
      %v2113 = vsel %vm2095, %v2080, %v1614
      %v2114 = vsel %vm2095, %v2081, %v1616
      %v2115 = vsel %vm2095, %v2082, %v1618
      %v2116 = vsel %vm2095, %v2083, %v1620
      %v2117 = vsel %vm2095, %v2084, %v1622
      %v2118 = vsel %vm2095, %v2085, %v1624
      %v2119 = vsel %vm2095, %v2086, %v1626
      %v2120 = vsel %vm2095, %v2087, %v1628
      %v2121 = vsel %vm2095, %v2088, %v1630
      %v2122 = vsel %vm2095, %v2089, %v1632
      %v2123 = vsel %vm2095, %v2090, %v1634
      %v2124 = vsel %vm2095, %v2091, %v1636
      %v2125 = vsel %vm2095, %v2092, %v1638
      %v2126 = vsel %vm2095, %v2093, %v1640
      %v2127 = vsel %vm2095, %v2094, %v1642
      %vm2128 = vcmask 228352
      %v2129 = vsel %vm2128, %v2096, %v1708
      %v2130 = vsel %vm2128, %v2097, %v1710
      %v2131 = vsel %vm2128, %v2098, %v1712
      %v2132 = vsel %vm2128, %v2099, %v1714
      %v2133 = vsel %vm2128, %v2100, %v1716
      %v2134 = vsel %vm2128, %v2101, %v1718
      %v2135 = vsel %vm2128, %v2102, %v1720
      %v2136 = vsel %vm2128, %v2103, %v1722
      %v2137 = vsel %vm2128, %v2104, %v1724
      %v2138 = vsel %vm2128, %v2105, %v1726
      %v2139 = vsel %vm2128, %v2106, %v1728
      %v2140 = vsel %vm2128, %v2107, %v1730
      %v2141 = vsel %vm2128, %v2108, %v1732
      %v2142 = vsel %vm2128, %v2109, %v1734
      %v2143 = vsel %vm2128, %v2110, %v1736
      %v2144 = vsel %vm2128, %v2111, %v1738
      %v2145 = vsel %vm2128, %v2112, %v1740
      %v2146 = vsel %vm2128, %v2113, %v1742
      %v2147 = vsel %vm2128, %v2114, %v1744
      %v2148 = vsel %vm2128, %v2115, %v1746
      %v2149 = vsel %vm2128, %v2116, %v1748
      %v2150 = vsel %vm2128, %v2117, %v1750
      %v2151 = vsel %vm2128, %v2118, %v1752
      %v2152 = vsel %vm2128, %v2119, %v1754
      %v2153 = vsel %vm2128, %v2120, %v1756
      %v2154 = vsel %vm2128, %v2121, %v1758
      %v2155 = vsel %vm2128, %v2122, %v1760
      %v2156 = vsel %vm2128, %v2123, %v1762
      %v2157 = vsel %vm2128, %v2124, %v1764
      %v2158 = vsel %vm2128, %v2125, %v1766
      %v2159 = vsel %vm2128, %v2126, %v1768
      %v2160 = vsel %vm2128, %v2127, %v1770
      %vm2161 = vcmask 261120
      %v2162 = vsel %vm2161, %v2129, %v1836
      %v2163 = vsel %vm2161, %v2130, %v1838
      %v2164 = vsel %vm2161, %v2131, %v1840
      %v2165 = vsel %vm2161, %v2132, %v1842
      %v2166 = vsel %vm2161, %v2133, %v1844
      %v2167 = vsel %vm2161, %v2134, %v1846
      %v2168 = vsel %vm2161, %v2135, %v1848
      %v2169 = vsel %vm2161, %v2136, %v1850
      %v2170 = vsel %vm2161, %v2137, %v1852
      %v2171 = vsel %vm2161, %v2138, %v1854
      %v2172 = vsel %vm2161, %v2139, %v1856
      %v2173 = vsel %vm2161, %v2140, %v1858
      %v2174 = vsel %vm2161, %v2141, %v1860
      %v2175 = vsel %vm2161, %v2142, %v1862
      %v2176 = vsel %vm2161, %v2143, %v1864
      %v2177 = vsel %vm2161, %v2144, %v1866
      %v2178 = vsel %vm2161, %v2145, %v1868
      %v2179 = vsel %vm2161, %v2146, %v1870
      %v2180 = vsel %vm2161, %v2147, %v1872
      %v2181 = vsel %vm2161, %v2148, %v1874
      %v2182 = vsel %vm2161, %v2149, %v1876
      %v2183 = vsel %vm2161, %v2150, %v1878
      %v2184 = vsel %vm2161, %v2151, %v1880
      %v2185 = vsel %vm2161, %v2152, %v1882
      %v2186 = vsel %vm2161, %v2153, %v1884
      %v2187 = vsel %vm2161, %v2154, %v1886
      %v2188 = vsel %vm2161, %v2155, %v1888
      %v2189 = vsel %vm2161, %v2156, %v1890
      %v2190 = vsel %vm2161, %v2157, %v1892
      %v2191 = vsel %vm2161, %v2158, %v1894
      %v2192 = vsel %vm2161, %v2159, %v1896
      %v2193 = vsel %vm2161, %v2160, %v1898
      %v2194 = vld [vmem:[%s1] sm:$0xff]
      %v2195 = vld [vmem:[%s1 + $0x8] sm:$0xff]
      %v2196 = vld [vmem:[%s1 + $0x10] sm:$0xff]
      %v2197 = vld [vmem:[%s1 + $0x18] sm:$0xff]
      %v2198 = vld [vmem:[%s1 + $0x20] sm:$0xf]
      %v2199 = vld [vmem:[%s2] sm:$0x1]
      %v2201 = vlaneseq
      %v2202 = vshrl.u32 %v2201, 7
      %v2203 = vsub.s32 0, %v2202
      %v2204 = vrot.slane %v2199, %v2203
      %vm2206 = vcmask 293888
      %v2208 = vsel %vm2206, %v2162, 0
      %v2211 = vsel %vm2206, %v2163, 0
      %v2214 = vsel %vm2206, %v2164, 0
      %v2217 = vsel %vm2206, %v2165, 0
      %v2220 = vsel %vm2206, %v2166, 0
      %v2223 = vsel %vm2206, %v2167, 0
      %v2226 = vsel %vm2206, %v2168, 0
      %v2229 = vsel %vm2206, %v2169, 0
      %v2232 = vsel %vm2206, %v2170, 0
      %v2235 = vsel %vm2206, %v2171, 0
      %v2238 = vsel %vm2206, %v2172, 0
      %v2241 = vsel %vm2206, %v2173, 0
      %v2244 = vsel %vm2206, %v2174, 0
      %v2247 = vsel %vm2206, %v2175, 0
      %v2250 = vsel %vm2206, %v2176, 0
      %v2253 = vsel %vm2206, %v2177, 0
      %v2256 = vsel %vm2206, %v2178, 0
      %v2259 = vsel %vm2206, %v2179, 0
      %v2262 = vsel %vm2206, %v2180, 0
      %v2265 = vsel %vm2206, %v2181, 0
      %v2268 = vsel %vm2206, %v2182, 0
      %v2271 = vsel %vm2206, %v2183, 0
      %v2274 = vsel %vm2206, %v2184, 0
      %v2277 = vsel %vm2206, %v2185, 0
      %v2280 = vsel %vm2206, %v2186, 0
      %v2283 = vsel %vm2206, %v2187, 0
      %v2286 = vsel %vm2206, %v2188, 0
      %v2289 = vsel %vm2206, %v2189, 0
      %v2292 = vsel %vm2206, %v2190, 0
      %v2295 = vsel %vm2206, %v2191, 0
      %v2298 = vsel %vm2206, %v2192, 0
      %v2301 = vsel %vm2206, %v2193, 0
      %vm2303 = vcmask 1043456
      %v2305 = vsel %vm2303, %v2198, 0
      %2307 = vmatprep.subr.mxu0 0.0
      %2308 = vmatpush1.msra.mxu0 %v2194
      %2309 = vmatprep.subr.mxu0 0.0
      %2310 = vmatpush1.msra.mxu0 %v2195
      %2311 = vmatprep.subr.mxu0 0.0
      %2312 = vmatpush1.msra.mxu0 %v2196
      %2313 = vmatprep.subr.mxu0 0.0
      %2314 = vmatpush1.msra.mxu0 %v2197
      %2315 = vmatprep.subr.mxu0 0.0
      %2316 = vmatpush1.msra.mxu0 %v2305
      %2317 = vmatprep.subr.mxu0 0.0
      %2318 = vmatpush1.msra.mxu0 0.0
      %2319 = vmatprep.subr.mxu0 0.0
      %2320 = vmatpush1.msra.mxu0 0.0
      %2321 = vmatprep.subr.mxu0 0.0
      %2322 = vmatpush1.msra.mxu0 0.0
      %2323 = vmatprep.subr.mxu0 0.0
      %2324 = vmatpush1.msra.mxu0 0.0
      %2325 = vmatprep.subr.mxu0 0.0
      %2326 = vmatpush1.msra.mxu0 0.0
      %2327 = vmatprep.subr.mxu0 0.0
      %2328 = vmatpush1.msra.mxu0 0.0
      %2329 = vmatprep.subr.mxu0 0.0
      %2330 = vmatpush1.msra.mxu0 0.0
      %2331 = vmatprep.subr.mxu0 0.0
      %2332 = vmatpush1.msra.mxu0 0.0
      %2333 = vmatprep.subr.mxu0 0.0
      %2334 = vmatpush1.msra.mxu0 0.0
      %2335 = vmatprep.subr.mxu0 0.0
      %2336 = vmatpush1.msra.mxu0 0.0
      %2337 = vmatprep.subr.mxu0 0.0
      %2338 = vmatpush1.msra.mxu0 0.0
      %2339 = vmatprep.subr.mxu0 0.0
      %2340 = vmatpush1.msra.mxu0 0.0
      %2341 = vmatprep.subr.mxu0 0.0
      %2342 = vmatpush1.msra.mxu0 0.0
      %2343 = vmatprep.subr.mxu0 0.0
      %2344 = vmatpush1.msra.mxu0 0.0
      %2345 = vmatprep.subr.mxu0 0.0
      %2346 = vmatpush1.msra.mxu0 0.0
      %2347 = vmatprep.subr.mxu0 0.0
      %2348 = vmatpush1.msra.mxu0 0.0
      %2349 = vmatprep.subr.mxu0 0.0
      %2350 = vmatpush1.msra.mxu0 0.0
      %2351 = vmatprep.subr.mxu0 0.0
      %2352 = vmatpush1.msra.mxu0 0.0
      %2353 = vmatprep.subr.mxu0 0.0
      %2354 = vmatpush1.msra.mxu0 0.0
      %2355 = vmatprep.subr.mxu0 0.0
      %2356 = vmatpush1.msra.mxu0 0.0
      %2357 = vmatprep.subr.mxu0 0.0
      %2358 = vmatpush1.msra.mxu0 0.0
      %2359 = vmatprep.subr.mxu0 0.0
      %2360 = vmatpush1.msra.mxu0 0.0
      %2361 = vmatprep.subr.mxu0 0.0
      %2362 = vmatpush1.msra.mxu0 0.0
      %2363 = vmatprep.subr.mxu0 0.0
      %2364 = vmatpush1.msra.mxu0 0.0
      %2365 = vmatprep.subr.mxu0 0.0
      %2366 = vmatpush1.msra.mxu0 0.0
      %2367 = vmatprep.subr.mxu0 0.0
      %2368 = vmatpush1.msra.mxu0 0.0
      %2369 = vmatprep.subr.mxu0 0.0
      %2370 = vmatpush1.msra.mxu0 0.0
      %2371 = vmatprep.mubr.f32.mxu0 0.0
      %2372 = vmatmul.mubr.f32.gmra.mrb[0].mxu0 %v2208
      %v2373 = vpop.f32.mrb[0].mxu0
      %v2374 = vadd.f32 %v2204, %v2373
      %v2375 = vpop.f32.mrb[0].mxu0
      %2376 = vmatprep.mubr.f32.mxu0 0.0
      %2377 = vmatmul.mubr.f32.gmra.mrb[0].mxu0 %v2211
      %v2378 = vpop.f32.mrb[0].mxu0
      %v2379 = vadd.f32 %v2204, %v2378
      %v2380 = vpop.f32.mrb[0].mxu0
      %2381 = vmatprep.mubr.f32.mxu0 0.0
      %2382 = vmatmul.mubr.f32.gmra.mrb[0].mxu0 %v2214
      %v2383 = vpop.f32.mrb[0].mxu0
      %v2384 = vadd.f32 %v2204, %v2383
      %v2385 = vpop.f32.mrb[0].mxu0
      %2386 = vmatprep.mubr.f32.mxu0 0.0
      %2387 = vmatmul.mubr.f32.gmra.mrb[0].mxu0 %v2217
      %v2388 = vpop.f32.mrb[0].mxu0
      %v2389 = vadd.f32 %v2204, %v2388
      %v2390 = vpop.f32.mrb[0].mxu0
      %2391 = vmatprep.mubr.f32.mxu0 0.0
      %2392 = vmatmul.mubr.f32.gmra.mrb[0].mxu0 %v2220
      %v2393 = vpop.f32.mrb[0].mxu0
      %v2394 = vadd.f32 %v2204, %v2393
      %v2395 = vpop.f32.mrb[0].mxu0
      %2396 = vmatprep.mubr.f32.mxu0 0.0
      %2397 = vmatmul.mubr.f32.gmra.mrb[0].mxu0 %v2223
      %v2398 = vpop.f32.mrb[0].mxu0
      %v2399 = vadd.f32 %v2204, %v2398
      %v2400 = vpop.f32.mrb[0].mxu0
      %2401 = vmatprep.mubr.f32.mxu0 0.0
      %2402 = vmatmul.mubr.f32.gmra.mrb[0].mxu0 %v2226
      %v2403 = vpop.f32.mrb[0].mxu0
      %v2404 = vadd.f32 %v2204, %v2403
      %v2405 = vpop.f32.mrb[0].mxu0
      %2406 = vmatprep.mubr.f32.mxu0 0.0
      %2407 = vmatmul.mubr.f32.gmra.mrb[0].mxu0 %v2229
      %v2408 = vpop.f32.mrb[0].mxu0
      %v2409 = vadd.f32 %v2204, %v2408
      %v2410 = vpop.f32.mrb[0].mxu0
      %2411 = vmatprep.mubr.f32.mxu0 0.0
      %2412 = vmatmul.mubr.f32.gmra.mrb[0].mxu0 %v2232
      %v2413 = vpop.f32.mrb[0].mxu0
      %v2414 = vadd.f32 %v2204, %v2413
      %v2415 = vpop.f32.mrb[0].mxu0
      %2416 = vmatprep.mubr.f32.mxu0 0.0
      %2417 = vmatmul.mubr.f32.gmra.mrb[0].mxu0 %v2235
      %v2418 = vpop.f32.mrb[0].mxu0
      %v2419 = vadd.f32 %v2204, %v2418
      %v2420 = vpop.f32.mrb[0].mxu0
      %2421 = vmatprep.mubr.f32.mxu0 0.0
      %2422 = vmatmul.mubr.f32.gmra.mrb[0].mxu0 %v2238
      %v2423 = vpop.f32.mrb[0].mxu0
      %v2424 = vadd.f32 %v2204, %v2423
      %v2425 = vpop.f32.mrb[0].mxu0
      %2426 = vmatprep.mubr.f32.mxu0 0.0
      %2427 = vmatmul.mubr.f32.gmra.mrb[0].mxu0 %v2241
      %v2428 = vpop.f32.mrb[0].mxu0
      %v2429 = vadd.f32 %v2204, %v2428
      %v2430 = vpop.f32.mrb[0].mxu0
      %2431 = vmatprep.mubr.f32.mxu0 0.0
      %2432 = vmatmul.mubr.f32.gmra.mrb[0].mxu0 %v2244
      %v2433 = vpop.f32.mrb[0].mxu0
      %v2434 = vadd.f32 %v2204, %v2433
      %v2435 = vpop.f32.mrb[0].mxu0
      %2436 = vmatprep.mubr.f32.mxu0 0.0
      %2437 = vmatmul.mubr.f32.gmra.mrb[0].mxu0 %v2247
      %v2438 = vpop.f32.mrb[0].mxu0
      %v2439 = vadd.f32 %v2204, %v2438
      %v2440 = vpop.f32.mrb[0].mxu0
      %2441 = vmatprep.mubr.f32.mxu0 0.0
      %2442 = vmatmul.mubr.f32.gmra.mrb[0].mxu0 %v2250
      %v2443 = vpop.f32.mrb[0].mxu0
      %v2444 = vadd.f32 %v2204, %v2443
      %v2445 = vpop.f32.mrb[0].mxu0
      %2446 = vmatprep.mubr.f32.mxu0 0.0
      %2447 = vmatmul.mubr.f32.gmra.mrb[0].mxu0 %v2253
      %v2448 = vpop.f32.mrb[0].mxu0
      %v2449 = vadd.f32 %v2204, %v2448
      %v2450 = vpop.f32.mrb[0].mxu0
      %2451 = vmatprep.mubr.f32.mxu0 0.0
      %2452 = vmatmul.mubr.f32.gmra.mrb[0].mxu0 %v2256
      %v2453 = vpop.f32.mrb[0].mxu0
      %v2454 = vadd.f32 %v2204, %v2453
      %v2455 = vpop.f32.mrb[0].mxu0
      %2456 = vmatprep.mubr.f32.mxu0 0.0
      %2457 = vmatmul.mubr.f32.gmra.mrb[0].mxu0 %v2259
      %v2458 = vpop.f32.mrb[0].mxu0
      %v2459 = vadd.f32 %v2204, %v2458
      %v2460 = vpop.f32.mrb[0].mxu0
      %2461 = vmatprep.mubr.f32.mxu0 0.0
      %2462 = vmatmul.mubr.f32.gmra.mrb[0].mxu0 %v2262
      %v2463 = vpop.f32.mrb[0].mxu0
      %v2464 = vadd.f32 %v2204, %v2463
      %v2465 = vpop.f32.mrb[0].mxu0
      %2466 = vmatprep.mubr.f32.mxu0 0.0
      %2467 = vmatmul.mubr.f32.gmra.mrb[0].mxu0 %v2265
      %v2468 = vpop.f32.mrb[0].mxu0
      %v2469 = vadd.f32 %v2204, %v2468
      %v2470 = vpop.f32.mrb[0].mxu0
      %2471 = vmatprep.mubr.f32.mxu0 0.0
      %2472 = vmatmul.mubr.f32.gmra.mrb[0].mxu0 %v2268
      %v2473 = vpop.f32.mrb[0].mxu0
      %v2474 = vadd.f32 %v2204, %v2473
      %v2475 = vpop.f32.mrb[0].mxu0
      %2476 = vmatprep.mubr.f32.mxu0 0.0
      %2477 = vmatmul.mubr.f32.gmra.mrb[0].mxu0 %v2271
      %v2478 = vpop.f32.mrb[0].mxu0
      %v2479 = vadd.f32 %v2204, %v2478
      %v2480 = vpop.f32.mrb[0].mxu0
      %2481 = vmatprep.mubr.f32.mxu0 0.0
      %2482 = vmatmul.mubr.f32.gmra.mrb[0].mxu0 %v2274
      %v2483 = vpop.f32.mrb[0].mxu0
      %v2484 = vadd.f32 %v2204, %v2483
      %v2485 = vpop.f32.mrb[0].mxu0
      %2486 = vmatprep.mubr.f32.mxu0 0.0
      %2487 = vmatmul.mubr.f32.gmra.mrb[0].mxu0 %v2277
      %v2488 = vpop.f32.mrb[0].mxu0
      %v2489 = vadd.f32 %v2204, %v2488
      %v2490 = vpop.f32.mrb[0].mxu0
      %2491 = vmatprep.mubr.f32.mxu0 0.0
      %2492 = vmatmul.mubr.f32.gmra.mrb[0].mxu0 %v2280
      %v2493 = vpop.f32.mrb[0].mxu0
      %v2494 = vadd.f32 %v2204, %v2493
      %v2495 = vpop.f32.mrb[0].mxu0
      %2496 = vmatprep.mubr.f32.mxu0 0.0
      %2497 = vmatmul.mubr.f32.gmra.mrb[0].mxu0 %v2283
      %v2498 = vpop.f32.mrb[0].mxu0
      %v2499 = vadd.f32 %v2204, %v2498
      %v2500 = vpop.f32.mrb[0].mxu0
      %2501 = vmatprep.mubr.f32.mxu0 0.0
      %2502 = vmatmul.mubr.f32.gmra.mrb[0].mxu0 %v2286
      %v2503 = vpop.f32.mrb[0].mxu0
      %v2504 = vadd.f32 %v2204, %v2503
      %v2505 = vpop.f32.mrb[0].mxu0
      %2506 = vmatprep.mubr.f32.mxu0 0.0
      %2507 = vmatmul.mubr.f32.gmra.mrb[0].mxu0 %v2289
      %v2508 = vpop.f32.mrb[0].mxu0
      %v2509 = vadd.f32 %v2204, %v2508
      %v2510 = vpop.f32.mrb[0].mxu0
      %2511 = vmatprep.mubr.f32.mxu0 0.0
      %2512 = vmatmul.mubr.f32.gmra.mrb[0].mxu0 %v2292
      %v2513 = vpop.f32.mrb[0].mxu0
      %v2514 = vadd.f32 %v2204, %v2513
      %v2515 = vpop.f32.mrb[0].mxu0
      %2516 = vmatprep.mubr.f32.mxu0 0.0
      %2517 = vmatmul.mubr.f32.gmra.mrb[0].mxu0 %v2295
      %v2518 = vpop.f32.mrb[0].mxu0
      %v2519 = vadd.f32 %v2204, %v2518
      %v2520 = vpop.f32.mrb[0].mxu0
      %2521 = vmatprep.mubr.f32.mxu0 0.0
      %2522 = vmatmul.mubr.f32.gmra.mrb[0].mxu0 %v2298
      %v2523 = vpop.f32.mrb[0].mxu0
      %v2524 = vadd.f32 %v2204, %v2523
      %v2525 = vpop.f32.mrb[0].mxu0
      %2526 = vmatprep.mubr.f32.mxu0 0.0
      %2527 = vmatmul.mubr.f32.gmra.mrb[0].mxu0 %v2301
      %v2528 = vpop.f32.mrb[0].mxu0
      %v2529 = vadd.f32 %v2204, %v2528
      %v2530 = vpop.f32.mrb[0].mxu0
      %2531 = vdwg.mxu0
      %s2532 = scalar_lea.vmem [#allocation3], 24
      %2533 = vst.msk [vmem:[%s2532 + $0x1] sm:$0xff] %vm1963, %v2374
      %2534 = vst.msk [vmem:[%s2532 + $0x9] sm:$0xff] %vm1963, %v2379
      %2535 = vst.msk [vmem:[%s2532 + $0x19] sm:$0xff] %vm1963, %v2384
      %2536 = vst.msk [vmem:[%s2532 + $0x21] sm:$0xff] %vm1963, %v2389
      %2537 = vst.msk [vmem:[%s2532 + $0x31] sm:$0xff] %vm1963, %v2394
      %2538 = vst.msk [vmem:[%s2532 + $0x39] sm:$0xff] %vm1963, %v2399
      %2539 = vst.msk [vmem:[%s2532 + $0x49] sm:$0xff] %vm1963, %v2404
      %2540 = vst.msk [vmem:[%s2532 + $0x51] sm:$0xff] %vm1963, %v2409
      %2541 = vst.msk [vmem:[%s2532 + $0x61] sm:$0xff] %vm1963, %v2414
      %2542 = vst.msk [vmem:[%s2532 + $0x69] sm:$0xff] %vm1963, %v2419
      %2543 = vst.msk [vmem:[%s2532 + $0x79] sm:$0xff] %vm1963, %v2424
      %2544 = vst.msk [vmem:[%s2532 + $0x81] sm:$0xff] %vm1963, %v2429
      %2545 = vst.msk [vmem:[%s2532 + $0x91] sm:$0xff] %vm1963, %v2434
      %2546 = vst.msk [vmem:[%s2532 + $0x99] sm:$0xff] %vm1963, %v2439
      %2547 = vst.msk [vmem:[%s2532 + $0xa9] sm:$0xff] %vm1963, %v2444
      %2548 = vst.msk [vmem:[%s2532 + $0xb1] sm:$0xff] %vm1963, %v2449
      %2549 = vst.msk [vmem:[%s2532 + $0xc1] sm:$0xff] %vm1963, %v2454
      %2550 = vst.msk [vmem:[%s2532 + $0xc9] sm:$0xff] %vm1963, %v2459
      %2551 = vst.msk [vmem:[%s2532 + $0xd9] sm:$0xff] %vm1963, %v2464
      %2552 = vst.msk [vmem:[%s2532 + $0xe1] sm:$0xff] %vm1963, %v2469
      %2553 = vst.msk [vmem:[%s2532 + $0xf1] sm:$0xff] %vm1963, %v2474
      %2554 = vst.msk [vmem:[%s2532 + $0xf9] sm:$0xff] %vm1963, %v2479
      %2555 = vst.msk [vmem:[%s2532 + $0x109] sm:$0xff] %vm1963, %v2484
      %2556 = vst.msk [vmem:[%s2532 + $0x111] sm:$0xff] %vm1963, %v2489
      %2557 = vst.msk [vmem:[%s2532 + $0x121] sm:$0xff] %vm1963, %v2494
      %2558 = vst.msk [vmem:[%s2532 + $0x129] sm:$0xff] %vm1963, %v2499
      %2559 = vst.msk [vmem:[%s2532 + $0x139] sm:$0xff] %vm1963, %v2504
      %2560 = vst.msk [vmem:[%s2532 + $0x141] sm:$0xff] %vm1963, %v2509
      %2561 = vst.msk [vmem:[%s2532 + $0x151] sm:$0xff] %vm1963, %v2514
      %2562 = vst.msk [vmem:[%s2532 + $0x159] sm:$0xff] %vm1963, %v2519
      %2563 = vst.msk [vmem:[%s2532 + $0x169] sm:$0xff] %vm1963, %v2524
      %2564 = vst.msk [vmem:[%s2532 + $0x171] sm:$0xff] %vm1963, %v2529
      %2597 = vrot.lane.b32.xlu0 %v2374, 16
      %v2598 = vpop.permute.xlu0 %2597
      %2599 = vrot.lane.b32.xlu0 %v2379, 16
      %v2600 = vpop.permute.xlu0 %2599
      %2601 = vrot.lane.b32.xlu0 %v2384, 16
      %v2602 = vpop.permute.xlu0 %2601
      %2603 = vrot.lane.b32.xlu0 %v2389, 16
      %v2604 = vpop.permute.xlu0 %2603
      %2605 = vrot.lane.b32.xlu0 %v2394, 16
      %v2606 = vpop.permute.xlu0 %2605
      %2607 = vrot.lane.b32.xlu0 %v2399, 16
      %v2608 = vpop.permute.xlu0 %2607
      %2609 = vrot.lane.b32.xlu0 %v2404, 16
      %v2610 = vpop.permute.xlu0 %2609
      %2611 = vrot.lane.b32.xlu0 %v2409, 16
      %v2612 = vpop.permute.xlu0 %2611
      %2613 = vrot.lane.b32.xlu0 %v2414, 16
      %v2614 = vpop.permute.xlu0 %2613
      %2615 = vrot.lane.b32.xlu0 %v2419, 16
      %v2616 = vpop.permute.xlu0 %2615
      %2617 = vrot.lane.b32.xlu0 %v2424, 16
      %v2618 = vpop.permute.xlu0 %2617
      %2619 = vrot.lane.b32.xlu0 %v2429, 16
      %v2620 = vpop.permute.xlu0 %2619
      %2621 = vrot.lane.b32.xlu0 %v2434, 16
      %v2622 = vpop.permute.xlu0 %2621
      %2623 = vrot.lane.b32.xlu0 %v2439, 16
      %v2624 = vpop.permute.xlu0 %2623
      %2625 = vrot.lane.b32.xlu0 %v2444, 16
      %v2626 = vpop.permute.xlu0 %2625
      %2627 = vrot.lane.b32.xlu0 %v2449, 16
      %v2628 = vpop.permute.xlu0 %2627
      %2629 = vrot.lane.b32.xlu0 %v2454, 16
      %v2630 = vpop.permute.xlu0 %2629
      %2631 = vrot.lane.b32.xlu0 %v2459, 16
      %v2632 = vpop.permute.xlu0 %2631
      %2633 = vrot.lane.b32.xlu0 %v2464, 16
      %v2634 = vpop.permute.xlu0 %2633
      %2635 = vrot.lane.b32.xlu0 %v2469, 16
      %v2636 = vpop.permute.xlu0 %2635
      %2637 = vrot.lane.b32.xlu0 %v2474, 16
      %v2638 = vpop.permute.xlu0 %2637
      %2639 = vrot.lane.b32.xlu0 %v2479, 16
      %v2640 = vpop.permute.xlu0 %2639
      %2641 = vrot.lane.b32.xlu0 %v2484, 16
      %v2642 = vpop.permute.xlu0 %2641
      %2643 = vrot.lane.b32.xlu0 %v2489, 16
      %v2644 = vpop.permute.xlu0 %2643
      %2645 = vrot.lane.b32.xlu0 %v2494, 16
      %v2646 = vpop.permute.xlu0 %2645
      %2647 = vrot.lane.b32.xlu0 %v2499, 16
      %v2648 = vpop.permute.xlu0 %2647
      %2649 = vrot.lane.b32.xlu0 %v2504, 16
      %v2650 = vpop.permute.xlu0 %2649
      %2651 = vrot.lane.b32.xlu0 %v2509, 16
      %v2652 = vpop.permute.xlu0 %2651
      %2653 = vrot.lane.b32.xlu0 %v2514, 16
      %v2654 = vpop.permute.xlu0 %2653
      %2655 = vrot.lane.b32.xlu0 %v2519, 16
      %v2656 = vpop.permute.xlu0 %2655
      %2657 = vrot.lane.b32.xlu0 %v2524, 16
      %v2658 = vpop.permute.xlu0 %2657
      %2659 = vrot.lane.b32.xlu0 %v2529, 16
      %v2660 = vpop.permute.xlu0 %2659
      %vm2693 = vcmask 261312
      %2694 = vst.msk [vmem:[%s2532 + $0x1] sm:$0xff] %vm2693, %v2598
      %2695 = vst.msk [vmem:[%s2532 + $0x9] sm:$0xff] %vm2693, %v2600
      %2696 = vst.msk [vmem:[%s2532 + $0x19] sm:$0xff] %vm2693, %v2602
      %2697 = vst.msk [vmem:[%s2532 + $0x21] sm:$0xff] %vm2693, %v2604
      %2698 = vst.msk [vmem:[%s2532 + $0x31] sm:$0xff] %vm2693, %v2606
      %2699 = vst.msk [vmem:[%s2532 + $0x39] sm:$0xff] %vm2693, %v2608
      %2700 = vst.msk [vmem:[%s2532 + $0x49] sm:$0xff] %vm2693, %v2610
      %2701 = vst.msk [vmem:[%s2532 + $0x51] sm:$0xff] %vm2693, %v2612
      %2702 = vst.msk [vmem:[%s2532 + $0x61] sm:$0xff] %vm2693, %v2614
      %2703 = vst.msk [vmem:[%s2532 + $0x69] sm:$0xff] %vm2693, %v2616
      %2704 = vst.msk [vmem:[%s2532 + $0x79] sm:$0xff] %vm2693, %v2618
      %2705 = vst.msk [vmem:[%s2532 + $0x81] sm:$0xff] %vm2693, %v2620
      %2706 = vst.msk [vmem:[%s2532 + $0x91] sm:$0xff] %vm2693, %v2622
      %2707 = vst.msk [vmem:[%s2532 + $0x99] sm:$0xff] %vm2693, %v2624
      %2708 = vst.msk [vmem:[%s2532 + $0xa9] sm:$0xff] %vm2693, %v2626
      %2709 = vst.msk [vmem:[%s2532 + $0xb1] sm:$0xff] %vm2693, %v2628
      %2710 = vst.msk [vmem:[%s2532 + $0xc1] sm:$0xff] %vm2693, %v2630
      %2711 = vst.msk [vmem:[%s2532 + $0xc9] sm:$0xff] %vm2693, %v2632
      %2712 = vst.msk [vmem:[%s2532 + $0xd9] sm:$0xff] %vm2693, %v2634
      %2713 = vst.msk [vmem:[%s2532 + $0xe1] sm:$0xff] %vm2693, %v2636
      %2714 = vst.msk [vmem:[%s2532 + $0xf1] sm:$0xff] %vm2693, %v2638
      %2715 = vst.msk [vmem:[%s2532 + $0xf9] sm:$0xff] %vm2693, %v2640
      %2716 = vst.msk [vmem:[%s2532 + $0x109] sm:$0xff] %vm2693, %v2642
      %2717 = vst.msk [vmem:[%s2532 + $0x111] sm:$0xff] %vm2693, %v2644
      %2718 = vst.msk [vmem:[%s2532 + $0x121] sm:$0xff] %vm2693, %v2646
      %2719 = vst.msk [vmem:[%s2532 + $0x129] sm:$0xff] %vm2693, %v2648
      %2720 = vst.msk [vmem:[%s2532 + $0x139] sm:$0xff] %vm2693, %v2650
      %2721 = vst.msk [vmem:[%s2532 + $0x141] sm:$0xff] %vm2693, %v2652
      %2722 = vst.msk [vmem:[%s2532 + $0x151] sm:$0xff] %vm2693, %v2654
      %2723 = vst.msk [vmem:[%s2532 + $0x159] sm:$0xff] %vm2693, %v2656
      %2724 = vst.msk [vmem:[%s2532 + $0x169] sm:$0xff] %vm2693, %v2658
      %2725 = vst.msk [vmem:[%s2532 + $0x171] sm:$0xff] %vm2693, %v2660
      %v2726 = vld [vmem:[#allocation3] sm:$0xff]
      %v2727 = vld [vmem:[#allocation3 + $0x8] sm:$0xff]
      %v2728 = vld [vmem:[#allocation3 + $0x18] sm:$0xff]
      %v2729 = vld [vmem:[#allocation3 + $0x20] sm:$0xff]
      %v2730 = vld [vmem:[#allocation3 + $0x30] sm:$0xff]
      %v2731 = vld [vmem:[#allocation3 + $0x38] sm:$0xff]
      %v2732 = vld [vmem:[#allocation3 + $0x48] sm:$0xff]
      %v2733 = vld [vmem:[#allocation3 + $0x50] sm:$0xff]
      %v2734 = vld [vmem:[#allocation3 + $0x60] sm:$0xff]
      %v2735 = vld [vmem:[#allocation3 + $0x68] sm:$0xff]
      %v2736 = vld [vmem:[#allocation3 + $0x78] sm:$0xff]
      %v2737 = vld [vmem:[#allocation3 + $0x80] sm:$0xff]
      %v2738 = vld [vmem:[#allocation3 + $0x90] sm:$0xff]
      %v2739 = vld [vmem:[#allocation3 + $0x98] sm:$0xff]
      %v2740 = vld [vmem:[#allocation3 + $0xa8] sm:$0xff]
      %v2741 = vld [vmem:[#allocation3 + $0xb0] sm:$0xff]
      %v2742 = vld [vmem:[#allocation3 + $0xc0] sm:$0xff]
      %v2743 = vld [vmem:[#allocation3 + $0xc8] sm:$0xff]
      %v2744 = vld [vmem:[#allocation3 + $0xd8] sm:$0xff]
      %v2745 = vld [vmem:[#allocation3 + $0xe0] sm:$0xff]
      %v2746 = vld [vmem:[#allocation3 + $0xf0] sm:$0xff]
      %v2747 = vld [vmem:[#allocation3 + $0xf8] sm:$0xff]
      %v2748 = vld [vmem:[#allocation3 + $0x108] sm:$0xff]
      %v2749 = vld [vmem:[#allocation3 + $0x110] sm:$0xff]
      %v2750 = vld [vmem:[#allocation3 + $0x120] sm:$0xff]
      %v2751 = vld [vmem:[#allocation3 + $0x128] sm:$0xff]
      %v2752 = vld [vmem:[#allocation3 + $0x138] sm:$0xff]
      %v2753 = vld [vmem:[#allocation3 + $0x140] sm:$0xff]
      %v2754 = vld [vmem:[#allocation3 + $0x150] sm:$0xff]
      %v2755 = vld [vmem:[#allocation3 + $0x158] sm:$0xff]
      %v2756 = vld [vmem:[#allocation3 + $0x168] sm:$0xff]
      %v2757 = vld [vmem:[#allocation3 + $0x170] sm:$0xff]
      %v2758 = vld [vmem:[#allocation3 + $0x1] sm:$0xff]
      %v2759 = vld [vmem:[#allocation3 + $0x9] sm:$0xff]
      %v2760 = vld [vmem:[#allocation3 + $0x19] sm:$0xff]
      %v2761 = vld [vmem:[#allocation3 + $0x21] sm:$0xff]
      %v2762 = vld [vmem:[#allocation3 + $0x31] sm:$0xff]
      %v2763 = vld [vmem:[#allocation3 + $0x39] sm:$0xff]
      %v2764 = vld [vmem:[#allocation3 + $0x49] sm:$0xff]
      %v2765 = vld [vmem:[#allocation3 + $0x51] sm:$0xff]
      %v2766 = vld [vmem:[#allocation3 + $0x61] sm:$0xff]
      %v2767 = vld [vmem:[#allocation3 + $0x69] sm:$0xff]
      %v2768 = vld [vmem:[#allocation3 + $0x79] sm:$0xff]
      %v2769 = vld [vmem:[#allocation3 + $0x81] sm:$0xff]
      %v2770 = vld [vmem:[#allocation3 + $0x91] sm:$0xff]
      %v2771 = vld [vmem:[#allocation3 + $0x99] sm:$0xff]
      %v2772 = vld [vmem:[#allocation3 + $0xa9] sm:$0xff]
      %v2773 = vld [vmem:[#allocation3 + $0xb1] sm:$0xff]
      %v2774 = vld [vmem:[#allocation3 + $0xc1] sm:$0xff]
      %v2775 = vld [vmem:[#allocation3 + $0xc9] sm:$0xff]
      %v2776 = vld [vmem:[#allocation3 + $0xd9] sm:$0xff]
      %v2777 = vld [vmem:[#allocation3 + $0xe1] sm:$0xff]
      %v2778 = vld [vmem:[#allocation3 + $0xf1] sm:$0xff]
      %v2779 = vld [vmem:[#allocation3 + $0xf9] sm:$0xff]
      %v2780 = vld [vmem:[#allocation3 + $0x109] sm:$0xff]
      %v2781 = vld [vmem:[#allocation3 + $0x111] sm:$0xff]
      %v2782 = vld [vmem:[#allocation3 + $0x121] sm:$0xff]
      %v2783 = vld [vmem:[#allocation3 + $0x129] sm:$0xff]
      %v2784 = vld [vmem:[#allocation3 + $0x139] sm:$0xff]
      %v2785 = vld [vmem:[#allocation3 + $0x141] sm:$0xff]
      %v2786 = vld [vmem:[#allocation3 + $0x151] sm:$0xff]
      %v2787 = vld [vmem:[#allocation3 + $0x159] sm:$0xff]
      %v2788 = vld [vmem:[#allocation3 + $0x169] sm:$0xff]
      %v2789 = vld [vmem:[#allocation3 + $0x171] sm:$0xff]
      %v2790 = vld [vmem:[#allocation3 + $0x2] sm:$0xff]
      %v2791 = vld [vmem:[#allocation3 + $0xa] sm:$0xff]
      %v2792 = vld [vmem:[#allocation3 + $0x1a] sm:$0xff]
      %v2793 = vld [vmem:[#allocation3 + $0x22] sm:$0xff]
      %v2794 = vld [vmem:[#allocation3 + $0x32] sm:$0xff]
      %v2795 = vld [vmem:[#allocation3 + $0x3a] sm:$0xff]
      %v2796 = vld [vmem:[#allocation3 + $0x4a] sm:$0xff]
      %v2797 = vld [vmem:[#allocation3 + $0x52] sm:$0xff]
      %v2798 = vld [vmem:[#allocation3 + $0x62] sm:$0xff]
      %v2799 = vld [vmem:[#allocation3 + $0x6a] sm:$0xff]
      %v2800 = vld [vmem:[#allocation3 + $0x7a] sm:$0xff]
      %v2801 = vld [vmem:[#allocation3 + $0x82] sm:$0xff]
      %v2802 = vld [vmem:[#allocation3 + $0x92] sm:$0xff]
      %v2803 = vld [vmem:[#allocation3 + $0x9a] sm:$0xff]
      %v2804 = vld [vmem:[#allocation3 + $0xaa] sm:$0xff]
      %v2805 = vld [vmem:[#allocation3 + $0xb2] sm:$0xff]
      %v2806 = vld [vmem:[#allocation3 + $0xc2] sm:$0xff]
      %v2807 = vld [vmem:[#allocation3 + $0xca] sm:$0xff]
      %v2808 = vld [vmem:[#allocation3 + $0xda] sm:$0xff]
      %v2809 = vld [vmem:[#allocation3 + $0xe2] sm:$0xff]
      %v2810 = vld [vmem:[#allocation3 + $0xf2] sm:$0xff]
      %v2811 = vld [vmem:[#allocation3 + $0xfa] sm:$0xff]
      %v2812 = vld [vmem:[#allocation3 + $0x10a] sm:$0xff]
      %v2813 = vld [vmem:[#allocation3 + $0x112] sm:$0xff]
      %v2814 = vld [vmem:[#allocation3 + $0x122] sm:$0xff]
      %v2815 = vld [vmem:[#allocation3 + $0x12a] sm:$0xff]
      %v2816 = vld [vmem:[#allocation3 + $0x13a] sm:$0xff]
      %v2817 = vld [vmem:[#allocation3 + $0x142] sm:$0xff]
      %v2818 = vld [vmem:[#allocation3 + $0x152] sm:$0xff]
      %v2819 = vld [vmem:[#allocation3 + $0x15a] sm:$0xff]
      %v2820 = vld [vmem:[#allocation3 + $0x16a] sm:$0xff]
      %v2821 = vld [vmem:[#allocation3 + $0x172] sm:$0xff]
      %v2822 = vld [vmem:[%s2532] sm:$0xff]
      %v2823 = vld [vmem:[%s2532 + $0x8] sm:$0xff]
      %v2824 = vld [vmem:[%s2532 + $0x18] sm:$0xff]
      %v2825 = vld [vmem:[%s2532 + $0x20] sm:$0xff]
      %v2826 = vld [vmem:[%s2532 + $0x30] sm:$0xff]
      %v2827 = vld [vmem:[%s2532 + $0x38] sm:$0xff]
      %v2828 = vld [vmem:[%s2532 + $0x48] sm:$0xff]
      %v2829 = vld [vmem:[%s2532 + $0x50] sm:$0xff]
      %v2830 = vld [vmem:[%s2532 + $0x60] sm:$0xff]
      %v2831 = vld [vmem:[%s2532 + $0x68] sm:$0xff]
      %v2832 = vld [vmem:[%s2532 + $0x78] sm:$0xff]
      %v2833 = vld [vmem:[%s2532 + $0x80] sm:$0xff]
      %v2834 = vld [vmem:[%s2532 + $0x90] sm:$0xff]
      %v2835 = vld [vmem:[%s2532 + $0x98] sm:$0xff]
      %v2836 = vld [vmem:[%s2532 + $0xa8] sm:$0xff]
      %v2837 = vld [vmem:[%s2532 + $0xb0] sm:$0xff]
      %v2838 = vld [vmem:[%s2532 + $0xc0] sm:$0xff]
      %v2839 = vld [vmem:[%s2532 + $0xc8] sm:$0xff]
      %v2840 = vld [vmem:[%s2532 + $0xd8] sm:$0xff]
      %v2841 = vld [vmem:[%s2532 + $0xe0] sm:$0xff]
      %v2842 = vld [vmem:[%s2532 + $0xf0] sm:$0xff]
      %v2843 = vld [vmem:[%s2532 + $0xf8] sm:$0xff]
      %v2844 = vld [vmem:[%s2532 + $0x108] sm:$0xff]
      %v2845 = vld [vmem:[%s2532 + $0x110] sm:$0xff]
      %v2846 = vld [vmem:[%s2532 + $0x120] sm:$0xff]
      %v2847 = vld [vmem:[%s2532 + $0x128] sm:$0xff]
      %v2848 = vld [vmem:[%s2532 + $0x138] sm:$0xff]
      %v2849 = vld [vmem:[%s2532 + $0x140] sm:$0xff]
      %v2850 = vld [vmem:[%s2532 + $0x150] sm:$0xff]
      %v2851 = vld [vmem:[%s2532 + $0x158] sm:$0xff]
      %v2852 = vld [vmem:[%s2532 + $0x168] sm:$0xff]
      %v2853 = vld [vmem:[%s2532 + $0x170] sm:$0xff]
      %v2854 = vld [vmem:[%s2532 + $0x1] sm:$0xff]
      %v2855 = vld [vmem:[%s2532 + $0x9] sm:$0xff]
      %v2856 = vld [vmem:[%s2532 + $0x19] sm:$0xff]
      %v2857 = vld [vmem:[%s2532 + $0x21] sm:$0xff]
      %v2858 = vld [vmem:[%s2532 + $0x31] sm:$0xff]
      %v2859 = vld [vmem:[%s2532 + $0x39] sm:$0xff]
      %v2860 = vld [vmem:[%s2532 + $0x49] sm:$0xff]
      %v2861 = vld [vmem:[%s2532 + $0x51] sm:$0xff]
      %v2862 = vld [vmem:[%s2532 + $0x61] sm:$0xff]
      %v2863 = vld [vmem:[%s2532 + $0x69] sm:$0xff]
      %v2864 = vld [vmem:[%s2532 + $0x79] sm:$0xff]
      %v2865 = vld [vmem:[%s2532 + $0x81] sm:$0xff]
      %v2866 = vld [vmem:[%s2532 + $0x91] sm:$0xff]
      %v2867 = vld [vmem:[%s2532 + $0x99] sm:$0xff]
      %v2868 = vld [vmem:[%s2532 + $0xa9] sm:$0xff]
      %v2869 = vld [vmem:[%s2532 + $0xb1] sm:$0xff]
      %v2870 = vld [vmem:[%s2532 + $0xc1] sm:$0xff]
      %v2871 = vld [vmem:[%s2532 + $0xc9] sm:$0xff]
      %v2872 = vld [vmem:[%s2532 + $0xd9] sm:$0xff]
      %v2873 = vld [vmem:[%s2532 + $0xe1] sm:$0xff]
      %v2874 = vld [vmem:[%s2532 + $0xf1] sm:$0xff]
      %v2875 = vld [vmem:[%s2532 + $0xf9] sm:$0xff]
      %v2876 = vld [vmem:[%s2532 + $0x109] sm:$0xff]
      %v2877 = vld [vmem:[%s2532 + $0x111] sm:$0xff]
      %v2878 = vld [vmem:[%s2532 + $0x121] sm:$0xff]
      %v2879 = vld [vmem:[%s2532 + $0x129] sm:$0xff]
      %v2880 = vld [vmem:[%s2532 + $0x139] sm:$0xff]
      %v2881 = vld [vmem:[%s2532 + $0x141] sm:$0xff]
      %v2882 = vld [vmem:[%s2532 + $0x151] sm:$0xff]
      %v2883 = vld [vmem:[%s2532 + $0x159] sm:$0xff]
      %v2884 = vld [vmem:[%s2532 + $0x169] sm:$0xff]
      %v2885 = vld [vmem:[%s2532 + $0x171] sm:$0xff]
      %v2886 = vld [vmem:[%s2532 + $0x2] sm:$0xff]
      %v2887 = vld [vmem:[%s2532 + $0xa] sm:$0xff]
      %v2888 = vld [vmem:[%s2532 + $0x1a] sm:$0xff]
      %v2889 = vld [vmem:[%s2532 + $0x22] sm:$0xff]
      %v2890 = vld [vmem:[%s2532 + $0x32] sm:$0xff]
      %v2891 = vld [vmem:[%s2532 + $0x3a] sm:$0xff]
      %v2892 = vld [vmem:[%s2532 + $0x4a] sm:$0xff]
      %v2893 = vld [vmem:[%s2532 + $0x52] sm:$0xff]
      %v2894 = vld [vmem:[%s2532 + $0x62] sm:$0xff]
      %v2895 = vld [vmem:[%s2532 + $0x6a] sm:$0xff]
      %v2896 = vld [vmem:[%s2532 + $0x7a] sm:$0xff]
      %v2897 = vld [vmem:[%s2532 + $0x82] sm:$0xff]
      %v2898 = vld [vmem:[%s2532 + $0x92] sm:$0xff]
      %v2899 = vld [vmem:[%s2532 + $0x9a] sm:$0xff]
      %v2900 = vld [vmem:[%s2532 + $0xaa] sm:$0xff]
      %v2901 = vld [vmem:[%s2532 + $0xb2] sm:$0xff]
      %v2902 = vld [vmem:[%s2532 + $0xc2] sm:$0xff]
      %v2903 = vld [vmem:[%s2532 + $0xca] sm:$0xff]
      %v2904 = vld [vmem:[%s2532 + $0xda] sm:$0xff]
      %v2905 = vld [vmem:[%s2532 + $0xe2] sm:$0xff]
      %v2906 = vld [vmem:[%s2532 + $0xf2] sm:$0xff]
      %v2907 = vld [vmem:[%s2532 + $0xfa] sm:$0xff]
      %v2908 = vld [vmem:[%s2532 + $0x10a] sm:$0xff]
      %v2909 = vld [vmem:[%s2532 + $0x112] sm:$0xff]
      %v2910 = vld [vmem:[%s2532 + $0x122] sm:$0xff]
      %v2911 = vld [vmem:[%s2532 + $0x12a] sm:$0xff]
      %v2912 = vld [vmem:[%s2532 + $0x13a] sm:$0xff]
      %v2913 = vld [vmem:[%s2532 + $0x142] sm:$0xff]
      %v2914 = vld [vmem:[%s2532 + $0x152] sm:$0xff]
      %v2915 = vld [vmem:[%s2532 + $0x15a] sm:$0xff]
      %v2916 = vld [vmem:[%s2532 + $0x16a] sm:$0xff]
      %v2917 = vld [vmem:[%s2532 + $0x172] sm:$0xff]
      %s2918 = scalar_lea.vmem [#allocation3], 48
      %v2919 = vld [vmem:[%s2918] sm:$0xff]
      %v2920 = vld [vmem:[%s2918 + $0x8] sm:$0xff]
      %v2921 = vld [vmem:[%s2918 + $0x18] sm:$0xff]
      %v2922 = vld [vmem:[%s2918 + $0x20] sm:$0xff]
      %v2923 = vld [vmem:[%s2918 + $0x30] sm:$0xff]
      %v2924 = vld [vmem:[%s2918 + $0x38] sm:$0xff]
      %v2925 = vld [vmem:[%s2918 + $0x48] sm:$0xff]
      %v2926 = vld [vmem:[%s2918 + $0x50] sm:$0xff]
      %v2927 = vld [vmem:[%s2918 + $0x60] sm:$0xff]
      %v2928 = vld [vmem:[%s2918 + $0x68] sm:$0xff]
      %v2929 = vld [vmem:[%s2918 + $0x78] sm:$0xff]
      %v2930 = vld [vmem:[%s2918 + $0x80] sm:$0xff]
      %v2931 = vld [vmem:[%s2918 + $0x90] sm:$0xff]
      %v2932 = vld [vmem:[%s2918 + $0x98] sm:$0xff]
      %v2933 = vld [vmem:[%s2918 + $0xa8] sm:$0xff]
      %v2934 = vld [vmem:[%s2918 + $0xb0] sm:$0xff]
      %v2935 = vld [vmem:[%s2918 + $0xc0] sm:$0xff]
      %v2936 = vld [vmem:[%s2918 + $0xc8] sm:$0xff]
      %v2937 = vld [vmem:[%s2918 + $0xd8] sm:$0xff]
      %v2938 = vld [vmem:[%s2918 + $0xe0] sm:$0xff]
      %v2939 = vld [vmem:[%s2918 + $0xf0] sm:$0xff]
      %v2940 = vld [vmem:[%s2918 + $0xf8] sm:$0xff]
      %v2941 = vld [vmem:[%s2918 + $0x108] sm:$0xff]
      %v2942 = vld [vmem:[%s2918 + $0x110] sm:$0xff]
      %v2943 = vld [vmem:[%s2918 + $0x120] sm:$0xff]
      %v2944 = vld [vmem:[%s2918 + $0x128] sm:$0xff]
      %v2945 = vld [vmem:[%s2918 + $0x138] sm:$0xff]
      %v2946 = vld [vmem:[%s2918 + $0x140] sm:$0xff]
      %v2947 = vld [vmem:[%s2918 + $0x150] sm:$0xff]
      %v2948 = vld [vmem:[%s2918 + $0x158] sm:$0xff]
      %v2949 = vld [vmem:[%s2918 + $0x168] sm:$0xff]
      %v2950 = vld [vmem:[%s2918 + $0x170] sm:$0xff]
      %v2951 = vld [vmem:[%s2918 + $0x1] sm:$0xff]
      %v2952 = vld [vmem:[%s2918 + $0x9] sm:$0xff]
      %v2953 = vld [vmem:[%s2918 + $0x19] sm:$0xff]
      %v2954 = vld [vmem:[%s2918 + $0x21] sm:$0xff]
      %v2955 = vld [vmem:[%s2918 + $0x31] sm:$0xff]
      %v2956 = vld [vmem:[%s2918 + $0x39] sm:$0xff]
      %v2957 = vld [vmem:[%s2918 + $0x49] sm:$0xff]
      %v2958 = vld [vmem:[%s2918 + $0x51] sm:$0xff]
      %v2959 = vld [vmem:[%s2918 + $0x61] sm:$0xff]
      %v2960 = vld [vmem:[%s2918 + $0x69] sm:$0xff]
      %v2961 = vld [vmem:[%s2918 + $0x79] sm:$0xff]
      %v2962 = vld [vmem:[%s2918 + $0x81] sm:$0xff]
      %v2963 = vld [vmem:[%s2918 + $0x91] sm:$0xff]
      %v2964 = vld [vmem:[%s2918 + $0x99] sm:$0xff]
      %v2965 = vld [vmem:[%s2918 + $0xa9] sm:$0xff]
      %v2966 = vld [vmem:[%s2918 + $0xb1] sm:$0xff]
      %v2967 = vld [vmem:[%s2918 + $0xc1] sm:$0xff]
      %v2968 = vld [vmem:[%s2918 + $0xc9] sm:$0xff]
      %v2969 = vld [vmem:[%s2918 + $0xd9] sm:$0xff]
      %v2970 = vld [vmem:[%s2918 + $0xe1] sm:$0xff]
      %v2971 = vld [vmem:[%s2918 + $0xf1] sm:$0xff]
      %v2972 = vld [vmem:[%s2918 + $0xf9] sm:$0xff]
      %v2973 = vld [vmem:[%s2918 + $0x109] sm:$0xff]
      %v2974 = vld [vmem:[%s2918 + $0x111] sm:$0xff]
      %v2975 = vld [vmem:[%s2918 + $0x121] sm:$0xff]
      %v2976 = vld [vmem:[%s2918 + $0x129] sm:$0xff]
      %v2977 = vld [vmem:[%s2918 + $0x139] sm:$0xff]
      %v2978 = vld [vmem:[%s2918 + $0x141] sm:$0xff]
      %v2979 = vld [vmem:[%s2918 + $0x151] sm:$0xff]
      %v2980 = vld [vmem:[%s2918 + $0x159] sm:$0xff]
      %v2981 = vld [vmem:[%s2918 + $0x169] sm:$0xff]
      %v2982 = vld [vmem:[%s2918 + $0x171] sm:$0xff]
      %v2983 = vld [vmem:[%s2918 + $0x2] sm:$0xff]
      %v2984 = vld [vmem:[%s2918 + $0xa] sm:$0xff]
      %v2985 = vld [vmem:[%s2918 + $0x1a] sm:$0xff]
      %v2986 = vld [vmem:[%s2918 + $0x22] sm:$0xff]
      %v2987 = vld [vmem:[%s2918 + $0x32] sm:$0xff]
      %v2988 = vld [vmem:[%s2918 + $0x3a] sm:$0xff]
      %v2989 = vld [vmem:[%s2918 + $0x4a] sm:$0xff]
      %v2990 = vld [vmem:[%s2918 + $0x52] sm:$0xff]
      %v2991 = vld [vmem:[%s2918 + $0x62] sm:$0xff]
      %v2992 = vld [vmem:[%s2918 + $0x6a] sm:$0xff]
      %v2993 = vld [vmem:[%s2918 + $0x7a] sm:$0xff]
      %v2994 = vld [vmem:[%s2918 + $0x82] sm:$0xff]
      %v2995 = vld [vmem:[%s2918 + $0x92] sm:$0xff]
      %v2996 = vld [vmem:[%s2918 + $0x9a] sm:$0xff]
      %v2997 = vld [vmem:[%s2918 + $0xaa] sm:$0xff]
      %v2998 = vld [vmem:[%s2918 + $0xb2] sm:$0xff]
      %v2999 = vld [vmem:[%s2918 + $0xc2] sm:$0xff]
      %v3000 = vld [vmem:[%s2918 + $0xca] sm:$0xff]
      %v3001 = vld [vmem:[%s2918 + $0xda] sm:$0xff]
      %v3002 = vld [vmem:[%s2918 + $0xe2] sm:$0xff]
      %v3003 = vld [vmem:[%s2918 + $0xf2] sm:$0xff]
      %v3004 = vld [vmem:[%s2918 + $0xfa] sm:$0xff]
      %v3005 = vld [vmem:[%s2918 + $0x10a] sm:$0xff]
      %v3006 = vld [vmem:[%s2918 + $0x112] sm:$0xff]
      %v3007 = vld [vmem:[%s2918 + $0x122] sm:$0xff]
      %v3008 = vld [vmem:[%s2918 + $0x12a] sm:$0xff]
      %v3009 = vld [vmem:[%s2918 + $0x13a] sm:$0xff]
      %v3010 = vld [vmem:[%s2918 + $0x142] sm:$0xff]
      %v3011 = vld [vmem:[%s2918 + $0x152] sm:$0xff]
      %v3012 = vld [vmem:[%s2918 + $0x15a] sm:$0xff]
      %v3013 = vld [vmem:[%s2918 + $0x16a] sm:$0xff]
      %v3014 = vld [vmem:[%s2918 + $0x172] sm:$0xff]
      %3047 = vrot.lane.b32.xlu0 %v2758, 8
      %v3048 = vpop.permute.xlu0 %3047
      %3049 = vrot.lane.b32.xlu0 %v2759, 8
      %v3050 = vpop.permute.xlu0 %3049
      %3051 = vrot.lane.b32.xlu0 %v2760, 8
      %v3052 = vpop.permute.xlu0 %3051
      %3053 = vrot.lane.b32.xlu0 %v2761, 8
      %v3054 = vpop.permute.xlu0 %3053
      %3055 = vrot.lane.b32.xlu0 %v2762, 8
      %v3056 = vpop.permute.xlu0 %3055
      %3057 = vrot.lane.b32.xlu0 %v2763, 8
      %v3058 = vpop.permute.xlu0 %3057
      %3059 = vrot.lane.b32.xlu0 %v2764, 8
      %v3060 = vpop.permute.xlu0 %3059
      %3061 = vrot.lane.b32.xlu0 %v2765, 8
      %v3062 = vpop.permute.xlu0 %3061
      %3063 = vrot.lane.b32.xlu0 %v2766, 8
      %v3064 = vpop.permute.xlu0 %3063
      %3065 = vrot.lane.b32.xlu0 %v2767, 8
      %v3066 = vpop.permute.xlu0 %3065
      %3067 = vrot.lane.b32.xlu0 %v2768, 8
      %v3068 = vpop.permute.xlu0 %3067
      %3069 = vrot.lane.b32.xlu0 %v2769, 8
      %v3070 = vpop.permute.xlu0 %3069
      %3071 = vrot.lane.b32.xlu0 %v2770, 8
      %v3072 = vpop.permute.xlu0 %3071
      %3073 = vrot.lane.b32.xlu0 %v2771, 8
      %v3074 = vpop.permute.xlu0 %3073
      %3075 = vrot.lane.b32.xlu0 %v2772, 8
      %v3076 = vpop.permute.xlu0 %3075
      %3077 = vrot.lane.b32.xlu0 %v2773, 8
      %v3078 = vpop.permute.xlu0 %3077
      %3079 = vrot.lane.b32.xlu0 %v2774, 8
      %v3080 = vpop.permute.xlu0 %3079
      %3081 = vrot.lane.b32.xlu0 %v2775, 8
      %v3082 = vpop.permute.xlu0 %3081
      %3083 = vrot.lane.b32.xlu0 %v2776, 8
      %v3084 = vpop.permute.xlu0 %3083
      %3085 = vrot.lane.b32.xlu0 %v2777, 8
      %v3086 = vpop.permute.xlu0 %3085
      %3087 = vrot.lane.b32.xlu0 %v2778, 8
      %v3088 = vpop.permute.xlu0 %3087
      %3089 = vrot.lane.b32.xlu0 %v2779, 8
      %v3090 = vpop.permute.xlu0 %3089
      %3091 = vrot.lane.b32.xlu0 %v2780, 8
      %v3092 = vpop.permute.xlu0 %3091
      %3093 = vrot.lane.b32.xlu0 %v2781, 8
      %v3094 = vpop.permute.xlu0 %3093
      %3095 = vrot.lane.b32.xlu0 %v2782, 8
      %v3096 = vpop.permute.xlu0 %3095
      %3097 = vrot.lane.b32.xlu0 %v2783, 8
      %v3098 = vpop.permute.xlu0 %3097
      %3099 = vrot.lane.b32.xlu0 %v2784, 8
      %v3100 = vpop.permute.xlu0 %3099
      %3101 = vrot.lane.b32.xlu0 %v2785, 8
      %v3102 = vpop.permute.xlu0 %3101
      %3103 = vrot.lane.b32.xlu0 %v2786, 8
      %v3104 = vpop.permute.xlu0 %3103
      %3105 = vrot.lane.b32.xlu0 %v2787, 8
      %v3106 = vpop.permute.xlu0 %3105
      %3107 = vrot.lane.b32.xlu0 %v2788, 8
      %v3108 = vpop.permute.xlu0 %3107
      %3109 = vrot.lane.b32.xlu0 %v2789, 8
      %v3110 = vpop.permute.xlu0 %3109
      %3175 = vrot.lane.b32.xlu0 %v2790, 16
      %v3176 = vpop.permute.xlu0 %3175
      %3177 = vrot.lane.b32.xlu0 %v2791, 16
      %v3178 = vpop.permute.xlu0 %3177
      %3179 = vrot.lane.b32.xlu0 %v2792, 16
      %v3180 = vpop.permute.xlu0 %3179
      %3181 = vrot.lane.b32.xlu0 %v2793, 16
      %v3182 = vpop.permute.xlu0 %3181
      %3183 = vrot.lane.b32.xlu0 %v2794, 16
      %v3184 = vpop.permute.xlu0 %3183
      %3185 = vrot.lane.b32.xlu0 %v2795, 16
      %v3186 = vpop.permute.xlu0 %3185
      %3187 = vrot.lane.b32.xlu0 %v2796, 16
      %v3188 = vpop.permute.xlu0 %3187
      %3189 = vrot.lane.b32.xlu0 %v2797, 16
      %v3190 = vpop.permute.xlu0 %3189
      %3191 = vrot.lane.b32.xlu0 %v2798, 16
      %v3192 = vpop.permute.xlu0 %3191
      %3193 = vrot.lane.b32.xlu0 %v2799, 16
      %v3194 = vpop.permute.xlu0 %3193
      %3195 = vrot.lane.b32.xlu0 %v2800, 16
      %v3196 = vpop.permute.xlu0 %3195
      %3197 = vrot.lane.b32.xlu0 %v2801, 16
      %v3198 = vpop.permute.xlu0 %3197
      %3199 = vrot.lane.b32.xlu0 %v2802, 16
      %v3200 = vpop.permute.xlu0 %3199
      %3201 = vrot.lane.b32.xlu0 %v2803, 16
      %v3202 = vpop.permute.xlu0 %3201
      %3203 = vrot.lane.b32.xlu0 %v2804, 16
      %v3204 = vpop.permute.xlu0 %3203
      %3205 = vrot.lane.b32.xlu0 %v2805, 16
      %v3206 = vpop.permute.xlu0 %3205
      %3207 = vrot.lane.b32.xlu0 %v2806, 16
      %v3208 = vpop.permute.xlu0 %3207
      %3209 = vrot.lane.b32.xlu0 %v2807, 16
      %v3210 = vpop.permute.xlu0 %3209
      %3211 = vrot.lane.b32.xlu0 %v2808, 16
      %v3212 = vpop.permute.xlu0 %3211
      %3213 = vrot.lane.b32.xlu0 %v2809, 16
      %v3214 = vpop.permute.xlu0 %3213
      %3215 = vrot.lane.b32.xlu0 %v2810, 16
      %v3216 = vpop.permute.xlu0 %3215
      %3217 = vrot.lane.b32.xlu0 %v2811, 16
      %v3218 = vpop.permute.xlu0 %3217
      %3219 = vrot.lane.b32.xlu0 %v2812, 16
      %v3220 = vpop.permute.xlu0 %3219
      %3221 = vrot.lane.b32.xlu0 %v2813, 16
      %v3222 = vpop.permute.xlu0 %3221
      %3223 = vrot.lane.b32.xlu0 %v2814, 16
      %v3224 = vpop.permute.xlu0 %3223
      %3225 = vrot.lane.b32.xlu0 %v2815, 16
      %v3226 = vpop.permute.xlu0 %3225
      %3227 = vrot.lane.b32.xlu0 %v2816, 16
      %v3228 = vpop.permute.xlu0 %3227
      %3229 = vrot.lane.b32.xlu0 %v2817, 16
      %v3230 = vpop.permute.xlu0 %3229
      %3231 = vrot.lane.b32.xlu0 %v2818, 16
      %v3232 = vpop.permute.xlu0 %3231
      %3233 = vrot.lane.b32.xlu0 %v2819, 16
      %v3234 = vpop.permute.xlu0 %3233
      %3235 = vrot.lane.b32.xlu0 %v2820, 16
      %v3236 = vpop.permute.xlu0 %3235
      %3237 = vrot.lane.b32.xlu0 %v2821, 16
      %v3238 = vpop.permute.xlu0 %3237
      %3303 = vrot.lane.b32.xlu0 %v2822, 24
      %v3304 = vpop.permute.xlu0 %3303
      %3305 = vrot.lane.b32.xlu0 %v2823, 24
      %v3306 = vpop.permute.xlu0 %3305
      %3307 = vrot.lane.b32.xlu0 %v2824, 24
      %v3308 = vpop.permute.xlu0 %3307
      %3309 = vrot.lane.b32.xlu0 %v2825, 24
      %v3310 = vpop.permute.xlu0 %3309
      %3311 = vrot.lane.b32.xlu0 %v2826, 24
      %v3312 = vpop.permute.xlu0 %3311
      %3313 = vrot.lane.b32.xlu0 %v2827, 24
      %v3314 = vpop.permute.xlu0 %3313
      %3315 = vrot.lane.b32.xlu0 %v2828, 24
      %v3316 = vpop.permute.xlu0 %3315
      %3317 = vrot.lane.b32.xlu0 %v2829, 24
      %v3318 = vpop.permute.xlu0 %3317
      %3319 = vrot.lane.b32.xlu0 %v2830, 24
      %v3320 = vpop.permute.xlu0 %3319
      %3321 = vrot.lane.b32.xlu0 %v2831, 24
      %v3322 = vpop.permute.xlu0 %3321
      %3323 = vrot.lane.b32.xlu0 %v2832, 24
      %v3324 = vpop.permute.xlu0 %3323
      %3325 = vrot.lane.b32.xlu0 %v2833, 24
      %v3326 = vpop.permute.xlu0 %3325
      %3327 = vrot.lane.b32.xlu0 %v2834, 24
      %v3328 = vpop.permute.xlu0 %3327
      %3329 = vrot.lane.b32.xlu0 %v2835, 24
      %v3330 = vpop.permute.xlu0 %3329
      %3331 = vrot.lane.b32.xlu0 %v2836, 24
      %v3332 = vpop.permute.xlu0 %3331
      %3333 = vrot.lane.b32.xlu0 %v2837, 24
      %v3334 = vpop.permute.xlu0 %3333
      %3335 = vrot.lane.b32.xlu0 %v2838, 24
      %v3336 = vpop.permute.xlu0 %3335
      %3337 = vrot.lane.b32.xlu0 %v2839, 24
      %v3338 = vpop.permute.xlu0 %3337
      %3339 = vrot.lane.b32.xlu0 %v2840, 24
      %v3340 = vpop.permute.xlu0 %3339
      %3341 = vrot.lane.b32.xlu0 %v2841, 24
      %v3342 = vpop.permute.xlu0 %3341
      %3343 = vrot.lane.b32.xlu0 %v2842, 24
      %v3344 = vpop.permute.xlu0 %3343
      %3345 = vrot.lane.b32.xlu0 %v2843, 24
      %v3346 = vpop.permute.xlu0 %3345
      %3347 = vrot.lane.b32.xlu0 %v2844, 24
      %v3348 = vpop.permute.xlu0 %3347
      %3349 = vrot.lane.b32.xlu0 %v2845, 24
      %v3350 = vpop.permute.xlu0 %3349
      %3351 = vrot.lane.b32.xlu0 %v2846, 24
      %v3352 = vpop.permute.xlu0 %3351
      %3353 = vrot.lane.b32.xlu0 %v2847, 24
      %v3354 = vpop.permute.xlu0 %3353
      %3355 = vrot.lane.b32.xlu0 %v2848, 24
      %v3356 = vpop.permute.xlu0 %3355
      %3357 = vrot.lane.b32.xlu0 %v2849, 24
      %v3358 = vpop.permute.xlu0 %3357
      %3359 = vrot.lane.b32.xlu0 %v2850, 24
      %v3360 = vpop.permute.xlu0 %3359
      %3361 = vrot.lane.b32.xlu0 %v2851, 24
      %v3362 = vpop.permute.xlu0 %3361
      %3363 = vrot.lane.b32.xlu0 %v2852, 24
      %v3364 = vpop.permute.xlu0 %3363
      %3365 = vrot.lane.b32.xlu0 %v2853, 24
      %v3366 = vpop.permute.xlu0 %3365
      %3431 = vrot.lane.b32.xlu0 %v2854, 32
      %v3432 = vpop.permute.xlu0 %3431
      %3433 = vrot.lane.b32.xlu0 %v2855, 32
      %v3434 = vpop.permute.xlu0 %3433
      %3435 = vrot.lane.b32.xlu0 %v2856, 32
      %v3436 = vpop.permute.xlu0 %3435
      %3437 = vrot.lane.b32.xlu0 %v2857, 32
      %v3438 = vpop.permute.xlu0 %3437
      %3439 = vrot.lane.b32.xlu0 %v2858, 32
      %v3440 = vpop.permute.xlu0 %3439
      %3441 = vrot.lane.b32.xlu0 %v2859, 32
      %v3442 = vpop.permute.xlu0 %3441
      %3443 = vrot.lane.b32.xlu0 %v2860, 32
      %v3444 = vpop.permute.xlu0 %3443
      %3445 = vrot.lane.b32.xlu0 %v2861, 32
      %v3446 = vpop.permute.xlu0 %3445
      %3447 = vrot.lane.b32.xlu0 %v2862, 32
      %v3448 = vpop.permute.xlu0 %3447
      %3449 = vrot.lane.b32.xlu0 %v2863, 32
      %v3450 = vpop.permute.xlu0 %3449
      %3451 = vrot.lane.b32.xlu0 %v2864, 32
      %v3452 = vpop.permute.xlu0 %3451
      %3453 = vrot.lane.b32.xlu0 %v2865, 32
      %v3454 = vpop.permute.xlu0 %3453
      %3455 = vrot.lane.b32.xlu0 %v2866, 32
      %v3456 = vpop.permute.xlu0 %3455
      %3457 = vrot.lane.b32.xlu0 %v2867, 32
      %v3458 = vpop.permute.xlu0 %3457
      %3459 = vrot.lane.b32.xlu0 %v2868, 32
      %v3460 = vpop.permute.xlu0 %3459
      %3461 = vrot.lane.b32.xlu0 %v2869, 32
      %v3462 = vpop.permute.xlu0 %3461
      %3463 = vrot.lane.b32.xlu0 %v2870, 32
      %v3464 = vpop.permute.xlu0 %3463
      %3465 = vrot.lane.b32.xlu0 %v2871, 32
      %v3466 = vpop.permute.xlu0 %3465
      %3467 = vrot.lane.b32.xlu0 %v2872, 32
      %v3468 = vpop.permute.xlu0 %3467
      %3469 = vrot.lane.b32.xlu0 %v2873, 32
      %v3470 = vpop.permute.xlu0 %3469
      %3471 = vrot.lane.b32.xlu0 %v2874, 32
      %v3472 = vpop.permute.xlu0 %3471
      %3473 = vrot.lane.b32.xlu0 %v2875, 32
      %v3474 = vpop.permute.xlu0 %3473
      %3475 = vrot.lane.b32.xlu0 %v2876, 32
      %v3476 = vpop.permute.xlu0 %3475
      %3477 = vrot.lane.b32.xlu0 %v2877, 32
      %v3478 = vpop.permute.xlu0 %3477
      %3479 = vrot.lane.b32.xlu0 %v2878, 32
      %v3480 = vpop.permute.xlu0 %3479
      %3481 = vrot.lane.b32.xlu0 %v2879, 32
      %v3482 = vpop.permute.xlu0 %3481
      %3483 = vrot.lane.b32.xlu0 %v2880, 32
      %v3484 = vpop.permute.xlu0 %3483
      %3485 = vrot.lane.b32.xlu0 %v2881, 32
      %v3486 = vpop.permute.xlu0 %3485
      %3487 = vrot.lane.b32.xlu0 %v2882, 32
      %v3488 = vpop.permute.xlu0 %3487
      %3489 = vrot.lane.b32.xlu0 %v2883, 32
      %v3490 = vpop.permute.xlu0 %3489
      %3491 = vrot.lane.b32.xlu0 %v2884, 32
      %v3492 = vpop.permute.xlu0 %3491
      %3493 = vrot.lane.b32.xlu0 %v2885, 32
      %v3494 = vpop.permute.xlu0 %3493
      %3559 = vrot.lane.b32.xlu0 %v2886, 40
      %v3560 = vpop.permute.xlu0 %3559
      %3561 = vrot.lane.b32.xlu0 %v2887, 40
      %v3562 = vpop.permute.xlu0 %3561
      %3563 = vrot.lane.b32.xlu0 %v2888, 40
      %v3564 = vpop.permute.xlu0 %3563
      %3565 = vrot.lane.b32.xlu0 %v2889, 40
      %v3566 = vpop.permute.xlu0 %3565
      %3567 = vrot.lane.b32.xlu0 %v2890, 40
      %v3568 = vpop.permute.xlu0 %3567
      %3569 = vrot.lane.b32.xlu0 %v2891, 40
      %v3570 = vpop.permute.xlu0 %3569
      %3571 = vrot.lane.b32.xlu0 %v2892, 40
      %v3572 = vpop.permute.xlu0 %3571
      %3573 = vrot.lane.b32.xlu0 %v2893, 40
      %v3574 = vpop.permute.xlu0 %3573
      %3575 = vrot.lane.b32.xlu0 %v2894, 40
      %v3576 = vpop.permute.xlu0 %3575
      %3577 = vrot.lane.b32.xlu0 %v2895, 40
      %v3578 = vpop.permute.xlu0 %3577
      %3579 = vrot.lane.b32.xlu0 %v2896, 40
      %v3580 = vpop.permute.xlu0 %3579
      %3581 = vrot.lane.b32.xlu0 %v2897, 40
      %v3582 = vpop.permute.xlu0 %3581
      %3583 = vrot.lane.b32.xlu0 %v2898, 40
      %v3584 = vpop.permute.xlu0 %3583
      %3585 = vrot.lane.b32.xlu0 %v2899, 40
      %v3586 = vpop.permute.xlu0 %3585
      %3587 = vrot.lane.b32.xlu0 %v2900, 40
      %v3588 = vpop.permute.xlu0 %3587
      %3589 = vrot.lane.b32.xlu0 %v2901, 40
      %v3590 = vpop.permute.xlu0 %3589
      %3591 = vrot.lane.b32.xlu0 %v2902, 40
      %v3592 = vpop.permute.xlu0 %3591
      %3593 = vrot.lane.b32.xlu0 %v2903, 40
      %v3594 = vpop.permute.xlu0 %3593
      %3595 = vrot.lane.b32.xlu0 %v2904, 40
      %v3596 = vpop.permute.xlu0 %3595
      %3597 = vrot.lane.b32.xlu0 %v2905, 40
      %v3598 = vpop.permute.xlu0 %3597
      %3599 = vrot.lane.b32.xlu0 %v2906, 40
      %v3600 = vpop.permute.xlu0 %3599
      %3601 = vrot.lane.b32.xlu0 %v2907, 40
      %v3602 = vpop.permute.xlu0 %3601
      %3603 = vrot.lane.b32.xlu0 %v2908, 40
      %v3604 = vpop.permute.xlu0 %3603
      %3605 = vrot.lane.b32.xlu0 %v2909, 40
      %v3606 = vpop.permute.xlu0 %3605
      %3607 = vrot.lane.b32.xlu0 %v2910, 40
      %v3608 = vpop.permute.xlu0 %3607
      %3609 = vrot.lane.b32.xlu0 %v2911, 40
      %v3610 = vpop.permute.xlu0 %3609
      %3611 = vrot.lane.b32.xlu0 %v2912, 40
      %v3612 = vpop.permute.xlu0 %3611
      %3613 = vrot.lane.b32.xlu0 %v2913, 40
      %v3614 = vpop.permute.xlu0 %3613
      %3615 = vrot.lane.b32.xlu0 %v2914, 40
      %v3616 = vpop.permute.xlu0 %3615
      %3617 = vrot.lane.b32.xlu0 %v2915, 40
      %v3618 = vpop.permute.xlu0 %3617
      %3619 = vrot.lane.b32.xlu0 %v2916, 40
      %v3620 = vpop.permute.xlu0 %3619
      %3621 = vrot.lane.b32.xlu0 %v2917, 40
      %v3622 = vpop.permute.xlu0 %3621
      %3687 = vrot.lane.b32.xlu0 %v2919, 48
      %v3688 = vpop.permute.xlu0 %3687
      %3689 = vrot.lane.b32.xlu0 %v2920, 48
      %v3690 = vpop.permute.xlu0 %3689
      %3691 = vrot.lane.b32.xlu0 %v2921, 48
      %v3692 = vpop.permute.xlu0 %3691
      %3693 = vrot.lane.b32.xlu0 %v2922, 48
      %v3694 = vpop.permute.xlu0 %3693
      %3695 = vrot.lane.b32.xlu0 %v2923, 48
      %v3696 = vpop.permute.xlu0 %3695
      %3697 = vrot.lane.b32.xlu0 %v2924, 48
      %v3698 = vpop.permute.xlu0 %3697
      %3699 = vrot.lane.b32.xlu0 %v2925, 48
      %v3700 = vpop.permute.xlu0 %3699
      %3701 = vrot.lane.b32.xlu0 %v2926, 48
      %v3702 = vpop.permute.xlu0 %3701
      %3703 = vrot.lane.b32.xlu0 %v2927, 48
      %v3704 = vpop.permute.xlu0 %3703
      %3705 = vrot.lane.b32.xlu0 %v2928, 48
      %v3706 = vpop.permute.xlu0 %3705
      %3707 = vrot.lane.b32.xlu0 %v2929, 48
      %v3708 = vpop.permute.xlu0 %3707
      %3709 = vrot.lane.b32.xlu0 %v2930, 48
      %v3710 = vpop.permute.xlu0 %3709
      %3711 = vrot.lane.b32.xlu0 %v2931, 48
      %v3712 = vpop.permute.xlu0 %3711
      %3713 = vrot.lane.b32.xlu0 %v2932, 48
      %v3714 = vpop.permute.xlu0 %3713
      %3715 = vrot.lane.b32.xlu0 %v2933, 48
      %v3716 = vpop.permute.xlu0 %3715
      %3717 = vrot.lane.b32.xlu0 %v2934, 48
      %v3718 = vpop.permute.xlu0 %3717
      %3719 = vrot.lane.b32.xlu0 %v2935, 48
      %v3720 = vpop.permute.xlu0 %3719
      %3721 = vrot.lane.b32.xlu0 %v2936, 48
      %v3722 = vpop.permute.xlu0 %3721
      %3723 = vrot.lane.b32.xlu0 %v2937, 48
      %v3724 = vpop.permute.xlu0 %3723
      %3725 = vrot.lane.b32.xlu0 %v2938, 48
      %v3726 = vpop.permute.xlu0 %3725
      %3727 = vrot.lane.b32.xlu0 %v2939, 48
      %v3728 = vpop.permute.xlu0 %3727
      %3729 = vrot.lane.b32.xlu0 %v2940, 48
      %v3730 = vpop.permute.xlu0 %3729
      %3731 = vrot.lane.b32.xlu0 %v2941, 48
      %v3732 = vpop.permute.xlu0 %3731
      %3733 = vrot.lane.b32.xlu0 %v2942, 48
      %v3734 = vpop.permute.xlu0 %3733
      %3735 = vrot.lane.b32.xlu0 %v2943, 48
      %v3736 = vpop.permute.xlu0 %3735
      %3737 = vrot.lane.b32.xlu0 %v2944, 48
      %v3738 = vpop.permute.xlu0 %3737
      %3739 = vrot.lane.b32.xlu0 %v2945, 48
      %v3740 = vpop.permute.xlu0 %3739
      %3741 = vrot.lane.b32.xlu0 %v2946, 48
      %v3742 = vpop.permute.xlu0 %3741
      %3743 = vrot.lane.b32.xlu0 %v2947, 48
      %v3744 = vpop.permute.xlu0 %3743
      %3745 = vrot.lane.b32.xlu0 %v2948, 48
      %v3746 = vpop.permute.xlu0 %3745
      %3747 = vrot.lane.b32.xlu0 %v2949, 48
      %v3748 = vpop.permute.xlu0 %3747
      %3749 = vrot.lane.b32.xlu0 %v2950, 48
      %v3750 = vpop.permute.xlu0 %3749
      %3815 = vrot.lane.b32.xlu0 %v2951, 56
      %v3816 = vpop.permute.xlu0 %3815
      %3817 = vrot.lane.b32.xlu0 %v2952, 56
      %v3818 = vpop.permute.xlu0 %3817
      %3819 = vrot.lane.b32.xlu0 %v2953, 56
      %v3820 = vpop.permute.xlu0 %3819
      %3821 = vrot.lane.b32.xlu0 %v2954, 56
      %v3822 = vpop.permute.xlu0 %3821
      %3823 = vrot.lane.b32.xlu0 %v2955, 56
      %v3824 = vpop.permute.xlu0 %3823
      %3825 = vrot.lane.b32.xlu0 %v2956, 56
      %v3826 = vpop.permute.xlu0 %3825
      %3827 = vrot.lane.b32.xlu0 %v2957, 56
      %v3828 = vpop.permute.xlu0 %3827
      %3829 = vrot.lane.b32.xlu0 %v2958, 56
      %v3830 = vpop.permute.xlu0 %3829
      %3831 = vrot.lane.b32.xlu0 %v2959, 56
      %v3832 = vpop.permute.xlu0 %3831
      %3833 = vrot.lane.b32.xlu0 %v2960, 56
      %v3834 = vpop.permute.xlu0 %3833
      %3835 = vrot.lane.b32.xlu0 %v2961, 56
      %v3836 = vpop.permute.xlu0 %3835
      %3837 = vrot.lane.b32.xlu0 %v2962, 56
      %v3838 = vpop.permute.xlu0 %3837
      %3839 = vrot.lane.b32.xlu0 %v2963, 56
      %v3840 = vpop.permute.xlu0 %3839
      %3841 = vrot.lane.b32.xlu0 %v2964, 56
      %v3842 = vpop.permute.xlu0 %3841
      %3843 = vrot.lane.b32.xlu0 %v2965, 56
      %v3844 = vpop.permute.xlu0 %3843
      %3845 = vrot.lane.b32.xlu0 %v2966, 56
      %v3846 = vpop.permute.xlu0 %3845
      %3847 = vrot.lane.b32.xlu0 %v2967, 56
      %v3848 = vpop.permute.xlu0 %3847
      %3849 = vrot.lane.b32.xlu0 %v2968, 56
      %v3850 = vpop.permute.xlu0 %3849
      %3851 = vrot.lane.b32.xlu0 %v2969, 56
      %v3852 = vpop.permute.xlu0 %3851
      %3853 = vrot.lane.b32.xlu0 %v2970, 56
      %v3854 = vpop.permute.xlu0 %3853
      %3855 = vrot.lane.b32.xlu0 %v2971, 56
      %v3856 = vpop.permute.xlu0 %3855
      %3857 = vrot.lane.b32.xlu0 %v2972, 56
      %v3858 = vpop.permute.xlu0 %3857
      %3859 = vrot.lane.b32.xlu0 %v2973, 56
      %v3860 = vpop.permute.xlu0 %3859
      %3861 = vrot.lane.b32.xlu0 %v2974, 56
      %v3862 = vpop.permute.xlu0 %3861
      %3863 = vrot.lane.b32.xlu0 %v2975, 56
      %v3864 = vpop.permute.xlu0 %3863
      %3865 = vrot.lane.b32.xlu0 %v2976, 56
      %v3866 = vpop.permute.xlu0 %3865
      %3867 = vrot.lane.b32.xlu0 %v2977, 56
      %v3868 = vpop.permute.xlu0 %3867
      %3869 = vrot.lane.b32.xlu0 %v2978, 56
      %v3870 = vpop.permute.xlu0 %3869
      %3871 = vrot.lane.b32.xlu0 %v2979, 56
      %v3872 = vpop.permute.xlu0 %3871
      %3873 = vrot.lane.b32.xlu0 %v2980, 56
      %v3874 = vpop.permute.xlu0 %3873
      %3875 = vrot.lane.b32.xlu0 %v2981, 56
      %v3876 = vpop.permute.xlu0 %3875
      %3877 = vrot.lane.b32.xlu0 %v2982, 56
      %v3878 = vpop.permute.xlu0 %3877
      %3943 = vrot.lane.b32.xlu0 %v2983, 64
      %v3944 = vpop.permute.xlu0 %3943
      %3945 = vrot.lane.b32.xlu0 %v2984, 64
      %v3946 = vpop.permute.xlu0 %3945
      %3947 = vrot.lane.b32.xlu0 %v2985, 64
      %v3948 = vpop.permute.xlu0 %3947
      %3949 = vrot.lane.b32.xlu0 %v2986, 64
      %v3950 = vpop.permute.xlu0 %3949
      %3951 = vrot.lane.b32.xlu0 %v2987, 64
      %v3952 = vpop.permute.xlu0 %3951
      %3953 = vrot.lane.b32.xlu0 %v2988, 64
      %v3954 = vpop.permute.xlu0 %3953
      %3955 = vrot.lane.b32.xlu0 %v2989, 64
      %v3956 = vpop.permute.xlu0 %3955
      %3957 = vrot.lane.b32.xlu0 %v2990, 64
      %v3958 = vpop.permute.xlu0 %3957
      %3959 = vrot.lane.b32.xlu0 %v2991, 64
      %v3960 = vpop.permute.xlu0 %3959
      %3961 = vrot.lane.b32.xlu0 %v2992, 64
      %v3962 = vpop.permute.xlu0 %3961
      %3963 = vrot.lane.b32.xlu0 %v2993, 64
      %v3964 = vpop.permute.xlu0 %3963
      %3965 = vrot.lane.b32.xlu0 %v2994, 64
      %v3966 = vpop.permute.xlu0 %3965
      %3967 = vrot.lane.b32.xlu0 %v2995, 64
      %v3968 = vpop.permute.xlu0 %3967
      %3969 = vrot.lane.b32.xlu0 %v2996, 64
      %v3970 = vpop.permute.xlu0 %3969
      %3971 = vrot.lane.b32.xlu0 %v2997, 64
      %v3972 = vpop.permute.xlu0 %3971
      %3973 = vrot.lane.b32.xlu0 %v2998, 64
      %v3974 = vpop.permute.xlu0 %3973
      %3975 = vrot.lane.b32.xlu0 %v2999, 64
      %v3976 = vpop.permute.xlu0 %3975
      %3977 = vrot.lane.b32.xlu0 %v3000, 64
      %v3978 = vpop.permute.xlu0 %3977
      %3979 = vrot.lane.b32.xlu0 %v3001, 64
      %v3980 = vpop.permute.xlu0 %3979
      %3981 = vrot.lane.b32.xlu0 %v3002, 64
      %v3982 = vpop.permute.xlu0 %3981
      %3983 = vrot.lane.b32.xlu0 %v3003, 64
      %v3984 = vpop.permute.xlu0 %3983
      %3985 = vrot.lane.b32.xlu0 %v3004, 64
      %v3986 = vpop.permute.xlu0 %3985
      %3987 = vrot.lane.b32.xlu0 %v3005, 64
      %v3988 = vpop.permute.xlu0 %3987
      %3989 = vrot.lane.b32.xlu0 %v3006, 64
      %v3990 = vpop.permute.xlu0 %3989
      %3991 = vrot.lane.b32.xlu0 %v3007, 64
      %v3992 = vpop.permute.xlu0 %3991
      %3993 = vrot.lane.b32.xlu0 %v3008, 64
      %v3994 = vpop.permute.xlu0 %3993
      %3995 = vrot.lane.b32.xlu0 %v3009, 64
      %v3996 = vpop.permute.xlu0 %3995
      %3997 = vrot.lane.b32.xlu0 %v3010, 64
      %v3998 = vpop.permute.xlu0 %3997
      %3999 = vrot.lane.b32.xlu0 %v3011, 64
      %v4000 = vpop.permute.xlu0 %3999
      %4001 = vrot.lane.b32.xlu0 %v3012, 64
      %v4002 = vpop.permute.xlu0 %4001
      %4003 = vrot.lane.b32.xlu0 %v3013, 64
      %v4004 = vpop.permute.xlu0 %4003
      %4005 = vrot.lane.b32.xlu0 %v3014, 64
      %v4006 = vpop.permute.xlu0 %4005
      %v4039 = vsel %vm1963, %v2726, %v3048
      %v4040 = vsel %vm1963, %v2727, %v3050
      %v4041 = vsel %vm1963, %v2728, %v3052
      %v4042 = vsel %vm1963, %v2729, %v3054
      %v4043 = vsel %vm1963, %v2730, %v3056
      %v4044 = vsel %vm1963, %v2731, %v3058
      %v4045 = vsel %vm1963, %v2732, %v3060
      %v4046 = vsel %vm1963, %v2733, %v3062
      %v4047 = vsel %vm1963, %v2734, %v3064
      %v4048 = vsel %vm1963, %v2735, %v3066
      %v4049 = vsel %vm1963, %v2736, %v3068
      %v4050 = vsel %vm1963, %v2737, %v3070
      %v4051 = vsel %vm1963, %v2738, %v3072
      %v4052 = vsel %vm1963, %v2739, %v3074
      %v4053 = vsel %vm1963, %v2740, %v3076
      %v4054 = vsel %vm1963, %v2741, %v3078
      %v4055 = vsel %vm1963, %v2742, %v3080
      %v4056 = vsel %vm1963, %v2743, %v3082
      %v4057 = vsel %vm1963, %v2744, %v3084
      %v4058 = vsel %vm1963, %v2745, %v3086
      %v4059 = vsel %vm1963, %v2746, %v3088
      %v4060 = vsel %vm1963, %v2747, %v3090
      %v4061 = vsel %vm1963, %v2748, %v3092
      %v4062 = vsel %vm1963, %v2749, %v3094
      %v4063 = vsel %vm1963, %v2750, %v3096
      %v4064 = vsel %vm1963, %v2751, %v3098
      %v4065 = vsel %vm1963, %v2752, %v3100
      %v4066 = vsel %vm1963, %v2753, %v3102
      %v4067 = vsel %vm1963, %v2754, %v3104
      %v4068 = vsel %vm1963, %v2755, %v3106
      %v4069 = vsel %vm1963, %v2756, %v3108
      %v4070 = vsel %vm1963, %v2757, %v3110
      %v4071 = vsel %vm2029, %v4039, %v3176
      %v4072 = vsel %vm2029, %v4040, %v3178
      %v4073 = vsel %vm2029, %v4041, %v3180
      %v4074 = vsel %vm2029, %v4042, %v3182
      %v4075 = vsel %vm2029, %v4043, %v3184
      %v4076 = vsel %vm2029, %v4044, %v3186
      %v4077 = vsel %vm2029, %v4045, %v3188
      %v4078 = vsel %vm2029, %v4046, %v3190
      %v4079 = vsel %vm2029, %v4047, %v3192
      %v4080 = vsel %vm2029, %v4048, %v3194
      %v4081 = vsel %vm2029, %v4049, %v3196
      %v4082 = vsel %vm2029, %v4050, %v3198
      %v4083 = vsel %vm2029, %v4051, %v3200
      %v4084 = vsel %vm2029, %v4052, %v3202
      %v4085 = vsel %vm2029, %v4053, %v3204
      %v4086 = vsel %vm2029, %v4054, %v3206
      %v4087 = vsel %vm2029, %v4055, %v3208
      %v4088 = vsel %vm2029, %v4056, %v3210
      %v4089 = vsel %vm2029, %v4057, %v3212
      %v4090 = vsel %vm2029, %v4058, %v3214
      %v4091 = vsel %vm2029, %v4059, %v3216
      %v4092 = vsel %vm2029, %v4060, %v3218
      %v4093 = vsel %vm2029, %v4061, %v3220
      %v4094 = vsel %vm2029, %v4062, %v3222
      %v4095 = vsel %vm2029, %v4063, %v3224
      %v4096 = vsel %vm2029, %v4064, %v3226
      %v4097 = vsel %vm2029, %v4065, %v3228
      %v4098 = vsel %vm2029, %v4066, %v3230
      %v4099 = vsel %vm2029, %v4067, %v3232
      %v4100 = vsel %vm2029, %v4068, %v3234
      %v4101 = vsel %vm2029, %v4069, %v3236
      %v4102 = vsel %vm2029, %v4070, %v3238
      %v4103 = vsel %vm2095, %v4071, %v3304
      %v4104 = vsel %vm2095, %v4072, %v3306
      %v4105 = vsel %vm2095, %v4073, %v3308
      %v4106 = vsel %vm2095, %v4074, %v3310
      %v4107 = vsel %vm2095, %v4075, %v3312
      %v4108 = vsel %vm2095, %v4076, %v3314
      %v4109 = vsel %vm2095, %v4077, %v3316
      %v4110 = vsel %vm2095, %v4078, %v3318
      %v4111 = vsel %vm2095, %v4079, %v3320
      %v4112 = vsel %vm2095, %v4080, %v3322
      %v4113 = vsel %vm2095, %v4081, %v3324
      %v4114 = vsel %vm2095, %v4082, %v3326
      %v4115 = vsel %vm2095, %v4083, %v3328
      %v4116 = vsel %vm2095, %v4084, %v3330
      %v4117 = vsel %vm2095, %v4085, %v3332
      %v4118 = vsel %vm2095, %v4086, %v3334
      %v4119 = vsel %vm2095, %v4087, %v3336
      %v4120 = vsel %vm2095, %v4088, %v3338
      %v4121 = vsel %vm2095, %v4089, %v3340
      %v4122 = vsel %vm2095, %v4090, %v3342
      %v4123 = vsel %vm2095, %v4091, %v3344
      %v4124 = vsel %vm2095, %v4092, %v3346
      %v4125 = vsel %vm2095, %v4093, %v3348
      %v4126 = vsel %vm2095, %v4094, %v3350
      %v4127 = vsel %vm2095, %v4095, %v3352
      %v4128 = vsel %vm2095, %v4096, %v3354
      %v4129 = vsel %vm2095, %v4097, %v3356
      %v4130 = vsel %vm2095, %v4098, %v3358
      %v4131 = vsel %vm2095, %v4099, %v3360
      %v4132 = vsel %vm2095, %v4100, %v3362
      %v4133 = vsel %vm2095, %v4101, %v3364
      %v4134 = vsel %vm2095, %v4102, %v3366
      %v4135 = vsel %vm2161, %v4103, %v3432
      %v4136 = vsel %vm2161, %v4104, %v3434
      %v4137 = vsel %vm2161, %v4105, %v3436
      %v4138 = vsel %vm2161, %v4106, %v3438
      %v4139 = vsel %vm2161, %v4107, %v3440
      %v4140 = vsel %vm2161, %v4108, %v3442
      %v4141 = vsel %vm2161, %v4109, %v3444
      %v4142 = vsel %vm2161, %v4110, %v3446
      %v4143 = vsel %vm2161, %v4111, %v3448
      %v4144 = vsel %vm2161, %v4112, %v3450
      %v4145 = vsel %vm2161, %v4113, %v3452
      %v4146 = vsel %vm2161, %v4114, %v3454
      %v4147 = vsel %vm2161, %v4115, %v3456
      %v4148 = vsel %vm2161, %v4116, %v3458
      %v4149 = vsel %vm2161, %v4117, %v3460
      %v4150 = vsel %vm2161, %v4118, %v3462
      %v4151 = vsel %vm2161, %v4119, %v3464
      %v4152 = vsel %vm2161, %v4120, %v3466
      %v4153 = vsel %vm2161, %v4121, %v3468
      %v4154 = vsel %vm2161, %v4122, %v3470
      %v4155 = vsel %vm2161, %v4123, %v3472
      %v4156 = vsel %vm2161, %v4124, %v3474
      %v4157 = vsel %vm2161, %v4125, %v3476
      %v4158 = vsel %vm2161, %v4126, %v3478
      %v4159 = vsel %vm2161, %v4127, %v3480
      %v4160 = vsel %vm2161, %v4128, %v3482
      %v4161 = vsel %vm2161, %v4129, %v3484
      %v4162 = vsel %vm2161, %v4130, %v3486
      %v4163 = vsel %vm2161, %v4131, %v3488
      %v4164 = vsel %vm2161, %v4132, %v3490
      %v4165 = vsel %vm2161, %v4133, %v3492
      %v4166 = vsel %vm2161, %v4134, %v3494
      %vm4167 = vcmask 326656
      %v4168 = vsel %vm4167, %v4135, %v3560
      %v4169 = vsel %vm4167, %v4136, %v3562
      %v4170 = vsel %vm4167, %v4137, %v3564
      %v4171 = vsel %vm4167, %v4138, %v3566
      %v4172 = vsel %vm4167, %v4139, %v3568
      %v4173 = vsel %vm4167, %v4140, %v3570
      %v4174 = vsel %vm4167, %v4141, %v3572
      %v4175 = vsel %vm4167, %v4142, %v3574
      %v4176 = vsel %vm4167, %v4143, %v3576
      %v4177 = vsel %vm4167, %v4144, %v3578
      %v4178 = vsel %vm4167, %v4145, %v3580
      %v4179 = vsel %vm4167, %v4146, %v3582
      %v4180 = vsel %vm4167, %v4147, %v3584
      %v4181 = vsel %vm4167, %v4148, %v3586
      %v4182 = vsel %vm4167, %v4149, %v3588
      %v4183 = vsel %vm4167, %v4150, %v3590
      %v4184 = vsel %vm4167, %v4151, %v3592
      %v4185 = vsel %vm4167, %v4152, %v3594
      %v4186 = vsel %vm4167, %v4153, %v3596
      %v4187 = vsel %vm4167, %v4154, %v3598
      %v4188 = vsel %vm4167, %v4155, %v3600
      %v4189 = vsel %vm4167, %v4156, %v3602
      %v4190 = vsel %vm4167, %v4157, %v3604
      %v4191 = vsel %vm4167, %v4158, %v3606
      %v4192 = vsel %vm4167, %v4159, %v3608
      %v4193 = vsel %vm4167, %v4160, %v3610
      %v4194 = vsel %vm4167, %v4161, %v3612
      %v4195 = vsel %vm4167, %v4162, %v3614
      %v4196 = vsel %vm4167, %v4163, %v3616
      %v4197 = vsel %vm4167, %v4164, %v3618
      %v4198 = vsel %vm4167, %v4165, %v3620
      %v4199 = vsel %vm4167, %v4166, %v3622
      %v4200 = vsel %vm497, %v4168, %v3688
      %v4201 = vsel %vm497, %v4169, %v3690
      %v4202 = vsel %vm497, %v4170, %v3692
      %v4203 = vsel %vm497, %v4171, %v3694
      %v4204 = vsel %vm497, %v4172, %v3696
      %v4205 = vsel %vm497, %v4173, %v3698
      %v4206 = vsel %vm497, %v4174, %v3700
      %v4207 = vsel %vm497, %v4175, %v3702
      %v4208 = vsel %vm497, %v4176, %v3704
      %v4209 = vsel %vm497, %v4177, %v3706
      %v4210 = vsel %vm497, %v4178, %v3708
      %v4211 = vsel %vm497, %v4179, %v3710
      %v4212 = vsel %vm497, %v4180, %v3712
      %v4213 = vsel %vm497, %v4181, %v3714
      %v4214 = vsel %vm497, %v4182, %v3716
      %v4215 = vsel %vm497, %v4183, %v3718
      %v4216 = vsel %vm497, %v4184, %v3720
      %v4217 = vsel %vm497, %v4185, %v3722
      %v4218 = vsel %vm497, %v4186, %v3724
      %v4219 = vsel %vm497, %v4187, %v3726
      %v4220 = vsel %vm497, %v4188, %v3728
      %v4221 = vsel %vm497, %v4189, %v3730
      %v4222 = vsel %vm497, %v4190, %v3732
      %v4223 = vsel %vm497, %v4191, %v3734
      %v4224 = vsel %vm497, %v4192, %v3736
      %v4225 = vsel %vm497, %v4193, %v3738
      %v4226 = vsel %vm497, %v4194, %v3740
      %v4227 = vsel %vm497, %v4195, %v3742
      %v4228 = vsel %vm497, %v4196, %v3744
      %v4229 = vsel %vm497, %v4197, %v3746
      %v4230 = vsel %vm497, %v4198, %v3748
      %v4231 = vsel %vm497, %v4199, %v3750
      %vm4232 = vcmask 457728
      %v4233 = vsel %vm4232, %v4200, %v3816
      %v4234 = vsel %vm4232, %v4201, %v3818
      %v4235 = vsel %vm4232, %v4202, %v3820
      %v4236 = vsel %vm4232, %v4203, %v3822
      %v4237 = vsel %vm4232, %v4204, %v3824
      %v4238 = vsel %vm4232, %v4205, %v3826
      %v4239 = vsel %vm4232, %v4206, %v3828
      %v4240 = vsel %vm4232, %v4207, %v3830
      %v4241 = vsel %vm4232, %v4208, %v3832
      %v4242 = vsel %vm4232, %v4209, %v3834
      %v4243 = vsel %vm4232, %v4210, %v3836
      %v4244 = vsel %vm4232, %v4211, %v3838
      %v4245 = vsel %vm4232, %v4212, %v3840
      %v4246 = vsel %vm4232, %v4213, %v3842
      %v4247 = vsel %vm4232, %v4214, %v3844
      %v4248 = vsel %vm4232, %v4215, %v3846
      %v4249 = vsel %vm4232, %v4216, %v3848
      %v4250 = vsel %vm4232, %v4217, %v3850
      %v4251 = vsel %vm4232, %v4218, %v3852
      %v4252 = vsel %vm4232, %v4219, %v3854
      %v4253 = vsel %vm4232, %v4220, %v3856
      %v4254 = vsel %vm4232, %v4221, %v3858
      %v4255 = vsel %vm4232, %v4222, %v3860
      %v4256 = vsel %vm4232, %v4223, %v3862
      %v4257 = vsel %vm4232, %v4224, %v3864
      %v4258 = vsel %vm4232, %v4225, %v3866
      %v4259 = vsel %vm4232, %v4226, %v3868
      %v4260 = vsel %vm4232, %v4227, %v3870
      %v4261 = vsel %vm4232, %v4228, %v3872
      %v4262 = vsel %vm4232, %v4229, %v3874
      %v4263 = vsel %vm4232, %v4230, %v3876
      %v4264 = vsel %vm4232, %v4231, %v3878
      %vm4265 = vcmask 523264
      %v4266 = vsel %vm4265, %v4233, %v3944
      %v4267 = vsel %vm4265, %v4234, %v3946
      %v4268 = vsel %vm4265, %v4235, %v3948
      %v4269 = vsel %vm4265, %v4236, %v3950
      %v4270 = vsel %vm4265, %v4237, %v3952
      %v4271 = vsel %vm4265, %v4238, %v3954
      %v4272 = vsel %vm4265, %v4239, %v3956
      %v4273 = vsel %vm4265, %v4240, %v3958
      %v4274 = vsel %vm4265, %v4241, %v3960
      %v4275 = vsel %vm4265, %v4242, %v3962
      %v4276 = vsel %vm4265, %v4243, %v3964
      %v4277 = vsel %vm4265, %v4244, %v3966
      %v4278 = vsel %vm4265, %v4245, %v3968
      %v4279 = vsel %vm4265, %v4246, %v3970
      %v4280 = vsel %vm4265, %v4247, %v3972
      %v4281 = vsel %vm4265, %v4248, %v3974
      %v4282 = vsel %vm4265, %v4249, %v3976
      %v4283 = vsel %vm4265, %v4250, %v3978
      %v4284 = vsel %vm4265, %v4251, %v3980
      %v4285 = vsel %vm4265, %v4252, %v3982
      %v4286 = vsel %vm4265, %v4253, %v3984
      %v4287 = vsel %vm4265, %v4254, %v3986
      %v4288 = vsel %vm4265, %v4255, %v3988
      %v4289 = vsel %vm4265, %v4256, %v3990
      %v4290 = vsel %vm4265, %v4257, %v3992
      %v4291 = vsel %vm4265, %v4258, %v3994
      %v4292 = vsel %vm4265, %v4259, %v3996
      %v4293 = vsel %vm4265, %v4260, %v3998
      %v4294 = vsel %vm4265, %v4261, %v4000
      %v4295 = vsel %vm4265, %v4262, %v4002
      %v4296 = vsel %vm4265, %v4263, %v4004
      %v4297 = vsel %vm4265, %v4264, %v4006
      %v4298 = vld [vmem:[%s3] sm:$0xff]
      %v4299 = vld [vmem:[%s3 + $0x8] sm:$0xff]
      %v4300 = vld [vmem:[%s3 + $0x10] sm:$0xff]
      %v4301 = vld [vmem:[%s3 + $0x18] sm:$0xff]
      %v4302 = vld [vmem:[%s3 + $0x20] sm:$0xff]
      %v4303 = vld [vmem:[%s3 + $0x28] sm:$0xff]
      %v4304 = vld [vmem:[%s3 + $0x30] sm:$0xff]
      %v4305 = vld [vmem:[%s3 + $0x38] sm:$0xff]
      %v4306 = vld [vmem:[%s3 + $0x40] sm:$0xff]
      %v4307 = vld [vmem:[%s4] sm:$0x1]
      %v4309 = vlaneseq
      %v4310 = vshrl.u32 %v4309, 7
      %v4311 = vsub.s32 0, %v4310
      %v4312 = vrot.slane %v4307, %v4311
      %vm4314 = vcmask 588800
      %v4316 = vsel %vm4314, %v4266, 0
      %v4319 = vsel %vm4314, %v4267, 0
      %v4322 = vsel %vm4314, %v4268, 0
      %v4325 = vsel %vm4314, %v4269, 0
      %v4328 = vsel %vm4314, %v4270, 0
      %v4331 = vsel %vm4314, %v4271, 0
      %v4334 = vsel %vm4314, %v4272, 0
      %v4337 = vsel %vm4314, %v4273, 0
      %v4340 = vsel %vm4314, %v4274, 0
      %v4343 = vsel %vm4314, %v4275, 0
      %v4346 = vsel %vm4314, %v4276, 0
      %v4349 = vsel %vm4314, %v4277, 0
      %v4352 = vsel %vm4314, %v4278, 0
      %v4355 = vsel %vm4314, %v4279, 0
      %v4358 = vsel %vm4314, %v4280, 0
      %v4361 = vsel %vm4314, %v4281, 0
      %v4364 = vsel %vm4314, %v4282, 0
      %v4367 = vsel %vm4314, %v4283, 0
      %v4370 = vsel %vm4314, %v4284, 0
      %v4373 = vsel %vm4314, %v4285, 0
      %v4376 = vsel %vm4314, %v4286, 0
      %v4379 = vsel %vm4314, %v4287, 0
      %v4382 = vsel %vm4314, %v4288, 0
      %v4385 = vsel %vm4314, %v4289, 0
      %v4388 = vsel %vm4314, %v4290, 0
      %v4391 = vsel %vm4314, %v4291, 0
      %v4394 = vsel %vm4314, %v4292, 0
      %v4397 = vsel %vm4314, %v4293, 0
      %v4400 = vsel %vm4314, %v4294, 0
      %v4403 = vsel %vm4314, %v4295, 0
      %v4406 = vsel %vm4314, %v4296, 0
      %v4409 = vsel %vm4314, %v4297, 0
      %4411 = vmatprep.subr.mxu0 0.0
      %4412 = vmatpush1.msra.mxu0 %v4298
      %4413 = vmatprep.subr.mxu0 0.0
      %4414 = vmatpush1.msra.mxu0 %v4299
      %4415 = vmatprep.subr.mxu0 0.0
      %4416 = vmatpush1.msra.mxu0 %v4300
      %4417 = vmatprep.subr.mxu0 0.0
      %4418 = vmatpush1.msra.mxu0 %v4301
      %4419 = vmatprep.subr.mxu0 0.0
      %4420 = vmatpush1.msra.mxu0 %v4302
      %4421 = vmatprep.subr.mxu0 0.0
      %4422 = vmatpush1.msra.mxu0 %v4303
      %4423 = vmatprep.subr.mxu0 0.0
      %4424 = vmatpush1.msra.mxu0 %v4304
      %4425 = vmatprep.subr.mxu0 0.0
      %4426 = vmatpush1.msra.mxu0 %v4305
      %4427 = vmatprep.subr.mxu0 0.0
      %4428 = vmatpush1.msra.mxu0 %v4306
      %4429 = vmatprep.subr.mxu0 0.0
      %4430 = vmatpush1.msra.mxu0 0.0
      %4431 = vmatprep.subr.mxu0 0.0
      %4432 = vmatpush1.msra.mxu0 0.0
      %4433 = vmatprep.subr.mxu0 0.0
      %4434 = vmatpush1.msra.mxu0 0.0
      %4435 = vmatprep.subr.mxu0 0.0
      %4436 = vmatpush1.msra.mxu0 0.0
      %4437 = vmatprep.subr.mxu0 0.0
      %4438 = vmatpush1.msra.mxu0 0.0
      %4439 = vmatprep.subr.mxu0 0.0
      %4440 = vmatpush1.msra.mxu0 0.0
      %4441 = vmatprep.subr.mxu0 0.0
      %4442 = vmatpush1.msra.mxu0 0.0
      %4443 = vmatprep.subr.mxu0 0.0
      %4444 = vmatpush1.msra.mxu0 0.0
      %4445 = vmatprep.subr.mxu0 0.0
      %4446 = vmatpush1.msra.mxu0 0.0
      %4447 = vmatprep.subr.mxu0 0.0
      %4448 = vmatpush1.msra.mxu0 0.0
      %4449 = vmatprep.subr.mxu0 0.0
      %4450 = vmatpush1.msra.mxu0 0.0
      %4451 = vmatprep.subr.mxu0 0.0
      %4452 = vmatpush1.msra.mxu0 0.0
      %4453 = vmatprep.subr.mxu0 0.0
      %4454 = vmatpush1.msra.mxu0 0.0
      %4455 = vmatprep.subr.mxu0 0.0
      %4456 = vmatpush1.msra.mxu0 0.0
      %4457 = vmatprep.subr.mxu0 0.0
      %4458 = vmatpush1.msra.mxu0 0.0
      %4459 = vmatprep.subr.mxu0 0.0
      %4460 = vmatpush1.msra.mxu0 0.0
      %4461 = vmatprep.subr.mxu0 0.0
      %4462 = vmatpush1.msra.mxu0 0.0
      %4463 = vmatprep.subr.mxu0 0.0
      %4464 = vmatpush1.msra.mxu0 0.0
      %4465 = vmatprep.subr.mxu0 0.0
      %4466 = vmatpush1.msra.mxu0 0.0
      %4467 = vmatprep.subr.mxu0 0.0
      %4468 = vmatpush1.msra.mxu0 0.0
      %4469 = vmatprep.subr.mxu0 0.0
      %4470 = vmatpush1.msra.mxu0 0.0
      %4471 = vmatprep.subr.mxu0 0.0
      %4472 = vmatpush1.msra.mxu0 0.0
      %4473 = vmatprep.subr.mxu0 0.0
      %4474 = vmatpush1.msra.mxu0 0.0
      %4475 = vmatprep.mubr.f32.mxu0 0.0
      %4476 = vmatmul.mubr.f32.gmra.mrb[0].mxu0 %v4316
      %v4477 = vpop.f32.mrb[0].mxu0
      %v4478 = vadd.f32 %v4312, %v4477
      %v4479 = vpop.f32.mrb[0].mxu0
      %4480 = vmatprep.mubr.f32.mxu0 0.0
      %4481 = vmatmul.mubr.f32.gmra.mrb[0].mxu0 %v4319
      %v4482 = vpop.f32.mrb[0].mxu0
      %v4483 = vadd.f32 %v4312, %v4482
      %v4484 = vpop.f32.mrb[0].mxu0
      %4485 = vmatprep.mubr.f32.mxu0 0.0
      %4486 = vmatmul.mubr.f32.gmra.mrb[0].mxu0 %v4322
      %v4487 = vpop.f32.mrb[0].mxu0
      %v4488 = vadd.f32 %v4312, %v4487
      %v4489 = vpop.f32.mrb[0].mxu0
      %4490 = vmatprep.mubr.f32.mxu0 0.0
      %4491 = vmatmul.mubr.f32.gmra.mrb[0].mxu0 %v4325
      %v4492 = vpop.f32.mrb[0].mxu0
      %v4493 = vadd.f32 %v4312, %v4492
      %v4494 = vpop.f32.mrb[0].mxu0
      %4495 = vmatprep.mubr.f32.mxu0 0.0
      %4496 = vmatmul.mubr.f32.gmra.mrb[0].mxu0 %v4328
      %v4497 = vpop.f32.mrb[0].mxu0
      %v4498 = vadd.f32 %v4312, %v4497
      %v4499 = vpop.f32.mrb[0].mxu0
      %4500 = vmatprep.mubr.f32.mxu0 0.0
      %4501 = vmatmul.mubr.f32.gmra.mrb[0].mxu0 %v4331
      %v4502 = vpop.f32.mrb[0].mxu0
      %v4503 = vadd.f32 %v4312, %v4502
      %v4504 = vpop.f32.mrb[0].mxu0
      %4505 = vmatprep.mubr.f32.mxu0 0.0
      %4506 = vmatmul.mubr.f32.gmra.mrb[0].mxu0 %v4334
      %v4507 = vpop.f32.mrb[0].mxu0
      %v4508 = vadd.f32 %v4312, %v4507
      %v4509 = vpop.f32.mrb[0].mxu0
      %4510 = vmatprep.mubr.f32.mxu0 0.0
      %4511 = vmatmul.mubr.f32.gmra.mrb[0].mxu0 %v4337
      %v4512 = vpop.f32.mrb[0].mxu0
      %v4513 = vadd.f32 %v4312, %v4512
      %v4514 = vpop.f32.mrb[0].mxu0
      %4515 = vmatprep.mubr.f32.mxu0 0.0
      %4516 = vmatmul.mubr.f32.gmra.mrb[0].mxu0 %v4340
      %v4517 = vpop.f32.mrb[0].mxu0
      %v4518 = vadd.f32 %v4312, %v4517
      %v4519 = vpop.f32.mrb[0].mxu0
      %4520 = vmatprep.mubr.f32.mxu0 0.0
      %4521 = vmatmul.mubr.f32.gmra.mrb[0].mxu0 %v4343
      %v4522 = vpop.f32.mrb[0].mxu0
      %v4523 = vadd.f32 %v4312, %v4522
      %v4524 = vpop.f32.mrb[0].mxu0
      %4525 = vmatprep.mubr.f32.mxu0 0.0
      %4526 = vmatmul.mubr.f32.gmra.mrb[0].mxu0 %v4346
      %v4527 = vpop.f32.mrb[0].mxu0
      %v4528 = vadd.f32 %v4312, %v4527
      %v4529 = vpop.f32.mrb[0].mxu0
      %4530 = vmatprep.mubr.f32.mxu0 0.0
      %4531 = vmatmul.mubr.f32.gmra.mrb[0].mxu0 %v4349
      %v4532 = vpop.f32.mrb[0].mxu0
      %v4533 = vadd.f32 %v4312, %v4532
      %v4534 = vpop.f32.mrb[0].mxu0
      %4535 = vmatprep.mubr.f32.mxu0 0.0
      %4536 = vmatmul.mubr.f32.gmra.mrb[0].mxu0 %v4352
      %v4537 = vpop.f32.mrb[0].mxu0
      %v4538 = vadd.f32 %v4312, %v4537
      %v4539 = vpop.f32.mrb[0].mxu0
      %4540 = vmatprep.mubr.f32.mxu0 0.0
      %4541 = vmatmul.mubr.f32.gmra.mrb[0].mxu0 %v4355
      %v4542 = vpop.f32.mrb[0].mxu0
      %v4543 = vadd.f32 %v4312, %v4542
      %v4544 = vpop.f32.mrb[0].mxu0
      %4545 = vmatprep.mubr.f32.mxu0 0.0
      %4546 = vmatmul.mubr.f32.gmra.mrb[0].mxu0 %v4358
      %v4547 = vpop.f32.mrb[0].mxu0
      %v4548 = vadd.f32 %v4312, %v4547
      %v4549 = vpop.f32.mrb[0].mxu0
      %4550 = vmatprep.mubr.f32.mxu0 0.0
      %4551 = vmatmul.mubr.f32.gmra.mrb[0].mxu0 %v4361
      %v4552 = vpop.f32.mrb[0].mxu0
      %v4553 = vadd.f32 %v4312, %v4552
      %v4554 = vpop.f32.mrb[0].mxu0
      %4555 = vmatprep.mubr.f32.mxu0 0.0
      %4556 = vmatmul.mubr.f32.gmra.mrb[0].mxu0 %v4364
      %v4557 = vpop.f32.mrb[0].mxu0
      %v4558 = vadd.f32 %v4312, %v4557
      %v4559 = vpop.f32.mrb[0].mxu0
      %4560 = vmatprep.mubr.f32.mxu0 0.0
      %4561 = vmatmul.mubr.f32.gmra.mrb[0].mxu0 %v4367
      %v4562 = vpop.f32.mrb[0].mxu0
      %v4563 = vadd.f32 %v4312, %v4562
      %v4564 = vpop.f32.mrb[0].mxu0
      %4565 = vmatprep.mubr.f32.mxu0 0.0
      %4566 = vmatmul.mubr.f32.gmra.mrb[0].mxu0 %v4370
      %v4567 = vpop.f32.mrb[0].mxu0
      %v4568 = vadd.f32 %v4312, %v4567
      %v4569 = vpop.f32.mrb[0].mxu0
      %4570 = vmatprep.mubr.f32.mxu0 0.0
      %4571 = vmatmul.mubr.f32.gmra.mrb[0].mxu0 %v4373
      %v4572 = vpop.f32.mrb[0].mxu0
      %v4573 = vadd.f32 %v4312, %v4572
      %v4574 = vpop.f32.mrb[0].mxu0
      %4575 = vmatprep.mubr.f32.mxu0 0.0
      %4576 = vmatmul.mubr.f32.gmra.mrb[0].mxu0 %v4376
      %v4577 = vpop.f32.mrb[0].mxu0
      %v4578 = vadd.f32 %v4312, %v4577
      %v4579 = vpop.f32.mrb[0].mxu0
      %4580 = vmatprep.mubr.f32.mxu0 0.0
      %4581 = vmatmul.mubr.f32.gmra.mrb[0].mxu0 %v4379
      %v4582 = vpop.f32.mrb[0].mxu0
      %v4583 = vadd.f32 %v4312, %v4582
      %v4584 = vpop.f32.mrb[0].mxu0
      %4585 = vmatprep.mubr.f32.mxu0 0.0
      %4586 = vmatmul.mubr.f32.gmra.mrb[0].mxu0 %v4382
      %v4587 = vpop.f32.mrb[0].mxu0
      %v4588 = vadd.f32 %v4312, %v4587
      %v4589 = vpop.f32.mrb[0].mxu0
      %4590 = vmatprep.mubr.f32.mxu0 0.0
      %4591 = vmatmul.mubr.f32.gmra.mrb[0].mxu0 %v4385
      %v4592 = vpop.f32.mrb[0].mxu0
      %v4593 = vadd.f32 %v4312, %v4592
      %v4594 = vpop.f32.mrb[0].mxu0
      %4595 = vmatprep.mubr.f32.mxu0 0.0
      %4596 = vmatmul.mubr.f32.gmra.mrb[0].mxu0 %v4388
      %v4597 = vpop.f32.mrb[0].mxu0
      %v4598 = vadd.f32 %v4312, %v4597
      %v4599 = vpop.f32.mrb[0].mxu0
      %4600 = vmatprep.mubr.f32.mxu0 0.0
      %4601 = vmatmul.mubr.f32.gmra.mrb[0].mxu0 %v4391
      %v4602 = vpop.f32.mrb[0].mxu0
      %v4603 = vadd.f32 %v4312, %v4602
      %v4604 = vpop.f32.mrb[0].mxu0
      %4605 = vmatprep.mubr.f32.mxu0 0.0
      %4606 = vmatmul.mubr.f32.gmra.mrb[0].mxu0 %v4394
      %v4607 = vpop.f32.mrb[0].mxu0
      %v4608 = vadd.f32 %v4312, %v4607
      %v4609 = vpop.f32.mrb[0].mxu0
      %4610 = vmatprep.mubr.f32.mxu0 0.0
      %4611 = vmatmul.mubr.f32.gmra.mrb[0].mxu0 %v4397
      %v4612 = vpop.f32.mrb[0].mxu0
      %v4613 = vadd.f32 %v4312, %v4612
      %v4614 = vpop.f32.mrb[0].mxu0
      %4615 = vmatprep.mubr.f32.mxu0 0.0
      %4616 = vmatmul.mubr.f32.gmra.mrb[0].mxu0 %v4400
      %v4617 = vpop.f32.mrb[0].mxu0
      %v4618 = vadd.f32 %v4312, %v4617
      %v4619 = vpop.f32.mrb[0].mxu0
      %4620 = vmatprep.mubr.f32.mxu0 0.0
      %4621 = vmatmul.mubr.f32.gmra.mrb[0].mxu0 %v4403
      %v4622 = vpop.f32.mrb[0].mxu0
      %v4623 = vadd.f32 %v4312, %v4622
      %v4624 = vpop.f32.mrb[0].mxu0
      %4625 = vmatprep.mubr.f32.mxu0 0.0
      %4626 = vmatmul.mubr.f32.gmra.mrb[0].mxu0 %v4406
      %v4627 = vpop.f32.mrb[0].mxu0
      %v4628 = vadd.f32 %v4312, %v4627
      %v4629 = vpop.f32.mrb[0].mxu0
      %4630 = vmatprep.mubr.f32.mxu0 0.0
      %4631 = vmatmul.mubr.f32.gmra.mrb[0].mxu0 %v4409
      %v4632 = vpop.f32.mrb[0].mxu0
      %v4633 = vadd.f32 %v4312, %v4632
      %v4634 = vpop.f32.mrb[0].mxu0
      %4635 = vdwg.mxu0
      %4668 = vrot.lane.b32.xlu0 %v4478, 8
      %v4669 = vpop.permute.xlu0 %4668
      %4670 = vrot.lane.b32.xlu0 %v4483, 8
      %v4671 = vpop.permute.xlu0 %4670
      %4672 = vrot.lane.b32.xlu0 %v4488, 8
      %v4673 = vpop.permute.xlu0 %4672
      %4674 = vrot.lane.b32.xlu0 %v4493, 8
      %v4675 = vpop.permute.xlu0 %4674
      %4676 = vrot.lane.b32.xlu0 %v4498, 8
      %v4677 = vpop.permute.xlu0 %4676
      %4678 = vrot.lane.b32.xlu0 %v4503, 8
      %v4679 = vpop.permute.xlu0 %4678
      %4680 = vrot.lane.b32.xlu0 %v4508, 8
      %v4681 = vpop.permute.xlu0 %4680
      %4682 = vrot.lane.b32.xlu0 %v4513, 8
      %v4683 = vpop.permute.xlu0 %4682
      %4684 = vrot.lane.b32.xlu0 %v4518, 8
      %v4685 = vpop.permute.xlu0 %4684
      %4686 = vrot.lane.b32.xlu0 %v4523, 8
      %v4687 = vpop.permute.xlu0 %4686
      %4688 = vrot.lane.b32.xlu0 %v4528, 8
      %v4689 = vpop.permute.xlu0 %4688
      %4690 = vrot.lane.b32.xlu0 %v4533, 8
      %v4691 = vpop.permute.xlu0 %4690
      %4692 = vrot.lane.b32.xlu0 %v4538, 8
      %v4693 = vpop.permute.xlu0 %4692
      %4694 = vrot.lane.b32.xlu0 %v4543, 8
      %v4695 = vpop.permute.xlu0 %4694
      %4696 = vrot.lane.b32.xlu0 %v4548, 8
      %v4697 = vpop.permute.xlu0 %4696
      %4698 = vrot.lane.b32.xlu0 %v4553, 8
      %v4699 = vpop.permute.xlu0 %4698
      %4700 = vrot.lane.b32.xlu0 %v4558, 8
      %v4701 = vpop.permute.xlu0 %4700
      %4702 = vrot.lane.b32.xlu0 %v4563, 8
      %v4703 = vpop.permute.xlu0 %4702
      %4704 = vrot.lane.b32.xlu0 %v4568, 8
      %v4705 = vpop.permute.xlu0 %4704
      %4706 = vrot.lane.b32.xlu0 %v4573, 8
      %v4707 = vpop.permute.xlu0 %4706
      %4708 = vrot.lane.b32.xlu0 %v4578, 8
      %v4709 = vpop.permute.xlu0 %4708
      %4710 = vrot.lane.b32.xlu0 %v4583, 8
      %v4711 = vpop.permute.xlu0 %4710
      %4712 = vrot.lane.b32.xlu0 %v4588, 8
      %v4713 = vpop.permute.xlu0 %4712
      %4714 = vrot.lane.b32.xlu0 %v4593, 8
      %v4715 = vpop.permute.xlu0 %4714
      %4716 = vrot.lane.b32.xlu0 %v4598, 8
      %v4717 = vpop.permute.xlu0 %4716
      %4718 = vrot.lane.b32.xlu0 %v4603, 8
      %v4719 = vpop.permute.xlu0 %4718
      %4720 = vrot.lane.b32.xlu0 %v4608, 8
      %v4721 = vpop.permute.xlu0 %4720
      %4722 = vrot.lane.b32.xlu0 %v4613, 8
      %v4723 = vpop.permute.xlu0 %4722
      %4724 = vrot.lane.b32.xlu0 %v4618, 8
      %v4725 = vpop.permute.xlu0 %4724
      %4726 = vrot.lane.b32.xlu0 %v4623, 8
      %v4727 = vpop.permute.xlu0 %4726
      %4728 = vrot.lane.b32.xlu0 %v4628, 8
      %v4729 = vpop.permute.xlu0 %4728
      %4730 = vrot.lane.b32.xlu0 %v4633, 8
      %v4731 = vpop.permute.xlu0 %4730
      %vm4764 = vcmask 130112
      %4765 = vst.msk [vmem:[%s2532 + $0x1] sm:$0xff] %vm4764, %v4669
      %4766 = vst.msk [vmem:[%s2532 + $0x9] sm:$0xff] %vm4764, %v4671
      %4767 = vst.msk [vmem:[%s2532 + $0x19] sm:$0xff] %vm4764, %v4673
      %4768 = vst.msk [vmem:[%s2532 + $0x21] sm:$0xff] %vm4764, %v4675
      %4769 = vst.msk [vmem:[%s2532 + $0x31] sm:$0xff] %vm4764, %v4677
      %4770 = vst.msk [vmem:[%s2532 + $0x39] sm:$0xff] %vm4764, %v4679
      %4771 = vst.msk [vmem:[%s2532 + $0x49] sm:$0xff] %vm4764, %v4681
      %4772 = vst.msk [vmem:[%s2532 + $0x51] sm:$0xff] %vm4764, %v4683
      %4773 = vst.msk [vmem:[%s2532 + $0x61] sm:$0xff] %vm4764, %v4685
      %4774 = vst.msk [vmem:[%s2532 + $0x69] sm:$0xff] %vm4764, %v4687
      %4775 = vst.msk [vmem:[%s2532 + $0x79] sm:$0xff] %vm4764, %v4689
      %4776 = vst.msk [vmem:[%s2532 + $0x81] sm:$0xff] %vm4764, %v4691
      %4777 = vst.msk [vmem:[%s2532 + $0x91] sm:$0xff] %vm4764, %v4693
      %4778 = vst.msk [vmem:[%s2532 + $0x99] sm:$0xff] %vm4764, %v4695
      %4779 = vst.msk [vmem:[%s2532 + $0xa9] sm:$0xff] %vm4764, %v4697
      %4780 = vst.msk [vmem:[%s2532 + $0xb1] sm:$0xff] %vm4764, %v4699
      %4781 = vst.msk [vmem:[%s2532 + $0xc1] sm:$0xff] %vm4764, %v4701
      %4782 = vst.msk [vmem:[%s2532 + $0xc9] sm:$0xff] %vm4764, %v4703
      %4783 = vst.msk [vmem:[%s2532 + $0xd9] sm:$0xff] %vm4764, %v4705
      %4784 = vst.msk [vmem:[%s2532 + $0xe1] sm:$0xff] %vm4764, %v4707
      %4785 = vst.msk [vmem:[%s2532 + $0xf1] sm:$0xff] %vm4764, %v4709
      %4786 = vst.msk [vmem:[%s2532 + $0xf9] sm:$0xff] %vm4764, %v4711
      %4787 = vst.msk [vmem:[%s2532 + $0x109] sm:$0xff] %vm4764, %v4713
      %4788 = vst.msk [vmem:[%s2532 + $0x111] sm:$0xff] %vm4764, %v4715
      %4789 = vst.msk [vmem:[%s2532 + $0x121] sm:$0xff] %vm4764, %v4717
      %4790 = vst.msk [vmem:[%s2532 + $0x129] sm:$0xff] %vm4764, %v4719
      %4791 = vst.msk [vmem:[%s2532 + $0x139] sm:$0xff] %vm4764, %v4721
      %4792 = vst.msk [vmem:[%s2532 + $0x141] sm:$0xff] %vm4764, %v4723
      %4793 = vst.msk [vmem:[%s2532 + $0x151] sm:$0xff] %vm4764, %v4725
      %4794 = vst.msk [vmem:[%s2532 + $0x159] sm:$0xff] %vm4764, %v4727
      %4795 = vst.msk [vmem:[%s2532 + $0x169] sm:$0xff] %vm4764, %v4729
      %4796 = vst.msk [vmem:[%s2532 + $0x171] sm:$0xff] %vm4764, %v4731
      %v4797 = vld [vmem:[#allocation3] sm:$0xff]
      %v4798 = vld [vmem:[#allocation3 + $0x8] sm:$0xff]
      %v4799 = vld [vmem:[#allocation3 + $0x18] sm:$0xff]
      %v4800 = vld [vmem:[#allocation3 + $0x20] sm:$0xff]
      %v4801 = vld [vmem:[#allocation3 + $0x30] sm:$0xff]
      %v4802 = vld [vmem:[#allocation3 + $0x38] sm:$0xff]
      %v4803 = vld [vmem:[#allocation3 + $0x48] sm:$0xff]
      %v4804 = vld [vmem:[#allocation3 + $0x50] sm:$0xff]
      %v4805 = vld [vmem:[#allocation3 + $0x60] sm:$0xff]
      %v4806 = vld [vmem:[#allocation3 + $0x68] sm:$0xff]
      %v4807 = vld [vmem:[#allocation3 + $0x78] sm:$0xff]
      %v4808 = vld [vmem:[#allocation3 + $0x80] sm:$0xff]
      %v4809 = vld [vmem:[#allocation3 + $0x90] sm:$0xff]
      %v4810 = vld [vmem:[#allocation3 + $0x98] sm:$0xff]
      %v4811 = vld [vmem:[#allocation3 + $0xa8] sm:$0xff]
      %v4812 = vld [vmem:[#allocation3 + $0xb0] sm:$0xff]
      %v4813 = vld [vmem:[#allocation3 + $0xc0] sm:$0xff]
      %v4814 = vld [vmem:[#allocation3 + $0xc8] sm:$0xff]
      %v4815 = vld [vmem:[#allocation3 + $0xd8] sm:$0xff]
      %v4816 = vld [vmem:[#allocation3 + $0xe0] sm:$0xff]
      %v4817 = vld [vmem:[#allocation3 + $0xf0] sm:$0xff]
      %v4818 = vld [vmem:[#allocation3 + $0xf8] sm:$0xff]
      %v4819 = vld [vmem:[#allocation3 + $0x108] sm:$0xff]
      %v4820 = vld [vmem:[#allocation3 + $0x110] sm:$0xff]
      %v4821 = vld [vmem:[#allocation3 + $0x120] sm:$0xff]
      %v4822 = vld [vmem:[#allocation3 + $0x128] sm:$0xff]
      %v4823 = vld [vmem:[#allocation3 + $0x138] sm:$0xff]
      %v4824 = vld [vmem:[#allocation3 + $0x140] sm:$0xff]
      %v4825 = vld [vmem:[#allocation3 + $0x150] sm:$0xff]
      %v4826 = vld [vmem:[#allocation3 + $0x158] sm:$0xff]
      %v4827 = vld [vmem:[#allocation3 + $0x168] sm:$0xff]
      %v4828 = vld [vmem:[#allocation3 + $0x170] sm:$0xff]
      %v4829 = vld [vmem:[#allocation3 + $0x1] sm:$0xff]
      %v4830 = vld [vmem:[#allocation3 + $0x9] sm:$0xff]
      %v4831 = vld [vmem:[#allocation3 + $0x19] sm:$0xff]
      %v4832 = vld [vmem:[#allocation3 + $0x21] sm:$0xff]
      %v4833 = vld [vmem:[#allocation3 + $0x31] sm:$0xff]
      %v4834 = vld [vmem:[#allocation3 + $0x39] sm:$0xff]
      %v4835 = vld [vmem:[#allocation3 + $0x49] sm:$0xff]
      %v4836 = vld [vmem:[#allocation3 + $0x51] sm:$0xff]
      %v4837 = vld [vmem:[#allocation3 + $0x61] sm:$0xff]
      %v4838 = vld [vmem:[#allocation3 + $0x69] sm:$0xff]
      %v4839 = vld [vmem:[#allocation3 + $0x79] sm:$0xff]
      %v4840 = vld [vmem:[#allocation3 + $0x81] sm:$0xff]
      %v4841 = vld [vmem:[#allocation3 + $0x91] sm:$0xff]
      %v4842 = vld [vmem:[#allocation3 + $0x99] sm:$0xff]
      %v4843 = vld [vmem:[#allocation3 + $0xa9] sm:$0xff]
      %v4844 = vld [vmem:[#allocation3 + $0xb1] sm:$0xff]
      %v4845 = vld [vmem:[#allocation3 + $0xc1] sm:$0xff]
      %v4846 = vld [vmem:[#allocation3 + $0xc9] sm:$0xff]
      %v4847 = vld [vmem:[#allocation3 + $0xd9] sm:$0xff]
      %v4848 = vld [vmem:[#allocation3 + $0xe1] sm:$0xff]
      %v4849 = vld [vmem:[#allocation3 + $0xf1] sm:$0xff]
      %v4850 = vld [vmem:[#allocation3 + $0xf9] sm:$0xff]
      %v4851 = vld [vmem:[#allocation3 + $0x109] sm:$0xff]
      %v4852 = vld [vmem:[#allocation3 + $0x111] sm:$0xff]
      %v4853 = vld [vmem:[#allocation3 + $0x121] sm:$0xff]
      %v4854 = vld [vmem:[#allocation3 + $0x129] sm:$0xff]
      %v4855 = vld [vmem:[#allocation3 + $0x139] sm:$0xff]
      %v4856 = vld [vmem:[#allocation3 + $0x141] sm:$0xff]
      %v4857 = vld [vmem:[#allocation3 + $0x151] sm:$0xff]
      %v4858 = vld [vmem:[#allocation3 + $0x159] sm:$0xff]
      %v4859 = vld [vmem:[#allocation3 + $0x169] sm:$0xff]
      %v4860 = vld [vmem:[#allocation3 + $0x171] sm:$0xff]
      %v4861 = vld [vmem:[#allocation3 + $0x2] sm:$0xff]
      %v4862 = vld [vmem:[#allocation3 + $0xa] sm:$0xff]
      %v4863 = vld [vmem:[#allocation3 + $0x1a] sm:$0xff]
      %v4864 = vld [vmem:[#allocation3 + $0x22] sm:$0xff]
      %v4865 = vld [vmem:[#allocation3 + $0x32] sm:$0xff]
      %v4866 = vld [vmem:[#allocation3 + $0x3a] sm:$0xff]
      %v4867 = vld [vmem:[#allocation3 + $0x4a] sm:$0xff]
      %v4868 = vld [vmem:[#allocation3 + $0x52] sm:$0xff]
      %v4869 = vld [vmem:[#allocation3 + $0x62] sm:$0xff]
      %v4870 = vld [vmem:[#allocation3 + $0x6a] sm:$0xff]
      %v4871 = vld [vmem:[#allocation3 + $0x7a] sm:$0xff]
      %v4872 = vld [vmem:[#allocation3 + $0x82] sm:$0xff]
      %v4873 = vld [vmem:[#allocation3 + $0x92] sm:$0xff]
      %v4874 = vld [vmem:[#allocation3 + $0x9a] sm:$0xff]
      %v4875 = vld [vmem:[#allocation3 + $0xaa] sm:$0xff]
      %v4876 = vld [vmem:[#allocation3 + $0xb2] sm:$0xff]
      %v4877 = vld [vmem:[#allocation3 + $0xc2] sm:$0xff]
      %v4878 = vld [vmem:[#allocation3 + $0xca] sm:$0xff]
      %v4879 = vld [vmem:[#allocation3 + $0xda] sm:$0xff]
      %v4880 = vld [vmem:[#allocation3 + $0xe2] sm:$0xff]
      %v4881 = vld [vmem:[#allocation3 + $0xf2] sm:$0xff]
      %v4882 = vld [vmem:[#allocation3 + $0xfa] sm:$0xff]
      %v4883 = vld [vmem:[#allocation3 + $0x10a] sm:$0xff]
      %v4884 = vld [vmem:[#allocation3 + $0x112] sm:$0xff]
      %v4885 = vld [vmem:[#allocation3 + $0x122] sm:$0xff]
      %v4886 = vld [vmem:[#allocation3 + $0x12a] sm:$0xff]
      %v4887 = vld [vmem:[#allocation3 + $0x13a] sm:$0xff]
      %v4888 = vld [vmem:[#allocation3 + $0x142] sm:$0xff]
      %v4889 = vld [vmem:[#allocation3 + $0x152] sm:$0xff]
      %v4890 = vld [vmem:[#allocation3 + $0x15a] sm:$0xff]
      %v4891 = vld [vmem:[#allocation3 + $0x16a] sm:$0xff]
      %v4892 = vld [vmem:[#allocation3 + $0x172] sm:$0xff]
      %v4893 = vld [vmem:[%s2532] sm:$0xff]
      %v4894 = vld [vmem:[%s2532 + $0x8] sm:$0xff]
      %v4895 = vld [vmem:[%s2532 + $0x18] sm:$0xff]
      %v4896 = vld [vmem:[%s2532 + $0x20] sm:$0xff]
      %v4897 = vld [vmem:[%s2532 + $0x30] sm:$0xff]
      %v4898 = vld [vmem:[%s2532 + $0x38] sm:$0xff]
      %v4899 = vld [vmem:[%s2532 + $0x48] sm:$0xff]
      %v4900 = vld [vmem:[%s2532 + $0x50] sm:$0xff]
      %v4901 = vld [vmem:[%s2532 + $0x60] sm:$0xff]
      %v4902 = vld [vmem:[%s2532 + $0x68] sm:$0xff]
      %v4903 = vld [vmem:[%s2532 + $0x78] sm:$0xff]
      %v4904 = vld [vmem:[%s2532 + $0x80] sm:$0xff]
      %v4905 = vld [vmem:[%s2532 + $0x90] sm:$0xff]
      %v4906 = vld [vmem:[%s2532 + $0x98] sm:$0xff]
      %v4907 = vld [vmem:[%s2532 + $0xa8] sm:$0xff]
      %v4908 = vld [vmem:[%s2532 + $0xb0] sm:$0xff]
      %v4909 = vld [vmem:[%s2532 + $0xc0] sm:$0xff]
      %v4910 = vld [vmem:[%s2532 + $0xc8] sm:$0xff]
      %v4911 = vld [vmem:[%s2532 + $0xd8] sm:$0xff]
      %v4912 = vld [vmem:[%s2532 + $0xe0] sm:$0xff]
      %v4913 = vld [vmem:[%s2532 + $0xf0] sm:$0xff]
      %v4914 = vld [vmem:[%s2532 + $0xf8] sm:$0xff]
      %v4915 = vld [vmem:[%s2532 + $0x108] sm:$0xff]
      %v4916 = vld [vmem:[%s2532 + $0x110] sm:$0xff]
      %v4917 = vld [vmem:[%s2532 + $0x120] sm:$0xff]
      %v4918 = vld [vmem:[%s2532 + $0x128] sm:$0xff]
      %v4919 = vld [vmem:[%s2532 + $0x138] sm:$0xff]
      %v4920 = vld [vmem:[%s2532 + $0x140] sm:$0xff]
      %v4921 = vld [vmem:[%s2532 + $0x150] sm:$0xff]
      %v4922 = vld [vmem:[%s2532 + $0x158] sm:$0xff]
      %v4923 = vld [vmem:[%s2532 + $0x168] sm:$0xff]
      %v4924 = vld [vmem:[%s2532 + $0x170] sm:$0xff]
      %v4925 = vld [vmem:[%s2532 + $0x1] sm:$0xff]
      %v4926 = vld [vmem:[%s2532 + $0x9] sm:$0xff]
      %v4927 = vld [vmem:[%s2532 + $0x19] sm:$0xff]
      %v4928 = vld [vmem:[%s2532 + $0x21] sm:$0xff]
      %v4929 = vld [vmem:[%s2532 + $0x31] sm:$0xff]
      %v4930 = vld [vmem:[%s2532 + $0x39] sm:$0xff]
      %v4931 = vld [vmem:[%s2532 + $0x49] sm:$0xff]
      %v4932 = vld [vmem:[%s2532 + $0x51] sm:$0xff]
      %v4933 = vld [vmem:[%s2532 + $0x61] sm:$0xff]
      %v4934 = vld [vmem:[%s2532 + $0x69] sm:$0xff]
      %v4935 = vld [vmem:[%s2532 + $0x79] sm:$0xff]
      %v4936 = vld [vmem:[%s2532 + $0x81] sm:$0xff]
      %v4937 = vld [vmem:[%s2532 + $0x91] sm:$0xff]
      %v4938 = vld [vmem:[%s2532 + $0x99] sm:$0xff]
      %v4939 = vld [vmem:[%s2532 + $0xa9] sm:$0xff]
      %v4940 = vld [vmem:[%s2532 + $0xb1] sm:$0xff]
      %v4941 = vld [vmem:[%s2532 + $0xc1] sm:$0xff]
      %v4942 = vld [vmem:[%s2532 + $0xc9] sm:$0xff]
      %v4943 = vld [vmem:[%s2532 + $0xd9] sm:$0xff]
      %v4944 = vld [vmem:[%s2532 + $0xe1] sm:$0xff]
      %v4945 = vld [vmem:[%s2532 + $0xf1] sm:$0xff]
      %v4946 = vld [vmem:[%s2532 + $0xf9] sm:$0xff]
      %v4947 = vld [vmem:[%s2532 + $0x109] sm:$0xff]
      %v4948 = vld [vmem:[%s2532 + $0x111] sm:$0xff]
      %v4949 = vld [vmem:[%s2532 + $0x121] sm:$0xff]
      %v4950 = vld [vmem:[%s2532 + $0x129] sm:$0xff]
      %v4951 = vld [vmem:[%s2532 + $0x139] sm:$0xff]
      %v4952 = vld [vmem:[%s2532 + $0x141] sm:$0xff]
      %v4953 = vld [vmem:[%s2532 + $0x151] sm:$0xff]
      %v4954 = vld [vmem:[%s2532 + $0x159] sm:$0xff]
      %v4955 = vld [vmem:[%s2532 + $0x169] sm:$0xff]
      %v4956 = vld [vmem:[%s2532 + $0x171] sm:$0xff]
      %v4957 = vld [vmem:[%s2532 + $0x2] sm:$0xff]
      %v4958 = vld [vmem:[%s2532 + $0xa] sm:$0xff]
      %v4959 = vld [vmem:[%s2532 + $0x1a] sm:$0xff]
      %v4960 = vld [vmem:[%s2532 + $0x22] sm:$0xff]
      %v4961 = vld [vmem:[%s2532 + $0x32] sm:$0xff]
      %v4962 = vld [vmem:[%s2532 + $0x3a] sm:$0xff]
      %v4963 = vld [vmem:[%s2532 + $0x4a] sm:$0xff]
      %v4964 = vld [vmem:[%s2532 + $0x52] sm:$0xff]
      %v4965 = vld [vmem:[%s2532 + $0x62] sm:$0xff]
      %v4966 = vld [vmem:[%s2532 + $0x6a] sm:$0xff]
      %v4967 = vld [vmem:[%s2532 + $0x7a] sm:$0xff]
      %v4968 = vld [vmem:[%s2532 + $0x82] sm:$0xff]
      %v4969 = vld [vmem:[%s2532 + $0x92] sm:$0xff]
      %v4970 = vld [vmem:[%s2532 + $0x9a] sm:$0xff]
      %v4971 = vld [vmem:[%s2532 + $0xaa] sm:$0xff]
      %v4972 = vld [vmem:[%s2532 + $0xb2] sm:$0xff]
      %v4973 = vld [vmem:[%s2532 + $0xc2] sm:$0xff]
      %v4974 = vld [vmem:[%s2532 + $0xca] sm:$0xff]
      %v4975 = vld [vmem:[%s2532 + $0xda] sm:$0xff]
      %v4976 = vld [vmem:[%s2532 + $0xe2] sm:$0xff]
      %v4977 = vld [vmem:[%s2532 + $0xf2] sm:$0xff]
      %v4978 = vld [vmem:[%s2532 + $0xfa] sm:$0xff]
      %v4979 = vld [vmem:[%s2532 + $0x10a] sm:$0xff]
      %v4980 = vld [vmem:[%s2532 + $0x112] sm:$0xff]
      %v4981 = vld [vmem:[%s2532 + $0x122] sm:$0xff]
      %v4982 = vld [vmem:[%s2532 + $0x12a] sm:$0xff]
      %v4983 = vld [vmem:[%s2532 + $0x13a] sm:$0xff]
      %v4984 = vld [vmem:[%s2532 + $0x142] sm:$0xff]
      %v4985 = vld [vmem:[%s2532 + $0x152] sm:$0xff]
      %v4986 = vld [vmem:[%s2532 + $0x15a] sm:$0xff]
      %v4987 = vld [vmem:[%s2532 + $0x16a] sm:$0xff]
      %v4988 = vld [vmem:[%s2532 + $0x172] sm:$0xff]
      %v4989 = vld [vmem:[%s2918] sm:$0xff]
      %v4990 = vld [vmem:[%s2918 + $0x8] sm:$0xff]
      %v4991 = vld [vmem:[%s2918 + $0x18] sm:$0xff]
      %v4992 = vld [vmem:[%s2918 + $0x20] sm:$0xff]
      %v4993 = vld [vmem:[%s2918 + $0x30] sm:$0xff]
      %v4994 = vld [vmem:[%s2918 + $0x38] sm:$0xff]
      %v4995 = vld [vmem:[%s2918 + $0x48] sm:$0xff]
      %v4996 = vld [vmem:[%s2918 + $0x50] sm:$0xff]
      %v4997 = vld [vmem:[%s2918 + $0x60] sm:$0xff]
      %v4998 = vld [vmem:[%s2918 + $0x68] sm:$0xff]
      %v4999 = vld [vmem:[%s2918 + $0x78] sm:$0xff]
      %v5000 = vld [vmem:[%s2918 + $0x80] sm:$0xff]
      %v5001 = vld [vmem:[%s2918 + $0x90] sm:$0xff]
      %v5002 = vld [vmem:[%s2918 + $0x98] sm:$0xff]
      %v5003 = vld [vmem:[%s2918 + $0xa8] sm:$0xff]
      %v5004 = vld [vmem:[%s2918 + $0xb0] sm:$0xff]
      %v5005 = vld [vmem:[%s2918 + $0xc0] sm:$0xff]
      %v5006 = vld [vmem:[%s2918 + $0xc8] sm:$0xff]
      %v5007 = vld [vmem:[%s2918 + $0xd8] sm:$0xff]
      %v5008 = vld [vmem:[%s2918 + $0xe0] sm:$0xff]
      %v5009 = vld [vmem:[%s2918 + $0xf0] sm:$0xff]
      %v5010 = vld [vmem:[%s2918 + $0xf8] sm:$0xff]
      %v5011 = vld [vmem:[%s2918 + $0x108] sm:$0xff]
      %v5012 = vld [vmem:[%s2918 + $0x110] sm:$0xff]
      %v5013 = vld [vmem:[%s2918 + $0x120] sm:$0xff]
      %v5014 = vld [vmem:[%s2918 + $0x128] sm:$0xff]
      %v5015 = vld [vmem:[%s2918 + $0x138] sm:$0xff]
      %v5016 = vld [vmem:[%s2918 + $0x140] sm:$0xff]
      %v5017 = vld [vmem:[%s2918 + $0x150] sm:$0xff]
      %v5018 = vld [vmem:[%s2918 + $0x158] sm:$0xff]
      %v5019 = vld [vmem:[%s2918 + $0x168] sm:$0xff]
      %v5020 = vld [vmem:[%s2918 + $0x170] sm:$0xff]
      %v5021 = vld [vmem:[%s2918 + $0x1] sm:$0xff]
      %v5022 = vld [vmem:[%s2918 + $0x9] sm:$0xff]
      %v5023 = vld [vmem:[%s2918 + $0x19] sm:$0xff]
      %v5024 = vld [vmem:[%s2918 + $0x21] sm:$0xff]
      %v5025 = vld [vmem:[%s2918 + $0x31] sm:$0xff]
      %v5026 = vld [vmem:[%s2918 + $0x39] sm:$0xff]
      %v5027 = vld [vmem:[%s2918 + $0x49] sm:$0xff]
      %v5028 = vld [vmem:[%s2918 + $0x51] sm:$0xff]
      %v5029 = vld [vmem:[%s2918 + $0x61] sm:$0xff]
      %v5030 = vld [vmem:[%s2918 + $0x69] sm:$0xff]
      %v5031 = vld [vmem:[%s2918 + $0x79] sm:$0xff]
      %v5032 = vld [vmem:[%s2918 + $0x81] sm:$0xff]
      %v5033 = vld [vmem:[%s2918 + $0x91] sm:$0xff]
      %v5034 = vld [vmem:[%s2918 + $0x99] sm:$0xff]
      %v5035 = vld [vmem:[%s2918 + $0xa9] sm:$0xff]
      %v5036 = vld [vmem:[%s2918 + $0xb1] sm:$0xff]
      %v5037 = vld [vmem:[%s2918 + $0xc1] sm:$0xff]
      %v5038 = vld [vmem:[%s2918 + $0xc9] sm:$0xff]
      %v5039 = vld [vmem:[%s2918 + $0xd9] sm:$0xff]
      %v5040 = vld [vmem:[%s2918 + $0xe1] sm:$0xff]
      %v5041 = vld [vmem:[%s2918 + $0xf1] sm:$0xff]
      %v5042 = vld [vmem:[%s2918 + $0xf9] sm:$0xff]
      %v5043 = vld [vmem:[%s2918 + $0x109] sm:$0xff]
      %v5044 = vld [vmem:[%s2918 + $0x111] sm:$0xff]
      %v5045 = vld [vmem:[%s2918 + $0x121] sm:$0xff]
      %v5046 = vld [vmem:[%s2918 + $0x129] sm:$0xff]
      %v5047 = vld [vmem:[%s2918 + $0x139] sm:$0xff]
      %v5048 = vld [vmem:[%s2918 + $0x141] sm:$0xff]
      %v5049 = vld [vmem:[%s2918 + $0x151] sm:$0xff]
      %v5050 = vld [vmem:[%s2918 + $0x159] sm:$0xff]
      %v5051 = vld [vmem:[%s2918 + $0x169] sm:$0xff]
      %v5052 = vld [vmem:[%s2918 + $0x171] sm:$0xff]
      %v5053 = vld [vmem:[%s2918 + $0x2] sm:$0xff]
      %v5054 = vld [vmem:[%s2918 + $0xa] sm:$0xff]
      %v5055 = vld [vmem:[%s2918 + $0x1a] sm:$0xff]
      %v5056 = vld [vmem:[%s2918 + $0x22] sm:$0xff]
      %v5057 = vld [vmem:[%s2918 + $0x32] sm:$0xff]
      %v5058 = vld [vmem:[%s2918 + $0x3a] sm:$0xff]
      %v5059 = vld [vmem:[%s2918 + $0x4a] sm:$0xff]
      %v5060 = vld [vmem:[%s2918 + $0x52] sm:$0xff]
      %v5061 = vld [vmem:[%s2918 + $0x62] sm:$0xff]
      %v5062 = vld [vmem:[%s2918 + $0x6a] sm:$0xff]
      %v5063 = vld [vmem:[%s2918 + $0x7a] sm:$0xff]
      %v5064 = vld [vmem:[%s2918 + $0x82] sm:$0xff]
      %v5065 = vld [vmem:[%s2918 + $0x92] sm:$0xff]
      %v5066 = vld [vmem:[%s2918 + $0x9a] sm:$0xff]
      %v5067 = vld [vmem:[%s2918 + $0xaa] sm:$0xff]
      %v5068 = vld [vmem:[%s2918 + $0xb2] sm:$0xff]
      %v5069 = vld [vmem:[%s2918 + $0xc2] sm:$0xff]
      %v5070 = vld [vmem:[%s2918 + $0xca] sm:$0xff]
      %v5071 = vld [vmem:[%s2918 + $0xda] sm:$0xff]
      %v5072 = vld [vmem:[%s2918 + $0xe2] sm:$0xff]
      %v5073 = vld [vmem:[%s2918 + $0xf2] sm:$0xff]
      %v5074 = vld [vmem:[%s2918 + $0xfa] sm:$0xff]
      %v5075 = vld [vmem:[%s2918 + $0x10a] sm:$0xff]
      %v5076 = vld [vmem:[%s2918 + $0x112] sm:$0xff]
      %v5077 = vld [vmem:[%s2918 + $0x122] sm:$0xff]
      %v5078 = vld [vmem:[%s2918 + $0x12a] sm:$0xff]
      %v5079 = vld [vmem:[%s2918 + $0x13a] sm:$0xff]
      %v5080 = vld [vmem:[%s2918 + $0x142] sm:$0xff]
      %v5081 = vld [vmem:[%s2918 + $0x152] sm:$0xff]
      %v5082 = vld [vmem:[%s2918 + $0x15a] sm:$0xff]
      %v5083 = vld [vmem:[%s2918 + $0x16a] sm:$0xff]
      %v5084 = vld [vmem:[%s2918 + $0x172] sm:$0xff]
      %5117 = vrot.lane.b32.xlu0 %v4797, 104
      %v5118 = vpop.permute.xlu0 %5117
      %5119 = vrot.lane.b32.xlu0 %v4798, 104
      %v5120 = vpop.permute.xlu0 %5119
      %5121 = vrot.lane.b32.xlu0 %v4799, 104
      %v5122 = vpop.permute.xlu0 %5121
      %5123 = vrot.lane.b32.xlu0 %v4800, 104
      %v5124 = vpop.permute.xlu0 %5123
      %5125 = vrot.lane.b32.xlu0 %v4801, 104
      %v5126 = vpop.permute.xlu0 %5125
      %5127 = vrot.lane.b32.xlu0 %v4802, 104
      %v5128 = vpop.permute.xlu0 %5127
      %5129 = vrot.lane.b32.xlu0 %v4803, 104
      %v5130 = vpop.permute.xlu0 %5129
      %5131 = vrot.lane.b32.xlu0 %v4804, 104
      %v5132 = vpop.permute.xlu0 %5131
      %5133 = vrot.lane.b32.xlu0 %v4805, 104
      %v5134 = vpop.permute.xlu0 %5133
      %5135 = vrot.lane.b32.xlu0 %v4806, 104
      %v5136 = vpop.permute.xlu0 %5135
      %5137 = vrot.lane.b32.xlu0 %v4807, 104
      %v5138 = vpop.permute.xlu0 %5137
      %5139 = vrot.lane.b32.xlu0 %v4808, 104
      %v5140 = vpop.permute.xlu0 %5139
      %5141 = vrot.lane.b32.xlu0 %v4809, 104
      %v5142 = vpop.permute.xlu0 %5141
      %5143 = vrot.lane.b32.xlu0 %v4810, 104
      %v5144 = vpop.permute.xlu0 %5143
      %5145 = vrot.lane.b32.xlu0 %v4811, 104
      %v5146 = vpop.permute.xlu0 %5145
      %5147 = vrot.lane.b32.xlu0 %v4812, 104
      %v5148 = vpop.permute.xlu0 %5147
      %5149 = vrot.lane.b32.xlu0 %v4813, 104
      %v5150 = vpop.permute.xlu0 %5149
      %5151 = vrot.lane.b32.xlu0 %v4814, 104
      %v5152 = vpop.permute.xlu0 %5151
      %5153 = vrot.lane.b32.xlu0 %v4815, 104
      %v5154 = vpop.permute.xlu0 %5153
      %5155 = vrot.lane.b32.xlu0 %v4816, 104
      %v5156 = vpop.permute.xlu0 %5155
      %5157 = vrot.lane.b32.xlu0 %v4817, 104
      %v5158 = vpop.permute.xlu0 %5157
      %5159 = vrot.lane.b32.xlu0 %v4818, 104
      %v5160 = vpop.permute.xlu0 %5159
      %5161 = vrot.lane.b32.xlu0 %v4819, 104
      %v5162 = vpop.permute.xlu0 %5161
      %5163 = vrot.lane.b32.xlu0 %v4820, 104
      %v5164 = vpop.permute.xlu0 %5163
      %5165 = vrot.lane.b32.xlu0 %v4821, 104
      %v5166 = vpop.permute.xlu0 %5165
      %5167 = vrot.lane.b32.xlu0 %v4822, 104
      %v5168 = vpop.permute.xlu0 %5167
      %5169 = vrot.lane.b32.xlu0 %v4823, 104
      %v5170 = vpop.permute.xlu0 %5169
      %5171 = vrot.lane.b32.xlu0 %v4824, 104
      %v5172 = vpop.permute.xlu0 %5171
      %5173 = vrot.lane.b32.xlu0 %v4825, 104
      %v5174 = vpop.permute.xlu0 %5173
      %5175 = vrot.lane.b32.xlu0 %v4826, 104
      %v5176 = vpop.permute.xlu0 %5175
      %5177 = vrot.lane.b32.xlu0 %v4827, 104
      %v5178 = vpop.permute.xlu0 %5177
      %5179 = vrot.lane.b32.xlu0 %v4828, 104
      %v5180 = vpop.permute.xlu0 %5179
      %5245 = vrot.lane.b32.xlu0 %v4829, 112
      %v5246 = vpop.permute.xlu0 %5245
      %5247 = vrot.lane.b32.xlu0 %v4830, 112
      %v5248 = vpop.permute.xlu0 %5247
      %5249 = vrot.lane.b32.xlu0 %v4831, 112
      %v5250 = vpop.permute.xlu0 %5249
      %5251 = vrot.lane.b32.xlu0 %v4832, 112
      %v5252 = vpop.permute.xlu0 %5251
      %5253 = vrot.lane.b32.xlu0 %v4833, 112
      %v5254 = vpop.permute.xlu0 %5253
      %5255 = vrot.lane.b32.xlu0 %v4834, 112
      %v5256 = vpop.permute.xlu0 %5255
      %5257 = vrot.lane.b32.xlu0 %v4835, 112
      %v5258 = vpop.permute.xlu0 %5257
      %5259 = vrot.lane.b32.xlu0 %v4836, 112
      %v5260 = vpop.permute.xlu0 %5259
      %5261 = vrot.lane.b32.xlu0 %v4837, 112
      %v5262 = vpop.permute.xlu0 %5261
      %5263 = vrot.lane.b32.xlu0 %v4838, 112
      %v5264 = vpop.permute.xlu0 %5263
      %5265 = vrot.lane.b32.xlu0 %v4839, 112
      %v5266 = vpop.permute.xlu0 %5265
      %5267 = vrot.lane.b32.xlu0 %v4840, 112
      %v5268 = vpop.permute.xlu0 %5267
      %5269 = vrot.lane.b32.xlu0 %v4841, 112
      %v5270 = vpop.permute.xlu0 %5269
      %5271 = vrot.lane.b32.xlu0 %v4842, 112
      %v5272 = vpop.permute.xlu0 %5271
      %5273 = vrot.lane.b32.xlu0 %v4843, 112
      %v5274 = vpop.permute.xlu0 %5273
      %5275 = vrot.lane.b32.xlu0 %v4844, 112
      %v5276 = vpop.permute.xlu0 %5275
      %5277 = vrot.lane.b32.xlu0 %v4845, 112
      %v5278 = vpop.permute.xlu0 %5277
      %5279 = vrot.lane.b32.xlu0 %v4846, 112
      %v5280 = vpop.permute.xlu0 %5279
      %5281 = vrot.lane.b32.xlu0 %v4847, 112
      %v5282 = vpop.permute.xlu0 %5281
      %5283 = vrot.lane.b32.xlu0 %v4848, 112
      %v5284 = vpop.permute.xlu0 %5283
      %5285 = vrot.lane.b32.xlu0 %v4849, 112
      %v5286 = vpop.permute.xlu0 %5285
      %5287 = vrot.lane.b32.xlu0 %v4850, 112
      %v5288 = vpop.permute.xlu0 %5287
      %5289 = vrot.lane.b32.xlu0 %v4851, 112
      %v5290 = vpop.permute.xlu0 %5289
      %5291 = vrot.lane.b32.xlu0 %v4852, 112
      %v5292 = vpop.permute.xlu0 %5291
      %5293 = vrot.lane.b32.xlu0 %v4853, 112
      %v5294 = vpop.permute.xlu0 %5293
      %5295 = vrot.lane.b32.xlu0 %v4854, 112
      %v5296 = vpop.permute.xlu0 %5295
      %5297 = vrot.lane.b32.xlu0 %v4855, 112
      %v5298 = vpop.permute.xlu0 %5297
      %5299 = vrot.lane.b32.xlu0 %v4856, 112
      %v5300 = vpop.permute.xlu0 %5299
      %5301 = vrot.lane.b32.xlu0 %v4857, 112
      %v5302 = vpop.permute.xlu0 %5301
      %5303 = vrot.lane.b32.xlu0 %v4858, 112
      %v5304 = vpop.permute.xlu0 %5303
      %5305 = vrot.lane.b32.xlu0 %v4859, 112
      %v5306 = vpop.permute.xlu0 %5305
      %5307 = vrot.lane.b32.xlu0 %v4860, 112
      %v5308 = vpop.permute.xlu0 %5307
      %5373 = vrot.lane.b32.xlu0 %v4861, 120
      %v5374 = vpop.permute.xlu0 %5373
      %5375 = vrot.lane.b32.xlu0 %v4862, 120
      %v5376 = vpop.permute.xlu0 %5375
      %5377 = vrot.lane.b32.xlu0 %v4863, 120
      %v5378 = vpop.permute.xlu0 %5377
      %5379 = vrot.lane.b32.xlu0 %v4864, 120
      %v5380 = vpop.permute.xlu0 %5379
      %5381 = vrot.lane.b32.xlu0 %v4865, 120
      %v5382 = vpop.permute.xlu0 %5381
      %5383 = vrot.lane.b32.xlu0 %v4866, 120
      %v5384 = vpop.permute.xlu0 %5383
      %5385 = vrot.lane.b32.xlu0 %v4867, 120
      %v5386 = vpop.permute.xlu0 %5385
      %5387 = vrot.lane.b32.xlu0 %v4868, 120
      %v5388 = vpop.permute.xlu0 %5387
      %5389 = vrot.lane.b32.xlu0 %v4869, 120
      %v5390 = vpop.permute.xlu0 %5389
      %5391 = vrot.lane.b32.xlu0 %v4870, 120
      %v5392 = vpop.permute.xlu0 %5391
      %5393 = vrot.lane.b32.xlu0 %v4871, 120
      %v5394 = vpop.permute.xlu0 %5393
      %5395 = vrot.lane.b32.xlu0 %v4872, 120
      %v5396 = vpop.permute.xlu0 %5395
      %5397 = vrot.lane.b32.xlu0 %v4873, 120
      %v5398 = vpop.permute.xlu0 %5397
      %5399 = vrot.lane.b32.xlu0 %v4874, 120
      %v5400 = vpop.permute.xlu0 %5399
      %5401 = vrot.lane.b32.xlu0 %v4875, 120
      %v5402 = vpop.permute.xlu0 %5401
      %5403 = vrot.lane.b32.xlu0 %v4876, 120
      %v5404 = vpop.permute.xlu0 %5403
      %5405 = vrot.lane.b32.xlu0 %v4877, 120
      %v5406 = vpop.permute.xlu0 %5405
      %5407 = vrot.lane.b32.xlu0 %v4878, 120
      %v5408 = vpop.permute.xlu0 %5407
      %5409 = vrot.lane.b32.xlu0 %v4879, 120
      %v5410 = vpop.permute.xlu0 %5409
      %5411 = vrot.lane.b32.xlu0 %v4880, 120
      %v5412 = vpop.permute.xlu0 %5411
      %5413 = vrot.lane.b32.xlu0 %v4881, 120
      %v5414 = vpop.permute.xlu0 %5413
      %5415 = vrot.lane.b32.xlu0 %v4882, 120
      %v5416 = vpop.permute.xlu0 %5415
      %5417 = vrot.lane.b32.xlu0 %v4883, 120
      %v5418 = vpop.permute.xlu0 %5417
      %5419 = vrot.lane.b32.xlu0 %v4884, 120
      %v5420 = vpop.permute.xlu0 %5419
      %5421 = vrot.lane.b32.xlu0 %v4885, 120
      %v5422 = vpop.permute.xlu0 %5421
      %5423 = vrot.lane.b32.xlu0 %v4886, 120
      %v5424 = vpop.permute.xlu0 %5423
      %5425 = vrot.lane.b32.xlu0 %v4887, 120
      %v5426 = vpop.permute.xlu0 %5425
      %5427 = vrot.lane.b32.xlu0 %v4888, 120
      %v5428 = vpop.permute.xlu0 %5427
      %5429 = vrot.lane.b32.xlu0 %v4889, 120
      %v5430 = vpop.permute.xlu0 %5429
      %5431 = vrot.lane.b32.xlu0 %v4890, 120
      %v5432 = vpop.permute.xlu0 %5431
      %5433 = vrot.lane.b32.xlu0 %v4891, 120
      %v5434 = vpop.permute.xlu0 %5433
      %5435 = vrot.lane.b32.xlu0 %v4892, 120
      %v5436 = vpop.permute.xlu0 %5435
      %5501 = vrot.lane.b32.xlu0 %v4925, 8
      %v5502 = vpop.permute.xlu0 %5501
      %5503 = vrot.lane.b32.xlu0 %v4926, 8
      %v5504 = vpop.permute.xlu0 %5503
      %5505 = vrot.lane.b32.xlu0 %v4927, 8
      %v5506 = vpop.permute.xlu0 %5505
      %5507 = vrot.lane.b32.xlu0 %v4928, 8
      %v5508 = vpop.permute.xlu0 %5507
      %5509 = vrot.lane.b32.xlu0 %v4929, 8
      %v5510 = vpop.permute.xlu0 %5509
      %5511 = vrot.lane.b32.xlu0 %v4930, 8
      %v5512 = vpop.permute.xlu0 %5511
      %5513 = vrot.lane.b32.xlu0 %v4931, 8
      %v5514 = vpop.permute.xlu0 %5513
      %5515 = vrot.lane.b32.xlu0 %v4932, 8
      %v5516 = vpop.permute.xlu0 %5515
      %5517 = vrot.lane.b32.xlu0 %v4933, 8
      %v5518 = vpop.permute.xlu0 %5517
      %5519 = vrot.lane.b32.xlu0 %v4934, 8
      %v5520 = vpop.permute.xlu0 %5519
      %5521 = vrot.lane.b32.xlu0 %v4935, 8
      %v5522 = vpop.permute.xlu0 %5521
      %5523 = vrot.lane.b32.xlu0 %v4936, 8
      %v5524 = vpop.permute.xlu0 %5523
      %5525 = vrot.lane.b32.xlu0 %v4937, 8
      %v5526 = vpop.permute.xlu0 %5525
      %5527 = vrot.lane.b32.xlu0 %v4938, 8
      %v5528 = vpop.permute.xlu0 %5527
      %5529 = vrot.lane.b32.xlu0 %v4939, 8
      %v5530 = vpop.permute.xlu0 %5529
      %5531 = vrot.lane.b32.xlu0 %v4940, 8
      %v5532 = vpop.permute.xlu0 %5531
      %5533 = vrot.lane.b32.xlu0 %v4941, 8
      %v5534 = vpop.permute.xlu0 %5533
      %5535 = vrot.lane.b32.xlu0 %v4942, 8
      %v5536 = vpop.permute.xlu0 %5535
      %5537 = vrot.lane.b32.xlu0 %v4943, 8
      %v5538 = vpop.permute.xlu0 %5537
      %5539 = vrot.lane.b32.xlu0 %v4944, 8
      %v5540 = vpop.permute.xlu0 %5539
      %5541 = vrot.lane.b32.xlu0 %v4945, 8
      %v5542 = vpop.permute.xlu0 %5541
      %5543 = vrot.lane.b32.xlu0 %v4946, 8
      %v5544 = vpop.permute.xlu0 %5543
      %5545 = vrot.lane.b32.xlu0 %v4947, 8
      %v5546 = vpop.permute.xlu0 %5545
      %5547 = vrot.lane.b32.xlu0 %v4948, 8
      %v5548 = vpop.permute.xlu0 %5547
      %5549 = vrot.lane.b32.xlu0 %v4949, 8
      %v5550 = vpop.permute.xlu0 %5549
      %5551 = vrot.lane.b32.xlu0 %v4950, 8
      %v5552 = vpop.permute.xlu0 %5551
      %5553 = vrot.lane.b32.xlu0 %v4951, 8
      %v5554 = vpop.permute.xlu0 %5553
      %5555 = vrot.lane.b32.xlu0 %v4952, 8
      %v5556 = vpop.permute.xlu0 %5555
      %5557 = vrot.lane.b32.xlu0 %v4953, 8
      %v5558 = vpop.permute.xlu0 %5557
      %5559 = vrot.lane.b32.xlu0 %v4954, 8
      %v5560 = vpop.permute.xlu0 %5559
      %5561 = vrot.lane.b32.xlu0 %v4955, 8
      %v5562 = vpop.permute.xlu0 %5561
      %5563 = vrot.lane.b32.xlu0 %v4956, 8
      %v5564 = vpop.permute.xlu0 %5563
      %5629 = vrot.lane.b32.xlu0 %v4957, 16
      %v5630 = vpop.permute.xlu0 %5629
      %5631 = vrot.lane.b32.xlu0 %v4958, 16
      %v5632 = vpop.permute.xlu0 %5631
      %5633 = vrot.lane.b32.xlu0 %v4959, 16
      %v5634 = vpop.permute.xlu0 %5633
      %5635 = vrot.lane.b32.xlu0 %v4960, 16
      %v5636 = vpop.permute.xlu0 %5635
      %5637 = vrot.lane.b32.xlu0 %v4961, 16
      %v5638 = vpop.permute.xlu0 %5637
      %5639 = vrot.lane.b32.xlu0 %v4962, 16
      %v5640 = vpop.permute.xlu0 %5639
      %5641 = vrot.lane.b32.xlu0 %v4963, 16
      %v5642 = vpop.permute.xlu0 %5641
      %5643 = vrot.lane.b32.xlu0 %v4964, 16
      %v5644 = vpop.permute.xlu0 %5643
      %5645 = vrot.lane.b32.xlu0 %v4965, 16
      %v5646 = vpop.permute.xlu0 %5645
      %5647 = vrot.lane.b32.xlu0 %v4966, 16
      %v5648 = vpop.permute.xlu0 %5647
      %5649 = vrot.lane.b32.xlu0 %v4967, 16
      %v5650 = vpop.permute.xlu0 %5649
      %5651 = vrot.lane.b32.xlu0 %v4968, 16
      %v5652 = vpop.permute.xlu0 %5651
      %5653 = vrot.lane.b32.xlu0 %v4969, 16
      %v5654 = vpop.permute.xlu0 %5653
      %5655 = vrot.lane.b32.xlu0 %v4970, 16
      %v5656 = vpop.permute.xlu0 %5655
      %5657 = vrot.lane.b32.xlu0 %v4971, 16
      %v5658 = vpop.permute.xlu0 %5657
      %5659 = vrot.lane.b32.xlu0 %v4972, 16
      %v5660 = vpop.permute.xlu0 %5659
      %5661 = vrot.lane.b32.xlu0 %v4973, 16
      %v5662 = vpop.permute.xlu0 %5661
      %5663 = vrot.lane.b32.xlu0 %v4974, 16
      %v5664 = vpop.permute.xlu0 %5663
      %5665 = vrot.lane.b32.xlu0 %v4975, 16
      %v5666 = vpop.permute.xlu0 %5665
      %5667 = vrot.lane.b32.xlu0 %v4976, 16
      %v5668 = vpop.permute.xlu0 %5667
      %5669 = vrot.lane.b32.xlu0 %v4977, 16
      %v5670 = vpop.permute.xlu0 %5669
      %5671 = vrot.lane.b32.xlu0 %v4978, 16
      %v5672 = vpop.permute.xlu0 %5671
      %5673 = vrot.lane.b32.xlu0 %v4979, 16
      %v5674 = vpop.permute.xlu0 %5673
      %5675 = vrot.lane.b32.xlu0 %v4980, 16
      %v5676 = vpop.permute.xlu0 %5675
      %5677 = vrot.lane.b32.xlu0 %v4981, 16
      %v5678 = vpop.permute.xlu0 %5677
      %5679 = vrot.lane.b32.xlu0 %v4982, 16
      %v5680 = vpop.permute.xlu0 %5679
      %5681 = vrot.lane.b32.xlu0 %v4983, 16
      %v5682 = vpop.permute.xlu0 %5681
      %5683 = vrot.lane.b32.xlu0 %v4984, 16
      %v5684 = vpop.permute.xlu0 %5683
      %5685 = vrot.lane.b32.xlu0 %v4985, 16
      %v5686 = vpop.permute.xlu0 %5685
      %5687 = vrot.lane.b32.xlu0 %v4986, 16
      %v5688 = vpop.permute.xlu0 %5687
      %5689 = vrot.lane.b32.xlu0 %v4987, 16
      %v5690 = vpop.permute.xlu0 %5689
      %5691 = vrot.lane.b32.xlu0 %v4988, 16
      %v5692 = vpop.permute.xlu0 %5691
      %5757 = vrot.lane.b32.xlu0 %v4989, 24
      %v5758 = vpop.permute.xlu0 %5757
      %5759 = vrot.lane.b32.xlu0 %v4990, 24
      %v5760 = vpop.permute.xlu0 %5759
      %5761 = vrot.lane.b32.xlu0 %v4991, 24
      %v5762 = vpop.permute.xlu0 %5761
      %5763 = vrot.lane.b32.xlu0 %v4992, 24
      %v5764 = vpop.permute.xlu0 %5763
      %5765 = vrot.lane.b32.xlu0 %v4993, 24
      %v5766 = vpop.permute.xlu0 %5765
      %5767 = vrot.lane.b32.xlu0 %v4994, 24
      %v5768 = vpop.permute.xlu0 %5767
      %5769 = vrot.lane.b32.xlu0 %v4995, 24
      %v5770 = vpop.permute.xlu0 %5769
      %5771 = vrot.lane.b32.xlu0 %v4996, 24
      %v5772 = vpop.permute.xlu0 %5771
      %5773 = vrot.lane.b32.xlu0 %v4997, 24
      %v5774 = vpop.permute.xlu0 %5773
      %5775 = vrot.lane.b32.xlu0 %v4998, 24
      %v5776 = vpop.permute.xlu0 %5775
      %5777 = vrot.lane.b32.xlu0 %v4999, 24
      %v5778 = vpop.permute.xlu0 %5777
      %5779 = vrot.lane.b32.xlu0 %v5000, 24
      %v5780 = vpop.permute.xlu0 %5779
      %5781 = vrot.lane.b32.xlu0 %v5001, 24
      %v5782 = vpop.permute.xlu0 %5781
      %5783 = vrot.lane.b32.xlu0 %v5002, 24
      %v5784 = vpop.permute.xlu0 %5783
      %5785 = vrot.lane.b32.xlu0 %v5003, 24
      %v5786 = vpop.permute.xlu0 %5785
      %5787 = vrot.lane.b32.xlu0 %v5004, 24
      %v5788 = vpop.permute.xlu0 %5787
      %5789 = vrot.lane.b32.xlu0 %v5005, 24
      %v5790 = vpop.permute.xlu0 %5789
      %5791 = vrot.lane.b32.xlu0 %v5006, 24
      %v5792 = vpop.permute.xlu0 %5791
      %5793 = vrot.lane.b32.xlu0 %v5007, 24
      %v5794 = vpop.permute.xlu0 %5793
      %5795 = vrot.lane.b32.xlu0 %v5008, 24
      %v5796 = vpop.permute.xlu0 %5795
      %5797 = vrot.lane.b32.xlu0 %v5009, 24
      %v5798 = vpop.permute.xlu0 %5797
      %5799 = vrot.lane.b32.xlu0 %v5010, 24
      %v5800 = vpop.permute.xlu0 %5799
      %5801 = vrot.lane.b32.xlu0 %v5011, 24
      %v5802 = vpop.permute.xlu0 %5801
      %5803 = vrot.lane.b32.xlu0 %v5012, 24
      %v5804 = vpop.permute.xlu0 %5803
      %5805 = vrot.lane.b32.xlu0 %v5013, 24
      %v5806 = vpop.permute.xlu0 %5805
      %5807 = vrot.lane.b32.xlu0 %v5014, 24
      %v5808 = vpop.permute.xlu0 %5807
      %5809 = vrot.lane.b32.xlu0 %v5015, 24
      %v5810 = vpop.permute.xlu0 %5809
      %5811 = vrot.lane.b32.xlu0 %v5016, 24
      %v5812 = vpop.permute.xlu0 %5811
      %5813 = vrot.lane.b32.xlu0 %v5017, 24
      %v5814 = vpop.permute.xlu0 %5813
      %5815 = vrot.lane.b32.xlu0 %v5018, 24
      %v5816 = vpop.permute.xlu0 %5815
      %5817 = vrot.lane.b32.xlu0 %v5019, 24
      %v5818 = vpop.permute.xlu0 %5817
      %5819 = vrot.lane.b32.xlu0 %v5020, 24
      %v5820 = vpop.permute.xlu0 %5819
      %5885 = vrot.lane.b32.xlu0 %v5021, 32
      %v5886 = vpop.permute.xlu0 %5885
      %5887 = vrot.lane.b32.xlu0 %v5022, 32
      %v5888 = vpop.permute.xlu0 %5887
      %5889 = vrot.lane.b32.xlu0 %v5023, 32
      %v5890 = vpop.permute.xlu0 %5889
      %5891 = vrot.lane.b32.xlu0 %v5024, 32
      %v5892 = vpop.permute.xlu0 %5891
      %5893 = vrot.lane.b32.xlu0 %v5025, 32
      %v5894 = vpop.permute.xlu0 %5893
      %5895 = vrot.lane.b32.xlu0 %v5026, 32
      %v5896 = vpop.permute.xlu0 %5895
      %5897 = vrot.lane.b32.xlu0 %v5027, 32
      %v5898 = vpop.permute.xlu0 %5897
      %5899 = vrot.lane.b32.xlu0 %v5028, 32
      %v5900 = vpop.permute.xlu0 %5899
      %5901 = vrot.lane.b32.xlu0 %v5029, 32
      %v5902 = vpop.permute.xlu0 %5901
      %5903 = vrot.lane.b32.xlu0 %v5030, 32
      %v5904 = vpop.permute.xlu0 %5903
      %5905 = vrot.lane.b32.xlu0 %v5031, 32
      %v5906 = vpop.permute.xlu0 %5905
      %5907 = vrot.lane.b32.xlu0 %v5032, 32
      %v5908 = vpop.permute.xlu0 %5907
      %5909 = vrot.lane.b32.xlu0 %v5033, 32
      %v5910 = vpop.permute.xlu0 %5909
      %5911 = vrot.lane.b32.xlu0 %v5034, 32
      %v5912 = vpop.permute.xlu0 %5911
      %5913 = vrot.lane.b32.xlu0 %v5035, 32
      %v5914 = vpop.permute.xlu0 %5913
      %5915 = vrot.lane.b32.xlu0 %v5036, 32
      %v5916 = vpop.permute.xlu0 %5915
      %5917 = vrot.lane.b32.xlu0 %v5037, 32
      %v5918 = vpop.permute.xlu0 %5917
      %5919 = vrot.lane.b32.xlu0 %v5038, 32
      %v5920 = vpop.permute.xlu0 %5919
      %5921 = vrot.lane.b32.xlu0 %v5039, 32
      %v5922 = vpop.permute.xlu0 %5921
      %5923 = vrot.lane.b32.xlu0 %v5040, 32
      %v5924 = vpop.permute.xlu0 %5923
      %5925 = vrot.lane.b32.xlu0 %v5041, 32
      %v5926 = vpop.permute.xlu0 %5925
      %5927 = vrot.lane.b32.xlu0 %v5042, 32
      %v5928 = vpop.permute.xlu0 %5927
      %5929 = vrot.lane.b32.xlu0 %v5043, 32
      %v5930 = vpop.permute.xlu0 %5929
      %5931 = vrot.lane.b32.xlu0 %v5044, 32
      %v5932 = vpop.permute.xlu0 %5931
      %5933 = vrot.lane.b32.xlu0 %v5045, 32
      %v5934 = vpop.permute.xlu0 %5933
      %5935 = vrot.lane.b32.xlu0 %v5046, 32
      %v5936 = vpop.permute.xlu0 %5935
      %5937 = vrot.lane.b32.xlu0 %v5047, 32
      %v5938 = vpop.permute.xlu0 %5937
      %5939 = vrot.lane.b32.xlu0 %v5048, 32
      %v5940 = vpop.permute.xlu0 %5939
      %5941 = vrot.lane.b32.xlu0 %v5049, 32
      %v5942 = vpop.permute.xlu0 %5941
      %5943 = vrot.lane.b32.xlu0 %v5050, 32
      %v5944 = vpop.permute.xlu0 %5943
      %5945 = vrot.lane.b32.xlu0 %v5051, 32
      %v5946 = vpop.permute.xlu0 %5945
      %5947 = vrot.lane.b32.xlu0 %v5052, 32
      %v5948 = vpop.permute.xlu0 %5947
      %6013 = vrot.lane.b32.xlu0 %v5053, 40
      %v6014 = vpop.permute.xlu0 %6013
      %6015 = vrot.lane.b32.xlu0 %v5054, 40
      %v6016 = vpop.permute.xlu0 %6015
      %6017 = vrot.lane.b32.xlu0 %v5055, 40
      %v6018 = vpop.permute.xlu0 %6017
      %6019 = vrot.lane.b32.xlu0 %v5056, 40
      %v6020 = vpop.permute.xlu0 %6019
      %6021 = vrot.lane.b32.xlu0 %v5057, 40
      %v6022 = vpop.permute.xlu0 %6021
      %6023 = vrot.lane.b32.xlu0 %v5058, 40
      %v6024 = vpop.permute.xlu0 %6023
      %6025 = vrot.lane.b32.xlu0 %v5059, 40
      %v6026 = vpop.permute.xlu0 %6025
      %6027 = vrot.lane.b32.xlu0 %v5060, 40
      %v6028 = vpop.permute.xlu0 %6027
      %6029 = vrot.lane.b32.xlu0 %v5061, 40
      %v6030 = vpop.permute.xlu0 %6029
      %6031 = vrot.lane.b32.xlu0 %v5062, 40
      %v6032 = vpop.permute.xlu0 %6031
      %6033 = vrot.lane.b32.xlu0 %v5063, 40
      %v6034 = vpop.permute.xlu0 %6033
      %6035 = vrot.lane.b32.xlu0 %v5064, 40
      %v6036 = vpop.permute.xlu0 %6035
      %6037 = vrot.lane.b32.xlu0 %v5065, 40
      %v6038 = vpop.permute.xlu0 %6037
      %6039 = vrot.lane.b32.xlu0 %v5066, 40
      %v6040 = vpop.permute.xlu0 %6039
      %6041 = vrot.lane.b32.xlu0 %v5067, 40
      %v6042 = vpop.permute.xlu0 %6041
      %6043 = vrot.lane.b32.xlu0 %v5068, 40
      %v6044 = vpop.permute.xlu0 %6043
      %6045 = vrot.lane.b32.xlu0 %v5069, 40
      %v6046 = vpop.permute.xlu0 %6045
      %6047 = vrot.lane.b32.xlu0 %v5070, 40
      %v6048 = vpop.permute.xlu0 %6047
      %6049 = vrot.lane.b32.xlu0 %v5071, 40
      %v6050 = vpop.permute.xlu0 %6049
      %6051 = vrot.lane.b32.xlu0 %v5072, 40
      %v6052 = vpop.permute.xlu0 %6051
      %6053 = vrot.lane.b32.xlu0 %v5073, 40
      %v6054 = vpop.permute.xlu0 %6053
      %6055 = vrot.lane.b32.xlu0 %v5074, 40
      %v6056 = vpop.permute.xlu0 %6055
      %6057 = vrot.lane.b32.xlu0 %v5075, 40
      %v6058 = vpop.permute.xlu0 %6057
      %6059 = vrot.lane.b32.xlu0 %v5076, 40
      %v6060 = vpop.permute.xlu0 %6059
      %6061 = vrot.lane.b32.xlu0 %v5077, 40
      %v6062 = vpop.permute.xlu0 %6061
      %6063 = vrot.lane.b32.xlu0 %v5078, 40
      %v6064 = vpop.permute.xlu0 %6063
      %6065 = vrot.lane.b32.xlu0 %v5079, 40
      %v6066 = vpop.permute.xlu0 %6065
      %6067 = vrot.lane.b32.xlu0 %v5080, 40
      %v6068 = vpop.permute.xlu0 %6067
      %6069 = vrot.lane.b32.xlu0 %v5081, 40
      %v6070 = vpop.permute.xlu0 %6069
      %6071 = vrot.lane.b32.xlu0 %v5082, 40
      %v6072 = vpop.permute.xlu0 %6071
      %6073 = vrot.lane.b32.xlu0 %v5083, 40
      %v6074 = vpop.permute.xlu0 %6073
      %6075 = vrot.lane.b32.xlu0 %v5084, 40
      %v6076 = vpop.permute.xlu0 %6075
      %v6109 = vsel %vm1963, %v5118, %v5246
      %v6110 = vsel %vm1963, %v5120, %v5248
      %v6111 = vsel %vm1963, %v5122, %v5250
      %v6112 = vsel %vm1963, %v5124, %v5252
      %v6113 = vsel %vm1963, %v5126, %v5254
      %v6114 = vsel %vm1963, %v5128, %v5256
      %v6115 = vsel %vm1963, %v5130, %v5258
      %v6116 = vsel %vm1963, %v5132, %v5260
      %v6117 = vsel %vm1963, %v5134, %v5262
      %v6118 = vsel %vm1963, %v5136, %v5264
      %v6119 = vsel %vm1963, %v5138, %v5266
      %v6120 = vsel %vm1963, %v5140, %v5268
      %v6121 = vsel %vm1963, %v5142, %v5270
      %v6122 = vsel %vm1963, %v5144, %v5272
      %v6123 = vsel %vm1963, %v5146, %v5274
      %v6124 = vsel %vm1963, %v5148, %v5276
      %v6125 = vsel %vm1963, %v5150, %v5278
      %v6126 = vsel %vm1963, %v5152, %v5280
      %v6127 = vsel %vm1963, %v5154, %v5282
      %v6128 = vsel %vm1963, %v5156, %v5284
      %v6129 = vsel %vm1963, %v5158, %v5286
      %v6130 = vsel %vm1963, %v5160, %v5288
      %v6131 = vsel %vm1963, %v5162, %v5290
      %v6132 = vsel %vm1963, %v5164, %v5292
      %v6133 = vsel %vm1963, %v5166, %v5294
      %v6134 = vsel %vm1963, %v5168, %v5296
      %v6135 = vsel %vm1963, %v5170, %v5298
      %v6136 = vsel %vm1963, %v5172, %v5300
      %v6137 = vsel %vm1963, %v5174, %v5302
      %v6138 = vsel %vm1963, %v5176, %v5304
      %v6139 = vsel %vm1963, %v5178, %v5306
      %v6140 = vsel %vm1963, %v5180, %v5308
      %v6141 = vsel %vm2029, %v6109, %v5374
      %v6142 = vsel %vm2029, %v6110, %v5376
      %v6143 = vsel %vm2029, %v6111, %v5378
      %v6144 = vsel %vm2029, %v6112, %v5380
      %v6145 = vsel %vm2029, %v6113, %v5382
      %v6146 = vsel %vm2029, %v6114, %v5384
      %v6147 = vsel %vm2029, %v6115, %v5386
      %v6148 = vsel %vm2029, %v6116, %v5388
      %v6149 = vsel %vm2029, %v6117, %v5390
      %v6150 = vsel %vm2029, %v6118, %v5392
      %v6151 = vsel %vm2029, %v6119, %v5394
      %v6152 = vsel %vm2029, %v6120, %v5396
      %v6153 = vsel %vm2029, %v6121, %v5398
      %v6154 = vsel %vm2029, %v6122, %v5400
      %v6155 = vsel %vm2029, %v6123, %v5402
      %v6156 = vsel %vm2029, %v6124, %v5404
      %v6157 = vsel %vm2029, %v6125, %v5406
      %v6158 = vsel %vm2029, %v6126, %v5408
      %v6159 = vsel %vm2029, %v6127, %v5410
      %v6160 = vsel %vm2029, %v6128, %v5412
      %v6161 = vsel %vm2029, %v6129, %v5414
      %v6162 = vsel %vm2029, %v6130, %v5416
      %v6163 = vsel %vm2029, %v6131, %v5418
      %v6164 = vsel %vm2029, %v6132, %v5420
      %v6165 = vsel %vm2029, %v6133, %v5422
      %v6166 = vsel %vm2029, %v6134, %v5424
      %v6167 = vsel %vm2029, %v6135, %v5426
      %v6168 = vsel %vm2029, %v6136, %v5428
      %v6169 = vsel %vm2029, %v6137, %v5430
      %v6170 = vsel %vm2029, %v6138, %v5432
      %v6171 = vsel %vm2029, %v6139, %v5434
      %v6172 = vsel %vm2029, %v6140, %v5436
      %v6173 = vsel %vm2095, %v6141, %v4893
      %v6174 = vsel %vm2095, %v6142, %v4894
      %v6175 = vsel %vm2095, %v6143, %v4895
      %v6176 = vsel %vm2095, %v6144, %v4896
      %v6177 = vsel %vm2095, %v6145, %v4897
      %v6178 = vsel %vm2095, %v6146, %v4898
      %v6179 = vsel %vm2095, %v6147, %v4899
      %v6180 = vsel %vm2095, %v6148, %v4900
      %v6181 = vsel %vm2095, %v6149, %v4901
      %v6182 = vsel %vm2095, %v6150, %v4902
      %v6183 = vsel %vm2095, %v6151, %v4903
      %v6184 = vsel %vm2095, %v6152, %v4904
      %v6185 = vsel %vm2095, %v6153, %v4905
      %v6186 = vsel %vm2095, %v6154, %v4906
      %v6187 = vsel %vm2095, %v6155, %v4907
      %v6188 = vsel %vm2095, %v6156, %v4908
      %v6189 = vsel %vm2095, %v6157, %v4909
      %v6190 = vsel %vm2095, %v6158, %v4910
      %v6191 = vsel %vm2095, %v6159, %v4911
      %v6192 = vsel %vm2095, %v6160, %v4912
      %v6193 = vsel %vm2095, %v6161, %v4913
      %v6194 = vsel %vm2095, %v6162, %v4914
      %v6195 = vsel %vm2095, %v6163, %v4915
      %v6196 = vsel %vm2095, %v6164, %v4916
      %v6197 = vsel %vm2095, %v6165, %v4917
      %v6198 = vsel %vm2095, %v6166, %v4918
      %v6199 = vsel %vm2095, %v6167, %v4919
      %v6200 = vsel %vm2095, %v6168, %v4920
      %v6201 = vsel %vm2095, %v6169, %v4921
      %v6202 = vsel %vm2095, %v6170, %v4922
      %v6203 = vsel %vm2095, %v6171, %v4923
      %v6204 = vsel %vm2095, %v6172, %v4924
      %v6205 = vsel %vm2161, %v6173, %v5502
      %v6206 = vsel %vm2161, %v6174, %v5504
      %v6207 = vsel %vm2161, %v6175, %v5506
      %v6208 = vsel %vm2161, %v6176, %v5508
      %v6209 = vsel %vm2161, %v6177, %v5510
      %v6210 = vsel %vm2161, %v6178, %v5512
      %v6211 = vsel %vm2161, %v6179, %v5514
      %v6212 = vsel %vm2161, %v6180, %v5516
      %v6213 = vsel %vm2161, %v6181, %v5518
      %v6214 = vsel %vm2161, %v6182, %v5520
      %v6215 = vsel %vm2161, %v6183, %v5522
      %v6216 = vsel %vm2161, %v6184, %v5524
      %v6217 = vsel %vm2161, %v6185, %v5526
      %v6218 = vsel %vm2161, %v6186, %v5528
      %v6219 = vsel %vm2161, %v6187, %v5530
      %v6220 = vsel %vm2161, %v6188, %v5532
      %v6221 = vsel %vm2161, %v6189, %v5534
      %v6222 = vsel %vm2161, %v6190, %v5536
      %v6223 = vsel %vm2161, %v6191, %v5538
      %v6224 = vsel %vm2161, %v6192, %v5540
      %v6225 = vsel %vm2161, %v6193, %v5542
      %v6226 = vsel %vm2161, %v6194, %v5544
      %v6227 = vsel %vm2161, %v6195, %v5546
      %v6228 = vsel %vm2161, %v6196, %v5548
      %v6229 = vsel %vm2161, %v6197, %v5550
      %v6230 = vsel %vm2161, %v6198, %v5552
      %v6231 = vsel %vm2161, %v6199, %v5554
      %v6232 = vsel %vm2161, %v6200, %v5556
      %v6233 = vsel %vm2161, %v6201, %v5558
      %v6234 = vsel %vm2161, %v6202, %v5560
      %v6235 = vsel %vm2161, %v6203, %v5562
      %v6236 = vsel %vm2161, %v6204, %v5564
      %v6237 = vsel %vm4167, %v6205, %v5630
      %v6238 = vsel %vm4167, %v6206, %v5632
      %v6239 = vsel %vm4167, %v6207, %v5634
      %v6240 = vsel %vm4167, %v6208, %v5636
      %v6241 = vsel %vm4167, %v6209, %v5638
      %v6242 = vsel %vm4167, %v6210, %v5640
      %v6243 = vsel %vm4167, %v6211, %v5642
      %v6244 = vsel %vm4167, %v6212, %v5644
      %v6245 = vsel %vm4167, %v6213, %v5646
      %v6246 = vsel %vm4167, %v6214, %v5648
      %v6247 = vsel %vm4167, %v6215, %v5650
      %v6248 = vsel %vm4167, %v6216, %v5652
      %v6249 = vsel %vm4167, %v6217, %v5654
      %v6250 = vsel %vm4167, %v6218, %v5656
      %v6251 = vsel %vm4167, %v6219, %v5658
      %v6252 = vsel %vm4167, %v6220, %v5660
      %v6253 = vsel %vm4167, %v6221, %v5662
      %v6254 = vsel %vm4167, %v6222, %v5664
      %v6255 = vsel %vm4167, %v6223, %v5666
      %v6256 = vsel %vm4167, %v6224, %v5668
      %v6257 = vsel %vm4167, %v6225, %v5670
      %v6258 = vsel %vm4167, %v6226, %v5672
      %v6259 = vsel %vm4167, %v6227, %v5674
      %v6260 = vsel %vm4167, %v6228, %v5676
      %v6261 = vsel %vm4167, %v6229, %v5678
      %v6262 = vsel %vm4167, %v6230, %v5680
      %v6263 = vsel %vm4167, %v6231, %v5682
      %v6264 = vsel %vm4167, %v6232, %v5684
      %v6265 = vsel %vm4167, %v6233, %v5686
      %v6266 = vsel %vm4167, %v6234, %v5688
      %v6267 = vsel %vm4167, %v6235, %v5690
      %v6268 = vsel %vm4167, %v6236, %v5692
      %v6269 = vsel %vm497, %v6237, %v5758
      %v6270 = vsel %vm497, %v6238, %v5760
      %v6271 = vsel %vm497, %v6239, %v5762
      %v6272 = vsel %vm497, %v6240, %v5764
      %v6273 = vsel %vm497, %v6241, %v5766
      %v6274 = vsel %vm497, %v6242, %v5768
      %v6275 = vsel %vm497, %v6243, %v5770
      %v6276 = vsel %vm497, %v6244, %v5772
      %v6277 = vsel %vm497, %v6245, %v5774
      %v6278 = vsel %vm497, %v6246, %v5776
      %v6279 = vsel %vm497, %v6247, %v5778
      %v6280 = vsel %vm497, %v6248, %v5780
      %v6281 = vsel %vm497, %v6249, %v5782
      %v6282 = vsel %vm497, %v6250, %v5784
      %v6283 = vsel %vm497, %v6251, %v5786
      %v6284 = vsel %vm497, %v6252, %v5788
      %v6285 = vsel %vm497, %v6253, %v5790
      %v6286 = vsel %vm497, %v6254, %v5792
      %v6287 = vsel %vm497, %v6255, %v5794
      %v6288 = vsel %vm497, %v6256, %v5796
      %v6289 = vsel %vm497, %v6257, %v5798
      %v6290 = vsel %vm497, %v6258, %v5800
      %v6291 = vsel %vm497, %v6259, %v5802
      %v6292 = vsel %vm497, %v6260, %v5804
      %v6293 = vsel %vm497, %v6261, %v5806
      %v6294 = vsel %vm497, %v6262, %v5808
      %v6295 = vsel %vm497, %v6263, %v5810
      %v6296 = vsel %vm497, %v6264, %v5812
      %v6297 = vsel %vm497, %v6265, %v5814
      %v6298 = vsel %vm497, %v6266, %v5816
      %v6299 = vsel %vm497, %v6267, %v5818
      %v6300 = vsel %vm497, %v6268, %v5820
      %v6301 = vsel %vm4232, %v6269, %v5886
      %v6302 = vsel %vm4232, %v6270, %v5888
      %v6303 = vsel %vm4232, %v6271, %v5890
      %v6304 = vsel %vm4232, %v6272, %v5892
      %v6305 = vsel %vm4232, %v6273, %v5894
      %v6306 = vsel %vm4232, %v6274, %v5896
      %v6307 = vsel %vm4232, %v6275, %v5898
      %v6308 = vsel %vm4232, %v6276, %v5900
      %v6309 = vsel %vm4232, %v6277, %v5902
      %v6310 = vsel %vm4232, %v6278, %v5904
      %v6311 = vsel %vm4232, %v6279, %v5906
      %v6312 = vsel %vm4232, %v6280, %v5908
      %v6313 = vsel %vm4232, %v6281, %v5910
      %v6314 = vsel %vm4232, %v6282, %v5912
      %v6315 = vsel %vm4232, %v6283, %v5914
      %v6316 = vsel %vm4232, %v6284, %v5916
      %v6317 = vsel %vm4232, %v6285, %v5918
      %v6318 = vsel %vm4232, %v6286, %v5920
      %v6319 = vsel %vm4232, %v6287, %v5922
      %v6320 = vsel %vm4232, %v6288, %v5924
      %v6321 = vsel %vm4232, %v6289, %v5926
      %v6322 = vsel %vm4232, %v6290, %v5928
      %v6323 = vsel %vm4232, %v6291, %v5930
      %v6324 = vsel %vm4232, %v6292, %v5932
      %v6325 = vsel %vm4232, %v6293, %v5934
      %v6326 = vsel %vm4232, %v6294, %v5936
      %v6327 = vsel %vm4232, %v6295, %v5938
      %v6328 = vsel %vm4232, %v6296, %v5940
      %v6329 = vsel %vm4232, %v6297, %v5942
      %v6330 = vsel %vm4232, %v6298, %v5944
      %v6331 = vsel %vm4232, %v6299, %v5946
      %v6332 = vsel %vm4232, %v6300, %v5948
      %v6333 = vsel %vm4265, %v6301, %v6014
      %v6334 = vsel %vm4265, %v6302, %v6016
      %v6335 = vsel %vm4265, %v6303, %v6018
      %v6336 = vsel %vm4265, %v6304, %v6020
      %v6337 = vsel %vm4265, %v6305, %v6022
      %v6338 = vsel %vm4265, %v6306, %v6024
      %v6339 = vsel %vm4265, %v6307, %v6026
      %v6340 = vsel %vm4265, %v6308, %v6028
      %v6341 = vsel %vm4265, %v6309, %v6030
      %v6342 = vsel %vm4265, %v6310, %v6032
      %v6343 = vsel %vm4265, %v6311, %v6034
      %v6344 = vsel %vm4265, %v6312, %v6036
      %v6345 = vsel %vm4265, %v6313, %v6038
      %v6346 = vsel %vm4265, %v6314, %v6040
      %v6347 = vsel %vm4265, %v6315, %v6042
      %v6348 = vsel %vm4265, %v6316, %v6044
      %v6349 = vsel %vm4265, %v6317, %v6046
      %v6350 = vsel %vm4265, %v6318, %v6048
      %v6351 = vsel %vm4265, %v6319, %v6050
      %v6352 = vsel %vm4265, %v6320, %v6052
      %v6353 = vsel %vm4265, %v6321, %v6054
      %v6354 = vsel %vm4265, %v6322, %v6056
      %v6355 = vsel %vm4265, %v6323, %v6058
      %v6356 = vsel %vm4265, %v6324, %v6060
      %v6357 = vsel %vm4265, %v6325, %v6062
      %v6358 = vsel %vm4265, %v6326, %v6064
      %v6359 = vsel %vm4265, %v6327, %v6066
      %v6360 = vsel %vm4265, %v6328, %v6068
      %v6361 = vsel %vm4265, %v6329, %v6070
      %v6362 = vsel %vm4265, %v6330, %v6072
      %v6363 = vsel %vm4265, %v6331, %v6074
      %v6364 = vsel %vm4265, %v6332, %v6076
      %v6365 = vld [vmem:[%s7] sm:$0xff]
      %v6366 = vld [vmem:[%s7 + $0x8] sm:$0xff]
      %v6367 = vld [vmem:[%s7 + $0x10] sm:$0xff]
      %v6368 = vld [vmem:[%s7 + $0x18] sm:$0xff]
      %v6369 = vld [vmem:[%s7 + $0x20] sm:$0xff]
      %v6370 = vld [vmem:[%s7 + $0x28] sm:$0xff]
      %v6371 = vld [vmem:[%s7 + $0x30] sm:$0xff]
      %v6372 = vld [vmem:[%s7 + $0x38] sm:$0xff]
      %v6373 = vld [vmem:[%s7 + $0x40] sm:$0xff]
      %v6374 = vld [vmem:[%s8] sm:$0x1]
      %v6376 = vlaneseq
      %v6377 = vshrl.u32 %v6376, 7
      %v6378 = vsub.s32 0, %v6377
      %v6379 = vrot.slane %v6374, %v6378
      %v6382 = vsel %vm4314, %v6333, 0
      %v6385 = vsel %vm4314, %v6334, 0
      %v6388 = vsel %vm4314, %v6335, 0
      %v6391 = vsel %vm4314, %v6336, 0
      %v6394 = vsel %vm4314, %v6337, 0
      %v6397 = vsel %vm4314, %v6338, 0
      %v6400 = vsel %vm4314, %v6339, 0
      %v6403 = vsel %vm4314, %v6340, 0
      %v6406 = vsel %vm4314, %v6341, 0
      %v6409 = vsel %vm4314, %v6342, 0
      %v6412 = vsel %vm4314, %v6343, 0
      %v6415 = vsel %vm4314, %v6344, 0
      %v6418 = vsel %vm4314, %v6345, 0
      %v6421 = vsel %vm4314, %v6346, 0
      %v6424 = vsel %vm4314, %v6347, 0
      %v6427 = vsel %vm4314, %v6348, 0
      %v6430 = vsel %vm4314, %v6349, 0
      %v6433 = vsel %vm4314, %v6350, 0
      %v6436 = vsel %vm4314, %v6351, 0
      %v6439 = vsel %vm4314, %v6352, 0
      %v6442 = vsel %vm4314, %v6353, 0
      %v6445 = vsel %vm4314, %v6354, 0
      %v6448 = vsel %vm4314, %v6355, 0
      %v6451 = vsel %vm4314, %v6356, 0
      %v6454 = vsel %vm4314, %v6357, 0
      %v6457 = vsel %vm4314, %v6358, 0
      %v6460 = vsel %vm4314, %v6359, 0
      %v6463 = vsel %vm4314, %v6360, 0
      %v6466 = vsel %vm4314, %v6361, 0
      %v6469 = vsel %vm4314, %v6362, 0
      %v6472 = vsel %vm4314, %v6363, 0
      %v6475 = vsel %vm4314, %v6364, 0
      %6477 = vmatprep.subr.mxu0 0.0
      %6478 = vmatpush1.msra.mxu0 %v6365
      %6479 = vmatprep.subr.mxu0 0.0
      %6480 = vmatpush1.msra.mxu0 %v6366
      %6481 = vmatprep.subr.mxu0 0.0
      %6482 = vmatpush1.msra.mxu0 %v6367
      %6483 = vmatprep.subr.mxu0 0.0
      %6484 = vmatpush1.msra.mxu0 %v6368
      %6485 = vmatprep.subr.mxu0 0.0
      %6486 = vmatpush1.msra.mxu0 %v6369
      %6487 = vmatprep.subr.mxu0 0.0
      %6488 = vmatpush1.msra.mxu0 %v6370
      %6489 = vmatprep.subr.mxu0 0.0
      %6490 = vmatpush1.msra.mxu0 %v6371
      %6491 = vmatprep.subr.mxu0 0.0
      %6492 = vmatpush1.msra.mxu0 %v6372
      %6493 = vmatprep.subr.mxu0 0.0
      %6494 = vmatpush1.msra.mxu0 %v6373
      %6495 = vmatprep.subr.mxu0 0.0
      %6496 = vmatpush1.msra.mxu0 0.0
      %6497 = vmatprep.subr.mxu0 0.0
      %6498 = vmatpush1.msra.mxu0 0.0
      %6499 = vmatprep.subr.mxu0 0.0
      %6500 = vmatpush1.msra.mxu0 0.0
      %6501 = vmatprep.subr.mxu0 0.0
      %6502 = vmatpush1.msra.mxu0 0.0
      %6503 = vmatprep.subr.mxu0 0.0
      %6504 = vmatpush1.msra.mxu0 0.0
      %6505 = vmatprep.subr.mxu0 0.0
      %6506 = vmatpush1.msra.mxu0 0.0
      %6507 = vmatprep.subr.mxu0 0.0
      %6508 = vmatpush1.msra.mxu0 0.0
      %6509 = vmatprep.subr.mxu0 0.0
      %6510 = vmatpush1.msra.mxu0 0.0
      %6511 = vmatprep.subr.mxu0 0.0
      %6512 = vmatpush1.msra.mxu0 0.0
      %6513 = vmatprep.subr.mxu0 0.0
      %6514 = vmatpush1.msra.mxu0 0.0
      %6515 = vmatprep.subr.mxu0 0.0
      %6516 = vmatpush1.msra.mxu0 0.0
      %6517 = vmatprep.subr.mxu0 0.0
      %6518 = vmatpush1.msra.mxu0 0.0
      %6519 = vmatprep.subr.mxu0 0.0
      %6520 = vmatpush1.msra.mxu0 0.0
      %6521 = vmatprep.subr.mxu0 0.0
      %6522 = vmatpush1.msra.mxu0 0.0
      %6523 = vmatprep.subr.mxu0 0.0
      %6524 = vmatpush1.msra.mxu0 0.0
      %6525 = vmatprep.subr.mxu0 0.0
      %6526 = vmatpush1.msra.mxu0 0.0
      %6527 = vmatprep.subr.mxu0 0.0
      %6528 = vmatpush1.msra.mxu0 0.0
      %6529 = vmatprep.subr.mxu0 0.0
      %6530 = vmatpush1.msra.mxu0 0.0
      %6531 = vmatprep.subr.mxu0 0.0
      %6532 = vmatpush1.msra.mxu0 0.0
      %6533 = vmatprep.subr.mxu0 0.0
      %6534 = vmatpush1.msra.mxu0 0.0
      %6535 = vmatprep.subr.mxu0 0.0
      %6536 = vmatpush1.msra.mxu0 0.0
      %6537 = vmatprep.subr.mxu0 0.0
      %6538 = vmatpush1.msra.mxu0 0.0
      %6539 = vmatprep.subr.mxu0 0.0
      %6540 = vmatpush1.msra.mxu0 0.0
      %6541 = vmatprep.mubr.f32.mxu0 0.0
      %6542 = vmatmul.mubr.f32.gmra.mrb[0].mxu0 %v6382
      %v6543 = vpop.f32.mrb[0].mxu0
      %v6544 = vadd.f32 %v6379, %v6543
      %v6545 = vpop.f32.mrb[0].mxu0
      %6546 = vmatprep.mubr.f32.mxu0 0.0
      %6547 = vmatmul.mubr.f32.gmra.mrb[0].mxu0 %v6385
      %v6548 = vpop.f32.mrb[0].mxu0
      %v6549 = vadd.f32 %v6379, %v6548
      %v6550 = vpop.f32.mrb[0].mxu0
      %6551 = vmatprep.mubr.f32.mxu0 0.0
      %6552 = vmatmul.mubr.f32.gmra.mrb[0].mxu0 %v6388
      %v6553 = vpop.f32.mrb[0].mxu0
      %v6554 = vadd.f32 %v6379, %v6553
      %v6555 = vpop.f32.mrb[0].mxu0
      %6556 = vmatprep.mubr.f32.mxu0 0.0
      %6557 = vmatmul.mubr.f32.gmra.mrb[0].mxu0 %v6391
      %v6558 = vpop.f32.mrb[0].mxu0
      %v6559 = vadd.f32 %v6379, %v6558
      %v6560 = vpop.f32.mrb[0].mxu0
      %6561 = vmatprep.mubr.f32.mxu0 0.0
      %6562 = vmatmul.mubr.f32.gmra.mrb[0].mxu0 %v6394
      %v6563 = vpop.f32.mrb[0].mxu0
      %v6564 = vadd.f32 %v6379, %v6563
      %v6565 = vpop.f32.mrb[0].mxu0
      %6566 = vmatprep.mubr.f32.mxu0 0.0
      %6567 = vmatmul.mubr.f32.gmra.mrb[0].mxu0 %v6397
      %v6568 = vpop.f32.mrb[0].mxu0
      %v6569 = vadd.f32 %v6379, %v6568
      %v6570 = vpop.f32.mrb[0].mxu0
      %6571 = vmatprep.mubr.f32.mxu0 0.0
      %6572 = vmatmul.mubr.f32.gmra.mrb[0].mxu0 %v6400
      %v6573 = vpop.f32.mrb[0].mxu0
      %v6574 = vadd.f32 %v6379, %v6573
      %v6575 = vpop.f32.mrb[0].mxu0
      %6576 = vmatprep.mubr.f32.mxu0 0.0
      %6577 = vmatmul.mubr.f32.gmra.mrb[0].mxu0 %v6403
      %v6578 = vpop.f32.mrb[0].mxu0
      %v6579 = vadd.f32 %v6379, %v6578
      %v6580 = vpop.f32.mrb[0].mxu0
      %6581 = vmatprep.mubr.f32.mxu0 0.0
      %6582 = vmatmul.mubr.f32.gmra.mrb[0].mxu0 %v6406
      %v6583 = vpop.f32.mrb[0].mxu0
      %v6584 = vadd.f32 %v6379, %v6583
      %v6585 = vpop.f32.mrb[0].mxu0
      %6586 = vmatprep.mubr.f32.mxu0 0.0
      %6587 = vmatmul.mubr.f32.gmra.mrb[0].mxu0 %v6409
      %v6588 = vpop.f32.mrb[0].mxu0
      %v6589 = vadd.f32 %v6379, %v6588
      %v6590 = vpop.f32.mrb[0].mxu0
      %6591 = vmatprep.mubr.f32.mxu0 0.0
      %6592 = vmatmul.mubr.f32.gmra.mrb[0].mxu0 %v6412
      %v6593 = vpop.f32.mrb[0].mxu0
      %v6594 = vadd.f32 %v6379, %v6593
      %v6595 = vpop.f32.mrb[0].mxu0
      %6596 = vmatprep.mubr.f32.mxu0 0.0
      %6597 = vmatmul.mubr.f32.gmra.mrb[0].mxu0 %v6415
      %v6598 = vpop.f32.mrb[0].mxu0
      %v6599 = vadd.f32 %v6379, %v6598
      %v6600 = vpop.f32.mrb[0].mxu0
      %6601 = vmatprep.mubr.f32.mxu0 0.0
      %6602 = vmatmul.mubr.f32.gmra.mrb[0].mxu0 %v6418
      %v6603 = vpop.f32.mrb[0].mxu0
      %v6604 = vadd.f32 %v6379, %v6603
      %v6605 = vpop.f32.mrb[0].mxu0
      %6606 = vmatprep.mubr.f32.mxu0 0.0
      %6607 = vmatmul.mubr.f32.gmra.mrb[0].mxu0 %v6421
      %v6608 = vpop.f32.mrb[0].mxu0
      %v6609 = vadd.f32 %v6379, %v6608
      %v6610 = vpop.f32.mrb[0].mxu0
      %6611 = vmatprep.mubr.f32.mxu0 0.0
      %6612 = vmatmul.mubr.f32.gmra.mrb[0].mxu0 %v6424
      %v6613 = vpop.f32.mrb[0].mxu0
      %v6614 = vadd.f32 %v6379, %v6613
      %v6615 = vpop.f32.mrb[0].mxu0
      %6616 = vmatprep.mubr.f32.mxu0 0.0
      %6617 = vmatmul.mubr.f32.gmra.mrb[0].mxu0 %v6427
      %v6618 = vpop.f32.mrb[0].mxu0
      %v6619 = vadd.f32 %v6379, %v6618
      %v6620 = vpop.f32.mrb[0].mxu0
      %6621 = vmatprep.mubr.f32.mxu0 0.0
      %6622 = vmatmul.mubr.f32.gmra.mrb[0].mxu0 %v6430
      %v6623 = vpop.f32.mrb[0].mxu0
      %v6624 = vadd.f32 %v6379, %v6623
      %v6625 = vpop.f32.mrb[0].mxu0
      %6626 = vmatprep.mubr.f32.mxu0 0.0
      %6627 = vmatmul.mubr.f32.gmra.mrb[0].mxu0 %v6433
      %v6628 = vpop.f32.mrb[0].mxu0
      %v6629 = vadd.f32 %v6379, %v6628
      %v6630 = vpop.f32.mrb[0].mxu0
      %6631 = vmatprep.mubr.f32.mxu0 0.0
      %6632 = vmatmul.mubr.f32.gmra.mrb[0].mxu0 %v6436
      %v6633 = vpop.f32.mrb[0].mxu0
      %v6634 = vadd.f32 %v6379, %v6633
      %v6635 = vpop.f32.mrb[0].mxu0
      %6636 = vmatprep.mubr.f32.mxu0 0.0
      %6637 = vmatmul.mubr.f32.gmra.mrb[0].mxu0 %v6439
      %v6638 = vpop.f32.mrb[0].mxu0
      %v6639 = vadd.f32 %v6379, %v6638
      %v6640 = vpop.f32.mrb[0].mxu0
      %6641 = vmatprep.mubr.f32.mxu0 0.0
      %6642 = vmatmul.mubr.f32.gmra.mrb[0].mxu0 %v6442
      %v6643 = vpop.f32.mrb[0].mxu0
      %v6644 = vadd.f32 %v6379, %v6643
      %v6645 = vpop.f32.mrb[0].mxu0
      %6646 = vmatprep.mubr.f32.mxu0 0.0
      %6647 = vmatmul.mubr.f32.gmra.mrb[0].mxu0 %v6445
      %v6648 = vpop.f32.mrb[0].mxu0
      %v6649 = vadd.f32 %v6379, %v6648
      %v6650 = vpop.f32.mrb[0].mxu0
      %6651 = vmatprep.mubr.f32.mxu0 0.0
      %6652 = vmatmul.mubr.f32.gmra.mrb[0].mxu0 %v6448
      %v6653 = vpop.f32.mrb[0].mxu0
      %v6654 = vadd.f32 %v6379, %v6653
      %v6655 = vpop.f32.mrb[0].mxu0
      %6656 = vmatprep.mubr.f32.mxu0 0.0
      %6657 = vmatmul.mubr.f32.gmra.mrb[0].mxu0 %v6451
      %v6658 = vpop.f32.mrb[0].mxu0
      %v6659 = vadd.f32 %v6379, %v6658
      %v6660 = vpop.f32.mrb[0].mxu0
      %6661 = vmatprep.mubr.f32.mxu0 0.0
      %6662 = vmatmul.mubr.f32.gmra.mrb[0].mxu0 %v6454
      %v6663 = vpop.f32.mrb[0].mxu0
      %v6664 = vadd.f32 %v6379, %v6663
      %v6665 = vpop.f32.mrb[0].mxu0
      %6666 = vmatprep.mubr.f32.mxu0 0.0
      %6667 = vmatmul.mubr.f32.gmra.mrb[0].mxu0 %v6457
      %v6668 = vpop.f32.mrb[0].mxu0
      %v6669 = vadd.f32 %v6379, %v6668
      %v6670 = vpop.f32.mrb[0].mxu0
      %6671 = vmatprep.mubr.f32.mxu0 0.0
      %6672 = vmatmul.mubr.f32.gmra.mrb[0].mxu0 %v6460
      %v6673 = vpop.f32.mrb[0].mxu0
      %v6674 = vadd.f32 %v6379, %v6673
      %v6675 = vpop.f32.mrb[0].mxu0
      %6676 = vmatprep.mubr.f32.mxu0 0.0
      %6677 = vmatmul.mubr.f32.gmra.mrb[0].mxu0 %v6463
      %v6678 = vpop.f32.mrb[0].mxu0
      %v6679 = vadd.f32 %v6379, %v6678
      %v6680 = vpop.f32.mrb[0].mxu0
      %6681 = vmatprep.mubr.f32.mxu0 0.0
      %6682 = vmatmul.mubr.f32.gmra.mrb[0].mxu0 %v6466
      %v6683 = vpop.f32.mrb[0].mxu0
      %v6684 = vadd.f32 %v6379, %v6683
      %v6685 = vpop.f32.mrb[0].mxu0
      %6686 = vmatprep.mubr.f32.mxu0 0.0
      %6687 = vmatmul.mubr.f32.gmra.mrb[0].mxu0 %v6469
      %v6688 = vpop.f32.mrb[0].mxu0
      %v6689 = vadd.f32 %v6379, %v6688
      %v6690 = vpop.f32.mrb[0].mxu0
      %6691 = vmatprep.mubr.f32.mxu0 0.0
      %6692 = vmatmul.mubr.f32.gmra.mrb[0].mxu0 %v6472
      %v6693 = vpop.f32.mrb[0].mxu0
      %v6694 = vadd.f32 %v6379, %v6693
      %v6695 = vpop.f32.mrb[0].mxu0
      %6696 = vmatprep.mubr.f32.mxu0 0.0
      %6697 = vmatmul.mubr.f32.gmra.mrb[0].mxu0 %v6475
      %v6698 = vpop.f32.mrb[0].mxu0
      %v6699 = vadd.f32 %v6379, %v6698
      %v6700 = vpop.f32.mrb[0].mxu0
      %6701 = vdwg.mxu0
      %6734 = vrot.lane.b32.xlu0 %v6544, 32
      %v6735 = vpop.permute.xlu0 %6734
      %6736 = vrot.lane.b32.xlu0 %v6549, 32
      %v6737 = vpop.permute.xlu0 %6736
      %6738 = vrot.lane.b32.xlu0 %v6554, 32
      %v6739 = vpop.permute.xlu0 %6738
      %6740 = vrot.lane.b32.xlu0 %v6559, 32
      %v6741 = vpop.permute.xlu0 %6740
      %6742 = vrot.lane.b32.xlu0 %v6564, 32
      %v6743 = vpop.permute.xlu0 %6742
      %6744 = vrot.lane.b32.xlu0 %v6569, 32
      %v6745 = vpop.permute.xlu0 %6744
      %6746 = vrot.lane.b32.xlu0 %v6574, 32
      %v6747 = vpop.permute.xlu0 %6746
      %6748 = vrot.lane.b32.xlu0 %v6579, 32
      %v6749 = vpop.permute.xlu0 %6748
      %6750 = vrot.lane.b32.xlu0 %v6584, 32
      %v6751 = vpop.permute.xlu0 %6750
      %6752 = vrot.lane.b32.xlu0 %v6589, 32
      %v6753 = vpop.permute.xlu0 %6752
      %6754 = vrot.lane.b32.xlu0 %v6594, 32
      %v6755 = vpop.permute.xlu0 %6754
      %6756 = vrot.lane.b32.xlu0 %v6599, 32
      %v6757 = vpop.permute.xlu0 %6756
      %6758 = vrot.lane.b32.xlu0 %v6604, 32
      %v6759 = vpop.permute.xlu0 %6758
      %6760 = vrot.lane.b32.xlu0 %v6609, 32
      %v6761 = vpop.permute.xlu0 %6760
      %6762 = vrot.lane.b32.xlu0 %v6614, 32
      %v6763 = vpop.permute.xlu0 %6762
      %6764 = vrot.lane.b32.xlu0 %v6619, 32
      %v6765 = vpop.permute.xlu0 %6764
      %6766 = vrot.lane.b32.xlu0 %v6624, 32
      %v6767 = vpop.permute.xlu0 %6766
      %6768 = vrot.lane.b32.xlu0 %v6629, 32
      %v6769 = vpop.permute.xlu0 %6768
      %6770 = vrot.lane.b32.xlu0 %v6634, 32
      %v6771 = vpop.permute.xlu0 %6770
      %6772 = vrot.lane.b32.xlu0 %v6639, 32
      %v6773 = vpop.permute.xlu0 %6772
      %6774 = vrot.lane.b32.xlu0 %v6644, 32
      %v6775 = vpop.permute.xlu0 %6774
      %6776 = vrot.lane.b32.xlu0 %v6649, 32
      %v6777 = vpop.permute.xlu0 %6776
      %6778 = vrot.lane.b32.xlu0 %v6654, 32
      %v6779 = vpop.permute.xlu0 %6778
      %6780 = vrot.lane.b32.xlu0 %v6659, 32
      %v6781 = vpop.permute.xlu0 %6780
      %6782 = vrot.lane.b32.xlu0 %v6664, 32
      %v6783 = vpop.permute.xlu0 %6782
      %6784 = vrot.lane.b32.xlu0 %v6669, 32
      %v6785 = vpop.permute.xlu0 %6784
      %6786 = vrot.lane.b32.xlu0 %v6674, 32
      %v6787 = vpop.permute.xlu0 %6786
      %6788 = vrot.lane.b32.xlu0 %v6679, 32
      %v6789 = vpop.permute.xlu0 %6788
      %6790 = vrot.lane.b32.xlu0 %v6684, 32
      %v6791 = vpop.permute.xlu0 %6790
      %6792 = vrot.lane.b32.xlu0 %v6689, 32
      %v6793 = vpop.permute.xlu0 %6792
      %6794 = vrot.lane.b32.xlu0 %v6694, 32
      %v6795 = vpop.permute.xlu0 %6794
      %6796 = vrot.lane.b32.xlu0 %v6699, 32
      %v6797 = vpop.permute.xlu0 %6796
      %vm6830 = vcmask 326912
      %6831 = vst.msk [vmem:[%s2532 + $0x1] sm:$0xff] %vm6830, %v6735
      %6832 = vst.msk [vmem:[%s2532 + $0x9] sm:$0xff] %vm6830, %v6737
      %6833 = vst.msk [vmem:[%s2532 + $0x19] sm:$0xff] %vm6830, %v6739
      %6834 = vst.msk [vmem:[%s2532 + $0x21] sm:$0xff] %vm6830, %v6741
      %6835 = vst.msk [vmem:[%s2532 + $0x31] sm:$0xff] %vm6830, %v6743
      %6836 = vst.msk [vmem:[%s2532 + $0x39] sm:$0xff] %vm6830, %v6745
      %6837 = vst.msk [vmem:[%s2532 + $0x49] sm:$0xff] %vm6830, %v6747
      %6838 = vst.msk [vmem:[%s2532 + $0x51] sm:$0xff] %vm6830, %v6749
      %6839 = vst.msk [vmem:[%s2532 + $0x61] sm:$0xff] %vm6830, %v6751
      %6840 = vst.msk [vmem:[%s2532 + $0x69] sm:$0xff] %vm6830, %v6753
      %6841 = vst.msk [vmem:[%s2532 + $0x79] sm:$0xff] %vm6830, %v6755
      %6842 = vst.msk [vmem:[%s2532 + $0x81] sm:$0xff] %vm6830, %v6757
      %6843 = vst.msk [vmem:[%s2532 + $0x91] sm:$0xff] %vm6830, %v6759
      %6844 = vst.msk [vmem:[%s2532 + $0x99] sm:$0xff] %vm6830, %v6761
      %6845 = vst.msk [vmem:[%s2532 + $0xa9] sm:$0xff] %vm6830, %v6763
      %6846 = vst.msk [vmem:[%s2532 + $0xb1] sm:$0xff] %vm6830, %v6765
      %6847 = vst.msk [vmem:[%s2532 + $0xc1] sm:$0xff] %vm6830, %v6767
      %6848 = vst.msk [vmem:[%s2532 + $0xc9] sm:$0xff] %vm6830, %v6769
      %6849 = vst.msk [vmem:[%s2532 + $0xd9] sm:$0xff] %vm6830, %v6771
      %6850 = vst.msk [vmem:[%s2532 + $0xe1] sm:$0xff] %vm6830, %v6773
      %6851 = vst.msk [vmem:[%s2532 + $0xf1] sm:$0xff] %vm6830, %v6775
      %6852 = vst.msk [vmem:[%s2532 + $0xf9] sm:$0xff] %vm6830, %v6777
      %6853 = vst.msk [vmem:[%s2532 + $0x109] sm:$0xff] %vm6830, %v6779
      %6854 = vst.msk [vmem:[%s2532 + $0x111] sm:$0xff] %vm6830, %v6781
      %6855 = vst.msk [vmem:[%s2532 + $0x121] sm:$0xff] %vm6830, %v6783
      %6856 = vst.msk [vmem:[%s2532 + $0x129] sm:$0xff] %vm6830, %v6785
      %6857 = vst.msk [vmem:[%s2532 + $0x139] sm:$0xff] %vm6830, %v6787
      %6858 = vst.msk [vmem:[%s2532 + $0x141] sm:$0xff] %vm6830, %v6789
      %6859 = vst.msk [vmem:[%s2532 + $0x151] sm:$0xff] %vm6830, %v6791
      %6860 = vst.msk [vmem:[%s2532 + $0x159] sm:$0xff] %vm6830, %v6793
      %6861 = vst.msk [vmem:[%s2532 + $0x169] sm:$0xff] %vm6830, %v6795
      %6862 = vst.msk [vmem:[%s2532 + $0x171] sm:$0xff] %vm6830, %v6797
      %v6863 = vld [vmem:[#allocation3] sm:$0xff]
      %v6864 = vld [vmem:[#allocation3 + $0x8] sm:$0xff]
      %v6865 = vld [vmem:[#allocation3 + $0x18] sm:$0xff]
      %v6866 = vld [vmem:[#allocation3 + $0x20] sm:$0xff]
      %v6867 = vld [vmem:[#allocation3 + $0x30] sm:$0xff]
      %v6868 = vld [vmem:[#allocation3 + $0x38] sm:$0xff]
      %v6869 = vld [vmem:[#allocation3 + $0x48] sm:$0xff]
      %v6870 = vld [vmem:[#allocation3 + $0x50] sm:$0xff]
      %v6871 = vld [vmem:[#allocation3 + $0x60] sm:$0xff]
      %v6872 = vld [vmem:[#allocation3 + $0x68] sm:$0xff]
      %v6873 = vld [vmem:[#allocation3 + $0x78] sm:$0xff]
      %v6874 = vld [vmem:[#allocation3 + $0x80] sm:$0xff]
      %v6875 = vld [vmem:[#allocation3 + $0x90] sm:$0xff]
      %v6876 = vld [vmem:[#allocation3 + $0x98] sm:$0xff]
      %v6877 = vld [vmem:[#allocation3 + $0xa8] sm:$0xff]
      %v6878 = vld [vmem:[#allocation3 + $0xb0] sm:$0xff]
      %v6879 = vld [vmem:[#allocation3 + $0xc0] sm:$0xff]
      %v6880 = vld [vmem:[#allocation3 + $0xc8] sm:$0xff]
      %v6881 = vld [vmem:[#allocation3 + $0xd8] sm:$0xff]
      %v6882 = vld [vmem:[#allocation3 + $0xe0] sm:$0xff]
      %v6883 = vld [vmem:[#allocation3 + $0xf0] sm:$0xff]
      %v6884 = vld [vmem:[#allocation3 + $0xf8] sm:$0xff]
      %v6885 = vld [vmem:[#allocation3 + $0x108] sm:$0xff]
      %v6886 = vld [vmem:[#allocation3 + $0x110] sm:$0xff]
      %v6887 = vld [vmem:[#allocation3 + $0x120] sm:$0xff]
      %v6888 = vld [vmem:[#allocation3 + $0x128] sm:$0xff]
      %v6889 = vld [vmem:[#allocation3 + $0x138] sm:$0xff]
      %v6890 = vld [vmem:[#allocation3 + $0x140] sm:$0xff]
      %v6891 = vld [vmem:[#allocation3 + $0x150] sm:$0xff]
      %v6892 = vld [vmem:[#allocation3 + $0x158] sm:$0xff]
      %v6893 = vld [vmem:[#allocation3 + $0x168] sm:$0xff]
      %v6894 = vld [vmem:[#allocation3 + $0x170] sm:$0xff]
      %v6895 = vld [vmem:[#allocation3 + $0x1] sm:$0xff]
      %v6896 = vld [vmem:[#allocation3 + $0x9] sm:$0xff]
      %v6897 = vld [vmem:[#allocation3 + $0x19] sm:$0xff]
      %v6898 = vld [vmem:[#allocation3 + $0x21] sm:$0xff]
      %v6899 = vld [vmem:[#allocation3 + $0x31] sm:$0xff]
      %v6900 = vld [vmem:[#allocation3 + $0x39] sm:$0xff]
      %v6901 = vld [vmem:[#allocation3 + $0x49] sm:$0xff]
      %v6902 = vld [vmem:[#allocation3 + $0x51] sm:$0xff]
      %v6903 = vld [vmem:[#allocation3 + $0x61] sm:$0xff]
      %v6904 = vld [vmem:[#allocation3 + $0x69] sm:$0xff]
      %v6905 = vld [vmem:[#allocation3 + $0x79] sm:$0xff]
      %v6906 = vld [vmem:[#allocation3 + $0x81] sm:$0xff]
      %v6907 = vld [vmem:[#allocation3 + $0x91] sm:$0xff]
      %v6908 = vld [vmem:[#allocation3 + $0x99] sm:$0xff]
      %v6909 = vld [vmem:[#allocation3 + $0xa9] sm:$0xff]
      %v6910 = vld [vmem:[#allocation3 + $0xb1] sm:$0xff]
      %v6911 = vld [vmem:[#allocation3 + $0xc1] sm:$0xff]
      %v6912 = vld [vmem:[#allocation3 + $0xc9] sm:$0xff]
      %v6913 = vld [vmem:[#allocation3 + $0xd9] sm:$0xff]
      %v6914 = vld [vmem:[#allocation3 + $0xe1] sm:$0xff]
      %v6915 = vld [vmem:[#allocation3 + $0xf1] sm:$0xff]
      %v6916 = vld [vmem:[#allocation3 + $0xf9] sm:$0xff]
      %v6917 = vld [vmem:[#allocation3 + $0x109] sm:$0xff]
      %v6918 = vld [vmem:[#allocation3 + $0x111] sm:$0xff]
      %v6919 = vld [vmem:[#allocation3 + $0x121] sm:$0xff]
      %v6920 = vld [vmem:[#allocation3 + $0x129] sm:$0xff]
      %v6921 = vld [vmem:[#allocation3 + $0x139] sm:$0xff]
      %v6922 = vld [vmem:[#allocation3 + $0x141] sm:$0xff]
      %v6923 = vld [vmem:[#allocation3 + $0x151] sm:$0xff]
      %v6924 = vld [vmem:[#allocation3 + $0x159] sm:$0xff]
      %v6925 = vld [vmem:[#allocation3 + $0x169] sm:$0xff]
      %v6926 = vld [vmem:[#allocation3 + $0x171] sm:$0xff]
      %v6927 = vld [vmem:[#allocation3 + $0x2] sm:$0xff]
      %v6928 = vld [vmem:[#allocation3 + $0xa] sm:$0xff]
      %v6929 = vld [vmem:[#allocation3 + $0x1a] sm:$0xff]
      %v6930 = vld [vmem:[#allocation3 + $0x22] sm:$0xff]
      %v6931 = vld [vmem:[#allocation3 + $0x32] sm:$0xff]
      %v6932 = vld [vmem:[#allocation3 + $0x3a] sm:$0xff]
      %v6933 = vld [vmem:[#allocation3 + $0x4a] sm:$0xff]
      %v6934 = vld [vmem:[#allocation3 + $0x52] sm:$0xff]
      %v6935 = vld [vmem:[#allocation3 + $0x62] sm:$0xff]
      %v6936 = vld [vmem:[#allocation3 + $0x6a] sm:$0xff]
      %v6937 = vld [vmem:[#allocation3 + $0x7a] sm:$0xff]
      %v6938 = vld [vmem:[#allocation3 + $0x82] sm:$0xff]
      %v6939 = vld [vmem:[#allocation3 + $0x92] sm:$0xff]
      %v6940 = vld [vmem:[#allocation3 + $0x9a] sm:$0xff]
      %v6941 = vld [vmem:[#allocation3 + $0xaa] sm:$0xff]
      %v6942 = vld [vmem:[#allocation3 + $0xb2] sm:$0xff]
      %v6943 = vld [vmem:[#allocation3 + $0xc2] sm:$0xff]
      %v6944 = vld [vmem:[#allocation3 + $0xca] sm:$0xff]
      %v6945 = vld [vmem:[#allocation3 + $0xda] sm:$0xff]
      %v6946 = vld [vmem:[#allocation3 + $0xe2] sm:$0xff]
      %v6947 = vld [vmem:[#allocation3 + $0xf2] sm:$0xff]
      %v6948 = vld [vmem:[#allocation3 + $0xfa] sm:$0xff]
      %v6949 = vld [vmem:[#allocation3 + $0x10a] sm:$0xff]
      %v6950 = vld [vmem:[#allocation3 + $0x112] sm:$0xff]
      %v6951 = vld [vmem:[#allocation3 + $0x122] sm:$0xff]
      %v6952 = vld [vmem:[#allocation3 + $0x12a] sm:$0xff]
      %v6953 = vld [vmem:[#allocation3 + $0x13a] sm:$0xff]
      %v6954 = vld [vmem:[#allocation3 + $0x142] sm:$0xff]
      %v6955 = vld [vmem:[#allocation3 + $0x152] sm:$0xff]
      %v6956 = vld [vmem:[#allocation3 + $0x15a] sm:$0xff]
      %v6957 = vld [vmem:[#allocation3 + $0x16a] sm:$0xff]
      %v6958 = vld [vmem:[#allocation3 + $0x172] sm:$0xff]
      %v6959 = vld [vmem:[%s2532] sm:$0xff]
      %v6960 = vld [vmem:[%s2532 + $0x8] sm:$0xff]
      %v6961 = vld [vmem:[%s2532 + $0x18] sm:$0xff]
      %v6962 = vld [vmem:[%s2532 + $0x20] sm:$0xff]
      %v6963 = vld [vmem:[%s2532 + $0x30] sm:$0xff]
      %v6964 = vld [vmem:[%s2532 + $0x38] sm:$0xff]
      %v6965 = vld [vmem:[%s2532 + $0x48] sm:$0xff]
      %v6966 = vld [vmem:[%s2532 + $0x50] sm:$0xff]
      %v6967 = vld [vmem:[%s2532 + $0x60] sm:$0xff]
      %v6968 = vld [vmem:[%s2532 + $0x68] sm:$0xff]
      %v6969 = vld [vmem:[%s2532 + $0x78] sm:$0xff]
      %v6970 = vld [vmem:[%s2532 + $0x80] sm:$0xff]
      %v6971 = vld [vmem:[%s2532 + $0x90] sm:$0xff]
      %v6972 = vld [vmem:[%s2532 + $0x98] sm:$0xff]
      %v6973 = vld [vmem:[%s2532 + $0xa8] sm:$0xff]
      %v6974 = vld [vmem:[%s2532 + $0xb0] sm:$0xff]
      %v6975 = vld [vmem:[%s2532 + $0xc0] sm:$0xff]
      %v6976 = vld [vmem:[%s2532 + $0xc8] sm:$0xff]
      %v6977 = vld [vmem:[%s2532 + $0xd8] sm:$0xff]
      %v6978 = vld [vmem:[%s2532 + $0xe0] sm:$0xff]
      %v6979 = vld [vmem:[%s2532 + $0xf0] sm:$0xff]
      %v6980 = vld [vmem:[%s2532 + $0xf8] sm:$0xff]
      %v6981 = vld [vmem:[%s2532 + $0x108] sm:$0xff]
      %v6982 = vld [vmem:[%s2532 + $0x110] sm:$0xff]
      %v6983 = vld [vmem:[%s2532 + $0x120] sm:$0xff]
      %v6984 = vld [vmem:[%s2532 + $0x128] sm:$0xff]
      %v6985 = vld [vmem:[%s2532 + $0x138] sm:$0xff]
      %v6986 = vld [vmem:[%s2532 + $0x140] sm:$0xff]
      %v6987 = vld [vmem:[%s2532 + $0x150] sm:$0xff]
      %v6988 = vld [vmem:[%s2532 + $0x158] sm:$0xff]
      %v6989 = vld [vmem:[%s2532 + $0x168] sm:$0xff]
      %v6990 = vld [vmem:[%s2532 + $0x170] sm:$0xff]
      %v6991 = vld [vmem:[%s2532 + $0x1] sm:$0xff]
      %v6992 = vld [vmem:[%s2532 + $0x9] sm:$0xff]
      %v6993 = vld [vmem:[%s2532 + $0x19] sm:$0xff]
      %v6994 = vld [vmem:[%s2532 + $0x21] sm:$0xff]
      %v6995 = vld [vmem:[%s2532 + $0x31] sm:$0xff]
      %v6996 = vld [vmem:[%s2532 + $0x39] sm:$0xff]
      %v6997 = vld [vmem:[%s2532 + $0x49] sm:$0xff]
      %v6998 = vld [vmem:[%s2532 + $0x51] sm:$0xff]
      %v6999 = vld [vmem:[%s2532 + $0x61] sm:$0xff]
      %v7000 = vld [vmem:[%s2532 + $0x69] sm:$0xff]
      %v7001 = vld [vmem:[%s2532 + $0x79] sm:$0xff]
      %v7002 = vld [vmem:[%s2532 + $0x81] sm:$0xff]
      %v7003 = vld [vmem:[%s2532 + $0x91] sm:$0xff]
      %v7004 = vld [vmem:[%s2532 + $0x99] sm:$0xff]
      %v7005 = vld [vmem:[%s2532 + $0xa9] sm:$0xff]
      %v7006 = vld [vmem:[%s2532 + $0xb1] sm:$0xff]
      %v7007 = vld [vmem:[%s2532 + $0xc1] sm:$0xff]
      %v7008 = vld [vmem:[%s2532 + $0xc9] sm:$0xff]
      %v7009 = vld [vmem:[%s2532 + $0xd9] sm:$0xff]
      %v7010 = vld [vmem:[%s2532 + $0xe1] sm:$0xff]
      %v7011 = vld [vmem:[%s2532 + $0xf1] sm:$0xff]
      %v7012 = vld [vmem:[%s2532 + $0xf9] sm:$0xff]
      %v7013 = vld [vmem:[%s2532 + $0x109] sm:$0xff]
      %v7014 = vld [vmem:[%s2532 + $0x111] sm:$0xff]
      %v7015 = vld [vmem:[%s2532 + $0x121] sm:$0xff]
      %v7016 = vld [vmem:[%s2532 + $0x129] sm:$0xff]
      %v7017 = vld [vmem:[%s2532 + $0x139] sm:$0xff]
      %v7018 = vld [vmem:[%s2532 + $0x141] sm:$0xff]
      %v7019 = vld [vmem:[%s2532 + $0x151] sm:$0xff]
      %v7020 = vld [vmem:[%s2532 + $0x159] sm:$0xff]
      %v7021 = vld [vmem:[%s2532 + $0x169] sm:$0xff]
      %v7022 = vld [vmem:[%s2532 + $0x171] sm:$0xff]
      %v7023 = vld [vmem:[%s2532 + $0x2] sm:$0xff]
      %v7024 = vld [vmem:[%s2532 + $0xa] sm:$0xff]
      %v7025 = vld [vmem:[%s2532 + $0x1a] sm:$0xff]
      %v7026 = vld [vmem:[%s2532 + $0x22] sm:$0xff]
      %v7027 = vld [vmem:[%s2532 + $0x32] sm:$0xff]
      %v7028 = vld [vmem:[%s2532 + $0x3a] sm:$0xff]
      %v7029 = vld [vmem:[%s2532 + $0x4a] sm:$0xff]
      %v7030 = vld [vmem:[%s2532 + $0x52] sm:$0xff]
      %v7031 = vld [vmem:[%s2532 + $0x62] sm:$0xff]
      %v7032 = vld [vmem:[%s2532 + $0x6a] sm:$0xff]
      %v7033 = vld [vmem:[%s2532 + $0x7a] sm:$0xff]
      %v7034 = vld [vmem:[%s2532 + $0x82] sm:$0xff]
      %v7035 = vld [vmem:[%s2532 + $0x92] sm:$0xff]
      %v7036 = vld [vmem:[%s2532 + $0x9a] sm:$0xff]
      %v7037 = vld [vmem:[%s2532 + $0xaa] sm:$0xff]
      %v7038 = vld [vmem:[%s2532 + $0xb2] sm:$0xff]
      %v7039 = vld [vmem:[%s2532 + $0xc2] sm:$0xff]
      %v7040 = vld [vmem:[%s2532 + $0xca] sm:$0xff]
      %v7041 = vld [vmem:[%s2532 + $0xda] sm:$0xff]
      %v7042 = vld [vmem:[%s2532 + $0xe2] sm:$0xff]
      %v7043 = vld [vmem:[%s2532 + $0xf2] sm:$0xff]
      %v7044 = vld [vmem:[%s2532 + $0xfa] sm:$0xff]
      %v7045 = vld [vmem:[%s2532 + $0x10a] sm:$0xff]
      %v7046 = vld [vmem:[%s2532 + $0x112] sm:$0xff]
      %v7047 = vld [vmem:[%s2532 + $0x122] sm:$0xff]
      %v7048 = vld [vmem:[%s2532 + $0x12a] sm:$0xff]
      %v7049 = vld [vmem:[%s2532 + $0x13a] sm:$0xff]
      %v7050 = vld [vmem:[%s2532 + $0x142] sm:$0xff]
      %v7051 = vld [vmem:[%s2532 + $0x152] sm:$0xff]
      %v7052 = vld [vmem:[%s2532 + $0x15a] sm:$0xff]
      %v7053 = vld [vmem:[%s2532 + $0x16a] sm:$0xff]
      %v7054 = vld [vmem:[%s2532 + $0x172] sm:$0xff]
      %v7055 = vld [vmem:[%s2918] sm:$0xff]
      %v7056 = vld [vmem:[%s2918 + $0x8] sm:$0xff]
      %v7057 = vld [vmem:[%s2918 + $0x18] sm:$0xff]
      %v7058 = vld [vmem:[%s2918 + $0x20] sm:$0xff]
      %v7059 = vld [vmem:[%s2918 + $0x30] sm:$0xff]
      %v7060 = vld [vmem:[%s2918 + $0x38] sm:$0xff]
      %v7061 = vld [vmem:[%s2918 + $0x48] sm:$0xff]
      %v7062 = vld [vmem:[%s2918 + $0x50] sm:$0xff]
      %v7063 = vld [vmem:[%s2918 + $0x60] sm:$0xff]
      %v7064 = vld [vmem:[%s2918 + $0x68] sm:$0xff]
      %v7065 = vld [vmem:[%s2918 + $0x78] sm:$0xff]
      %v7066 = vld [vmem:[%s2918 + $0x80] sm:$0xff]
      %v7067 = vld [vmem:[%s2918 + $0x90] sm:$0xff]
      %v7068 = vld [vmem:[%s2918 + $0x98] sm:$0xff]
      %v7069 = vld [vmem:[%s2918 + $0xa8] sm:$0xff]
      %v7070 = vld [vmem:[%s2918 + $0xb0] sm:$0xff]
      %v7071 = vld [vmem:[%s2918 + $0xc0] sm:$0xff]
      %v7072 = vld [vmem:[%s2918 + $0xc8] sm:$0xff]
      %v7073 = vld [vmem:[%s2918 + $0xd8] sm:$0xff]
      %v7074 = vld [vmem:[%s2918 + $0xe0] sm:$0xff]
      %v7075 = vld [vmem:[%s2918 + $0xf0] sm:$0xff]
      %v7076 = vld [vmem:[%s2918 + $0xf8] sm:$0xff]
      %v7077 = vld [vmem:[%s2918 + $0x108] sm:$0xff]
      %v7078 = vld [vmem:[%s2918 + $0x110] sm:$0xff]
      %v7079 = vld [vmem:[%s2918 + $0x120] sm:$0xff]
      %v7080 = vld [vmem:[%s2918 + $0x128] sm:$0xff]
      %v7081 = vld [vmem:[%s2918 + $0x138] sm:$0xff]
      %v7082 = vld [vmem:[%s2918 + $0x140] sm:$0xff]
      %v7083 = vld [vmem:[%s2918 + $0x150] sm:$0xff]
      %v7084 = vld [vmem:[%s2918 + $0x158] sm:$0xff]
      %v7085 = vld [vmem:[%s2918 + $0x168] sm:$0xff]
      %v7086 = vld [vmem:[%s2918 + $0x170] sm:$0xff]
      %v7087 = vld [vmem:[%s2918 + $0x1] sm:$0xff]
      %v7088 = vld [vmem:[%s2918 + $0x9] sm:$0xff]
      %v7089 = vld [vmem:[%s2918 + $0x19] sm:$0xff]
      %v7090 = vld [vmem:[%s2918 + $0x21] sm:$0xff]
      %v7091 = vld [vmem:[%s2918 + $0x31] sm:$0xff]
      %v7092 = vld [vmem:[%s2918 + $0x39] sm:$0xff]
      %v7093 = vld [vmem:[%s2918 + $0x49] sm:$0xff]
      %v7094 = vld [vmem:[%s2918 + $0x51] sm:$0xff]
      %v7095 = vld [vmem:[%s2918 + $0x61] sm:$0xff]
      %v7096 = vld [vmem:[%s2918 + $0x69] sm:$0xff]
      %v7097 = vld [vmem:[%s2918 + $0x79] sm:$0xff]
      %v7098 = vld [vmem:[%s2918 + $0x81] sm:$0xff]
      %v7099 = vld [vmem:[%s2918 + $0x91] sm:$0xff]
      %v7100 = vld [vmem:[%s2918 + $0x99] sm:$0xff]
      %v7101 = vld [vmem:[%s2918 + $0xa9] sm:$0xff]
      %v7102 = vld [vmem:[%s2918 + $0xb1] sm:$0xff]
      %v7103 = vld [vmem:[%s2918 + $0xc1] sm:$0xff]
      %v7104 = vld [vmem:[%s2918 + $0xc9] sm:$0xff]
      %v7105 = vld [vmem:[%s2918 + $0xd9] sm:$0xff]
      %v7106 = vld [vmem:[%s2918 + $0xe1] sm:$0xff]
      %v7107 = vld [vmem:[%s2918 + $0xf1] sm:$0xff]
      %v7108 = vld [vmem:[%s2918 + $0xf9] sm:$0xff]
      %v7109 = vld [vmem:[%s2918 + $0x109] sm:$0xff]
      %v7110 = vld [vmem:[%s2918 + $0x111] sm:$0xff]
      %v7111 = vld [vmem:[%s2918 + $0x121] sm:$0xff]
      %v7112 = vld [vmem:[%s2918 + $0x129] sm:$0xff]
      %v7113 = vld [vmem:[%s2918 + $0x139] sm:$0xff]
      %v7114 = vld [vmem:[%s2918 + $0x141] sm:$0xff]
      %v7115 = vld [vmem:[%s2918 + $0x151] sm:$0xff]
      %v7116 = vld [vmem:[%s2918 + $0x159] sm:$0xff]
      %v7117 = vld [vmem:[%s2918 + $0x169] sm:$0xff]
      %v7118 = vld [vmem:[%s2918 + $0x171] sm:$0xff]
      %v7119 = vld [vmem:[%s2918 + $0x2] sm:$0xff]
      %v7120 = vld [vmem:[%s2918 + $0xa] sm:$0xff]
      %v7121 = vld [vmem:[%s2918 + $0x1a] sm:$0xff]
      %v7122 = vld [vmem:[%s2918 + $0x22] sm:$0xff]
      %v7123 = vld [vmem:[%s2918 + $0x32] sm:$0xff]
      %v7124 = vld [vmem:[%s2918 + $0x3a] sm:$0xff]
      %v7125 = vld [vmem:[%s2918 + $0x4a] sm:$0xff]
      %v7126 = vld [vmem:[%s2918 + $0x52] sm:$0xff]
      %v7127 = vld [vmem:[%s2918 + $0x62] sm:$0xff]
      %v7128 = vld [vmem:[%s2918 + $0x6a] sm:$0xff]
      %v7129 = vld [vmem:[%s2918 + $0x7a] sm:$0xff]
      %v7130 = vld [vmem:[%s2918 + $0x82] sm:$0xff]
      %v7131 = vld [vmem:[%s2918 + $0x92] sm:$0xff]
      %v7132 = vld [vmem:[%s2918 + $0x9a] sm:$0xff]
      %v7133 = vld [vmem:[%s2918 + $0xaa] sm:$0xff]
      %v7134 = vld [vmem:[%s2918 + $0xb2] sm:$0xff]
      %v7135 = vld [vmem:[%s2918 + $0xc2] sm:$0xff]
      %v7136 = vld [vmem:[%s2918 + $0xca] sm:$0xff]
      %v7137 = vld [vmem:[%s2918 + $0xda] sm:$0xff]
      %v7138 = vld [vmem:[%s2918 + $0xe2] sm:$0xff]
      %v7139 = vld [vmem:[%s2918 + $0xf2] sm:$0xff]
      %v7140 = vld [vmem:[%s2918 + $0xfa] sm:$0xff]
      %v7141 = vld [vmem:[%s2918 + $0x10a] sm:$0xff]
      %v7142 = vld [vmem:[%s2918 + $0x112] sm:$0xff]
      %v7143 = vld [vmem:[%s2918 + $0x122] sm:$0xff]
      %v7144 = vld [vmem:[%s2918 + $0x12a] sm:$0xff]
      %v7145 = vld [vmem:[%s2918 + $0x13a] sm:$0xff]
      %v7146 = vld [vmem:[%s2918 + $0x142] sm:$0xff]
      %v7147 = vld [vmem:[%s2918 + $0x152] sm:$0xff]
      %v7148 = vld [vmem:[%s2918 + $0x15a] sm:$0xff]
      %v7149 = vld [vmem:[%s2918 + $0x16a] sm:$0xff]
      %v7150 = vld [vmem:[%s2918 + $0x172] sm:$0xff]
      %7183 = vrot.lane.b32.xlu0 %v6863, 120
      %v7184 = vpop.permute.xlu0 %7183
      %7185 = vrot.lane.b32.xlu0 %v6864, 120
      %v7186 = vpop.permute.xlu0 %7185
      %7187 = vrot.lane.b32.xlu0 %v6865, 120
      %v7188 = vpop.permute.xlu0 %7187
      %7189 = vrot.lane.b32.xlu0 %v6866, 120
      %v7190 = vpop.permute.xlu0 %7189
      %7191 = vrot.lane.b32.xlu0 %v6867, 120
      %v7192 = vpop.permute.xlu0 %7191
      %7193 = vrot.lane.b32.xlu0 %v6868, 120
      %v7194 = vpop.permute.xlu0 %7193
      %7195 = vrot.lane.b32.xlu0 %v6869, 120
      %v7196 = vpop.permute.xlu0 %7195
      %7197 = vrot.lane.b32.xlu0 %v6870, 120
      %v7198 = vpop.permute.xlu0 %7197
      %7199 = vrot.lane.b32.xlu0 %v6871, 120
      %v7200 = vpop.permute.xlu0 %7199
      %7201 = vrot.lane.b32.xlu0 %v6872, 120
      %v7202 = vpop.permute.xlu0 %7201
      %7203 = vrot.lane.b32.xlu0 %v6873, 120
      %v7204 = vpop.permute.xlu0 %7203
      %7205 = vrot.lane.b32.xlu0 %v6874, 120
      %v7206 = vpop.permute.xlu0 %7205
      %7207 = vrot.lane.b32.xlu0 %v6875, 120
      %v7208 = vpop.permute.xlu0 %7207
      %7209 = vrot.lane.b32.xlu0 %v6876, 120
      %v7210 = vpop.permute.xlu0 %7209
      %7211 = vrot.lane.b32.xlu0 %v6877, 120
      %v7212 = vpop.permute.xlu0 %7211
      %7213 = vrot.lane.b32.xlu0 %v6878, 120
      %v7214 = vpop.permute.xlu0 %7213
      %7215 = vrot.lane.b32.xlu0 %v6879, 120
      %v7216 = vpop.permute.xlu0 %7215
      %7217 = vrot.lane.b32.xlu0 %v6880, 120
      %v7218 = vpop.permute.xlu0 %7217
      %7219 = vrot.lane.b32.xlu0 %v6881, 120
      %v7220 = vpop.permute.xlu0 %7219
      %7221 = vrot.lane.b32.xlu0 %v6882, 120
      %v7222 = vpop.permute.xlu0 %7221
      %7223 = vrot.lane.b32.xlu0 %v6883, 120
      %v7224 = vpop.permute.xlu0 %7223
      %7225 = vrot.lane.b32.xlu0 %v6884, 120
      %v7226 = vpop.permute.xlu0 %7225
      %7227 = vrot.lane.b32.xlu0 %v6885, 120
      %v7228 = vpop.permute.xlu0 %7227
      %7229 = vrot.lane.b32.xlu0 %v6886, 120
      %v7230 = vpop.permute.xlu0 %7229
      %7231 = vrot.lane.b32.xlu0 %v6887, 120
      %v7232 = vpop.permute.xlu0 %7231
      %7233 = vrot.lane.b32.xlu0 %v6888, 120
      %v7234 = vpop.permute.xlu0 %7233
      %7235 = vrot.lane.b32.xlu0 %v6889, 120
      %v7236 = vpop.permute.xlu0 %7235
      %7237 = vrot.lane.b32.xlu0 %v6890, 120
      %v7238 = vpop.permute.xlu0 %7237
      %7239 = vrot.lane.b32.xlu0 %v6891, 120
      %v7240 = vpop.permute.xlu0 %7239
      %7241 = vrot.lane.b32.xlu0 %v6892, 120
      %v7242 = vpop.permute.xlu0 %7241
      %7243 = vrot.lane.b32.xlu0 %v6893, 120
      %v7244 = vpop.permute.xlu0 %7243
      %7245 = vrot.lane.b32.xlu0 %v6894, 120
      %v7246 = vpop.permute.xlu0 %7245
      %7311 = vrot.lane.b32.xlu0 %v6927, 8
      %v7312 = vpop.permute.xlu0 %7311
      %7313 = vrot.lane.b32.xlu0 %v6928, 8
      %v7314 = vpop.permute.xlu0 %7313
      %7315 = vrot.lane.b32.xlu0 %v6929, 8
      %v7316 = vpop.permute.xlu0 %7315
      %7317 = vrot.lane.b32.xlu0 %v6930, 8
      %v7318 = vpop.permute.xlu0 %7317
      %7319 = vrot.lane.b32.xlu0 %v6931, 8
      %v7320 = vpop.permute.xlu0 %7319
      %7321 = vrot.lane.b32.xlu0 %v6932, 8
      %v7322 = vpop.permute.xlu0 %7321
      %7323 = vrot.lane.b32.xlu0 %v6933, 8
      %v7324 = vpop.permute.xlu0 %7323
      %7325 = vrot.lane.b32.xlu0 %v6934, 8
      %v7326 = vpop.permute.xlu0 %7325
      %7327 = vrot.lane.b32.xlu0 %v6935, 8
      %v7328 = vpop.permute.xlu0 %7327
      %7329 = vrot.lane.b32.xlu0 %v6936, 8
      %v7330 = vpop.permute.xlu0 %7329
      %7331 = vrot.lane.b32.xlu0 %v6937, 8
      %v7332 = vpop.permute.xlu0 %7331
      %7333 = vrot.lane.b32.xlu0 %v6938, 8
      %v7334 = vpop.permute.xlu0 %7333
      %7335 = vrot.lane.b32.xlu0 %v6939, 8
      %v7336 = vpop.permute.xlu0 %7335
      %7337 = vrot.lane.b32.xlu0 %v6940, 8
      %v7338 = vpop.permute.xlu0 %7337
      %7339 = vrot.lane.b32.xlu0 %v6941, 8
      %v7340 = vpop.permute.xlu0 %7339
      %7341 = vrot.lane.b32.xlu0 %v6942, 8
      %v7342 = vpop.permute.xlu0 %7341
      %7343 = vrot.lane.b32.xlu0 %v6943, 8
      %v7344 = vpop.permute.xlu0 %7343
      %7345 = vrot.lane.b32.xlu0 %v6944, 8
      %v7346 = vpop.permute.xlu0 %7345
      %7347 = vrot.lane.b32.xlu0 %v6945, 8
      %v7348 = vpop.permute.xlu0 %7347
      %7349 = vrot.lane.b32.xlu0 %v6946, 8
      %v7350 = vpop.permute.xlu0 %7349
      %7351 = vrot.lane.b32.xlu0 %v6947, 8
      %v7352 = vpop.permute.xlu0 %7351
      %7353 = vrot.lane.b32.xlu0 %v6948, 8
      %v7354 = vpop.permute.xlu0 %7353
      %7355 = vrot.lane.b32.xlu0 %v6949, 8
      %v7356 = vpop.permute.xlu0 %7355
      %7357 = vrot.lane.b32.xlu0 %v6950, 8
      %v7358 = vpop.permute.xlu0 %7357
      %7359 = vrot.lane.b32.xlu0 %v6951, 8
      %v7360 = vpop.permute.xlu0 %7359
      %7361 = vrot.lane.b32.xlu0 %v6952, 8
      %v7362 = vpop.permute.xlu0 %7361
      %7363 = vrot.lane.b32.xlu0 %v6953, 8
      %v7364 = vpop.permute.xlu0 %7363
      %7365 = vrot.lane.b32.xlu0 %v6954, 8
      %v7366 = vpop.permute.xlu0 %7365
      %7367 = vrot.lane.b32.xlu0 %v6955, 8
      %v7368 = vpop.permute.xlu0 %7367
      %7369 = vrot.lane.b32.xlu0 %v6956, 8
      %v7370 = vpop.permute.xlu0 %7369
      %7371 = vrot.lane.b32.xlu0 %v6957, 8
      %v7372 = vpop.permute.xlu0 %7371
      %7373 = vrot.lane.b32.xlu0 %v6958, 8
      %v7374 = vpop.permute.xlu0 %7373
      %7439 = vrot.lane.b32.xlu0 %v6959, 16
      %v7440 = vpop.permute.xlu0 %7439
      %7441 = vrot.lane.b32.xlu0 %v6960, 16
      %v7442 = vpop.permute.xlu0 %7441
      %7443 = vrot.lane.b32.xlu0 %v6961, 16
      %v7444 = vpop.permute.xlu0 %7443
      %7445 = vrot.lane.b32.xlu0 %v6962, 16
      %v7446 = vpop.permute.xlu0 %7445
      %7447 = vrot.lane.b32.xlu0 %v6963, 16
      %v7448 = vpop.permute.xlu0 %7447
      %7449 = vrot.lane.b32.xlu0 %v6964, 16
      %v7450 = vpop.permute.xlu0 %7449
      %7451 = vrot.lane.b32.xlu0 %v6965, 16
      %v7452 = vpop.permute.xlu0 %7451
      %7453 = vrot.lane.b32.xlu0 %v6966, 16
      %v7454 = vpop.permute.xlu0 %7453
      %7455 = vrot.lane.b32.xlu0 %v6967, 16
      %v7456 = vpop.permute.xlu0 %7455
      %7457 = vrot.lane.b32.xlu0 %v6968, 16
      %v7458 = vpop.permute.xlu0 %7457
      %7459 = vrot.lane.b32.xlu0 %v6969, 16
      %v7460 = vpop.permute.xlu0 %7459
      %7461 = vrot.lane.b32.xlu0 %v6970, 16
      %v7462 = vpop.permute.xlu0 %7461
      %7463 = vrot.lane.b32.xlu0 %v6971, 16
      %v7464 = vpop.permute.xlu0 %7463
      %7465 = vrot.lane.b32.xlu0 %v6972, 16
      %v7466 = vpop.permute.xlu0 %7465
      %7467 = vrot.lane.b32.xlu0 %v6973, 16
      %v7468 = vpop.permute.xlu0 %7467
      %7469 = vrot.lane.b32.xlu0 %v6974, 16
      %v7470 = vpop.permute.xlu0 %7469
      %7471 = vrot.lane.b32.xlu0 %v6975, 16
      %v7472 = vpop.permute.xlu0 %7471
      %7473 = vrot.lane.b32.xlu0 %v6976, 16
      %v7474 = vpop.permute.xlu0 %7473
      %7475 = vrot.lane.b32.xlu0 %v6977, 16
      %v7476 = vpop.permute.xlu0 %7475
      %7477 = vrot.lane.b32.xlu0 %v6978, 16
      %v7478 = vpop.permute.xlu0 %7477
      %7479 = vrot.lane.b32.xlu0 %v6979, 16
      %v7480 = vpop.permute.xlu0 %7479
      %7481 = vrot.lane.b32.xlu0 %v6980, 16
      %v7482 = vpop.permute.xlu0 %7481
      %7483 = vrot.lane.b32.xlu0 %v6981, 16
      %v7484 = vpop.permute.xlu0 %7483
      %7485 = vrot.lane.b32.xlu0 %v6982, 16
      %v7486 = vpop.permute.xlu0 %7485
      %7487 = vrot.lane.b32.xlu0 %v6983, 16
      %v7488 = vpop.permute.xlu0 %7487
      %7489 = vrot.lane.b32.xlu0 %v6984, 16
      %v7490 = vpop.permute.xlu0 %7489
      %7491 = vrot.lane.b32.xlu0 %v6985, 16
      %v7492 = vpop.permute.xlu0 %7491
      %7493 = vrot.lane.b32.xlu0 %v6986, 16
      %v7494 = vpop.permute.xlu0 %7493
      %7495 = vrot.lane.b32.xlu0 %v6987, 16
      %v7496 = vpop.permute.xlu0 %7495
      %7497 = vrot.lane.b32.xlu0 %v6988, 16
      %v7498 = vpop.permute.xlu0 %7497
      %7499 = vrot.lane.b32.xlu0 %v6989, 16
      %v7500 = vpop.permute.xlu0 %7499
      %7501 = vrot.lane.b32.xlu0 %v6990, 16
      %v7502 = vpop.permute.xlu0 %7501
      %7567 = vrot.lane.b32.xlu0 %v6991, 24
      %v7568 = vpop.permute.xlu0 %7567
      %7569 = vrot.lane.b32.xlu0 %v6992, 24
      %v7570 = vpop.permute.xlu0 %7569
      %7571 = vrot.lane.b32.xlu0 %v6993, 24
      %v7572 = vpop.permute.xlu0 %7571
      %7573 = vrot.lane.b32.xlu0 %v6994, 24
      %v7574 = vpop.permute.xlu0 %7573
      %7575 = vrot.lane.b32.xlu0 %v6995, 24
      %v7576 = vpop.permute.xlu0 %7575
      %7577 = vrot.lane.b32.xlu0 %v6996, 24
      %v7578 = vpop.permute.xlu0 %7577
      %7579 = vrot.lane.b32.xlu0 %v6997, 24
      %v7580 = vpop.permute.xlu0 %7579
      %7581 = vrot.lane.b32.xlu0 %v6998, 24
      %v7582 = vpop.permute.xlu0 %7581
      %7583 = vrot.lane.b32.xlu0 %v6999, 24
      %v7584 = vpop.permute.xlu0 %7583
      %7585 = vrot.lane.b32.xlu0 %v7000, 24
      %v7586 = vpop.permute.xlu0 %7585
      %7587 = vrot.lane.b32.xlu0 %v7001, 24
      %v7588 = vpop.permute.xlu0 %7587
      %7589 = vrot.lane.b32.xlu0 %v7002, 24
      %v7590 = vpop.permute.xlu0 %7589
      %7591 = vrot.lane.b32.xlu0 %v7003, 24
      %v7592 = vpop.permute.xlu0 %7591
      %7593 = vrot.lane.b32.xlu0 %v7004, 24
      %v7594 = vpop.permute.xlu0 %7593
      %7595 = vrot.lane.b32.xlu0 %v7005, 24
      %v7596 = vpop.permute.xlu0 %7595
      %7597 = vrot.lane.b32.xlu0 %v7006, 24
      %v7598 = vpop.permute.xlu0 %7597
      %7599 = vrot.lane.b32.xlu0 %v7007, 24
      %v7600 = vpop.permute.xlu0 %7599
      %7601 = vrot.lane.b32.xlu0 %v7008, 24
      %v7602 = vpop.permute.xlu0 %7601
      %7603 = vrot.lane.b32.xlu0 %v7009, 24
      %v7604 = vpop.permute.xlu0 %7603
      %7605 = vrot.lane.b32.xlu0 %v7010, 24
      %v7606 = vpop.permute.xlu0 %7605
      %7607 = vrot.lane.b32.xlu0 %v7011, 24
      %v7608 = vpop.permute.xlu0 %7607
      %7609 = vrot.lane.b32.xlu0 %v7012, 24
      %v7610 = vpop.permute.xlu0 %7609
      %7611 = vrot.lane.b32.xlu0 %v7013, 24
      %v7612 = vpop.permute.xlu0 %7611
      %7613 = vrot.lane.b32.xlu0 %v7014, 24
      %v7614 = vpop.permute.xlu0 %7613
      %7615 = vrot.lane.b32.xlu0 %v7015, 24
      %v7616 = vpop.permute.xlu0 %7615
      %7617 = vrot.lane.b32.xlu0 %v7016, 24
      %v7618 = vpop.permute.xlu0 %7617
      %7619 = vrot.lane.b32.xlu0 %v7017, 24
      %v7620 = vpop.permute.xlu0 %7619
      %7621 = vrot.lane.b32.xlu0 %v7018, 24
      %v7622 = vpop.permute.xlu0 %7621
      %7623 = vrot.lane.b32.xlu0 %v7019, 24
      %v7624 = vpop.permute.xlu0 %7623
      %7625 = vrot.lane.b32.xlu0 %v7020, 24
      %v7626 = vpop.permute.xlu0 %7625
      %7627 = vrot.lane.b32.xlu0 %v7021, 24
      %v7628 = vpop.permute.xlu0 %7627
      %7629 = vrot.lane.b32.xlu0 %v7022, 24
      %v7630 = vpop.permute.xlu0 %7629
      %7695 = vrot.lane.b32.xlu0 %v7023, 32
      %v7696 = vpop.permute.xlu0 %7695
      %7697 = vrot.lane.b32.xlu0 %v7024, 32
      %v7698 = vpop.permute.xlu0 %7697
      %7699 = vrot.lane.b32.xlu0 %v7025, 32
      %v7700 = vpop.permute.xlu0 %7699
      %7701 = vrot.lane.b32.xlu0 %v7026, 32
      %v7702 = vpop.permute.xlu0 %7701
      %7703 = vrot.lane.b32.xlu0 %v7027, 32
      %v7704 = vpop.permute.xlu0 %7703
      %7705 = vrot.lane.b32.xlu0 %v7028, 32
      %v7706 = vpop.permute.xlu0 %7705
      %7707 = vrot.lane.b32.xlu0 %v7029, 32
      %v7708 = vpop.permute.xlu0 %7707
      %7709 = vrot.lane.b32.xlu0 %v7030, 32
      %v7710 = vpop.permute.xlu0 %7709
      %7711 = vrot.lane.b32.xlu0 %v7031, 32
      %v7712 = vpop.permute.xlu0 %7711
      %7713 = vrot.lane.b32.xlu0 %v7032, 32
      %v7714 = vpop.permute.xlu0 %7713
      %7715 = vrot.lane.b32.xlu0 %v7033, 32
      %v7716 = vpop.permute.xlu0 %7715
      %7717 = vrot.lane.b32.xlu0 %v7034, 32
      %v7718 = vpop.permute.xlu0 %7717
      %7719 = vrot.lane.b32.xlu0 %v7035, 32
      %v7720 = vpop.permute.xlu0 %7719
      %7721 = vrot.lane.b32.xlu0 %v7036, 32
      %v7722 = vpop.permute.xlu0 %7721
      %7723 = vrot.lane.b32.xlu0 %v7037, 32
      %v7724 = vpop.permute.xlu0 %7723
      %7725 = vrot.lane.b32.xlu0 %v7038, 32
      %v7726 = vpop.permute.xlu0 %7725
      %7727 = vrot.lane.b32.xlu0 %v7039, 32
      %v7728 = vpop.permute.xlu0 %7727
      %7729 = vrot.lane.b32.xlu0 %v7040, 32
      %v7730 = vpop.permute.xlu0 %7729
      %7731 = vrot.lane.b32.xlu0 %v7041, 32
      %v7732 = vpop.permute.xlu0 %7731
      %7733 = vrot.lane.b32.xlu0 %v7042, 32
      %v7734 = vpop.permute.xlu0 %7733
      %7735 = vrot.lane.b32.xlu0 %v7043, 32
      %v7736 = vpop.permute.xlu0 %7735
      %7737 = vrot.lane.b32.xlu0 %v7044, 32
      %v7738 = vpop.permute.xlu0 %7737
      %7739 = vrot.lane.b32.xlu0 %v7045, 32
      %v7740 = vpop.permute.xlu0 %7739
      %7741 = vrot.lane.b32.xlu0 %v7046, 32
      %v7742 = vpop.permute.xlu0 %7741
      %7743 = vrot.lane.b32.xlu0 %v7047, 32
      %v7744 = vpop.permute.xlu0 %7743
      %7745 = vrot.lane.b32.xlu0 %v7048, 32
      %v7746 = vpop.permute.xlu0 %7745
      %7747 = vrot.lane.b32.xlu0 %v7049, 32
      %v7748 = vpop.permute.xlu0 %7747
      %7749 = vrot.lane.b32.xlu0 %v7050, 32
      %v7750 = vpop.permute.xlu0 %7749
      %7751 = vrot.lane.b32.xlu0 %v7051, 32
      %v7752 = vpop.permute.xlu0 %7751
      %7753 = vrot.lane.b32.xlu0 %v7052, 32
      %v7754 = vpop.permute.xlu0 %7753
      %7755 = vrot.lane.b32.xlu0 %v7053, 32
      %v7756 = vpop.permute.xlu0 %7755
      %7757 = vrot.lane.b32.xlu0 %v7054, 32
      %v7758 = vpop.permute.xlu0 %7757
      %7823 = vrot.lane.b32.xlu0 %v7055, 40
      %v7824 = vpop.permute.xlu0 %7823
      %7825 = vrot.lane.b32.xlu0 %v7056, 40
      %v7826 = vpop.permute.xlu0 %7825
      %7827 = vrot.lane.b32.xlu0 %v7057, 40
      %v7828 = vpop.permute.xlu0 %7827
      %7829 = vrot.lane.b32.xlu0 %v7058, 40
      %v7830 = vpop.permute.xlu0 %7829
      %7831 = vrot.lane.b32.xlu0 %v7059, 40
      %v7832 = vpop.permute.xlu0 %7831
      %7833 = vrot.lane.b32.xlu0 %v7060, 40
      %v7834 = vpop.permute.xlu0 %7833
      %7835 = vrot.lane.b32.xlu0 %v7061, 40
      %v7836 = vpop.permute.xlu0 %7835
      %7837 = vrot.lane.b32.xlu0 %v7062, 40
      %v7838 = vpop.permute.xlu0 %7837
      %7839 = vrot.lane.b32.xlu0 %v7063, 40
      %v7840 = vpop.permute.xlu0 %7839
      %7841 = vrot.lane.b32.xlu0 %v7064, 40
      %v7842 = vpop.permute.xlu0 %7841
      %7843 = vrot.lane.b32.xlu0 %v7065, 40
      %v7844 = vpop.permute.xlu0 %7843
      %7845 = vrot.lane.b32.xlu0 %v7066, 40
      %v7846 = vpop.permute.xlu0 %7845
      %7847 = vrot.lane.b32.xlu0 %v7067, 40
      %v7848 = vpop.permute.xlu0 %7847
      %7849 = vrot.lane.b32.xlu0 %v7068, 40
      %v7850 = vpop.permute.xlu0 %7849
      %7851 = vrot.lane.b32.xlu0 %v7069, 40
      %v7852 = vpop.permute.xlu0 %7851
      %7853 = vrot.lane.b32.xlu0 %v7070, 40
      %v7854 = vpop.permute.xlu0 %7853
      %7855 = vrot.lane.b32.xlu0 %v7071, 40
      %v7856 = vpop.permute.xlu0 %7855
      %7857 = vrot.lane.b32.xlu0 %v7072, 40
      %v7858 = vpop.permute.xlu0 %7857
      %7859 = vrot.lane.b32.xlu0 %v7073, 40
      %v7860 = vpop.permute.xlu0 %7859
      %7861 = vrot.lane.b32.xlu0 %v7074, 40
      %v7862 = vpop.permute.xlu0 %7861
      %7863 = vrot.lane.b32.xlu0 %v7075, 40
      %v7864 = vpop.permute.xlu0 %7863
      %7865 = vrot.lane.b32.xlu0 %v7076, 40
      %v7866 = vpop.permute.xlu0 %7865
      %7867 = vrot.lane.b32.xlu0 %v7077, 40
      %v7868 = vpop.permute.xlu0 %7867
      %7869 = vrot.lane.b32.xlu0 %v7078, 40
      %v7870 = vpop.permute.xlu0 %7869
      %7871 = vrot.lane.b32.xlu0 %v7079, 40
      %v7872 = vpop.permute.xlu0 %7871
      %7873 = vrot.lane.b32.xlu0 %v7080, 40
      %v7874 = vpop.permute.xlu0 %7873
      %7875 = vrot.lane.b32.xlu0 %v7081, 40
      %v7876 = vpop.permute.xlu0 %7875
      %7877 = vrot.lane.b32.xlu0 %v7082, 40
      %v7878 = vpop.permute.xlu0 %7877
      %7879 = vrot.lane.b32.xlu0 %v7083, 40
      %v7880 = vpop.permute.xlu0 %7879
      %7881 = vrot.lane.b32.xlu0 %v7084, 40
      %v7882 = vpop.permute.xlu0 %7881
      %7883 = vrot.lane.b32.xlu0 %v7085, 40
      %v7884 = vpop.permute.xlu0 %7883
      %7885 = vrot.lane.b32.xlu0 %v7086, 40
      %v7886 = vpop.permute.xlu0 %7885
      %7951 = vrot.lane.b32.xlu0 %v7087, 48
      %v7952 = vpop.permute.xlu0 %7951
      %7953 = vrot.lane.b32.xlu0 %v7088, 48
      %v7954 = vpop.permute.xlu0 %7953
      %7955 = vrot.lane.b32.xlu0 %v7089, 48
      %v7956 = vpop.permute.xlu0 %7955
      %7957 = vrot.lane.b32.xlu0 %v7090, 48
      %v7958 = vpop.permute.xlu0 %7957
      %7959 = vrot.lane.b32.xlu0 %v7091, 48
      %v7960 = vpop.permute.xlu0 %7959
      %7961 = vrot.lane.b32.xlu0 %v7092, 48
      %v7962 = vpop.permute.xlu0 %7961
      %7963 = vrot.lane.b32.xlu0 %v7093, 48
      %v7964 = vpop.permute.xlu0 %7963
      %7965 = vrot.lane.b32.xlu0 %v7094, 48
      %v7966 = vpop.permute.xlu0 %7965
      %7967 = vrot.lane.b32.xlu0 %v7095, 48
      %v7968 = vpop.permute.xlu0 %7967
      %7969 = vrot.lane.b32.xlu0 %v7096, 48
      %v7970 = vpop.permute.xlu0 %7969
      %7971 = vrot.lane.b32.xlu0 %v7097, 48
      %v7972 = vpop.permute.xlu0 %7971
      %7973 = vrot.lane.b32.xlu0 %v7098, 48
      %v7974 = vpop.permute.xlu0 %7973
      %7975 = vrot.lane.b32.xlu0 %v7099, 48
      %v7976 = vpop.permute.xlu0 %7975
      %7977 = vrot.lane.b32.xlu0 %v7100, 48
      %v7978 = vpop.permute.xlu0 %7977
      %7979 = vrot.lane.b32.xlu0 %v7101, 48
      %v7980 = vpop.permute.xlu0 %7979
      %7981 = vrot.lane.b32.xlu0 %v7102, 48
      %v7982 = vpop.permute.xlu0 %7981
      %7983 = vrot.lane.b32.xlu0 %v7103, 48
      %v7984 = vpop.permute.xlu0 %7983
      %7985 = vrot.lane.b32.xlu0 %v7104, 48
      %v7986 = vpop.permute.xlu0 %7985
      %7987 = vrot.lane.b32.xlu0 %v7105, 48
      %v7988 = vpop.permute.xlu0 %7987
      %7989 = vrot.lane.b32.xlu0 %v7106, 48
      %v7990 = vpop.permute.xlu0 %7989
      %7991 = vrot.lane.b32.xlu0 %v7107, 48
      %v7992 = vpop.permute.xlu0 %7991
      %7993 = vrot.lane.b32.xlu0 %v7108, 48
      %v7994 = vpop.permute.xlu0 %7993
      %7995 = vrot.lane.b32.xlu0 %v7109, 48
      %v7996 = vpop.permute.xlu0 %7995
      %7997 = vrot.lane.b32.xlu0 %v7110, 48
      %v7998 = vpop.permute.xlu0 %7997
      %7999 = vrot.lane.b32.xlu0 %v7111, 48
      %v8000 = vpop.permute.xlu0 %7999
      %8001 = vrot.lane.b32.xlu0 %v7112, 48
      %v8002 = vpop.permute.xlu0 %8001
      %8003 = vrot.lane.b32.xlu0 %v7113, 48
      %v8004 = vpop.permute.xlu0 %8003
      %8005 = vrot.lane.b32.xlu0 %v7114, 48
      %v8006 = vpop.permute.xlu0 %8005
      %8007 = vrot.lane.b32.xlu0 %v7115, 48
      %v8008 = vpop.permute.xlu0 %8007
      %8009 = vrot.lane.b32.xlu0 %v7116, 48
      %v8010 = vpop.permute.xlu0 %8009
      %8011 = vrot.lane.b32.xlu0 %v7117, 48
      %v8012 = vpop.permute.xlu0 %8011
      %8013 = vrot.lane.b32.xlu0 %v7118, 48
      %v8014 = vpop.permute.xlu0 %8013
      %8079 = vrot.lane.b32.xlu0 %v7119, 56
      %v8080 = vpop.permute.xlu0 %8079
      %8081 = vrot.lane.b32.xlu0 %v7120, 56
      %v8082 = vpop.permute.xlu0 %8081
      %8083 = vrot.lane.b32.xlu0 %v7121, 56
      %v8084 = vpop.permute.xlu0 %8083
      %8085 = vrot.lane.b32.xlu0 %v7122, 56
      %v8086 = vpop.permute.xlu0 %8085
      %8087 = vrot.lane.b32.xlu0 %v7123, 56
      %v8088 = vpop.permute.xlu0 %8087
      %8089 = vrot.lane.b32.xlu0 %v7124, 56
      %v8090 = vpop.permute.xlu0 %8089
      %8091 = vrot.lane.b32.xlu0 %v7125, 56
      %v8092 = vpop.permute.xlu0 %8091
      %8093 = vrot.lane.b32.xlu0 %v7126, 56
      %v8094 = vpop.permute.xlu0 %8093
      %8095 = vrot.lane.b32.xlu0 %v7127, 56
      %v8096 = vpop.permute.xlu0 %8095
      %8097 = vrot.lane.b32.xlu0 %v7128, 56
      %v8098 = vpop.permute.xlu0 %8097
      %8099 = vrot.lane.b32.xlu0 %v7129, 56
      %v8100 = vpop.permute.xlu0 %8099
      %8101 = vrot.lane.b32.xlu0 %v7130, 56
      %v8102 = vpop.permute.xlu0 %8101
      %8103 = vrot.lane.b32.xlu0 %v7131, 56
      %v8104 = vpop.permute.xlu0 %8103
      %8105 = vrot.lane.b32.xlu0 %v7132, 56
      %v8106 = vpop.permute.xlu0 %8105
      %8107 = vrot.lane.b32.xlu0 %v7133, 56
      %v8108 = vpop.permute.xlu0 %8107
      %8109 = vrot.lane.b32.xlu0 %v7134, 56
      %v8110 = vpop.permute.xlu0 %8109
      %8111 = vrot.lane.b32.xlu0 %v7135, 56
      %v8112 = vpop.permute.xlu0 %8111
      %8113 = vrot.lane.b32.xlu0 %v7136, 56
      %v8114 = vpop.permute.xlu0 %8113
      %8115 = vrot.lane.b32.xlu0 %v7137, 56
      %v8116 = vpop.permute.xlu0 %8115
      %8117 = vrot.lane.b32.xlu0 %v7138, 56
      %v8118 = vpop.permute.xlu0 %8117
      %8119 = vrot.lane.b32.xlu0 %v7139, 56
      %v8120 = vpop.permute.xlu0 %8119
      %8121 = vrot.lane.b32.xlu0 %v7140, 56
      %v8122 = vpop.permute.xlu0 %8121
      %8123 = vrot.lane.b32.xlu0 %v7141, 56
      %v8124 = vpop.permute.xlu0 %8123
      %8125 = vrot.lane.b32.xlu0 %v7142, 56
      %v8126 = vpop.permute.xlu0 %8125
      %8127 = vrot.lane.b32.xlu0 %v7143, 56
      %v8128 = vpop.permute.xlu0 %8127
      %8129 = vrot.lane.b32.xlu0 %v7144, 56
      %v8130 = vpop.permute.xlu0 %8129
      %8131 = vrot.lane.b32.xlu0 %v7145, 56
      %v8132 = vpop.permute.xlu0 %8131
      %8133 = vrot.lane.b32.xlu0 %v7146, 56
      %v8134 = vpop.permute.xlu0 %8133
      %8135 = vrot.lane.b32.xlu0 %v7147, 56
      %v8136 = vpop.permute.xlu0 %8135
      %8137 = vrot.lane.b32.xlu0 %v7148, 56
      %v8138 = vpop.permute.xlu0 %8137
      %8139 = vrot.lane.b32.xlu0 %v7149, 56
      %v8140 = vpop.permute.xlu0 %8139
      %8141 = vrot.lane.b32.xlu0 %v7150, 56
      %v8142 = vpop.permute.xlu0 %8141
      %v8175 = vsel %vm1963, %v7184, %v6895
      %v8176 = vsel %vm1963, %v7186, %v6896
      %v8177 = vsel %vm1963, %v7188, %v6897
      %v8178 = vsel %vm1963, %v7190, %v6898
      %v8179 = vsel %vm1963, %v7192, %v6899
      %v8180 = vsel %vm1963, %v7194, %v6900
      %v8181 = vsel %vm1963, %v7196, %v6901
      %v8182 = vsel %vm1963, %v7198, %v6902
      %v8183 = vsel %vm1963, %v7200, %v6903
      %v8184 = vsel %vm1963, %v7202, %v6904
      %v8185 = vsel %vm1963, %v7204, %v6905
      %v8186 = vsel %vm1963, %v7206, %v6906
      %v8187 = vsel %vm1963, %v7208, %v6907
      %v8188 = vsel %vm1963, %v7210, %v6908
      %v8189 = vsel %vm1963, %v7212, %v6909
      %v8190 = vsel %vm1963, %v7214, %v6910
      %v8191 = vsel %vm1963, %v7216, %v6911
      %v8192 = vsel %vm1963, %v7218, %v6912
      %v8193 = vsel %vm1963, %v7220, %v6913
      %v8194 = vsel %vm1963, %v7222, %v6914
      %v8195 = vsel %vm1963, %v7224, %v6915
      %v8196 = vsel %vm1963, %v7226, %v6916
      %v8197 = vsel %vm1963, %v7228, %v6917
      %v8198 = vsel %vm1963, %v7230, %v6918
      %v8199 = vsel %vm1963, %v7232, %v6919
      %v8200 = vsel %vm1963, %v7234, %v6920
      %v8201 = vsel %vm1963, %v7236, %v6921
      %v8202 = vsel %vm1963, %v7238, %v6922
      %v8203 = vsel %vm1963, %v7240, %v6923
      %v8204 = vsel %vm1963, %v7242, %v6924
      %v8205 = vsel %vm1963, %v7244, %v6925
      %v8206 = vsel %vm1963, %v7246, %v6926
      %v8207 = vsel %vm2029, %v8175, %v7312
      %v8208 = vsel %vm2029, %v8176, %v7314
      %v8209 = vsel %vm2029, %v8177, %v7316
      %v8210 = vsel %vm2029, %v8178, %v7318
      %v8211 = vsel %vm2029, %v8179, %v7320
      %v8212 = vsel %vm2029, %v8180, %v7322
      %v8213 = vsel %vm2029, %v8181, %v7324
      %v8214 = vsel %vm2029, %v8182, %v7326
      %v8215 = vsel %vm2029, %v8183, %v7328
      %v8216 = vsel %vm2029, %v8184, %v7330
      %v8217 = vsel %vm2029, %v8185, %v7332
      %v8218 = vsel %vm2029, %v8186, %v7334
      %v8219 = vsel %vm2029, %v8187, %v7336
      %v8220 = vsel %vm2029, %v8188, %v7338
      %v8221 = vsel %vm2029, %v8189, %v7340
      %v8222 = vsel %vm2029, %v8190, %v7342
      %v8223 = vsel %vm2029, %v8191, %v7344
      %v8224 = vsel %vm2029, %v8192, %v7346
      %v8225 = vsel %vm2029, %v8193, %v7348
      %v8226 = vsel %vm2029, %v8194, %v7350
      %v8227 = vsel %vm2029, %v8195, %v7352
      %v8228 = vsel %vm2029, %v8196, %v7354
      %v8229 = vsel %vm2029, %v8197, %v7356
      %v8230 = vsel %vm2029, %v8198, %v7358
      %v8231 = vsel %vm2029, %v8199, %v7360
      %v8232 = vsel %vm2029, %v8200, %v7362
      %v8233 = vsel %vm2029, %v8201, %v7364
      %v8234 = vsel %vm2029, %v8202, %v7366
      %v8235 = vsel %vm2029, %v8203, %v7368
      %v8236 = vsel %vm2029, %v8204, %v7370
      %v8237 = vsel %vm2029, %v8205, %v7372
      %v8238 = vsel %vm2029, %v8206, %v7374
      %v8239 = vsel %vm2095, %v8207, %v7440
      %v8240 = vsel %vm2095, %v8208, %v7442
      %v8241 = vsel %vm2095, %v8209, %v7444
      %v8242 = vsel %vm2095, %v8210, %v7446
      %v8243 = vsel %vm2095, %v8211, %v7448
      %v8244 = vsel %vm2095, %v8212, %v7450
      %v8245 = vsel %vm2095, %v8213, %v7452
      %v8246 = vsel %vm2095, %v8214, %v7454
      %v8247 = vsel %vm2095, %v8215, %v7456
      %v8248 = vsel %vm2095, %v8216, %v7458
      %v8249 = vsel %vm2095, %v8217, %v7460
      %v8250 = vsel %vm2095, %v8218, %v7462
      %v8251 = vsel %vm2095, %v8219, %v7464
      %v8252 = vsel %vm2095, %v8220, %v7466
      %v8253 = vsel %vm2095, %v8221, %v7468
      %v8254 = vsel %vm2095, %v8222, %v7470
      %v8255 = vsel %vm2095, %v8223, %v7472
      %v8256 = vsel %vm2095, %v8224, %v7474
      %v8257 = vsel %vm2095, %v8225, %v7476
      %v8258 = vsel %vm2095, %v8226, %v7478
      %v8259 = vsel %vm2095, %v8227, %v7480
      %v8260 = vsel %vm2095, %v8228, %v7482
      %v8261 = vsel %vm2095, %v8229, %v7484
      %v8262 = vsel %vm2095, %v8230, %v7486
      %v8263 = vsel %vm2095, %v8231, %v7488
      %v8264 = vsel %vm2095, %v8232, %v7490
      %v8265 = vsel %vm2095, %v8233, %v7492
      %v8266 = vsel %vm2095, %v8234, %v7494
      %v8267 = vsel %vm2095, %v8235, %v7496
      %v8268 = vsel %vm2095, %v8236, %v7498
      %v8269 = vsel %vm2095, %v8237, %v7500
      %v8270 = vsel %vm2095, %v8238, %v7502
      %v8271 = vsel %vm2161, %v8239, %v7568
      %v8272 = vsel %vm2161, %v8240, %v7570
      %v8273 = vsel %vm2161, %v8241, %v7572
      %v8274 = vsel %vm2161, %v8242, %v7574
      %v8275 = vsel %vm2161, %v8243, %v7576
      %v8276 = vsel %vm2161, %v8244, %v7578
      %v8277 = vsel %vm2161, %v8245, %v7580
      %v8278 = vsel %vm2161, %v8246, %v7582
      %v8279 = vsel %vm2161, %v8247, %v7584
      %v8280 = vsel %vm2161, %v8248, %v7586
      %v8281 = vsel %vm2161, %v8249, %v7588
      %v8282 = vsel %vm2161, %v8250, %v7590
      %v8283 = vsel %vm2161, %v8251, %v7592
      %v8284 = vsel %vm2161, %v8252, %v7594
      %v8285 = vsel %vm2161, %v8253, %v7596
      %v8286 = vsel %vm2161, %v8254, %v7598
      %v8287 = vsel %vm2161, %v8255, %v7600
      %v8288 = vsel %vm2161, %v8256, %v7602
      %v8289 = vsel %vm2161, %v8257, %v7604
      %v8290 = vsel %vm2161, %v8258, %v7606
      %v8291 = vsel %vm2161, %v8259, %v7608
      %v8292 = vsel %vm2161, %v8260, %v7610
      %v8293 = vsel %vm2161, %v8261, %v7612
      %v8294 = vsel %vm2161, %v8262, %v7614
      %v8295 = vsel %vm2161, %v8263, %v7616
      %v8296 = vsel %vm2161, %v8264, %v7618
      %v8297 = vsel %vm2161, %v8265, %v7620
      %v8298 = vsel %vm2161, %v8266, %v7622
      %v8299 = vsel %vm2161, %v8267, %v7624
      %v8300 = vsel %vm2161, %v8268, %v7626
      %v8301 = vsel %vm2161, %v8269, %v7628
      %v8302 = vsel %vm2161, %v8270, %v7630
      %v8303 = vsel %vm4167, %v8271, %v7696
      %v8304 = vsel %vm4167, %v8272, %v7698
      %v8305 = vsel %vm4167, %v8273, %v7700
      %v8306 = vsel %vm4167, %v8274, %v7702
      %v8307 = vsel %vm4167, %v8275, %v7704
      %v8308 = vsel %vm4167, %v8276, %v7706
      %v8309 = vsel %vm4167, %v8277, %v7708
      %v8310 = vsel %vm4167, %v8278, %v7710
      %v8311 = vsel %vm4167, %v8279, %v7712
      %v8312 = vsel %vm4167, %v8280, %v7714
      %v8313 = vsel %vm4167, %v8281, %v7716
      %v8314 = vsel %vm4167, %v8282, %v7718
      %v8315 = vsel %vm4167, %v8283, %v7720
      %v8316 = vsel %vm4167, %v8284, %v7722
      %v8317 = vsel %vm4167, %v8285, %v7724
      %v8318 = vsel %vm4167, %v8286, %v7726
      %v8319 = vsel %vm4167, %v8287, %v7728
      %v8320 = vsel %vm4167, %v8288, %v7730
      %v8321 = vsel %vm4167, %v8289, %v7732
      %v8322 = vsel %vm4167, %v8290, %v7734
      %v8323 = vsel %vm4167, %v8291, %v7736
      %v8324 = vsel %vm4167, %v8292, %v7738
      %v8325 = vsel %vm4167, %v8293, %v7740
      %v8326 = vsel %vm4167, %v8294, %v7742
      %v8327 = vsel %vm4167, %v8295, %v7744
      %v8328 = vsel %vm4167, %v8296, %v7746
      %v8329 = vsel %vm4167, %v8297, %v7748
      %v8330 = vsel %vm4167, %v8298, %v7750
      %v8331 = vsel %vm4167, %v8299, %v7752
      %v8332 = vsel %vm4167, %v8300, %v7754
      %v8333 = vsel %vm4167, %v8301, %v7756
      %v8334 = vsel %vm4167, %v8302, %v7758
      %v8335 = vsel %vm497, %v8303, %v7824
      %v8336 = vsel %vm497, %v8304, %v7826
      %v8337 = vsel %vm497, %v8305, %v7828
      %v8338 = vsel %vm497, %v8306, %v7830
      %v8339 = vsel %vm497, %v8307, %v7832
      %v8340 = vsel %vm497, %v8308, %v7834
      %v8341 = vsel %vm497, %v8309, %v7836
      %v8342 = vsel %vm497, %v8310, %v7838
      %v8343 = vsel %vm497, %v8311, %v7840
      %v8344 = vsel %vm497, %v8312, %v7842
      %v8345 = vsel %vm497, %v8313, %v7844
      %v8346 = vsel %vm497, %v8314, %v7846
      %v8347 = vsel %vm497, %v8315, %v7848
      %v8348 = vsel %vm497, %v8316, %v7850
      %v8349 = vsel %vm497, %v8317, %v7852
      %v8350 = vsel %vm497, %v8318, %v7854
      %v8351 = vsel %vm497, %v8319, %v7856
      %v8352 = vsel %vm497, %v8320, %v7858
      %v8353 = vsel %vm497, %v8321, %v7860
      %v8354 = vsel %vm497, %v8322, %v7862
      %v8355 = vsel %vm497, %v8323, %v7864
      %v8356 = vsel %vm497, %v8324, %v7866
      %v8357 = vsel %vm497, %v8325, %v7868
      %v8358 = vsel %vm497, %v8326, %v7870
      %v8359 = vsel %vm497, %v8327, %v7872
      %v8360 = vsel %vm497, %v8328, %v7874
      %v8361 = vsel %vm497, %v8329, %v7876
      %v8362 = vsel %vm497, %v8330, %v7878
      %v8363 = vsel %vm497, %v8331, %v7880
      %v8364 = vsel %vm497, %v8332, %v7882
      %v8365 = vsel %vm497, %v8333, %v7884
      %v8366 = vsel %vm497, %v8334, %v7886
      %v8367 = vsel %vm4232, %v8335, %v7952
      %v8368 = vsel %vm4232, %v8336, %v7954
      %v8369 = vsel %vm4232, %v8337, %v7956
      %v8370 = vsel %vm4232, %v8338, %v7958
      %v8371 = vsel %vm4232, %v8339, %v7960
      %v8372 = vsel %vm4232, %v8340, %v7962
      %v8373 = vsel %vm4232, %v8341, %v7964
      %v8374 = vsel %vm4232, %v8342, %v7966
      %v8375 = vsel %vm4232, %v8343, %v7968
      %v8376 = vsel %vm4232, %v8344, %v7970
      %v8377 = vsel %vm4232, %v8345, %v7972
      %v8378 = vsel %vm4232, %v8346, %v7974
      %v8379 = vsel %vm4232, %v8347, %v7976
      %v8380 = vsel %vm4232, %v8348, %v7978
      %v8381 = vsel %vm4232, %v8349, %v7980
      %v8382 = vsel %vm4232, %v8350, %v7982
      %v8383 = vsel %vm4232, %v8351, %v7984
      %v8384 = vsel %vm4232, %v8352, %v7986
      %v8385 = vsel %vm4232, %v8353, %v7988
      %v8386 = vsel %vm4232, %v8354, %v7990
      %v8387 = vsel %vm4232, %v8355, %v7992
      %v8388 = vsel %vm4232, %v8356, %v7994
      %v8389 = vsel %vm4232, %v8357, %v7996
      %v8390 = vsel %vm4232, %v8358, %v7998
      %v8391 = vsel %vm4232, %v8359, %v8000
      %v8392 = vsel %vm4232, %v8360, %v8002
      %v8393 = vsel %vm4232, %v8361, %v8004
      %v8394 = vsel %vm4232, %v8362, %v8006
      %v8395 = vsel %vm4232, %v8363, %v8008
      %v8396 = vsel %vm4232, %v8364, %v8010
      %v8397 = vsel %vm4232, %v8365, %v8012
      %v8398 = vsel %vm4232, %v8366, %v8014
      %v8399 = vsel %vm4265, %v8367, %v8080
      %v8400 = vsel %vm4265, %v8368, %v8082
      %v8401 = vsel %vm4265, %v8369, %v8084
      %v8402 = vsel %vm4265, %v8370, %v8086
      %v8403 = vsel %vm4265, %v8371, %v8088
      %v8404 = vsel %vm4265, %v8372, %v8090
      %v8405 = vsel %vm4265, %v8373, %v8092
      %v8406 = vsel %vm4265, %v8374, %v8094
      %v8407 = vsel %vm4265, %v8375, %v8096
      %v8408 = vsel %vm4265, %v8376, %v8098
      %v8409 = vsel %vm4265, %v8377, %v8100
      %v8410 = vsel %vm4265, %v8378, %v8102
      %v8411 = vsel %vm4265, %v8379, %v8104
      %v8412 = vsel %vm4265, %v8380, %v8106
      %v8413 = vsel %vm4265, %v8381, %v8108
      %v8414 = vsel %vm4265, %v8382, %v8110
      %v8415 = vsel %vm4265, %v8383, %v8112
      %v8416 = vsel %vm4265, %v8384, %v8114
      %v8417 = vsel %vm4265, %v8385, %v8116
      %v8418 = vsel %vm4265, %v8386, %v8118
      %v8419 = vsel %vm4265, %v8387, %v8120
      %v8420 = vsel %vm4265, %v8388, %v8122
      %v8421 = vsel %vm4265, %v8389, %v8124
      %v8422 = vsel %vm4265, %v8390, %v8126
      %v8423 = vsel %vm4265, %v8391, %v8128
      %v8424 = vsel %vm4265, %v8392, %v8130
      %v8425 = vsel %vm4265, %v8393, %v8132
      %v8426 = vsel %vm4265, %v8394, %v8134
      %v8427 = vsel %vm4265, %v8395, %v8136
      %v8428 = vsel %vm4265, %v8396, %v8138
      %v8429 = vsel %vm4265, %v8397, %v8140
      %v8430 = vsel %vm4265, %v8398, %v8142
      %v8431 = vld [vmem:[%s5] sm:$0xff]
      %v8432 = vld [vmem:[%s5 + $0x8] sm:$0xff]
      %v8433 = vld [vmem:[%s5 + $0x10] sm:$0xff]
      %v8434 = vld [vmem:[%s5 + $0x18] sm:$0xff]
      %v8435 = vld [vmem:[%s5 + $0x20] sm:$0xff]
      %v8436 = vld [vmem:[%s5 + $0x28] sm:$0xff]
      %v8437 = vld [vmem:[%s5 + $0x30] sm:$0xff]
      %v8438 = vld [vmem:[%s5 + $0x38] sm:$0xff]
      %v8439 = vld [vmem:[%s5 + $0x40] sm:$0xff]
      %v8440 = vld [vmem:[%s6] sm:$0x1]
      %v8442 = vlaneseq
      %v8443 = vshrl.u32 %v8442, 7
      %v8444 = vsub.s32 0, %v8443
      %v8445 = vrot.slane %v8440, %v8444
      %v8448 = vsel %vm4314, %v8399, 0
      %v8451 = vsel %vm4314, %v8400, 0
      %v8454 = vsel %vm4314, %v8401, 0
      %v8457 = vsel %vm4314, %v8402, 0
      %v8460 = vsel %vm4314, %v8403, 0
      %v8463 = vsel %vm4314, %v8404, 0
      %v8466 = vsel %vm4314, %v8405, 0
      %v8469 = vsel %vm4314, %v8406, 0
      %v8472 = vsel %vm4314, %v8407, 0
      %v8475 = vsel %vm4314, %v8408, 0
      %v8478 = vsel %vm4314, %v8409, 0
      %v8481 = vsel %vm4314, %v8410, 0
      %v8484 = vsel %vm4314, %v8411, 0
      %v8487 = vsel %vm4314, %v8412, 0
      %v8490 = vsel %vm4314, %v8413, 0
      %v8493 = vsel %vm4314, %v8414, 0
      %v8496 = vsel %vm4314, %v8415, 0
      %v8499 = vsel %vm4314, %v8416, 0
      %v8502 = vsel %vm4314, %v8417, 0
      %v8505 = vsel %vm4314, %v8418, 0
      %v8508 = vsel %vm4314, %v8419, 0
      %v8511 = vsel %vm4314, %v8420, 0
      %v8514 = vsel %vm4314, %v8421, 0
      %v8517 = vsel %vm4314, %v8422, 0
      %v8520 = vsel %vm4314, %v8423, 0
      %v8523 = vsel %vm4314, %v8424, 0
      %v8526 = vsel %vm4314, %v8425, 0
      %v8529 = vsel %vm4314, %v8426, 0
      %v8532 = vsel %vm4314, %v8427, 0
      %v8535 = vsel %vm4314, %v8428, 0
      %v8538 = vsel %vm4314, %v8429, 0
      %v8541 = vsel %vm4314, %v8430, 0
      %8543 = vmatprep.subr.mxu0 0.0
      %8544 = vmatpush1.msra.mxu0 %v8431
      %8545 = vmatprep.subr.mxu0 0.0
      %8546 = vmatpush1.msra.mxu0 %v8432
      %8547 = vmatprep.subr.mxu0 0.0
      %8548 = vmatpush1.msra.mxu0 %v8433
      %8549 = vmatprep.subr.mxu0 0.0
      %8550 = vmatpush1.msra.mxu0 %v8434
      %8551 = vmatprep.subr.mxu0 0.0
      %8552 = vmatpush1.msra.mxu0 %v8435
      %8553 = vmatprep.subr.mxu0 0.0
      %8554 = vmatpush1.msra.mxu0 %v8436
      %8555 = vmatprep.subr.mxu0 0.0
      %8556 = vmatpush1.msra.mxu0 %v8437
      %8557 = vmatprep.subr.mxu0 0.0
      %8558 = vmatpush1.msra.mxu0 %v8438
      %8559 = vmatprep.subr.mxu0 0.0
      %8560 = vmatpush1.msra.mxu0 %v8439
      %8561 = vmatprep.subr.mxu0 0.0
      %8562 = vmatpush1.msra.mxu0 0.0
      %8563 = vmatprep.subr.mxu0 0.0
      %8564 = vmatpush1.msra.mxu0 0.0
      %8565 = vmatprep.subr.mxu0 0.0
      %8566 = vmatpush1.msra.mxu0 0.0
      %8567 = vmatprep.subr.mxu0 0.0
      %8568 = vmatpush1.msra.mxu0 0.0
      %8569 = vmatprep.subr.mxu0 0.0
      %8570 = vmatpush1.msra.mxu0 0.0
      %8571 = vmatprep.subr.mxu0 0.0
      %8572 = vmatpush1.msra.mxu0 0.0
      %8573 = vmatprep.subr.mxu0 0.0
      %8574 = vmatpush1.msra.mxu0 0.0
      %8575 = vmatprep.subr.mxu0 0.0
      %8576 = vmatpush1.msra.mxu0 0.0
      %8577 = vmatprep.subr.mxu0 0.0
      %8578 = vmatpush1.msra.mxu0 0.0
      %8579 = vmatprep.subr.mxu0 0.0
      %8580 = vmatpush1.msra.mxu0 0.0
      %8581 = vmatprep.subr.mxu0 0.0
      %8582 = vmatpush1.msra.mxu0 0.0
      %8583 = vmatprep.subr.mxu0 0.0
      %8584 = vmatpush1.msra.mxu0 0.0
      %8585 = vmatprep.subr.mxu0 0.0
      %8586 = vmatpush1.msra.mxu0 0.0
      %8587 = vmatprep.subr.mxu0 0.0
      %8588 = vmatpush1.msra.mxu0 0.0
      %8589 = vmatprep.subr.mxu0 0.0
      %8590 = vmatpush1.msra.mxu0 0.0
      %8591 = vmatprep.subr.mxu0 0.0
      %8592 = vmatpush1.msra.mxu0 0.0
      %8593 = vmatprep.subr.mxu0 0.0
      %8594 = vmatpush1.msra.mxu0 0.0
      %8595 = vmatprep.subr.mxu0 0.0
      %8596 = vmatpush1.msra.mxu0 0.0
      %8597 = vmatprep.subr.mxu0 0.0
      %8598 = vmatpush1.msra.mxu0 0.0
      %8599 = vmatprep.subr.mxu0 0.0
      %8600 = vmatpush1.msra.mxu0 0.0
      %8601 = vmatprep.subr.mxu0 0.0
      %8602 = vmatpush1.msra.mxu0 0.0
      %8603 = vmatprep.subr.mxu0 0.0
      %8604 = vmatpush1.msra.mxu0 0.0
      %8605 = vmatprep.subr.mxu0 0.0
      %8606 = vmatpush1.msra.mxu0 0.0
      %8607 = vmatprep.mubr.f32.mxu0 0.0
      %8608 = vmatmul.mubr.f32.gmra.mrb[0].mxu0 %v8448
      %v8609 = vpop.f32.mrb[0].mxu0
      %v8610 = vadd.f32 %v8445, %v8609
      %v8611 = vpop.f32.mrb[0].mxu0
      %8612 = vmatprep.mubr.f32.mxu0 0.0
      %8613 = vmatmul.mubr.f32.gmra.mrb[0].mxu0 %v8451
      %v8614 = vpop.f32.mrb[0].mxu0
      %v8615 = vadd.f32 %v8445, %v8614
      %v8616 = vpop.f32.mrb[0].mxu0
      %8617 = vmatprep.mubr.f32.mxu0 0.0
      %8618 = vmatmul.mubr.f32.gmra.mrb[0].mxu0 %v8454
      %v8619 = vpop.f32.mrb[0].mxu0
      %v8620 = vadd.f32 %v8445, %v8619
      %v8621 = vpop.f32.mrb[0].mxu0
      %8622 = vmatprep.mubr.f32.mxu0 0.0
      %8623 = vmatmul.mubr.f32.gmra.mrb[0].mxu0 %v8457
      %v8624 = vpop.f32.mrb[0].mxu0
      %v8625 = vadd.f32 %v8445, %v8624
      %v8626 = vpop.f32.mrb[0].mxu0
      %8627 = vmatprep.mubr.f32.mxu0 0.0
      %8628 = vmatmul.mubr.f32.gmra.mrb[0].mxu0 %v8460
      %v8629 = vpop.f32.mrb[0].mxu0
      %v8630 = vadd.f32 %v8445, %v8629
      %v8631 = vpop.f32.mrb[0].mxu0
      %8632 = vmatprep.mubr.f32.mxu0 0.0
      %8633 = vmatmul.mubr.f32.gmra.mrb[0].mxu0 %v8463
      %v8634 = vpop.f32.mrb[0].mxu0
      %v8635 = vadd.f32 %v8445, %v8634
      %v8636 = vpop.f32.mrb[0].mxu0
      %8637 = vmatprep.mubr.f32.mxu0 0.0
      %8638 = vmatmul.mubr.f32.gmra.mrb[0].mxu0 %v8466
      %v8639 = vpop.f32.mrb[0].mxu0
      %v8640 = vadd.f32 %v8445, %v8639
      %v8641 = vpop.f32.mrb[0].mxu0
      %8642 = vmatprep.mubr.f32.mxu0 0.0
      %8643 = vmatmul.mubr.f32.gmra.mrb[0].mxu0 %v8469
      %v8644 = vpop.f32.mrb[0].mxu0
      %v8645 = vadd.f32 %v8445, %v8644
      %v8646 = vpop.f32.mrb[0].mxu0
      %8647 = vmatprep.mubr.f32.mxu0 0.0
      %8648 = vmatmul.mubr.f32.gmra.mrb[0].mxu0 %v8472
      %v8649 = vpop.f32.mrb[0].mxu0
      %v8650 = vadd.f32 %v8445, %v8649
      %v8651 = vpop.f32.mrb[0].mxu0
      %8652 = vmatprep.mubr.f32.mxu0 0.0
      %8653 = vmatmul.mubr.f32.gmra.mrb[0].mxu0 %v8475
      %v8654 = vpop.f32.mrb[0].mxu0
      %v8655 = vadd.f32 %v8445, %v8654
      %v8656 = vpop.f32.mrb[0].mxu0
      %8657 = vmatprep.mubr.f32.mxu0 0.0
      %8658 = vmatmul.mubr.f32.gmra.mrb[0].mxu0 %v8478
      %v8659 = vpop.f32.mrb[0].mxu0
      %v8660 = vadd.f32 %v8445, %v8659
      %v8661 = vpop.f32.mrb[0].mxu0
      %8662 = vmatprep.mubr.f32.mxu0 0.0
      %8663 = vmatmul.mubr.f32.gmra.mrb[0].mxu0 %v8481
      %v8664 = vpop.f32.mrb[0].mxu0
      %v8665 = vadd.f32 %v8445, %v8664
      %v8666 = vpop.f32.mrb[0].mxu0
      %8667 = vmatprep.mubr.f32.mxu0 0.0
      %8668 = vmatmul.mubr.f32.gmra.mrb[0].mxu0 %v8484
      %v8669 = vpop.f32.mrb[0].mxu0
      %v8670 = vadd.f32 %v8445, %v8669
      %v8671 = vpop.f32.mrb[0].mxu0
      %8672 = vmatprep.mubr.f32.mxu0 0.0
      %8673 = vmatmul.mubr.f32.gmra.mrb[0].mxu0 %v8487
      %v8674 = vpop.f32.mrb[0].mxu0
      %v8675 = vadd.f32 %v8445, %v8674
      %v8676 = vpop.f32.mrb[0].mxu0
      %8677 = vmatprep.mubr.f32.mxu0 0.0
      %8678 = vmatmul.mubr.f32.gmra.mrb[0].mxu0 %v8490
      %v8679 = vpop.f32.mrb[0].mxu0
      %v8680 = vadd.f32 %v8445, %v8679
      %v8681 = vpop.f32.mrb[0].mxu0
      %8682 = vmatprep.mubr.f32.mxu0 0.0
      %8683 = vmatmul.mubr.f32.gmra.mrb[0].mxu0 %v8493
      %v8684 = vpop.f32.mrb[0].mxu0
      %v8685 = vadd.f32 %v8445, %v8684
      %v8686 = vpop.f32.mrb[0].mxu0
      %8687 = vmatprep.mubr.f32.mxu0 0.0
      %8688 = vmatmul.mubr.f32.gmra.mrb[0].mxu0 %v8496
      %v8689 = vpop.f32.mrb[0].mxu0
      %v8690 = vadd.f32 %v8445, %v8689
      %v8691 = vpop.f32.mrb[0].mxu0
      %8692 = vmatprep.mubr.f32.mxu0 0.0
      %8693 = vmatmul.mubr.f32.gmra.mrb[0].mxu0 %v8499
      %v8694 = vpop.f32.mrb[0].mxu0
      %v8695 = vadd.f32 %v8445, %v8694
      %v8696 = vpop.f32.mrb[0].mxu0
      %8697 = vmatprep.mubr.f32.mxu0 0.0
      %8698 = vmatmul.mubr.f32.gmra.mrb[0].mxu0 %v8502
      %v8699 = vpop.f32.mrb[0].mxu0
      %v8700 = vadd.f32 %v8445, %v8699
      %v8701 = vpop.f32.mrb[0].mxu0
      %8702 = vmatprep.mubr.f32.mxu0 0.0
      %8703 = vmatmul.mubr.f32.gmra.mrb[0].mxu0 %v8505
      %v8704 = vpop.f32.mrb[0].mxu0
      %v8705 = vadd.f32 %v8445, %v8704
      %v8706 = vpop.f32.mrb[0].mxu0
      %8707 = vmatprep.mubr.f32.mxu0 0.0
      %8708 = vmatmul.mubr.f32.gmra.mrb[0].mxu0 %v8508
      %v8709 = vpop.f32.mrb[0].mxu0
      %v8710 = vadd.f32 %v8445, %v8709
      %v8711 = vpop.f32.mrb[0].mxu0
      %8712 = vmatprep.mubr.f32.mxu0 0.0
      %8713 = vmatmul.mubr.f32.gmra.mrb[0].mxu0 %v8511
      %v8714 = vpop.f32.mrb[0].mxu0
      %v8715 = vadd.f32 %v8445, %v8714
      %v8716 = vpop.f32.mrb[0].mxu0
      %8717 = vmatprep.mubr.f32.mxu0 0.0
      %8718 = vmatmul.mubr.f32.gmra.mrb[0].mxu0 %v8514
      %v8719 = vpop.f32.mrb[0].mxu0
      %v8720 = vadd.f32 %v8445, %v8719
      %v8721 = vpop.f32.mrb[0].mxu0
      %8722 = vmatprep.mubr.f32.mxu0 0.0
      %8723 = vmatmul.mubr.f32.gmra.mrb[0].mxu0 %v8517
      %v8724 = vpop.f32.mrb[0].mxu0
      %v8725 = vadd.f32 %v8445, %v8724
      %v8726 = vpop.f32.mrb[0].mxu0
      %8727 = vmatprep.mubr.f32.mxu0 0.0
      %8728 = vmatmul.mubr.f32.gmra.mrb[0].mxu0 %v8520
      %v8729 = vpop.f32.mrb[0].mxu0
      %v8730 = vadd.f32 %v8445, %v8729
      %v8731 = vpop.f32.mrb[0].mxu0
      %8732 = vmatprep.mubr.f32.mxu0 0.0
      %8733 = vmatmul.mubr.f32.gmra.mrb[0].mxu0 %v8523
      %v8734 = vpop.f32.mrb[0].mxu0
      %v8735 = vadd.f32 %v8445, %v8734
      %v8736 = vpop.f32.mrb[0].mxu0
      %8737 = vmatprep.mubr.f32.mxu0 0.0
      %8738 = vmatmul.mubr.f32.gmra.mrb[0].mxu0 %v8526
      %v8739 = vpop.f32.mrb[0].mxu0
      %v8740 = vadd.f32 %v8445, %v8739
      %v8741 = vpop.f32.mrb[0].mxu0
      %8742 = vmatprep.mubr.f32.mxu0 0.0
      %8743 = vmatmul.mubr.f32.gmra.mrb[0].mxu0 %v8529
      %v8744 = vpop.f32.mrb[0].mxu0
      %v8745 = vadd.f32 %v8445, %v8744
      %v8746 = vpop.f32.mrb[0].mxu0
      %8747 = vmatprep.mubr.f32.mxu0 0.0
      %8748 = vmatmul.mubr.f32.gmra.mrb[0].mxu0 %v8532
      %v8749 = vpop.f32.mrb[0].mxu0
      %v8750 = vadd.f32 %v8445, %v8749
      %v8751 = vpop.f32.mrb[0].mxu0
      %8752 = vmatprep.mubr.f32.mxu0 0.0
      %8753 = vmatmul.mubr.f32.gmra.mrb[0].mxu0 %v8535
      %v8754 = vpop.f32.mrb[0].mxu0
      %v8755 = vadd.f32 %v8445, %v8754
      %v8756 = vpop.f32.mrb[0].mxu0
      %8757 = vmatprep.mubr.f32.mxu0 0.0
      %8758 = vmatmul.mubr.f32.gmra.mrb[0].mxu0 %v8538
      %v8759 = vpop.f32.mrb[0].mxu0
      %v8760 = vadd.f32 %v8445, %v8759
      %v8761 = vpop.f32.mrb[0].mxu0
      %8762 = vmatprep.mubr.f32.mxu0 0.0
      %8763 = vmatmul.mubr.f32.gmra.mrb[0].mxu0 %v8541
      %v8764 = vpop.f32.mrb[0].mxu0
      %v8765 = vadd.f32 %v8445, %v8764
      %v8766 = vpop.f32.mrb[0].mxu0
      %8767 = vdwg.mxu0
      %8800 = vrot.lane.b32.xlu0 %v8610, 16
      %v8801 = vpop.permute.xlu0 %8800
      %8802 = vrot.lane.b32.xlu0 %v8615, 16
      %v8803 = vpop.permute.xlu0 %8802
      %8804 = vrot.lane.b32.xlu0 %v8620, 16
      %v8805 = vpop.permute.xlu0 %8804
      %8806 = vrot.lane.b32.xlu0 %v8625, 16
      %v8807 = vpop.permute.xlu0 %8806
      %8808 = vrot.lane.b32.xlu0 %v8630, 16
      %v8809 = vpop.permute.xlu0 %8808
      %8810 = vrot.lane.b32.xlu0 %v8635, 16
      %v8811 = vpop.permute.xlu0 %8810
      %8812 = vrot.lane.b32.xlu0 %v8640, 16
      %v8813 = vpop.permute.xlu0 %8812
      %8814 = vrot.lane.b32.xlu0 %v8645, 16
      %v8815 = vpop.permute.xlu0 %8814
      %8816 = vrot.lane.b32.xlu0 %v8650, 16
      %v8817 = vpop.permute.xlu0 %8816
      %8818 = vrot.lane.b32.xlu0 %v8655, 16
      %v8819 = vpop.permute.xlu0 %8818
      %8820 = vrot.lane.b32.xlu0 %v8660, 16
      %v8821 = vpop.permute.xlu0 %8820
      %8822 = vrot.lane.b32.xlu0 %v8665, 16
      %v8823 = vpop.permute.xlu0 %8822
      %8824 = vrot.lane.b32.xlu0 %v8670, 16
      %v8825 = vpop.permute.xlu0 %8824
      %8826 = vrot.lane.b32.xlu0 %v8675, 16
      %v8827 = vpop.permute.xlu0 %8826
      %8828 = vrot.lane.b32.xlu0 %v8680, 16
      %v8829 = vpop.permute.xlu0 %8828
      %8830 = vrot.lane.b32.xlu0 %v8685, 16
      %v8831 = vpop.permute.xlu0 %8830
      %8832 = vrot.lane.b32.xlu0 %v8690, 16
      %v8833 = vpop.permute.xlu0 %8832
      %8834 = vrot.lane.b32.xlu0 %v8695, 16
      %v8835 = vpop.permute.xlu0 %8834
      %8836 = vrot.lane.b32.xlu0 %v8700, 16
      %v8837 = vpop.permute.xlu0 %8836
      %8838 = vrot.lane.b32.xlu0 %v8705, 16
      %v8839 = vpop.permute.xlu0 %8838
      %8840 = vrot.lane.b32.xlu0 %v8710, 16
      %v8841 = vpop.permute.xlu0 %8840
      %8842 = vrot.lane.b32.xlu0 %v8715, 16
      %v8843 = vpop.permute.xlu0 %8842
      %8844 = vrot.lane.b32.xlu0 %v8720, 16
      %v8845 = vpop.permute.xlu0 %8844
      %8846 = vrot.lane.b32.xlu0 %v8725, 16
      %v8847 = vpop.permute.xlu0 %8846
      %8848 = vrot.lane.b32.xlu0 %v8730, 16
      %v8849 = vpop.permute.xlu0 %8848
      %8850 = vrot.lane.b32.xlu0 %v8735, 16
      %v8851 = vpop.permute.xlu0 %8850
      %8852 = vrot.lane.b32.xlu0 %v8740, 16
      %v8853 = vpop.permute.xlu0 %8852
      %8854 = vrot.lane.b32.xlu0 %v8745, 16
      %v8855 = vpop.permute.xlu0 %8854
      %8856 = vrot.lane.b32.xlu0 %v8750, 16
      %v8857 = vpop.permute.xlu0 %8856
      %8858 = vrot.lane.b32.xlu0 %v8755, 16
      %v8859 = vpop.permute.xlu0 %8858
      %8860 = vrot.lane.b32.xlu0 %v8760, 16
      %v8861 = vpop.permute.xlu0 %8860
      %8862 = vrot.lane.b32.xlu0 %v8765, 16
      %v8863 = vpop.permute.xlu0 %8862
      %vm8896 = vcmask 195712
      %8897 = vst.msk [vmem:[%s2532 + $0x1] sm:$0xff] %vm8896, %v8801
      %8898 = vst.msk [vmem:[%s2532 + $0x9] sm:$0xff] %vm8896, %v8803
      %8899 = vst.msk [vmem:[%s2532 + $0x19] sm:$0xff] %vm8896, %v8805
      %8900 = vst.msk [vmem:[%s2532 + $0x21] sm:$0xff] %vm8896, %v8807
      %8901 = vst.msk [vmem:[%s2532 + $0x31] sm:$0xff] %vm8896, %v8809
      %8902 = vst.msk [vmem:[%s2532 + $0x39] sm:$0xff] %vm8896, %v8811
      %8903 = vst.msk [vmem:[%s2532 + $0x49] sm:$0xff] %vm8896, %v8813
      %8904 = vst.msk [vmem:[%s2532 + $0x51] sm:$0xff] %vm8896, %v8815
      %8905 = vst.msk [vmem:[%s2532 + $0x61] sm:$0xff] %vm8896, %v8817
      %8906 = vst.msk [vmem:[%s2532 + $0x69] sm:$0xff] %vm8896, %v8819
      %8907 = vst.msk [vmem:[%s2532 + $0x79] sm:$0xff] %vm8896, %v8821
      %8908 = vst.msk [vmem:[%s2532 + $0x81] sm:$0xff] %vm8896, %v8823
      %8909 = vst.msk [vmem:[%s2532 + $0x91] sm:$0xff] %vm8896, %v8825
      %8910 = vst.msk [vmem:[%s2532 + $0x99] sm:$0xff] %vm8896, %v8827
      %8911 = vst.msk [vmem:[%s2532 + $0xa9] sm:$0xff] %vm8896, %v8829
      %8912 = vst.msk [vmem:[%s2532 + $0xb1] sm:$0xff] %vm8896, %v8831
      %8913 = vst.msk [vmem:[%s2532 + $0xc1] sm:$0xff] %vm8896, %v8833
      %8914 = vst.msk [vmem:[%s2532 + $0xc9] sm:$0xff] %vm8896, %v8835
      %8915 = vst.msk [vmem:[%s2532 + $0xd9] sm:$0xff] %vm8896, %v8837
      %8916 = vst.msk [vmem:[%s2532 + $0xe1] sm:$0xff] %vm8896, %v8839
      %8917 = vst.msk [vmem:[%s2532 + $0xf1] sm:$0xff] %vm8896, %v8841
      %8918 = vst.msk [vmem:[%s2532 + $0xf9] sm:$0xff] %vm8896, %v8843
      %8919 = vst.msk [vmem:[%s2532 + $0x109] sm:$0xff] %vm8896, %v8845
      %8920 = vst.msk [vmem:[%s2532 + $0x111] sm:$0xff] %vm8896, %v8847
      %8921 = vst.msk [vmem:[%s2532 + $0x121] sm:$0xff] %vm8896, %v8849
      %8922 = vst.msk [vmem:[%s2532 + $0x129] sm:$0xff] %vm8896, %v8851
      %8923 = vst.msk [vmem:[%s2532 + $0x139] sm:$0xff] %vm8896, %v8853
      %8924 = vst.msk [vmem:[%s2532 + $0x141] sm:$0xff] %vm8896, %v8855
      %8925 = vst.msk [vmem:[%s2532 + $0x151] sm:$0xff] %vm8896, %v8857
      %8926 = vst.msk [vmem:[%s2532 + $0x159] sm:$0xff] %vm8896, %v8859
      %8927 = vst.msk [vmem:[%s2532 + $0x169] sm:$0xff] %vm8896, %v8861
      %8928 = vst.msk [vmem:[%s2532 + $0x171] sm:$0xff] %vm8896, %v8863
      %v8929 = vld [vmem:[#allocation3] sm:$0xff]
      %v8930 = vld [vmem:[#allocation3 + $0x8] sm:$0xff]
      %v8931 = vld [vmem:[#allocation3 + $0x18] sm:$0xff]
      %v8932 = vld [vmem:[#allocation3 + $0x20] sm:$0xff]
      %v8933 = vld [vmem:[#allocation3 + $0x30] sm:$0xff]
      %v8934 = vld [vmem:[#allocation3 + $0x38] sm:$0xff]
      %v8935 = vld [vmem:[#allocation3 + $0x48] sm:$0xff]
      %v8936 = vld [vmem:[#allocation3 + $0x50] sm:$0xff]
      %v8937 = vld [vmem:[#allocation3 + $0x60] sm:$0xff]
      %v8938 = vld [vmem:[#allocation3 + $0x68] sm:$0xff]
      %v8939 = vld [vmem:[#allocation3 + $0x78] sm:$0xff]
      %v8940 = vld [vmem:[#allocation3 + $0x80] sm:$0xff]
      %v8941 = vld [vmem:[#allocation3 + $0x90] sm:$0xff]
      %v8942 = vld [vmem:[#allocation3 + $0x98] sm:$0xff]
      %v8943 = vld [vmem:[#allocation3 + $0xa8] sm:$0xff]
      %v8944 = vld [vmem:[#allocation3 + $0xb0] sm:$0xff]
      %v8945 = vld [vmem:[#allocation3 + $0xc0] sm:$0xff]
      %v8946 = vld [vmem:[#allocation3 + $0xc8] sm:$0xff]
      %v8947 = vld [vmem:[#allocation3 + $0xd8] sm:$0xff]
      %v8948 = vld [vmem:[#allocation3 + $0xe0] sm:$0xff]
      %v8949 = vld [vmem:[#allocation3 + $0xf0] sm:$0xff]
      %v8950 = vld [vmem:[#allocation3 + $0xf8] sm:$0xff]
      %v8951 = vld [vmem:[#allocation3 + $0x108] sm:$0xff]
      %v8952 = vld [vmem:[#allocation3 + $0x110] sm:$0xff]
      %v8953 = vld [vmem:[#allocation3 + $0x120] sm:$0xff]
      %v8954 = vld [vmem:[#allocation3 + $0x128] sm:$0xff]
      %v8955 = vld [vmem:[#allocation3 + $0x138] sm:$0xff]
      %v8956 = vld [vmem:[#allocation3 + $0x140] sm:$0xff]
      %v8957 = vld [vmem:[#allocation3 + $0x150] sm:$0xff]
      %v8958 = vld [vmem:[#allocation3 + $0x158] sm:$0xff]
      %v8959 = vld [vmem:[#allocation3 + $0x168] sm:$0xff]
      %v8960 = vld [vmem:[#allocation3 + $0x170] sm:$0xff]
      %v8961 = vld [vmem:[#allocation3 + $0x1] sm:$0xff]
      %v8962 = vld [vmem:[#allocation3 + $0x9] sm:$0xff]
      %v8963 = vld [vmem:[#allocation3 + $0x19] sm:$0xff]
      %v8964 = vld [vmem:[#allocation3 + $0x21] sm:$0xff]
      %v8965 = vld [vmem:[#allocation3 + $0x31] sm:$0xff]
      %v8966 = vld [vmem:[#allocation3 + $0x39] sm:$0xff]
      %v8967 = vld [vmem:[#allocation3 + $0x49] sm:$0xff]
      %v8968 = vld [vmem:[#allocation3 + $0x51] sm:$0xff]
      %v8969 = vld [vmem:[#allocation3 + $0x61] sm:$0xff]
      %v8970 = vld [vmem:[#allocation3 + $0x69] sm:$0xff]
      %v8971 = vld [vmem:[#allocation3 + $0x79] sm:$0xff]
      %v8972 = vld [vmem:[#allocation3 + $0x81] sm:$0xff]
      %v8973 = vld [vmem:[#allocation3 + $0x91] sm:$0xff]
      %v8974 = vld [vmem:[#allocation3 + $0x99] sm:$0xff]
      %v8975 = vld [vmem:[#allocation3 + $0xa9] sm:$0xff]
      %v8976 = vld [vmem:[#allocation3 + $0xb1] sm:$0xff]
      %v8977 = vld [vmem:[#allocation3 + $0xc1] sm:$0xff]
      %v8978 = vld [vmem:[#allocation3 + $0xc9] sm:$0xff]
      %v8979 = vld [vmem:[#allocation3 + $0xd9] sm:$0xff]
      %v8980 = vld [vmem:[#allocation3 + $0xe1] sm:$0xff]
      %v8981 = vld [vmem:[#allocation3 + $0xf1] sm:$0xff]
      %v8982 = vld [vmem:[#allocation3 + $0xf9] sm:$0xff]
      %v8983 = vld [vmem:[#allocation3 + $0x109] sm:$0xff]
      %v8984 = vld [vmem:[#allocation3 + $0x111] sm:$0xff]
      %v8985 = vld [vmem:[#allocation3 + $0x121] sm:$0xff]
      %v8986 = vld [vmem:[#allocation3 + $0x129] sm:$0xff]
      %v8987 = vld [vmem:[#allocation3 + $0x139] sm:$0xff]
      %v8988 = vld [vmem:[#allocation3 + $0x141] sm:$0xff]
      %v8989 = vld [vmem:[#allocation3 + $0x151] sm:$0xff]
      %v8990 = vld [vmem:[#allocation3 + $0x159] sm:$0xff]
      %v8991 = vld [vmem:[#allocation3 + $0x169] sm:$0xff]
      %v8992 = vld [vmem:[#allocation3 + $0x171] sm:$0xff]
      %v8993 = vld [vmem:[#allocation3 + $0x2] sm:$0xff]
      %v8994 = vld [vmem:[#allocation3 + $0xa] sm:$0xff]
      %v8995 = vld [vmem:[#allocation3 + $0x1a] sm:$0xff]
      %v8996 = vld [vmem:[#allocation3 + $0x22] sm:$0xff]
      %v8997 = vld [vmem:[#allocation3 + $0x32] sm:$0xff]
      %v8998 = vld [vmem:[#allocation3 + $0x3a] sm:$0xff]
      %v8999 = vld [vmem:[#allocation3 + $0x4a] sm:$0xff]
      %v9000 = vld [vmem:[#allocation3 + $0x52] sm:$0xff]
      %v9001 = vld [vmem:[#allocation3 + $0x62] sm:$0xff]
      %v9002 = vld [vmem:[#allocation3 + $0x6a] sm:$0xff]
      %v9003 = vld [vmem:[#allocation3 + $0x7a] sm:$0xff]
      %v9004 = vld [vmem:[#allocation3 + $0x82] sm:$0xff]
      %v9005 = vld [vmem:[#allocation3 + $0x92] sm:$0xff]
      %v9006 = vld [vmem:[#allocation3 + $0x9a] sm:$0xff]
      %v9007 = vld [vmem:[#allocation3 + $0xaa] sm:$0xff]
      %v9008 = vld [vmem:[#allocation3 + $0xb2] sm:$0xff]
      %v9009 = vld [vmem:[#allocation3 + $0xc2] sm:$0xff]
      %v9010 = vld [vmem:[#allocation3 + $0xca] sm:$0xff]
      %v9011 = vld [vmem:[#allocation3 + $0xda] sm:$0xff]
      %v9012 = vld [vmem:[#allocation3 + $0xe2] sm:$0xff]
      %v9013 = vld [vmem:[#allocation3 + $0xf2] sm:$0xff]
      %v9014 = vld [vmem:[#allocation3 + $0xfa] sm:$0xff]
      %v9015 = vld [vmem:[#allocation3 + $0x10a] sm:$0xff]
      %v9016 = vld [vmem:[#allocation3 + $0x112] sm:$0xff]
      %v9017 = vld [vmem:[#allocation3 + $0x122] sm:$0xff]
      %v9018 = vld [vmem:[#allocation3 + $0x12a] sm:$0xff]
      %v9019 = vld [vmem:[#allocation3 + $0x13a] sm:$0xff]
      %v9020 = vld [vmem:[#allocation3 + $0x142] sm:$0xff]
      %v9021 = vld [vmem:[#allocation3 + $0x152] sm:$0xff]
      %v9022 = vld [vmem:[#allocation3 + $0x15a] sm:$0xff]
      %v9023 = vld [vmem:[#allocation3 + $0x16a] sm:$0xff]
      %v9024 = vld [vmem:[#allocation3 + $0x172] sm:$0xff]
      %v9025 = vld [vmem:[%s2532] sm:$0xff]
      %v9026 = vld [vmem:[%s2532 + $0x8] sm:$0xff]
      %v9027 = vld [vmem:[%s2532 + $0x18] sm:$0xff]
      %v9028 = vld [vmem:[%s2532 + $0x20] sm:$0xff]
      %v9029 = vld [vmem:[%s2532 + $0x30] sm:$0xff]
      %v9030 = vld [vmem:[%s2532 + $0x38] sm:$0xff]
      %v9031 = vld [vmem:[%s2532 + $0x48] sm:$0xff]
      %v9032 = vld [vmem:[%s2532 + $0x50] sm:$0xff]
      %v9033 = vld [vmem:[%s2532 + $0x60] sm:$0xff]
      %v9034 = vld [vmem:[%s2532 + $0x68] sm:$0xff]
      %v9035 = vld [vmem:[%s2532 + $0x78] sm:$0xff]
      %v9036 = vld [vmem:[%s2532 + $0x80] sm:$0xff]
      %v9037 = vld [vmem:[%s2532 + $0x90] sm:$0xff]
      %v9038 = vld [vmem:[%s2532 + $0x98] sm:$0xff]
      %v9039 = vld [vmem:[%s2532 + $0xa8] sm:$0xff]
      %v9040 = vld [vmem:[%s2532 + $0xb0] sm:$0xff]
      %v9041 = vld [vmem:[%s2532 + $0xc0] sm:$0xff]
      %v9042 = vld [vmem:[%s2532 + $0xc8] sm:$0xff]
      %v9043 = vld [vmem:[%s2532 + $0xd8] sm:$0xff]
      %v9044 = vld [vmem:[%s2532 + $0xe0] sm:$0xff]
      %v9045 = vld [vmem:[%s2532 + $0xf0] sm:$0xff]
      %v9046 = vld [vmem:[%s2532 + $0xf8] sm:$0xff]
      %v9047 = vld [vmem:[%s2532 + $0x108] sm:$0xff]
      %v9048 = vld [vmem:[%s2532 + $0x110] sm:$0xff]
      %v9049 = vld [vmem:[%s2532 + $0x120] sm:$0xff]
      %v9050 = vld [vmem:[%s2532 + $0x128] sm:$0xff]
      %v9051 = vld [vmem:[%s2532 + $0x138] sm:$0xff]
      %v9052 = vld [vmem:[%s2532 + $0x140] sm:$0xff]
      %v9053 = vld [vmem:[%s2532 + $0x150] sm:$0xff]
      %v9054 = vld [vmem:[%s2532 + $0x158] sm:$0xff]
      %v9055 = vld [vmem:[%s2532 + $0x168] sm:$0xff]
      %v9056 = vld [vmem:[%s2532 + $0x170] sm:$0xff]
      %v9057 = vld [vmem:[%s2532 + $0x1] sm:$0xff]
      %v9058 = vld [vmem:[%s2532 + $0x9] sm:$0xff]
      %v9059 = vld [vmem:[%s2532 + $0x19] sm:$0xff]
      %v9060 = vld [vmem:[%s2532 + $0x21] sm:$0xff]
      %v9061 = vld [vmem:[%s2532 + $0x31] sm:$0xff]
      %v9062 = vld [vmem:[%s2532 + $0x39] sm:$0xff]
      %v9063 = vld [vmem:[%s2532 + $0x49] sm:$0xff]
      %v9064 = vld [vmem:[%s2532 + $0x51] sm:$0xff]
      %v9065 = vld [vmem:[%s2532 + $0x61] sm:$0xff]
      %v9066 = vld [vmem:[%s2532 + $0x69] sm:$0xff]
      %v9067 = vld [vmem:[%s2532 + $0x79] sm:$0xff]
      %v9068 = vld [vmem:[%s2532 + $0x81] sm:$0xff]
      %v9069 = vld [vmem:[%s2532 + $0x91] sm:$0xff]
      %v9070 = vld [vmem:[%s2532 + $0x99] sm:$0xff]
      %v9071 = vld [vmem:[%s2532 + $0xa9] sm:$0xff]
      %v9072 = vld [vmem:[%s2532 + $0xb1] sm:$0xff]
      %v9073 = vld [vmem:[%s2532 + $0xc1] sm:$0xff]
      %v9074 = vld [vmem:[%s2532 + $0xc9] sm:$0xff]
      %v9075 = vld [vmem:[%s2532 + $0xd9] sm:$0xff]
      %v9076 = vld [vmem:[%s2532 + $0xe1] sm:$0xff]
      %v9077 = vld [vmem:[%s2532 + $0xf1] sm:$0xff]
      %v9078 = vld [vmem:[%s2532 + $0xf9] sm:$0xff]
      %v9079 = vld [vmem:[%s2532 + $0x109] sm:$0xff]
      %v9080 = vld [vmem:[%s2532 + $0x111] sm:$0xff]
      %v9081 = vld [vmem:[%s2532 + $0x121] sm:$0xff]
      %v9082 = vld [vmem:[%s2532 + $0x129] sm:$0xff]
      %v9083 = vld [vmem:[%s2532 + $0x139] sm:$0xff]
      %v9084 = vld [vmem:[%s2532 + $0x141] sm:$0xff]
      %v9085 = vld [vmem:[%s2532 + $0x151] sm:$0xff]
      %v9086 = vld [vmem:[%s2532 + $0x159] sm:$0xff]
      %v9087 = vld [vmem:[%s2532 + $0x169] sm:$0xff]
      %v9088 = vld [vmem:[%s2532 + $0x171] sm:$0xff]
      %v9089 = vld [vmem:[%s2532 + $0x2] sm:$0xff]
      %v9090 = vld [vmem:[%s2532 + $0xa] sm:$0xff]
      %v9091 = vld [vmem:[%s2532 + $0x1a] sm:$0xff]
      %v9092 = vld [vmem:[%s2532 + $0x22] sm:$0xff]
      %v9093 = vld [vmem:[%s2532 + $0x32] sm:$0xff]
      %v9094 = vld [vmem:[%s2532 + $0x3a] sm:$0xff]
      %v9095 = vld [vmem:[%s2532 + $0x4a] sm:$0xff]
      %v9096 = vld [vmem:[%s2532 + $0x52] sm:$0xff]
      %v9097 = vld [vmem:[%s2532 + $0x62] sm:$0xff]
      %v9098 = vld [vmem:[%s2532 + $0x6a] sm:$0xff]
      %v9099 = vld [vmem:[%s2532 + $0x7a] sm:$0xff]
      %v9100 = vld [vmem:[%s2532 + $0x82] sm:$0xff]
      %v9101 = vld [vmem:[%s2532 + $0x92] sm:$0xff]
      %v9102 = vld [vmem:[%s2532 + $0x9a] sm:$0xff]
      %v9103 = vld [vmem:[%s2532 + $0xaa] sm:$0xff]
      %v9104 = vld [vmem:[%s2532 + $0xb2] sm:$0xff]
      %v9105 = vld [vmem:[%s2532 + $0xc2] sm:$0xff]
      %v9106 = vld [vmem:[%s2532 + $0xca] sm:$0xff]
      %v9107 = vld [vmem:[%s2532 + $0xda] sm:$0xff]
      %v9108 = vld [vmem:[%s2532 + $0xe2] sm:$0xff]
      %v9109 = vld [vmem:[%s2532 + $0xf2] sm:$0xff]
      %v9110 = vld [vmem:[%s2532 + $0xfa] sm:$0xff]
      %v9111 = vld [vmem:[%s2532 + $0x10a] sm:$0xff]
      %v9112 = vld [vmem:[%s2532 + $0x112] sm:$0xff]
      %v9113 = vld [vmem:[%s2532 + $0x122] sm:$0xff]
      %v9114 = vld [vmem:[%s2532 + $0x12a] sm:$0xff]
      %v9115 = vld [vmem:[%s2532 + $0x13a] sm:$0xff]
      %v9116 = vld [vmem:[%s2532 + $0x142] sm:$0xff]
      %v9117 = vld [vmem:[%s2532 + $0x152] sm:$0xff]
      %v9118 = vld [vmem:[%s2532 + $0x15a] sm:$0xff]
      %v9119 = vld [vmem:[%s2532 + $0x16a] sm:$0xff]
      %v9120 = vld [vmem:[%s2532 + $0x172] sm:$0xff]
      %v9121 = vld [vmem:[%s2918] sm:$0xff]
      %v9122 = vld [vmem:[%s2918 + $0x8] sm:$0xff]
      %v9123 = vld [vmem:[%s2918 + $0x18] sm:$0xff]
      %v9124 = vld [vmem:[%s2918 + $0x20] sm:$0xff]
      %v9125 = vld [vmem:[%s2918 + $0x30] sm:$0xff]
      %v9126 = vld [vmem:[%s2918 + $0x38] sm:$0xff]
      %v9127 = vld [vmem:[%s2918 + $0x48] sm:$0xff]
      %v9128 = vld [vmem:[%s2918 + $0x50] sm:$0xff]
      %v9129 = vld [vmem:[%s2918 + $0x60] sm:$0xff]
      %v9130 = vld [vmem:[%s2918 + $0x68] sm:$0xff]
      %v9131 = vld [vmem:[%s2918 + $0x78] sm:$0xff]
      %v9132 = vld [vmem:[%s2918 + $0x80] sm:$0xff]
      %v9133 = vld [vmem:[%s2918 + $0x90] sm:$0xff]
      %v9134 = vld [vmem:[%s2918 + $0x98] sm:$0xff]
      %v9135 = vld [vmem:[%s2918 + $0xa8] sm:$0xff]
      %v9136 = vld [vmem:[%s2918 + $0xb0] sm:$0xff]
      %v9137 = vld [vmem:[%s2918 + $0xc0] sm:$0xff]
      %v9138 = vld [vmem:[%s2918 + $0xc8] sm:$0xff]
      %v9139 = vld [vmem:[%s2918 + $0xd8] sm:$0xff]
      %v9140 = vld [vmem:[%s2918 + $0xe0] sm:$0xff]
      %v9141 = vld [vmem:[%s2918 + $0xf0] sm:$0xff]
      %v9142 = vld [vmem:[%s2918 + $0xf8] sm:$0xff]
      %v9143 = vld [vmem:[%s2918 + $0x108] sm:$0xff]
      %v9144 = vld [vmem:[%s2918 + $0x110] sm:$0xff]
      %v9145 = vld [vmem:[%s2918 + $0x120] sm:$0xff]
      %v9146 = vld [vmem:[%s2918 + $0x128] sm:$0xff]
      %v9147 = vld [vmem:[%s2918 + $0x138] sm:$0xff]
      %v9148 = vld [vmem:[%s2918 + $0x140] sm:$0xff]
      %v9149 = vld [vmem:[%s2918 + $0x150] sm:$0xff]
      %v9150 = vld [vmem:[%s2918 + $0x158] sm:$0xff]
      %v9151 = vld [vmem:[%s2918 + $0x168] sm:$0xff]
      %v9152 = vld [vmem:[%s2918 + $0x170] sm:$0xff]
      %v9153 = vld [vmem:[%s2918 + $0x1] sm:$0xff]
      %v9154 = vld [vmem:[%s2918 + $0x9] sm:$0xff]
      %v9155 = vld [vmem:[%s2918 + $0x19] sm:$0xff]
      %v9156 = vld [vmem:[%s2918 + $0x21] sm:$0xff]
      %v9157 = vld [vmem:[%s2918 + $0x31] sm:$0xff]
      %v9158 = vld [vmem:[%s2918 + $0x39] sm:$0xff]
      %v9159 = vld [vmem:[%s2918 + $0x49] sm:$0xff]
      %v9160 = vld [vmem:[%s2918 + $0x51] sm:$0xff]
      %v9161 = vld [vmem:[%s2918 + $0x61] sm:$0xff]
      %v9162 = vld [vmem:[%s2918 + $0x69] sm:$0xff]
      %v9163 = vld [vmem:[%s2918 + $0x79] sm:$0xff]
      %v9164 = vld [vmem:[%s2918 + $0x81] sm:$0xff]
      %v9165 = vld [vmem:[%s2918 + $0x91] sm:$0xff]
      %v9166 = vld [vmem:[%s2918 + $0x99] sm:$0xff]
      %v9167 = vld [vmem:[%s2918 + $0xa9] sm:$0xff]
      %v9168 = vld [vmem:[%s2918 + $0xb1] sm:$0xff]
      %v9169 = vld [vmem:[%s2918 + $0xc1] sm:$0xff]
      %v9170 = vld [vmem:[%s2918 + $0xc9] sm:$0xff]
      %v9171 = vld [vmem:[%s2918 + $0xd9] sm:$0xff]
      %v9172 = vld [vmem:[%s2918 + $0xe1] sm:$0xff]
      %v9173 = vld [vmem:[%s2918 + $0xf1] sm:$0xff]
      %v9174 = vld [vmem:[%s2918 + $0xf9] sm:$0xff]
      %v9175 = vld [vmem:[%s2918 + $0x109] sm:$0xff]
      %v9176 = vld [vmem:[%s2918 + $0x111] sm:$0xff]
      %v9177 = vld [vmem:[%s2918 + $0x121] sm:$0xff]
      %v9178 = vld [vmem:[%s2918 + $0x129] sm:$0xff]
      %v9179 = vld [vmem:[%s2918 + $0x139] sm:$0xff]
      %v9180 = vld [vmem:[%s2918 + $0x141] sm:$0xff]
      %v9181 = vld [vmem:[%s2918 + $0x151] sm:$0xff]
      %v9182 = vld [vmem:[%s2918 + $0x159] sm:$0xff]
      %v9183 = vld [vmem:[%s2918 + $0x169] sm:$0xff]
      %v9184 = vld [vmem:[%s2918 + $0x171] sm:$0xff]
      %v9185 = vld [vmem:[%s2918 + $0x2] sm:$0xff]
      %v9186 = vld [vmem:[%s2918 + $0xa] sm:$0xff]
      %v9187 = vld [vmem:[%s2918 + $0x1a] sm:$0xff]
      %v9188 = vld [vmem:[%s2918 + $0x22] sm:$0xff]
      %v9189 = vld [vmem:[%s2918 + $0x32] sm:$0xff]
      %v9190 = vld [vmem:[%s2918 + $0x3a] sm:$0xff]
      %v9191 = vld [vmem:[%s2918 + $0x4a] sm:$0xff]
      %v9192 = vld [vmem:[%s2918 + $0x52] sm:$0xff]
      %v9193 = vld [vmem:[%s2918 + $0x62] sm:$0xff]
      %v9194 = vld [vmem:[%s2918 + $0x6a] sm:$0xff]
      %v9195 = vld [vmem:[%s2918 + $0x7a] sm:$0xff]
      %v9196 = vld [vmem:[%s2918 + $0x82] sm:$0xff]
      %v9197 = vld [vmem:[%s2918 + $0x92] sm:$0xff]
      %v9198 = vld [vmem:[%s2918 + $0x9a] sm:$0xff]
      %v9199 = vld [vmem:[%s2918 + $0xaa] sm:$0xff]
      %v9200 = vld [vmem:[%s2918 + $0xb2] sm:$0xff]
      %v9201 = vld [vmem:[%s2918 + $0xc2] sm:$0xff]
      %v9202 = vld [vmem:[%s2918 + $0xca] sm:$0xff]
      %v9203 = vld [vmem:[%s2918 + $0xda] sm:$0xff]
      %v9204 = vld [vmem:[%s2918 + $0xe2] sm:$0xff]
      %v9205 = vld [vmem:[%s2918 + $0xf2] sm:$0xff]
      %v9206 = vld [vmem:[%s2918 + $0xfa] sm:$0xff]
      %v9207 = vld [vmem:[%s2918 + $0x10a] sm:$0xff]
      %v9208 = vld [vmem:[%s2918 + $0x112] sm:$0xff]
      %v9209 = vld [vmem:[%s2918 + $0x122] sm:$0xff]
      %v9210 = vld [vmem:[%s2918 + $0x12a] sm:$0xff]
      %v9211 = vld [vmem:[%s2918 + $0x13a] sm:$0xff]
      %v9212 = vld [vmem:[%s2918 + $0x142] sm:$0xff]
      %v9213 = vld [vmem:[%s2918 + $0x152] sm:$0xff]
      %v9214 = vld [vmem:[%s2918 + $0x15a] sm:$0xff]
      %v9215 = vld [vmem:[%s2918 + $0x16a] sm:$0xff]
      %v9216 = vld [vmem:[%s2918 + $0x172] sm:$0xff]
      %9249 = vrot.lane.b32.xlu0 %v8929, 96
      %v9250 = vpop.permute.xlu0 %9249
      %9251 = vrot.lane.b32.xlu0 %v8930, 96
      %v9252 = vpop.permute.xlu0 %9251
      %9253 = vrot.lane.b32.xlu0 %v8931, 96
      %v9254 = vpop.permute.xlu0 %9253
      %9255 = vrot.lane.b32.xlu0 %v8932, 96
      %v9256 = vpop.permute.xlu0 %9255
      %9257 = vrot.lane.b32.xlu0 %v8933, 96
      %v9258 = vpop.permute.xlu0 %9257
      %9259 = vrot.lane.b32.xlu0 %v8934, 96
      %v9260 = vpop.permute.xlu0 %9259
      %9261 = vrot.lane.b32.xlu0 %v8935, 96
      %v9262 = vpop.permute.xlu0 %9261
      %9263 = vrot.lane.b32.xlu0 %v8936, 96
      %v9264 = vpop.permute.xlu0 %9263
      %9265 = vrot.lane.b32.xlu0 %v8937, 96
      %v9266 = vpop.permute.xlu0 %9265
      %9267 = vrot.lane.b32.xlu0 %v8938, 96
      %v9268 = vpop.permute.xlu0 %9267
      %9269 = vrot.lane.b32.xlu0 %v8939, 96
      %v9270 = vpop.permute.xlu0 %9269
      %9271 = vrot.lane.b32.xlu0 %v8940, 96
      %v9272 = vpop.permute.xlu0 %9271
      %9273 = vrot.lane.b32.xlu0 %v8941, 96
      %v9274 = vpop.permute.xlu0 %9273
      %9275 = vrot.lane.b32.xlu0 %v8942, 96
      %v9276 = vpop.permute.xlu0 %9275
      %9277 = vrot.lane.b32.xlu0 %v8943, 96
      %v9278 = vpop.permute.xlu0 %9277
      %9279 = vrot.lane.b32.xlu0 %v8944, 96
      %v9280 = vpop.permute.xlu0 %9279
      %9281 = vrot.lane.b32.xlu0 %v8945, 96
      %v9282 = vpop.permute.xlu0 %9281
      %9283 = vrot.lane.b32.xlu0 %v8946, 96
      %v9284 = vpop.permute.xlu0 %9283
      %9285 = vrot.lane.b32.xlu0 %v8947, 96
      %v9286 = vpop.permute.xlu0 %9285
      %9287 = vrot.lane.b32.xlu0 %v8948, 96
      %v9288 = vpop.permute.xlu0 %9287
      %9289 = vrot.lane.b32.xlu0 %v8949, 96
      %v9290 = vpop.permute.xlu0 %9289
      %9291 = vrot.lane.b32.xlu0 %v8950, 96
      %v9292 = vpop.permute.xlu0 %9291
      %9293 = vrot.lane.b32.xlu0 %v8951, 96
      %v9294 = vpop.permute.xlu0 %9293
      %9295 = vrot.lane.b32.xlu0 %v8952, 96
      %v9296 = vpop.permute.xlu0 %9295
      %9297 = vrot.lane.b32.xlu0 %v8953, 96
      %v9298 = vpop.permute.xlu0 %9297
      %9299 = vrot.lane.b32.xlu0 %v8954, 96
      %v9300 = vpop.permute.xlu0 %9299
      %9301 = vrot.lane.b32.xlu0 %v8955, 96
      %v9302 = vpop.permute.xlu0 %9301
      %9303 = vrot.lane.b32.xlu0 %v8956, 96
      %v9304 = vpop.permute.xlu0 %9303
      %9305 = vrot.lane.b32.xlu0 %v8957, 96
      %v9306 = vpop.permute.xlu0 %9305
      %9307 = vrot.lane.b32.xlu0 %v8958, 96
      %v9308 = vpop.permute.xlu0 %9307
      %9309 = vrot.lane.b32.xlu0 %v8959, 96
      %v9310 = vpop.permute.xlu0 %9309
      %9311 = vrot.lane.b32.xlu0 %v8960, 96
      %v9312 = vpop.permute.xlu0 %9311
      %9377 = vrot.lane.b32.xlu0 %v8961, 104
      %v9378 = vpop.permute.xlu0 %9377
      %9379 = vrot.lane.b32.xlu0 %v8962, 104
      %v9380 = vpop.permute.xlu0 %9379
      %9381 = vrot.lane.b32.xlu0 %v8963, 104
      %v9382 = vpop.permute.xlu0 %9381
      %9383 = vrot.lane.b32.xlu0 %v8964, 104
      %v9384 = vpop.permute.xlu0 %9383
      %9385 = vrot.lane.b32.xlu0 %v8965, 104
      %v9386 = vpop.permute.xlu0 %9385
      %9387 = vrot.lane.b32.xlu0 %v8966, 104
      %v9388 = vpop.permute.xlu0 %9387
      %9389 = vrot.lane.b32.xlu0 %v8967, 104
      %v9390 = vpop.permute.xlu0 %9389
      %9391 = vrot.lane.b32.xlu0 %v8968, 104
      %v9392 = vpop.permute.xlu0 %9391
      %9393 = vrot.lane.b32.xlu0 %v8969, 104
      %v9394 = vpop.permute.xlu0 %9393
      %9395 = vrot.lane.b32.xlu0 %v8970, 104
      %v9396 = vpop.permute.xlu0 %9395
      %9397 = vrot.lane.b32.xlu0 %v8971, 104
      %v9398 = vpop.permute.xlu0 %9397
      %9399 = vrot.lane.b32.xlu0 %v8972, 104
      %v9400 = vpop.permute.xlu0 %9399
      %9401 = vrot.lane.b32.xlu0 %v8973, 104
      %v9402 = vpop.permute.xlu0 %9401
      %9403 = vrot.lane.b32.xlu0 %v8974, 104
      %v9404 = vpop.permute.xlu0 %9403
      %9405 = vrot.lane.b32.xlu0 %v8975, 104
      %v9406 = vpop.permute.xlu0 %9405
      %9407 = vrot.lane.b32.xlu0 %v8976, 104
      %v9408 = vpop.permute.xlu0 %9407
      %9409 = vrot.lane.b32.xlu0 %v8977, 104
      %v9410 = vpop.permute.xlu0 %9409
      %9411 = vrot.lane.b32.xlu0 %v8978, 104
      %v9412 = vpop.permute.xlu0 %9411
      %9413 = vrot.lane.b32.xlu0 %v8979, 104
      %v9414 = vpop.permute.xlu0 %9413
      %9415 = vrot.lane.b32.xlu0 %v8980, 104
      %v9416 = vpop.permute.xlu0 %9415
      %9417 = vrot.lane.b32.xlu0 %v8981, 104
      %v9418 = vpop.permute.xlu0 %9417
      %9419 = vrot.lane.b32.xlu0 %v8982, 104
      %v9420 = vpop.permute.xlu0 %9419
      %9421 = vrot.lane.b32.xlu0 %v8983, 104
      %v9422 = vpop.permute.xlu0 %9421
      %9423 = vrot.lane.b32.xlu0 %v8984, 104
      %v9424 = vpop.permute.xlu0 %9423
      %9425 = vrot.lane.b32.xlu0 %v8985, 104
      %v9426 = vpop.permute.xlu0 %9425
      %9427 = vrot.lane.b32.xlu0 %v8986, 104
      %v9428 = vpop.permute.xlu0 %9427
      %9429 = vrot.lane.b32.xlu0 %v8987, 104
      %v9430 = vpop.permute.xlu0 %9429
      %9431 = vrot.lane.b32.xlu0 %v8988, 104
      %v9432 = vpop.permute.xlu0 %9431
      %9433 = vrot.lane.b32.xlu0 %v8989, 104
      %v9434 = vpop.permute.xlu0 %9433
      %9435 = vrot.lane.b32.xlu0 %v8990, 104
      %v9436 = vpop.permute.xlu0 %9435
      %9437 = vrot.lane.b32.xlu0 %v8991, 104
      %v9438 = vpop.permute.xlu0 %9437
      %9439 = vrot.lane.b32.xlu0 %v8992, 104
      %v9440 = vpop.permute.xlu0 %9439
      %9505 = vrot.lane.b32.xlu0 %v8993, 112
      %v9506 = vpop.permute.xlu0 %9505
      %9507 = vrot.lane.b32.xlu0 %v8994, 112
      %v9508 = vpop.permute.xlu0 %9507
      %9509 = vrot.lane.b32.xlu0 %v8995, 112
      %v9510 = vpop.permute.xlu0 %9509
      %9511 = vrot.lane.b32.xlu0 %v8996, 112
      %v9512 = vpop.permute.xlu0 %9511
      %9513 = vrot.lane.b32.xlu0 %v8997, 112
      %v9514 = vpop.permute.xlu0 %9513
      %9515 = vrot.lane.b32.xlu0 %v8998, 112
      %v9516 = vpop.permute.xlu0 %9515
      %9517 = vrot.lane.b32.xlu0 %v8999, 112
      %v9518 = vpop.permute.xlu0 %9517
      %9519 = vrot.lane.b32.xlu0 %v9000, 112
      %v9520 = vpop.permute.xlu0 %9519
      %9521 = vrot.lane.b32.xlu0 %v9001, 112
      %v9522 = vpop.permute.xlu0 %9521
      %9523 = vrot.lane.b32.xlu0 %v9002, 112
      %v9524 = vpop.permute.xlu0 %9523
      %9525 = vrot.lane.b32.xlu0 %v9003, 112
      %v9526 = vpop.permute.xlu0 %9525
      %9527 = vrot.lane.b32.xlu0 %v9004, 112
      %v9528 = vpop.permute.xlu0 %9527
      %9529 = vrot.lane.b32.xlu0 %v9005, 112
      %v9530 = vpop.permute.xlu0 %9529
      %9531 = vrot.lane.b32.xlu0 %v9006, 112
      %v9532 = vpop.permute.xlu0 %9531
      %9533 = vrot.lane.b32.xlu0 %v9007, 112
      %v9534 = vpop.permute.xlu0 %9533
      %9535 = vrot.lane.b32.xlu0 %v9008, 112
      %v9536 = vpop.permute.xlu0 %9535
      %9537 = vrot.lane.b32.xlu0 %v9009, 112
      %v9538 = vpop.permute.xlu0 %9537
      %9539 = vrot.lane.b32.xlu0 %v9010, 112
      %v9540 = vpop.permute.xlu0 %9539
      %9541 = vrot.lane.b32.xlu0 %v9011, 112
      %v9542 = vpop.permute.xlu0 %9541
      %9543 = vrot.lane.b32.xlu0 %v9012, 112
      %v9544 = vpop.permute.xlu0 %9543
      %9545 = vrot.lane.b32.xlu0 %v9013, 112
      %v9546 = vpop.permute.xlu0 %9545
      %9547 = vrot.lane.b32.xlu0 %v9014, 112
      %v9548 = vpop.permute.xlu0 %9547
      %9549 = vrot.lane.b32.xlu0 %v9015, 112
      %v9550 = vpop.permute.xlu0 %9549
      %9551 = vrot.lane.b32.xlu0 %v9016, 112
      %v9552 = vpop.permute.xlu0 %9551
      %9553 = vrot.lane.b32.xlu0 %v9017, 112
      %v9554 = vpop.permute.xlu0 %9553
      %9555 = vrot.lane.b32.xlu0 %v9018, 112
      %v9556 = vpop.permute.xlu0 %9555
      %9557 = vrot.lane.b32.xlu0 %v9019, 112
      %v9558 = vpop.permute.xlu0 %9557
      %9559 = vrot.lane.b32.xlu0 %v9020, 112
      %v9560 = vpop.permute.xlu0 %9559
      %9561 = vrot.lane.b32.xlu0 %v9021, 112
      %v9562 = vpop.permute.xlu0 %9561
      %9563 = vrot.lane.b32.xlu0 %v9022, 112
      %v9564 = vpop.permute.xlu0 %9563
      %9565 = vrot.lane.b32.xlu0 %v9023, 112
      %v9566 = vpop.permute.xlu0 %9565
      %9567 = vrot.lane.b32.xlu0 %v9024, 112
      %v9568 = vpop.permute.xlu0 %9567
      %9633 = vrot.lane.b32.xlu0 %v9025, 120
      %v9634 = vpop.permute.xlu0 %9633
      %9635 = vrot.lane.b32.xlu0 %v9026, 120
      %v9636 = vpop.permute.xlu0 %9635
      %9637 = vrot.lane.b32.xlu0 %v9027, 120
      %v9638 = vpop.permute.xlu0 %9637
      %9639 = vrot.lane.b32.xlu0 %v9028, 120
      %v9640 = vpop.permute.xlu0 %9639
      %9641 = vrot.lane.b32.xlu0 %v9029, 120
      %v9642 = vpop.permute.xlu0 %9641
      %9643 = vrot.lane.b32.xlu0 %v9030, 120
      %v9644 = vpop.permute.xlu0 %9643
      %9645 = vrot.lane.b32.xlu0 %v9031, 120
      %v9646 = vpop.permute.xlu0 %9645
      %9647 = vrot.lane.b32.xlu0 %v9032, 120
      %v9648 = vpop.permute.xlu0 %9647
      %9649 = vrot.lane.b32.xlu0 %v9033, 120
      %v9650 = vpop.permute.xlu0 %9649
      %9651 = vrot.lane.b32.xlu0 %v9034, 120
      %v9652 = vpop.permute.xlu0 %9651
      %9653 = vrot.lane.b32.xlu0 %v9035, 120
      %v9654 = vpop.permute.xlu0 %9653
      %9655 = vrot.lane.b32.xlu0 %v9036, 120
      %v9656 = vpop.permute.xlu0 %9655
      %9657 = vrot.lane.b32.xlu0 %v9037, 120
      %v9658 = vpop.permute.xlu0 %9657
      %9659 = vrot.lane.b32.xlu0 %v9038, 120
      %v9660 = vpop.permute.xlu0 %9659
      %9661 = vrot.lane.b32.xlu0 %v9039, 120
      %v9662 = vpop.permute.xlu0 %9661
      %9663 = vrot.lane.b32.xlu0 %v9040, 120
      %v9664 = vpop.permute.xlu0 %9663
      %9665 = vrot.lane.b32.xlu0 %v9041, 120
      %v9666 = vpop.permute.xlu0 %9665
      %9667 = vrot.lane.b32.xlu0 %v9042, 120
      %v9668 = vpop.permute.xlu0 %9667
      %9669 = vrot.lane.b32.xlu0 %v9043, 120
      %v9670 = vpop.permute.xlu0 %9669
      %9671 = vrot.lane.b32.xlu0 %v9044, 120
      %v9672 = vpop.permute.xlu0 %9671
      %9673 = vrot.lane.b32.xlu0 %v9045, 120
      %v9674 = vpop.permute.xlu0 %9673
      %9675 = vrot.lane.b32.xlu0 %v9046, 120
      %v9676 = vpop.permute.xlu0 %9675
      %9677 = vrot.lane.b32.xlu0 %v9047, 120
      %v9678 = vpop.permute.xlu0 %9677
      %9679 = vrot.lane.b32.xlu0 %v9048, 120
      %v9680 = vpop.permute.xlu0 %9679
      %9681 = vrot.lane.b32.xlu0 %v9049, 120
      %v9682 = vpop.permute.xlu0 %9681
      %9683 = vrot.lane.b32.xlu0 %v9050, 120
      %v9684 = vpop.permute.xlu0 %9683
      %9685 = vrot.lane.b32.xlu0 %v9051, 120
      %v9686 = vpop.permute.xlu0 %9685
      %9687 = vrot.lane.b32.xlu0 %v9052, 120
      %v9688 = vpop.permute.xlu0 %9687
      %9689 = vrot.lane.b32.xlu0 %v9053, 120
      %v9690 = vpop.permute.xlu0 %9689
      %9691 = vrot.lane.b32.xlu0 %v9054, 120
      %v9692 = vpop.permute.xlu0 %9691
      %9693 = vrot.lane.b32.xlu0 %v9055, 120
      %v9694 = vpop.permute.xlu0 %9693
      %9695 = vrot.lane.b32.xlu0 %v9056, 120
      %v9696 = vpop.permute.xlu0 %9695
      %9761 = vrot.lane.b32.xlu0 %v9089, 8
      %v9762 = vpop.permute.xlu0 %9761
      %9763 = vrot.lane.b32.xlu0 %v9090, 8
      %v9764 = vpop.permute.xlu0 %9763
      %9765 = vrot.lane.b32.xlu0 %v9091, 8
      %v9766 = vpop.permute.xlu0 %9765
      %9767 = vrot.lane.b32.xlu0 %v9092, 8
      %v9768 = vpop.permute.xlu0 %9767
      %9769 = vrot.lane.b32.xlu0 %v9093, 8
      %v9770 = vpop.permute.xlu0 %9769
      %9771 = vrot.lane.b32.xlu0 %v9094, 8
      %v9772 = vpop.permute.xlu0 %9771
      %9773 = vrot.lane.b32.xlu0 %v9095, 8
      %v9774 = vpop.permute.xlu0 %9773
      %9775 = vrot.lane.b32.xlu0 %v9096, 8
      %v9776 = vpop.permute.xlu0 %9775
      %9777 = vrot.lane.b32.xlu0 %v9097, 8
      %v9778 = vpop.permute.xlu0 %9777
      %9779 = vrot.lane.b32.xlu0 %v9098, 8
      %v9780 = vpop.permute.xlu0 %9779
      %9781 = vrot.lane.b32.xlu0 %v9099, 8
      %v9782 = vpop.permute.xlu0 %9781
      %9783 = vrot.lane.b32.xlu0 %v9100, 8
      %v9784 = vpop.permute.xlu0 %9783
      %9785 = vrot.lane.b32.xlu0 %v9101, 8
      %v9786 = vpop.permute.xlu0 %9785
      %9787 = vrot.lane.b32.xlu0 %v9102, 8
      %v9788 = vpop.permute.xlu0 %9787
      %9789 = vrot.lane.b32.xlu0 %v9103, 8
      %v9790 = vpop.permute.xlu0 %9789
      %9791 = vrot.lane.b32.xlu0 %v9104, 8
      %v9792 = vpop.permute.xlu0 %9791
      %9793 = vrot.lane.b32.xlu0 %v9105, 8
      %v9794 = vpop.permute.xlu0 %9793
      %9795 = vrot.lane.b32.xlu0 %v9106, 8
      %v9796 = vpop.permute.xlu0 %9795
      %9797 = vrot.lane.b32.xlu0 %v9107, 8
      %v9798 = vpop.permute.xlu0 %9797
      %9799 = vrot.lane.b32.xlu0 %v9108, 8
      %v9800 = vpop.permute.xlu0 %9799
      %9801 = vrot.lane.b32.xlu0 %v9109, 8
      %v9802 = vpop.permute.xlu0 %9801
      %9803 = vrot.lane.b32.xlu0 %v9110, 8
      %v9804 = vpop.permute.xlu0 %9803
      %9805 = vrot.lane.b32.xlu0 %v9111, 8
      %v9806 = vpop.permute.xlu0 %9805
      %9807 = vrot.lane.b32.xlu0 %v9112, 8
      %v9808 = vpop.permute.xlu0 %9807
      %9809 = vrot.lane.b32.xlu0 %v9113, 8
      %v9810 = vpop.permute.xlu0 %9809
      %9811 = vrot.lane.b32.xlu0 %v9114, 8
      %v9812 = vpop.permute.xlu0 %9811
      %9813 = vrot.lane.b32.xlu0 %v9115, 8
      %v9814 = vpop.permute.xlu0 %9813
      %9815 = vrot.lane.b32.xlu0 %v9116, 8
      %v9816 = vpop.permute.xlu0 %9815
      %9817 = vrot.lane.b32.xlu0 %v9117, 8
      %v9818 = vpop.permute.xlu0 %9817
      %9819 = vrot.lane.b32.xlu0 %v9118, 8
      %v9820 = vpop.permute.xlu0 %9819
      %9821 = vrot.lane.b32.xlu0 %v9119, 8
      %v9822 = vpop.permute.xlu0 %9821
      %9823 = vrot.lane.b32.xlu0 %v9120, 8
      %v9824 = vpop.permute.xlu0 %9823
      %9889 = vrot.lane.b32.xlu0 %v9121, 16
      %v9890 = vpop.permute.xlu0 %9889
      %9891 = vrot.lane.b32.xlu0 %v9122, 16
      %v9892 = vpop.permute.xlu0 %9891
      %9893 = vrot.lane.b32.xlu0 %v9123, 16
      %v9894 = vpop.permute.xlu0 %9893
      %9895 = vrot.lane.b32.xlu0 %v9124, 16
      %v9896 = vpop.permute.xlu0 %9895
      %9897 = vrot.lane.b32.xlu0 %v9125, 16
      %v9898 = vpop.permute.xlu0 %9897
      %9899 = vrot.lane.b32.xlu0 %v9126, 16
      %v9900 = vpop.permute.xlu0 %9899
      %9901 = vrot.lane.b32.xlu0 %v9127, 16
      %v9902 = vpop.permute.xlu0 %9901
      %9903 = vrot.lane.b32.xlu0 %v9128, 16
      %v9904 = vpop.permute.xlu0 %9903
      %9905 = vrot.lane.b32.xlu0 %v9129, 16
      %v9906 = vpop.permute.xlu0 %9905
      %9907 = vrot.lane.b32.xlu0 %v9130, 16
      %v9908 = vpop.permute.xlu0 %9907
      %9909 = vrot.lane.b32.xlu0 %v9131, 16
      %v9910 = vpop.permute.xlu0 %9909
      %9911 = vrot.lane.b32.xlu0 %v9132, 16
      %v9912 = vpop.permute.xlu0 %9911
      %9913 = vrot.lane.b32.xlu0 %v9133, 16
      %v9914 = vpop.permute.xlu0 %9913
      %9915 = vrot.lane.b32.xlu0 %v9134, 16
      %v9916 = vpop.permute.xlu0 %9915
      %9917 = vrot.lane.b32.xlu0 %v9135, 16
      %v9918 = vpop.permute.xlu0 %9917
      %9919 = vrot.lane.b32.xlu0 %v9136, 16
      %v9920 = vpop.permute.xlu0 %9919
      %9921 = vrot.lane.b32.xlu0 %v9137, 16
      %v9922 = vpop.permute.xlu0 %9921
      %9923 = vrot.lane.b32.xlu0 %v9138, 16
      %v9924 = vpop.permute.xlu0 %9923
      %9925 = vrot.lane.b32.xlu0 %v9139, 16
      %v9926 = vpop.permute.xlu0 %9925
      %9927 = vrot.lane.b32.xlu0 %v9140, 16
      %v9928 = vpop.permute.xlu0 %9927
      %9929 = vrot.lane.b32.xlu0 %v9141, 16
      %v9930 = vpop.permute.xlu0 %9929
      %9931 = vrot.lane.b32.xlu0 %v9142, 16
      %v9932 = vpop.permute.xlu0 %9931
      %9933 = vrot.lane.b32.xlu0 %v9143, 16
      %v9934 = vpop.permute.xlu0 %9933
      %9935 = vrot.lane.b32.xlu0 %v9144, 16
      %v9936 = vpop.permute.xlu0 %9935
      %9937 = vrot.lane.b32.xlu0 %v9145, 16
      %v9938 = vpop.permute.xlu0 %9937
      %9939 = vrot.lane.b32.xlu0 %v9146, 16
      %v9940 = vpop.permute.xlu0 %9939
      %9941 = vrot.lane.b32.xlu0 %v9147, 16
      %v9942 = vpop.permute.xlu0 %9941
      %9943 = vrot.lane.b32.xlu0 %v9148, 16
      %v9944 = vpop.permute.xlu0 %9943
      %9945 = vrot.lane.b32.xlu0 %v9149, 16
      %v9946 = vpop.permute.xlu0 %9945
      %9947 = vrot.lane.b32.xlu0 %v9150, 16
      %v9948 = vpop.permute.xlu0 %9947
      %9949 = vrot.lane.b32.xlu0 %v9151, 16
      %v9950 = vpop.permute.xlu0 %9949
      %9951 = vrot.lane.b32.xlu0 %v9152, 16
      %v9952 = vpop.permute.xlu0 %9951
      %10017 = vrot.lane.b32.xlu0 %v9153, 24
      %v10018 = vpop.permute.xlu0 %10017
      %10019 = vrot.lane.b32.xlu0 %v9154, 24
      %v10020 = vpop.permute.xlu0 %10019
      %10021 = vrot.lane.b32.xlu0 %v9155, 24
      %v10022 = vpop.permute.xlu0 %10021
      %10023 = vrot.lane.b32.xlu0 %v9156, 24
      %v10024 = vpop.permute.xlu0 %10023
      %10025 = vrot.lane.b32.xlu0 %v9157, 24
      %v10026 = vpop.permute.xlu0 %10025
      %10027 = vrot.lane.b32.xlu0 %v9158, 24
      %v10028 = vpop.permute.xlu0 %10027
      %10029 = vrot.lane.b32.xlu0 %v9159, 24
      %v10030 = vpop.permute.xlu0 %10029
      %10031 = vrot.lane.b32.xlu0 %v9160, 24
      %v10032 = vpop.permute.xlu0 %10031
      %10033 = vrot.lane.b32.xlu0 %v9161, 24
      %v10034 = vpop.permute.xlu0 %10033
      %10035 = vrot.lane.b32.xlu0 %v9162, 24
      %v10036 = vpop.permute.xlu0 %10035
      %10037 = vrot.lane.b32.xlu0 %v9163, 24
      %v10038 = vpop.permute.xlu0 %10037
      %10039 = vrot.lane.b32.xlu0 %v9164, 24
      %v10040 = vpop.permute.xlu0 %10039
      %10041 = vrot.lane.b32.xlu0 %v9165, 24
      %v10042 = vpop.permute.xlu0 %10041
      %10043 = vrot.lane.b32.xlu0 %v9166, 24
      %v10044 = vpop.permute.xlu0 %10043
      %10045 = vrot.lane.b32.xlu0 %v9167, 24
      %v10046 = vpop.permute.xlu0 %10045
      %10047 = vrot.lane.b32.xlu0 %v9168, 24
      %v10048 = vpop.permute.xlu0 %10047
      %10049 = vrot.lane.b32.xlu0 %v9169, 24
      %v10050 = vpop.permute.xlu0 %10049
      %10051 = vrot.lane.b32.xlu0 %v9170, 24
      %v10052 = vpop.permute.xlu0 %10051
      %10053 = vrot.lane.b32.xlu0 %v9171, 24
      %v10054 = vpop.permute.xlu0 %10053
      %10055 = vrot.lane.b32.xlu0 %v9172, 24
      %v10056 = vpop.permute.xlu0 %10055
      %10057 = vrot.lane.b32.xlu0 %v9173, 24
      %v10058 = vpop.permute.xlu0 %10057
      %10059 = vrot.lane.b32.xlu0 %v9174, 24
      %v10060 = vpop.permute.xlu0 %10059
      %10061 = vrot.lane.b32.xlu0 %v9175, 24
      %v10062 = vpop.permute.xlu0 %10061
      %10063 = vrot.lane.b32.xlu0 %v9176, 24
      %v10064 = vpop.permute.xlu0 %10063
      %10065 = vrot.lane.b32.xlu0 %v9177, 24
      %v10066 = vpop.permute.xlu0 %10065
      %10067 = vrot.lane.b32.xlu0 %v9178, 24
      %v10068 = vpop.permute.xlu0 %10067
      %10069 = vrot.lane.b32.xlu0 %v9179, 24
      %v10070 = vpop.permute.xlu0 %10069
      %10071 = vrot.lane.b32.xlu0 %v9180, 24
      %v10072 = vpop.permute.xlu0 %10071
      %10073 = vrot.lane.b32.xlu0 %v9181, 24
      %v10074 = vpop.permute.xlu0 %10073
      %10075 = vrot.lane.b32.xlu0 %v9182, 24
      %v10076 = vpop.permute.xlu0 %10075
      %10077 = vrot.lane.b32.xlu0 %v9183, 24
      %v10078 = vpop.permute.xlu0 %10077
      %10079 = vrot.lane.b32.xlu0 %v9184, 24
      %v10080 = vpop.permute.xlu0 %10079
      %10145 = vrot.lane.b32.xlu0 %v9185, 32
      %v10146 = vpop.permute.xlu0 %10145
      %10147 = vrot.lane.b32.xlu0 %v9186, 32
      %v10148 = vpop.permute.xlu0 %10147
      %10149 = vrot.lane.b32.xlu0 %v9187, 32
      %v10150 = vpop.permute.xlu0 %10149
      %10151 = vrot.lane.b32.xlu0 %v9188, 32
      %v10152 = vpop.permute.xlu0 %10151
      %10153 = vrot.lane.b32.xlu0 %v9189, 32
      %v10154 = vpop.permute.xlu0 %10153
      %10155 = vrot.lane.b32.xlu0 %v9190, 32
      %v10156 = vpop.permute.xlu0 %10155
      %10157 = vrot.lane.b32.xlu0 %v9191, 32
      %v10158 = vpop.permute.xlu0 %10157
      %10159 = vrot.lane.b32.xlu0 %v9192, 32
      %v10160 = vpop.permute.xlu0 %10159
      %10161 = vrot.lane.b32.xlu0 %v9193, 32
      %v10162 = vpop.permute.xlu0 %10161
      %10163 = vrot.lane.b32.xlu0 %v9194, 32
      %v10164 = vpop.permute.xlu0 %10163
      %10165 = vrot.lane.b32.xlu0 %v9195, 32
      %v10166 = vpop.permute.xlu0 %10165
      %10167 = vrot.lane.b32.xlu0 %v9196, 32
      %v10168 = vpop.permute.xlu0 %10167
      %10169 = vrot.lane.b32.xlu0 %v9197, 32
      %v10170 = vpop.permute.xlu0 %10169
      %10171 = vrot.lane.b32.xlu0 %v9198, 32
      %v10172 = vpop.permute.xlu0 %10171
      %10173 = vrot.lane.b32.xlu0 %v9199, 32
      %v10174 = vpop.permute.xlu0 %10173
      %10175 = vrot.lane.b32.xlu0 %v9200, 32
      %v10176 = vpop.permute.xlu0 %10175
      %10177 = vrot.lane.b32.xlu0 %v9201, 32
      %v10178 = vpop.permute.xlu0 %10177
      %10179 = vrot.lane.b32.xlu0 %v9202, 32
      %v10180 = vpop.permute.xlu0 %10179
      %10181 = vrot.lane.b32.xlu0 %v9203, 32
      %v10182 = vpop.permute.xlu0 %10181
      %10183 = vrot.lane.b32.xlu0 %v9204, 32
      %v10184 = vpop.permute.xlu0 %10183
      %10185 = vrot.lane.b32.xlu0 %v9205, 32
      %v10186 = vpop.permute.xlu0 %10185
      %10187 = vrot.lane.b32.xlu0 %v9206, 32
      %v10188 = vpop.permute.xlu0 %10187
      %10189 = vrot.lane.b32.xlu0 %v9207, 32
      %v10190 = vpop.permute.xlu0 %10189
      %10191 = vrot.lane.b32.xlu0 %v9208, 32
      %v10192 = vpop.permute.xlu0 %10191
      %10193 = vrot.lane.b32.xlu0 %v9209, 32
      %v10194 = vpop.permute.xlu0 %10193
      %10195 = vrot.lane.b32.xlu0 %v9210, 32
      %v10196 = vpop.permute.xlu0 %10195
      %10197 = vrot.lane.b32.xlu0 %v9211, 32
      %v10198 = vpop.permute.xlu0 %10197
      %10199 = vrot.lane.b32.xlu0 %v9212, 32
      %v10200 = vpop.permute.xlu0 %10199
      %10201 = vrot.lane.b32.xlu0 %v9213, 32
      %v10202 = vpop.permute.xlu0 %10201
      %10203 = vrot.lane.b32.xlu0 %v9214, 32
      %v10204 = vpop.permute.xlu0 %10203
      %10205 = vrot.lane.b32.xlu0 %v9215, 32
      %v10206 = vpop.permute.xlu0 %10205
      %10207 = vrot.lane.b32.xlu0 %v9216, 32
      %v10208 = vpop.permute.xlu0 %10207
      %v10241 = vsel %vm1963, %v9250, %v9378
      %v10242 = vsel %vm1963, %v9252, %v9380
      %v10243 = vsel %vm1963, %v9254, %v9382
      %v10244 = vsel %vm1963, %v9256, %v9384
      %v10245 = vsel %vm1963, %v9258, %v9386
      %v10246 = vsel %vm1963, %v9260, %v9388
      %v10247 = vsel %vm1963, %v9262, %v9390
      %v10248 = vsel %vm1963, %v9264, %v9392
      %v10249 = vsel %vm1963, %v9266, %v9394
      %v10250 = vsel %vm1963, %v9268, %v9396
      %v10251 = vsel %vm1963, %v9270, %v9398
      %v10252 = vsel %vm1963, %v9272, %v9400
      %v10253 = vsel %vm1963, %v9274, %v9402
      %v10254 = vsel %vm1963, %v9276, %v9404
      %v10255 = vsel %vm1963, %v9278, %v9406
      %v10256 = vsel %vm1963, %v9280, %v9408
      %v10257 = vsel %vm1963, %v9282, %v9410
      %v10258 = vsel %vm1963, %v9284, %v9412
      %v10259 = vsel %vm1963, %v9286, %v9414
      %v10260 = vsel %vm1963, %v9288, %v9416
      %v10261 = vsel %vm1963, %v9290, %v9418
      %v10262 = vsel %vm1963, %v9292, %v9420
      %v10263 = vsel %vm1963, %v9294, %v9422
      %v10264 = vsel %vm1963, %v9296, %v9424
      %v10265 = vsel %vm1963, %v9298, %v9426
      %v10266 = vsel %vm1963, %v9300, %v9428
      %v10267 = vsel %vm1963, %v9302, %v9430
      %v10268 = vsel %vm1963, %v9304, %v9432
      %v10269 = vsel %vm1963, %v9306, %v9434
      %v10270 = vsel %vm1963, %v9308, %v9436
      %v10271 = vsel %vm1963, %v9310, %v9438
      %v10272 = vsel %vm1963, %v9312, %v9440
      %v10273 = vsel %vm2029, %v10241, %v9506
      %v10274 = vsel %vm2029, %v10242, %v9508
      %v10275 = vsel %vm2029, %v10243, %v9510
      %v10276 = vsel %vm2029, %v10244, %v9512
      %v10277 = vsel %vm2029, %v10245, %v9514
      %v10278 = vsel %vm2029, %v10246, %v9516
      %v10279 = vsel %vm2029, %v10247, %v9518
      %v10280 = vsel %vm2029, %v10248, %v9520
      %v10281 = vsel %vm2029, %v10249, %v9522
      %v10282 = vsel %vm2029, %v10250, %v9524
      %v10283 = vsel %vm2029, %v10251, %v9526
      %v10284 = vsel %vm2029, %v10252, %v9528
      %v10285 = vsel %vm2029, %v10253, %v9530
      %v10286 = vsel %vm2029, %v10254, %v9532
      %v10287 = vsel %vm2029, %v10255, %v9534
      %v10288 = vsel %vm2029, %v10256, %v9536
      %v10289 = vsel %vm2029, %v10257, %v9538
      %v10290 = vsel %vm2029, %v10258, %v9540
      %v10291 = vsel %vm2029, %v10259, %v9542
      %v10292 = vsel %vm2029, %v10260, %v9544
      %v10293 = vsel %vm2029, %v10261, %v9546
      %v10294 = vsel %vm2029, %v10262, %v9548
      %v10295 = vsel %vm2029, %v10263, %v9550
      %v10296 = vsel %vm2029, %v10264, %v9552
      %v10297 = vsel %vm2029, %v10265, %v9554
      %v10298 = vsel %vm2029, %v10266, %v9556
      %v10299 = vsel %vm2029, %v10267, %v9558
      %v10300 = vsel %vm2029, %v10268, %v9560
      %v10301 = vsel %vm2029, %v10269, %v9562
      %v10302 = vsel %vm2029, %v10270, %v9564
      %v10303 = vsel %vm2029, %v10271, %v9566
      %v10304 = vsel %vm2029, %v10272, %v9568
      %v10305 = vsel %vm2095, %v10273, %v9634
      %v10306 = vsel %vm2095, %v10274, %v9636
      %v10307 = vsel %vm2095, %v10275, %v9638
      %v10308 = vsel %vm2095, %v10276, %v9640
      %v10309 = vsel %vm2095, %v10277, %v9642
      %v10310 = vsel %vm2095, %v10278, %v9644
      %v10311 = vsel %vm2095, %v10279, %v9646
      %v10312 = vsel %vm2095, %v10280, %v9648
      %v10313 = vsel %vm2095, %v10281, %v9650
      %v10314 = vsel %vm2095, %v10282, %v9652
      %v10315 = vsel %vm2095, %v10283, %v9654
      %v10316 = vsel %vm2095, %v10284, %v9656
      %v10317 = vsel %vm2095, %v10285, %v9658
      %v10318 = vsel %vm2095, %v10286, %v9660
      %v10319 = vsel %vm2095, %v10287, %v9662
      %v10320 = vsel %vm2095, %v10288, %v9664
      %v10321 = vsel %vm2095, %v10289, %v9666
      %v10322 = vsel %vm2095, %v10290, %v9668
      %v10323 = vsel %vm2095, %v10291, %v9670
      %v10324 = vsel %vm2095, %v10292, %v9672
      %v10325 = vsel %vm2095, %v10293, %v9674
      %v10326 = vsel %vm2095, %v10294, %v9676
      %v10327 = vsel %vm2095, %v10295, %v9678
      %v10328 = vsel %vm2095, %v10296, %v9680
      %v10329 = vsel %vm2095, %v10297, %v9682
      %v10330 = vsel %vm2095, %v10298, %v9684
      %v10331 = vsel %vm2095, %v10299, %v9686
      %v10332 = vsel %vm2095, %v10300, %v9688
      %v10333 = vsel %vm2095, %v10301, %v9690
      %v10334 = vsel %vm2095, %v10302, %v9692
      %v10335 = vsel %vm2095, %v10303, %v9694
      %v10336 = vsel %vm2095, %v10304, %v9696
      %v10337 = vsel %vm2161, %v10305, %v9057
      %v10338 = vsel %vm2161, %v10306, %v9058
      %v10339 = vsel %vm2161, %v10307, %v9059
      %v10340 = vsel %vm2161, %v10308, %v9060
      %v10341 = vsel %vm2161, %v10309, %v9061
      %v10342 = vsel %vm2161, %v10310, %v9062
      %v10343 = vsel %vm2161, %v10311, %v9063
      %v10344 = vsel %vm2161, %v10312, %v9064
      %v10345 = vsel %vm2161, %v10313, %v9065
      %v10346 = vsel %vm2161, %v10314, %v9066
      %v10347 = vsel %vm2161, %v10315, %v9067
      %v10348 = vsel %vm2161, %v10316, %v9068
      %v10349 = vsel %vm2161, %v10317, %v9069
      %v10350 = vsel %vm2161, %v10318, %v9070
      %v10351 = vsel %vm2161, %v10319, %v9071
      %v10352 = vsel %vm2161, %v10320, %v9072
      %v10353 = vsel %vm2161, %v10321, %v9073
      %v10354 = vsel %vm2161, %v10322, %v9074
      %v10355 = vsel %vm2161, %v10323, %v9075
      %v10356 = vsel %vm2161, %v10324, %v9076
      %v10357 = vsel %vm2161, %v10325, %v9077
      %v10358 = vsel %vm2161, %v10326, %v9078
      %v10359 = vsel %vm2161, %v10327, %v9079
      %v10360 = vsel %vm2161, %v10328, %v9080
      %v10361 = vsel %vm2161, %v10329, %v9081
      %v10362 = vsel %vm2161, %v10330, %v9082
      %v10363 = vsel %vm2161, %v10331, %v9083
      %v10364 = vsel %vm2161, %v10332, %v9084
      %v10365 = vsel %vm2161, %v10333, %v9085
      %v10366 = vsel %vm2161, %v10334, %v9086
      %v10367 = vsel %vm2161, %v10335, %v9087
      %v10368 = vsel %vm2161, %v10336, %v9088
      %v10369 = vsel %vm4167, %v10337, %v9762
      %v10370 = vsel %vm4167, %v10338, %v9764
      %v10371 = vsel %vm4167, %v10339, %v9766
      %v10372 = vsel %vm4167, %v10340, %v9768
      %v10373 = vsel %vm4167, %v10341, %v9770
      %v10374 = vsel %vm4167, %v10342, %v9772
      %v10375 = vsel %vm4167, %v10343, %v9774
      %v10376 = vsel %vm4167, %v10344, %v9776
      %v10377 = vsel %vm4167, %v10345, %v9778
      %v10378 = vsel %vm4167, %v10346, %v9780
      %v10379 = vsel %vm4167, %v10347, %v9782
      %v10380 = vsel %vm4167, %v10348, %v9784
      %v10381 = vsel %vm4167, %v10349, %v9786
      %v10382 = vsel %vm4167, %v10350, %v9788
      %v10383 = vsel %vm4167, %v10351, %v9790
      %v10384 = vsel %vm4167, %v10352, %v9792
      %v10385 = vsel %vm4167, %v10353, %v9794
      %v10386 = vsel %vm4167, %v10354, %v9796
      %v10387 = vsel %vm4167, %v10355, %v9798
      %v10388 = vsel %vm4167, %v10356, %v9800
      %v10389 = vsel %vm4167, %v10357, %v9802
      %v10390 = vsel %vm4167, %v10358, %v9804
      %v10391 = vsel %vm4167, %v10359, %v9806
      %v10392 = vsel %vm4167, %v10360, %v9808
      %v10393 = vsel %vm4167, %v10361, %v9810
      %v10394 = vsel %vm4167, %v10362, %v9812
      %v10395 = vsel %vm4167, %v10363, %v9814
      %v10396 = vsel %vm4167, %v10364, %v9816
      %v10397 = vsel %vm4167, %v10365, %v9818
      %v10398 = vsel %vm4167, %v10366, %v9820
      %v10399 = vsel %vm4167, %v10367, %v9822
      %v10400 = vsel %vm4167, %v10368, %v9824
      %v10401 = vsel %vm497, %v10369, %v9890
      %v10402 = vsel %vm497, %v10370, %v9892
      %v10403 = vsel %vm497, %v10371, %v9894
      %v10404 = vsel %vm497, %v10372, %v9896
      %v10405 = vsel %vm497, %v10373, %v9898
      %v10406 = vsel %vm497, %v10374, %v9900
      %v10407 = vsel %vm497, %v10375, %v9902
      %v10408 = vsel %vm497, %v10376, %v9904
      %v10409 = vsel %vm497, %v10377, %v9906
      %v10410 = vsel %vm497, %v10378, %v9908
      %v10411 = vsel %vm497, %v10379, %v9910
      %v10412 = vsel %vm497, %v10380, %v9912
      %v10413 = vsel %vm497, %v10381, %v9914
      %v10414 = vsel %vm497, %v10382, %v9916
      %v10415 = vsel %vm497, %v10383, %v9918
      %v10416 = vsel %vm497, %v10384, %v9920
      %v10417 = vsel %vm497, %v10385, %v9922
      %v10418 = vsel %vm497, %v10386, %v9924
      %v10419 = vsel %vm497, %v10387, %v9926
      %v10420 = vsel %vm497, %v10388, %v9928
      %v10421 = vsel %vm497, %v10389, %v9930
      %v10422 = vsel %vm497, %v10390, %v9932
      %v10423 = vsel %vm497, %v10391, %v9934
      %v10424 = vsel %vm497, %v10392, %v9936
      %v10425 = vsel %vm497, %v10393, %v9938
      %v10426 = vsel %vm497, %v10394, %v9940
      %v10427 = vsel %vm497, %v10395, %v9942
      %v10428 = vsel %vm497, %v10396, %v9944
      %v10429 = vsel %vm497, %v10397, %v9946
      %v10430 = vsel %vm497, %v10398, %v9948
      %v10431 = vsel %vm497, %v10399, %v9950
      %v10432 = vsel %vm497, %v10400, %v9952
      %v10433 = vsel %vm4232, %v10401, %v10018
      %v10434 = vsel %vm4232, %v10402, %v10020
      %v10435 = vsel %vm4232, %v10403, %v10022
      %v10436 = vsel %vm4232, %v10404, %v10024
      %v10437 = vsel %vm4232, %v10405, %v10026
      %v10438 = vsel %vm4232, %v10406, %v10028
      %v10439 = vsel %vm4232, %v10407, %v10030
      %v10440 = vsel %vm4232, %v10408, %v10032
      %v10441 = vsel %vm4232, %v10409, %v10034
      %v10442 = vsel %vm4232, %v10410, %v10036
      %v10443 = vsel %vm4232, %v10411, %v10038
      %v10444 = vsel %vm4232, %v10412, %v10040
      %v10445 = vsel %vm4232, %v10413, %v10042
      %v10446 = vsel %vm4232, %v10414, %v10044
      %v10447 = vsel %vm4232, %v10415, %v10046
      %v10448 = vsel %vm4232, %v10416, %v10048
      %v10449 = vsel %vm4232, %v10417, %v10050
      %v10450 = vsel %vm4232, %v10418, %v10052
      %v10451 = vsel %vm4232, %v10419, %v10054
      %v10452 = vsel %vm4232, %v10420, %v10056
      %v10453 = vsel %vm4232, %v10421, %v10058
      %v10454 = vsel %vm4232, %v10422, %v10060
      %v10455 = vsel %vm4232, %v10423, %v10062
      %v10456 = vsel %vm4232, %v10424, %v10064
      %v10457 = vsel %vm4232, %v10425, %v10066
      %v10458 = vsel %vm4232, %v10426, %v10068
      %v10459 = vsel %vm4232, %v10427, %v10070
      %v10460 = vsel %vm4232, %v10428, %v10072
      %v10461 = vsel %vm4232, %v10429, %v10074
      %v10462 = vsel %vm4232, %v10430, %v10076
      %v10463 = vsel %vm4232, %v10431, %v10078
      %v10464 = vsel %vm4232, %v10432, %v10080
      %v10465 = vsel %vm4265, %v10433, %v10146
      %v10466 = vsel %vm4265, %v10434, %v10148
      %v10467 = vsel %vm4265, %v10435, %v10150
      %v10468 = vsel %vm4265, %v10436, %v10152
      %v10469 = vsel %vm4265, %v10437, %v10154
      %v10470 = vsel %vm4265, %v10438, %v10156
      %v10471 = vsel %vm4265, %v10439, %v10158
      %v10472 = vsel %vm4265, %v10440, %v10160
      %v10473 = vsel %vm4265, %v10441, %v10162
      %v10474 = vsel %vm4265, %v10442, %v10164
      %v10475 = vsel %vm4265, %v10443, %v10166
      %v10476 = vsel %vm4265, %v10444, %v10168
      %v10477 = vsel %vm4265, %v10445, %v10170
      %v10478 = vsel %vm4265, %v10446, %v10172
      %v10479 = vsel %vm4265, %v10447, %v10174
      %v10480 = vsel %vm4265, %v10448, %v10176
      %v10481 = vsel %vm4265, %v10449, %v10178
      %v10482 = vsel %vm4265, %v10450, %v10180
      %v10483 = vsel %vm4265, %v10451, %v10182
      %v10484 = vsel %vm4265, %v10452, %v10184
      %v10485 = vsel %vm4265, %v10453, %v10186
      %v10486 = vsel %vm4265, %v10454, %v10188
      %v10487 = vsel %vm4265, %v10455, %v10190
      %v10488 = vsel %vm4265, %v10456, %v10192
      %v10489 = vsel %vm4265, %v10457, %v10194
      %v10490 = vsel %vm4265, %v10458, %v10196
      %v10491 = vsel %vm4265, %v10459, %v10198
      %v10492 = vsel %vm4265, %v10460, %v10200
      %v10493 = vsel %vm4265, %v10461, %v10202
      %v10494 = vsel %vm4265, %v10462, %v10204
      %v10495 = vsel %vm4265, %v10463, %v10206
      %v10496 = vsel %vm4265, %v10464, %v10208
      %v10497 = vld [vmem:[%s9] sm:$0xff]
      %v10498 = vld [vmem:[%s9 + $0x8] sm:$0xff]
      %v10499 = vld [vmem:[%s9 + $0x10] sm:$0xff]
      %v10500 = vld [vmem:[%s9 + $0x18] sm:$0xff]
      %v10501 = vld [vmem:[%s9 + $0x20] sm:$0xff]
      %v10502 = vld [vmem:[%s9 + $0x28] sm:$0xff]
      %v10503 = vld [vmem:[%s9 + $0x30] sm:$0xff]
      %v10504 = vld [vmem:[%s9 + $0x38] sm:$0xff]
      %v10505 = vld [vmem:[%s9 + $0x40] sm:$0xff]
      %v10506 = vld [vmem:[%s10] sm:$0x1]
      %v10508 = vlaneseq
      %v10509 = vshrl.u32 %v10508, 7
      %v10510 = vsub.s32 0, %v10509
      %v10511 = vrot.slane %v10506, %v10510
      %v10514 = vsel %vm4314, %v10465, 0
      %v10517 = vsel %vm4314, %v10466, 0
      %v10520 = vsel %vm4314, %v10467, 0
      %v10523 = vsel %vm4314, %v10468, 0
      %v10526 = vsel %vm4314, %v10469, 0
      %v10529 = vsel %vm4314, %v10470, 0
      %v10532 = vsel %vm4314, %v10471, 0
      %v10535 = vsel %vm4314, %v10472, 0
      %v10538 = vsel %vm4314, %v10473, 0
      %v10541 = vsel %vm4314, %v10474, 0
      %v10544 = vsel %vm4314, %v10475, 0
      %v10547 = vsel %vm4314, %v10476, 0
      %v10550 = vsel %vm4314, %v10477, 0
      %v10553 = vsel %vm4314, %v10478, 0
      %v10556 = vsel %vm4314, %v10479, 0
      %v10559 = vsel %vm4314, %v10480, 0
      %v10562 = vsel %vm4314, %v10481, 0
      %v10565 = vsel %vm4314, %v10482, 0
      %v10568 = vsel %vm4314, %v10483, 0
      %v10571 = vsel %vm4314, %v10484, 0
      %v10574 = vsel %vm4314, %v10485, 0
      %v10577 = vsel %vm4314, %v10486, 0
      %v10580 = vsel %vm4314, %v10487, 0
      %v10583 = vsel %vm4314, %v10488, 0
      %v10586 = vsel %vm4314, %v10489, 0
      %v10589 = vsel %vm4314, %v10490, 0
      %v10592 = vsel %vm4314, %v10491, 0
      %v10595 = vsel %vm4314, %v10492, 0
      %v10598 = vsel %vm4314, %v10493, 0
      %v10601 = vsel %vm4314, %v10494, 0
      %v10604 = vsel %vm4314, %v10495, 0
      %v10607 = vsel %vm4314, %v10496, 0
      %10609 = vmatprep.subr.mxu0 0.0
      %10610 = vmatpush1.msra.mxu0 %v10497
      %10611 = vmatprep.subr.mxu0 0.0
      %10612 = vmatpush1.msra.mxu0 %v10498
      %10613 = vmatprep.subr.mxu0 0.0
      %10614 = vmatpush1.msra.mxu0 %v10499
      %10615 = vmatprep.subr.mxu0 0.0
      %10616 = vmatpush1.msra.mxu0 %v10500
      %10617 = vmatprep.subr.mxu0 0.0
      %10618 = vmatpush1.msra.mxu0 %v10501
      %10619 = vmatprep.subr.mxu0 0.0
      %10620 = vmatpush1.msra.mxu0 %v10502
      %10621 = vmatprep.subr.mxu0 0.0
      %10622 = vmatpush1.msra.mxu0 %v10503
      %10623 = vmatprep.subr.mxu0 0.0
      %10624 = vmatpush1.msra.mxu0 %v10504
      %10625 = vmatprep.subr.mxu0 0.0
      %10626 = vmatpush1.msra.mxu0 %v10505
      %10627 = vmatprep.subr.mxu0 0.0
      %10628 = vmatpush1.msra.mxu0 0.0
      %10629 = vmatprep.subr.mxu0 0.0
      %10630 = vmatpush1.msra.mxu0 0.0
      %10631 = vmatprep.subr.mxu0 0.0
      %10632 = vmatpush1.msra.mxu0 0.0
      %10633 = vmatprep.subr.mxu0 0.0
      %10634 = vmatpush1.msra.mxu0 0.0
      %10635 = vmatprep.subr.mxu0 0.0
      %10636 = vmatpush1.msra.mxu0 0.0
      %10637 = vmatprep.subr.mxu0 0.0
      %10638 = vmatpush1.msra.mxu0 0.0
      %10639 = vmatprep.subr.mxu0 0.0
      %10640 = vmatpush1.msra.mxu0 0.0
      %10641 = vmatprep.subr.mxu0 0.0
      %10642 = vmatpush1.msra.mxu0 0.0
      %10643 = vmatprep.subr.mxu0 0.0
      %10644 = vmatpush1.msra.mxu0 0.0
      %10645 = vmatprep.subr.mxu0 0.0
      %10646 = vmatpush1.msra.mxu0 0.0
      %10647 = vmatprep.subr.mxu0 0.0
      %10648 = vmatpush1.msra.mxu0 0.0
      %10649 = vmatprep.subr.mxu0 0.0
      %10650 = vmatpush1.msra.mxu0 0.0
      %10651 = vmatprep.subr.mxu0 0.0
      %10652 = vmatpush1.msra.mxu0 0.0
      %10653 = vmatprep.subr.mxu0 0.0
      %10654 = vmatpush1.msra.mxu0 0.0
      %10655 = vmatprep.subr.mxu0 0.0
      %10656 = vmatpush1.msra.mxu0 0.0
      %10657 = vmatprep.subr.mxu0 0.0
      %10658 = vmatpush1.msra.mxu0 0.0
      %10659 = vmatprep.subr.mxu0 0.0
      %10660 = vmatpush1.msra.mxu0 0.0
      %10661 = vmatprep.subr.mxu0 0.0
      %10662 = vmatpush1.msra.mxu0 0.0
      %10663 = vmatprep.subr.mxu0 0.0
      %10664 = vmatpush1.msra.mxu0 0.0
      %10665 = vmatprep.subr.mxu0 0.0
      %10666 = vmatpush1.msra.mxu0 0.0
      %10667 = vmatprep.subr.mxu0 0.0
      %10668 = vmatpush1.msra.mxu0 0.0
      %10669 = vmatprep.subr.mxu0 0.0
      %10670 = vmatpush1.msra.mxu0 0.0
      %10671 = vmatprep.subr.mxu0 0.0
      %10672 = vmatpush1.msra.mxu0 0.0
      %10673 = vmatprep.mubr.f32.mxu0 0.0
      %10674 = vmatmul.mubr.f32.gmra.mrb[0].mxu0 %v10514
      %v10675 = vpop.f32.mrb[0].mxu0
      %v10676 = vadd.f32 %v10511, %v10675
      %v10677 = vpop.f32.mrb[0].mxu0
      %10678 = vmatprep.mubr.f32.mxu0 0.0
      %10679 = vmatmul.mubr.f32.gmra.mrb[0].mxu0 %v10517
      %v10680 = vpop.f32.mrb[0].mxu0
      %v10681 = vadd.f32 %v10511, %v10680
      %v10682 = vpop.f32.mrb[0].mxu0
      %10683 = vmatprep.mubr.f32.mxu0 0.0
      %10684 = vmatmul.mubr.f32.gmra.mrb[0].mxu0 %v10520
      %v10685 = vpop.f32.mrb[0].mxu0
      %v10686 = vadd.f32 %v10511, %v10685
      %v10687 = vpop.f32.mrb[0].mxu0
      %10688 = vmatprep.mubr.f32.mxu0 0.0
      %10689 = vmatmul.mubr.f32.gmra.mrb[0].mxu0 %v10523
      %v10690 = vpop.f32.mrb[0].mxu0
      %v10691 = vadd.f32 %v10511, %v10690
      %v10692 = vpop.f32.mrb[0].mxu0
      %10693 = vmatprep.mubr.f32.mxu0 0.0
      %10694 = vmatmul.mubr.f32.gmra.mrb[0].mxu0 %v10526
      %v10695 = vpop.f32.mrb[0].mxu0
      %v10696 = vadd.f32 %v10511, %v10695
      %v10697 = vpop.f32.mrb[0].mxu0
      %10698 = vmatprep.mubr.f32.mxu0 0.0
      %10699 = vmatmul.mubr.f32.gmra.mrb[0].mxu0 %v10529
      %v10700 = vpop.f32.mrb[0].mxu0
      %v10701 = vadd.f32 %v10511, %v10700
      %v10702 = vpop.f32.mrb[0].mxu0
      %10703 = vmatprep.mubr.f32.mxu0 0.0
      %10704 = vmatmul.mubr.f32.gmra.mrb[0].mxu0 %v10532
      %v10705 = vpop.f32.mrb[0].mxu0
      %v10706 = vadd.f32 %v10511, %v10705
      %v10707 = vpop.f32.mrb[0].mxu0
      %10708 = vmatprep.mubr.f32.mxu0 0.0
      %10709 = vmatmul.mubr.f32.gmra.mrb[0].mxu0 %v10535
      %v10710 = vpop.f32.mrb[0].mxu0
      %v10711 = vadd.f32 %v10511, %v10710
      %v10712 = vpop.f32.mrb[0].mxu0
      %10713 = vmatprep.mubr.f32.mxu0 0.0
      %10714 = vmatmul.mubr.f32.gmra.mrb[0].mxu0 %v10538
      %v10715 = vpop.f32.mrb[0].mxu0
      %v10716 = vadd.f32 %v10511, %v10715
      %v10717 = vpop.f32.mrb[0].mxu0
      %10718 = vmatprep.mubr.f32.mxu0 0.0
      %10719 = vmatmul.mubr.f32.gmra.mrb[0].mxu0 %v10541
      %v10720 = vpop.f32.mrb[0].mxu0
      %v10721 = vadd.f32 %v10511, %v10720
      %v10722 = vpop.f32.mrb[0].mxu0
      %10723 = vmatprep.mubr.f32.mxu0 0.0
      %10724 = vmatmul.mubr.f32.gmra.mrb[0].mxu0 %v10544
      %v10725 = vpop.f32.mrb[0].mxu0
      %v10726 = vadd.f32 %v10511, %v10725
      %v10727 = vpop.f32.mrb[0].mxu0
      %10728 = vmatprep.mubr.f32.mxu0 0.0
      %10729 = vmatmul.mubr.f32.gmra.mrb[0].mxu0 %v10547
      %v10730 = vpop.f32.mrb[0].mxu0
      %v10731 = vadd.f32 %v10511, %v10730
      %v10732 = vpop.f32.mrb[0].mxu0
      %10733 = vmatprep.mubr.f32.mxu0 0.0
      %10734 = vmatmul.mubr.f32.gmra.mrb[0].mxu0 %v10550
      %v10735 = vpop.f32.mrb[0].mxu0
      %v10736 = vadd.f32 %v10511, %v10735
      %v10737 = vpop.f32.mrb[0].mxu0
      %10738 = vmatprep.mubr.f32.mxu0 0.0
      %10739 = vmatmul.mubr.f32.gmra.mrb[0].mxu0 %v10553
      %v10740 = vpop.f32.mrb[0].mxu0
      %v10741 = vadd.f32 %v10511, %v10740
      %v10742 = vpop.f32.mrb[0].mxu0
      %10743 = vmatprep.mubr.f32.mxu0 0.0
      %10744 = vmatmul.mubr.f32.gmra.mrb[0].mxu0 %v10556
      %v10745 = vpop.f32.mrb[0].mxu0
      %v10746 = vadd.f32 %v10511, %v10745
      %v10747 = vpop.f32.mrb[0].mxu0
      %10748 = vmatprep.mubr.f32.mxu0 0.0
      %10749 = vmatmul.mubr.f32.gmra.mrb[0].mxu0 %v10559
      %v10750 = vpop.f32.mrb[0].mxu0
      %v10751 = vadd.f32 %v10511, %v10750
      %v10752 = vpop.f32.mrb[0].mxu0
      %10753 = vmatprep.mubr.f32.mxu0 0.0
      %10754 = vmatmul.mubr.f32.gmra.mrb[0].mxu0 %v10562
      %v10755 = vpop.f32.mrb[0].mxu0
      %v10756 = vadd.f32 %v10511, %v10755
      %v10757 = vpop.f32.mrb[0].mxu0
      %10758 = vmatprep.mubr.f32.mxu0 0.0
      %10759 = vmatmul.mubr.f32.gmra.mrb[0].mxu0 %v10565
      %v10760 = vpop.f32.mrb[0].mxu0
      %v10761 = vadd.f32 %v10511, %v10760
      %v10762 = vpop.f32.mrb[0].mxu0
      %10763 = vmatprep.mubr.f32.mxu0 0.0
      %10764 = vmatmul.mubr.f32.gmra.mrb[0].mxu0 %v10568
      %v10765 = vpop.f32.mrb[0].mxu0
      %v10766 = vadd.f32 %v10511, %v10765
      %v10767 = vpop.f32.mrb[0].mxu0
      %10768 = vmatprep.mubr.f32.mxu0 0.0
      %10769 = vmatmul.mubr.f32.gmra.mrb[0].mxu0 %v10571
      %v10770 = vpop.f32.mrb[0].mxu0
      %v10771 = vadd.f32 %v10511, %v10770
      %v10772 = vpop.f32.mrb[0].mxu0
      %10773 = vmatprep.mubr.f32.mxu0 0.0
      %10774 = vmatmul.mubr.f32.gmra.mrb[0].mxu0 %v10574
      %v10775 = vpop.f32.mrb[0].mxu0
      %v10776 = vadd.f32 %v10511, %v10775
      %v10777 = vpop.f32.mrb[0].mxu0
      %10778 = vmatprep.mubr.f32.mxu0 0.0
      %10779 = vmatmul.mubr.f32.gmra.mrb[0].mxu0 %v10577
      %v10780 = vpop.f32.mrb[0].mxu0
      %v10781 = vadd.f32 %v10511, %v10780
      %v10782 = vpop.f32.mrb[0].mxu0
      %10783 = vmatprep.mubr.f32.mxu0 0.0
      %10784 = vmatmul.mubr.f32.gmra.mrb[0].mxu0 %v10580
      %v10785 = vpop.f32.mrb[0].mxu0
      %v10786 = vadd.f32 %v10511, %v10785
      %v10787 = vpop.f32.mrb[0].mxu0
      %10788 = vmatprep.mubr.f32.mxu0 0.0
      %10789 = vmatmul.mubr.f32.gmra.mrb[0].mxu0 %v10583
      %v10790 = vpop.f32.mrb[0].mxu0
      %v10791 = vadd.f32 %v10511, %v10790
      %v10792 = vpop.f32.mrb[0].mxu0
      %10793 = vmatprep.mubr.f32.mxu0 0.0
      %10794 = vmatmul.mubr.f32.gmra.mrb[0].mxu0 %v10586
      %v10795 = vpop.f32.mrb[0].mxu0
      %v10796 = vadd.f32 %v10511, %v10795
      %v10797 = vpop.f32.mrb[0].mxu0
      %10798 = vmatprep.mubr.f32.mxu0 0.0
      %10799 = vmatmul.mubr.f32.gmra.mrb[0].mxu0 %v10589
      %v10800 = vpop.f32.mrb[0].mxu0
      %v10801 = vadd.f32 %v10511, %v10800
      %v10802 = vpop.f32.mrb[0].mxu0
      %10803 = vmatprep.mubr.f32.mxu0 0.0
      %10804 = vmatmul.mubr.f32.gmra.mrb[0].mxu0 %v10592
      %v10805 = vpop.f32.mrb[0].mxu0
      %v10806 = vadd.f32 %v10511, %v10805
      %v10807 = vpop.f32.mrb[0].mxu0
      %10808 = vmatprep.mubr.f32.mxu0 0.0
      %10809 = vmatmul.mubr.f32.gmra.mrb[0].mxu0 %v10595
      %v10810 = vpop.f32.mrb[0].mxu0
      %v10811 = vadd.f32 %v10511, %v10810
      %v10812 = vpop.f32.mrb[0].mxu0
      %10813 = vmatprep.mubr.f32.mxu0 0.0
      %10814 = vmatmul.mubr.f32.gmra.mrb[0].mxu0 %v10598
      %v10815 = vpop.f32.mrb[0].mxu0
      %v10816 = vadd.f32 %v10511, %v10815
      %v10817 = vpop.f32.mrb[0].mxu0
      %10818 = vmatprep.mubr.f32.mxu0 0.0
      %10819 = vmatmul.mubr.f32.gmra.mrb[0].mxu0 %v10601
      %v10820 = vpop.f32.mrb[0].mxu0
      %v10821 = vadd.f32 %v10511, %v10820
      %v10822 = vpop.f32.mrb[0].mxu0
      %10823 = vmatprep.mubr.f32.mxu0 0.0
      %10824 = vmatmul.mubr.f32.gmra.mrb[0].mxu0 %v10604
      %v10825 = vpop.f32.mrb[0].mxu0
      %v10826 = vadd.f32 %v10511, %v10825
      %v10827 = vpop.f32.mrb[0].mxu0
      %10828 = vmatprep.mubr.f32.mxu0 0.0
      %10829 = vmatmul.mubr.f32.gmra.mrb[0].mxu0 %v10607
      %v10830 = vpop.f32.mrb[0].mxu0
      %v10831 = vadd.f32 %v10511, %v10830
      %v10832 = vpop.f32.mrb[0].mxu0
      %10833 = vdwg.mxu0
      %10866 = vrot.lane.b32.xlu0 %v10676, 40
      %v10867 = vpop.permute.xlu0 %10866
      %10868 = vrot.lane.b32.xlu0 %v10681, 40
      %v10869 = vpop.permute.xlu0 %10868
      %10870 = vrot.lane.b32.xlu0 %v10686, 40
      %v10871 = vpop.permute.xlu0 %10870
      %10872 = vrot.lane.b32.xlu0 %v10691, 40
      %v10873 = vpop.permute.xlu0 %10872
      %10874 = vrot.lane.b32.xlu0 %v10696, 40
      %v10875 = vpop.permute.xlu0 %10874
      %10876 = vrot.lane.b32.xlu0 %v10701, 40
      %v10877 = vpop.permute.xlu0 %10876
      %10878 = vrot.lane.b32.xlu0 %v10706, 40
      %v10879 = vpop.permute.xlu0 %10878
      %10880 = vrot.lane.b32.xlu0 %v10711, 40
      %v10881 = vpop.permute.xlu0 %10880
      %10882 = vrot.lane.b32.xlu0 %v10716, 40
      %v10883 = vpop.permute.xlu0 %10882
      %10884 = vrot.lane.b32.xlu0 %v10721, 40
      %v10885 = vpop.permute.xlu0 %10884
      %10886 = vrot.lane.b32.xlu0 %v10726, 40
      %v10887 = vpop.permute.xlu0 %10886
      %10888 = vrot.lane.b32.xlu0 %v10731, 40
      %v10889 = vpop.permute.xlu0 %10888
      %10890 = vrot.lane.b32.xlu0 %v10736, 40
      %v10891 = vpop.permute.xlu0 %10890
      %10892 = vrot.lane.b32.xlu0 %v10741, 40
      %v10893 = vpop.permute.xlu0 %10892
      %10894 = vrot.lane.b32.xlu0 %v10746, 40
      %v10895 = vpop.permute.xlu0 %10894
      %10896 = vrot.lane.b32.xlu0 %v10751, 40
      %v10897 = vpop.permute.xlu0 %10896
      %10898 = vrot.lane.b32.xlu0 %v10756, 40
      %v10899 = vpop.permute.xlu0 %10898
      %10900 = vrot.lane.b32.xlu0 %v10761, 40
      %v10901 = vpop.permute.xlu0 %10900
      %10902 = vrot.lane.b32.xlu0 %v10766, 40
      %v10903 = vpop.permute.xlu0 %10902
      %10904 = vrot.lane.b32.xlu0 %v10771, 40
      %v10905 = vpop.permute.xlu0 %10904
      %10906 = vrot.lane.b32.xlu0 %v10776, 40
      %v10907 = vpop.permute.xlu0 %10906
      %10908 = vrot.lane.b32.xlu0 %v10781, 40
      %v10909 = vpop.permute.xlu0 %10908
      %10910 = vrot.lane.b32.xlu0 %v10786, 40
      %v10911 = vpop.permute.xlu0 %10910
      %10912 = vrot.lane.b32.xlu0 %v10791, 40
      %v10913 = vpop.permute.xlu0 %10912
      %10914 = vrot.lane.b32.xlu0 %v10796, 40
      %v10915 = vpop.permute.xlu0 %10914
      %10916 = vrot.lane.b32.xlu0 %v10801, 40
      %v10917 = vpop.permute.xlu0 %10916
      %10918 = vrot.lane.b32.xlu0 %v10806, 40
      %v10919 = vpop.permute.xlu0 %10918
      %10920 = vrot.lane.b32.xlu0 %v10811, 40
      %v10921 = vpop.permute.xlu0 %10920
      %10922 = vrot.lane.b32.xlu0 %v10816, 40
      %v10923 = vpop.permute.xlu0 %10922
      %10924 = vrot.lane.b32.xlu0 %v10821, 40
      %v10925 = vpop.permute.xlu0 %10924
      %10926 = vrot.lane.b32.xlu0 %v10826, 40
      %v10927 = vpop.permute.xlu0 %10926
      %10928 = vrot.lane.b32.xlu0 %v10831, 40
      %v10929 = vpop.permute.xlu0 %10928
      %vm10962 = vcmask 392512
      %10963 = vst.msk [vmem:[%s2532 + $0x1] sm:$0xff] %vm10962, %v10867
      %10964 = vst.msk [vmem:[%s2532 + $0x9] sm:$0xff] %vm10962, %v10869
      %10965 = vst.msk [vmem:[%s2532 + $0x19] sm:$0xff] %vm10962, %v10871
      %10966 = vst.msk [vmem:[%s2532 + $0x21] sm:$0xff] %vm10962, %v10873
      %10967 = vst.msk [vmem:[%s2532 + $0x31] sm:$0xff] %vm10962, %v10875
      %10968 = vst.msk [vmem:[%s2532 + $0x39] sm:$0xff] %vm10962, %v10877
      %10969 = vst.msk [vmem:[%s2532 + $0x49] sm:$0xff] %vm10962, %v10879
      %10970 = vst.msk [vmem:[%s2532 + $0x51] sm:$0xff] %vm10962, %v10881
      %10971 = vst.msk [vmem:[%s2532 + $0x61] sm:$0xff] %vm10962, %v10883
      %10972 = vst.msk [vmem:[%s2532 + $0x69] sm:$0xff] %vm10962, %v10885
      %10973 = vst.msk [vmem:[%s2532 + $0x79] sm:$0xff] %vm10962, %v10887
      %10974 = vst.msk [vmem:[%s2532 + $0x81] sm:$0xff] %vm10962, %v10889
      %10975 = vst.msk [vmem:[%s2532 + $0x91] sm:$0xff] %vm10962, %v10891
      %10976 = vst.msk [vmem:[%s2532 + $0x99] sm:$0xff] %vm10962, %v10893
      %10977 = vst.msk [vmem:[%s2532 + $0xa9] sm:$0xff] %vm10962, %v10895
      %10978 = vst.msk [vmem:[%s2532 + $0xb1] sm:$0xff] %vm10962, %v10897
      %10979 = vst.msk [vmem:[%s2532 + $0xc1] sm:$0xff] %vm10962, %v10899
      %10980 = vst.msk [vmem:[%s2532 + $0xc9] sm:$0xff] %vm10962, %v10901
      %10981 = vst.msk [vmem:[%s2532 + $0xd9] sm:$0xff] %vm10962, %v10903
      %10982 = vst.msk [vmem:[%s2532 + $0xe1] sm:$0xff] %vm10962, %v10905
      %10983 = vst.msk [vmem:[%s2532 + $0xf1] sm:$0xff] %vm10962, %v10907
      %10984 = vst.msk [vmem:[%s2532 + $0xf9] sm:$0xff] %vm10962, %v10909
      %10985 = vst.msk [vmem:[%s2532 + $0x109] sm:$0xff] %vm10962, %v10911
      %10986 = vst.msk [vmem:[%s2532 + $0x111] sm:$0xff] %vm10962, %v10913
      %10987 = vst.msk [vmem:[%s2532 + $0x121] sm:$0xff] %vm10962, %v10915
      %10988 = vst.msk [vmem:[%s2532 + $0x129] sm:$0xff] %vm10962, %v10917
      %10989 = vst.msk [vmem:[%s2532 + $0x139] sm:$0xff] %vm10962, %v10919
      %10990 = vst.msk [vmem:[%s2532 + $0x141] sm:$0xff] %vm10962, %v10921
      %10991 = vst.msk [vmem:[%s2532 + $0x151] sm:$0xff] %vm10962, %v10923
      %10992 = vst.msk [vmem:[%s2532 + $0x159] sm:$0xff] %vm10962, %v10925
      %10993 = vst.msk [vmem:[%s2532 + $0x169] sm:$0xff] %vm10962, %v10927
      %10994 = vst.msk [vmem:[%s2532 + $0x171] sm:$0xff] %vm10962, %v10929
      %v10995 = vld [vmem:[#allocation3] sm:$0xff]
      %v10996 = vld [vmem:[#allocation3 + $0x8] sm:$0xff]
      %v10997 = vld [vmem:[#allocation3 + $0x18] sm:$0xff]
      %v10998 = vld [vmem:[#allocation3 + $0x20] sm:$0xff]
      %v10999 = vld [vmem:[#allocation3 + $0x30] sm:$0xff]
      %v11000 = vld [vmem:[#allocation3 + $0x38] sm:$0xff]
      %v11001 = vld [vmem:[#allocation3 + $0x48] sm:$0xff]
      %v11002 = vld [vmem:[#allocation3 + $0x50] sm:$0xff]
      %v11003 = vld [vmem:[#allocation3 + $0x60] sm:$0xff]
      %v11004 = vld [vmem:[#allocation3 + $0x68] sm:$0xff]
      %v11005 = vld [vmem:[#allocation3 + $0x78] sm:$0xff]
      %v11006 = vld [vmem:[#allocation3 + $0x80] sm:$0xff]
      %v11007 = vld [vmem:[#allocation3 + $0x90] sm:$0xff]
      %v11008 = vld [vmem:[#allocation3 + $0x98] sm:$0xff]
      %v11009 = vld [vmem:[#allocation3 + $0xa8] sm:$0xff]
      %v11010 = vld [vmem:[#allocation3 + $0xb0] sm:$0xff]
      %v11011 = vld [vmem:[#allocation3 + $0xc0] sm:$0xff]
      %v11012 = vld [vmem:[#allocation3 + $0xc8] sm:$0xff]
      %v11013 = vld [vmem:[#allocation3 + $0xd8] sm:$0xff]
      %v11014 = vld [vmem:[#allocation3 + $0xe0] sm:$0xff]
      %v11015 = vld [vmem:[#allocation3 + $0xf0] sm:$0xff]
      %v11016 = vld [vmem:[#allocation3 + $0xf8] sm:$0xff]
      %v11017 = vld [vmem:[#allocation3 + $0x108] sm:$0xff]
      %v11018 = vld [vmem:[#allocation3 + $0x110] sm:$0xff]
      %v11019 = vld [vmem:[#allocation3 + $0x120] sm:$0xff]
      %v11020 = vld [vmem:[#allocation3 + $0x128] sm:$0xff]
      %v11021 = vld [vmem:[#allocation3 + $0x138] sm:$0xff]
      %v11022 = vld [vmem:[#allocation3 + $0x140] sm:$0xff]
      %v11023 = vld [vmem:[#allocation3 + $0x150] sm:$0xff]
      %v11024 = vld [vmem:[#allocation3 + $0x158] sm:$0xff]
      %v11025 = vld [vmem:[#allocation3 + $0x168] sm:$0xff]
      %v11026 = vld [vmem:[#allocation3 + $0x170] sm:$0xff]
      %v11027 = vld [vmem:[#allocation3 + $0x1] sm:$0xff]
      %v11028 = vld [vmem:[#allocation3 + $0x9] sm:$0xff]
      %v11029 = vld [vmem:[#allocation3 + $0x19] sm:$0xff]
      %v11030 = vld [vmem:[#allocation3 + $0x21] sm:$0xff]
      %v11031 = vld [vmem:[#allocation3 + $0x31] sm:$0xff]
      %v11032 = vld [vmem:[#allocation3 + $0x39] sm:$0xff]
      %v11033 = vld [vmem:[#allocation3 + $0x49] sm:$0xff]
      %v11034 = vld [vmem:[#allocation3 + $0x51] sm:$0xff]
      %v11035 = vld [vmem:[#allocation3 + $0x61] sm:$0xff]
      %v11036 = vld [vmem:[#allocation3 + $0x69] sm:$0xff]
      %v11037 = vld [vmem:[#allocation3 + $0x79] sm:$0xff]
      %v11038 = vld [vmem:[#allocation3 + $0x81] sm:$0xff]
      %v11039 = vld [vmem:[#allocation3 + $0x91] sm:$0xff]
      %v11040 = vld [vmem:[#allocation3 + $0x99] sm:$0xff]
      %v11041 = vld [vmem:[#allocation3 + $0xa9] sm:$0xff]
      %v11042 = vld [vmem:[#allocation3 + $0xb1] sm:$0xff]
      %v11043 = vld [vmem:[#allocation3 + $0xc1] sm:$0xff]
      %v11044 = vld [vmem:[#allocation3 + $0xc9] sm:$0xff]
      %v11045 = vld [vmem:[#allocation3 + $0xd9] sm:$0xff]
      %v11046 = vld [vmem:[#allocation3 + $0xe1] sm:$0xff]
      %v11047 = vld [vmem:[#allocation3 + $0xf1] sm:$0xff]
      %v11048 = vld [vmem:[#allocation3 + $0xf9] sm:$0xff]
      %v11049 = vld [vmem:[#allocation3 + $0x109] sm:$0xff]
      %v11050 = vld [vmem:[#allocation3 + $0x111] sm:$0xff]
      %v11051 = vld [vmem:[#allocation3 + $0x121] sm:$0xff]
      %v11052 = vld [vmem:[#allocation3 + $0x129] sm:$0xff]
      %v11053 = vld [vmem:[#allocation3 + $0x139] sm:$0xff]
      %v11054 = vld [vmem:[#allocation3 + $0x141] sm:$0xff]
      %v11055 = vld [vmem:[#allocation3 + $0x151] sm:$0xff]
      %v11056 = vld [vmem:[#allocation3 + $0x159] sm:$0xff]
      %v11057 = vld [vmem:[#allocation3 + $0x169] sm:$0xff]
      %v11058 = vld [vmem:[#allocation3 + $0x171] sm:$0xff]
      %v11059 = vld [vmem:[#allocation3 + $0x2] sm:$0xff]
      %v11060 = vld [vmem:[#allocation3 + $0xa] sm:$0xff]
      %v11061 = vld [vmem:[#allocation3 + $0x1a] sm:$0xff]
      %v11062 = vld [vmem:[#allocation3 + $0x22] sm:$0xff]
      %v11063 = vld [vmem:[#allocation3 + $0x32] sm:$0xff]
      %v11064 = vld [vmem:[#allocation3 + $0x3a] sm:$0xff]
      %v11065 = vld [vmem:[#allocation3 + $0x4a] sm:$0xff]
      %v11066 = vld [vmem:[#allocation3 + $0x52] sm:$0xff]
      %v11067 = vld [vmem:[#allocation3 + $0x62] sm:$0xff]
      %v11068 = vld [vmem:[#allocation3 + $0x6a] sm:$0xff]
      %v11069 = vld [vmem:[#allocation3 + $0x7a] sm:$0xff]
      %v11070 = vld [vmem:[#allocation3 + $0x82] sm:$0xff]
      %v11071 = vld [vmem:[#allocation3 + $0x92] sm:$0xff]
      %v11072 = vld [vmem:[#allocation3 + $0x9a] sm:$0xff]
      %v11073 = vld [vmem:[#allocation3 + $0xaa] sm:$0xff]
      %v11074 = vld [vmem:[#allocation3 + $0xb2] sm:$0xff]
      %v11075 = vld [vmem:[#allocation3 + $0xc2] sm:$0xff]
      %v11076 = vld [vmem:[#allocation3 + $0xca] sm:$0xff]
      %v11077 = vld [vmem:[#allocation3 + $0xda] sm:$0xff]
      %v11078 = vld [vmem:[#allocation3 + $0xe2] sm:$0xff]
      %v11079 = vld [vmem:[#allocation3 + $0xf2] sm:$0xff]
      %v11080 = vld [vmem:[#allocation3 + $0xfa] sm:$0xff]
      %v11081 = vld [vmem:[#allocation3 + $0x10a] sm:$0xff]
      %v11082 = vld [vmem:[#allocation3 + $0x112] sm:$0xff]
      %v11083 = vld [vmem:[#allocation3 + $0x122] sm:$0xff]
      %v11084 = vld [vmem:[#allocation3 + $0x12a] sm:$0xff]
      %v11085 = vld [vmem:[#allocation3 + $0x13a] sm:$0xff]
      %v11086 = vld [vmem:[#allocation3 + $0x142] sm:$0xff]
      %v11087 = vld [vmem:[#allocation3 + $0x152] sm:$0xff]
      %v11088 = vld [vmem:[#allocation3 + $0x15a] sm:$0xff]
      %v11089 = vld [vmem:[#allocation3 + $0x16a] sm:$0xff]
      %v11090 = vld [vmem:[#allocation3 + $0x172] sm:$0xff]
      %v11091 = vld [vmem:[%s2532] sm:$0xff]
      %v11092 = vld [vmem:[%s2532 + $0x8] sm:$0xff]
      %v11093 = vld [vmem:[%s2532 + $0x18] sm:$0xff]
      %v11094 = vld [vmem:[%s2532 + $0x20] sm:$0xff]
      %v11095 = vld [vmem:[%s2532 + $0x30] sm:$0xff]
      %v11096 = vld [vmem:[%s2532 + $0x38] sm:$0xff]
      %v11097 = vld [vmem:[%s2532 + $0x48] sm:$0xff]
      %v11098 = vld [vmem:[%s2532 + $0x50] sm:$0xff]
      %v11099 = vld [vmem:[%s2532 + $0x60] sm:$0xff]
      %v11100 = vld [vmem:[%s2532 + $0x68] sm:$0xff]
      %v11101 = vld [vmem:[%s2532 + $0x78] sm:$0xff]
      %v11102 = vld [vmem:[%s2532 + $0x80] sm:$0xff]
      %v11103 = vld [vmem:[%s2532 + $0x90] sm:$0xff]
      %v11104 = vld [vmem:[%s2532 + $0x98] sm:$0xff]
      %v11105 = vld [vmem:[%s2532 + $0xa8] sm:$0xff]
      %v11106 = vld [vmem:[%s2532 + $0xb0] sm:$0xff]
      %v11107 = vld [vmem:[%s2532 + $0xc0] sm:$0xff]
      %v11108 = vld [vmem:[%s2532 + $0xc8] sm:$0xff]
      %v11109 = vld [vmem:[%s2532 + $0xd8] sm:$0xff]
      %v11110 = vld [vmem:[%s2532 + $0xe0] sm:$0xff]
      %v11111 = vld [vmem:[%s2532 + $0xf0] sm:$0xff]
      %v11112 = vld [vmem:[%s2532 + $0xf8] sm:$0xff]
      %v11113 = vld [vmem:[%s2532 + $0x108] sm:$0xff]
      %v11114 = vld [vmem:[%s2532 + $0x110] sm:$0xff]
      %v11115 = vld [vmem:[%s2532 + $0x120] sm:$0xff]
      %v11116 = vld [vmem:[%s2532 + $0x128] sm:$0xff]
      %v11117 = vld [vmem:[%s2532 + $0x138] sm:$0xff]
      %v11118 = vld [vmem:[%s2532 + $0x140] sm:$0xff]
      %v11119 = vld [vmem:[%s2532 + $0x150] sm:$0xff]
      %v11120 = vld [vmem:[%s2532 + $0x158] sm:$0xff]
      %v11121 = vld [vmem:[%s2532 + $0x168] sm:$0xff]
      %v11122 = vld [vmem:[%s2532 + $0x170] sm:$0xff]
      %v11123 = vld [vmem:[%s2532 + $0x1] sm:$0xff]
      %v11124 = vld [vmem:[%s2532 + $0x9] sm:$0xff]
      %v11125 = vld [vmem:[%s2532 + $0x19] sm:$0xff]
      %v11126 = vld [vmem:[%s2532 + $0x21] sm:$0xff]
      %v11127 = vld [vmem:[%s2532 + $0x31] sm:$0xff]
      %v11128 = vld [vmem:[%s2532 + $0x39] sm:$0xff]
      %v11129 = vld [vmem:[%s2532 + $0x49] sm:$0xff]
      %v11130 = vld [vmem:[%s2532 + $0x51] sm:$0xff]
      %v11131 = vld [vmem:[%s2532 + $0x61] sm:$0xff]
      %v11132 = vld [vmem:[%s2532 + $0x69] sm:$0xff]
      %v11133 = vld [vmem:[%s2532 + $0x79] sm:$0xff]
      %v11134 = vld [vmem:[%s2532 + $0x81] sm:$0xff]
      %v11135 = vld [vmem:[%s2532 + $0x91] sm:$0xff]
      %v11136 = vld [vmem:[%s2532 + $0x99] sm:$0xff]
      %v11137 = vld [vmem:[%s2532 + $0xa9] sm:$0xff]
      %v11138 = vld [vmem:[%s2532 + $0xb1] sm:$0xff]
      %v11139 = vld [vmem:[%s2532 + $0xc1] sm:$0xff]
      %v11140 = vld [vmem:[%s2532 + $0xc9] sm:$0xff]
      %v11141 = vld [vmem:[%s2532 + $0xd9] sm:$0xff]
      %v11142 = vld [vmem:[%s2532 + $0xe1] sm:$0xff]
      %v11143 = vld [vmem:[%s2532 + $0xf1] sm:$0xff]
      %v11144 = vld [vmem:[%s2532 + $0xf9] sm:$0xff]
      %v11145 = vld [vmem:[%s2532 + $0x109] sm:$0xff]
      %v11146 = vld [vmem:[%s2532 + $0x111] sm:$0xff]
      %v11147 = vld [vmem:[%s2532 + $0x121] sm:$0xff]
      %v11148 = vld [vmem:[%s2532 + $0x129] sm:$0xff]
      %v11149 = vld [vmem:[%s2532 + $0x139] sm:$0xff]
      %v11150 = vld [vmem:[%s2532 + $0x141] sm:$0xff]
      %v11151 = vld [vmem:[%s2532 + $0x151] sm:$0xff]
      %v11152 = vld [vmem:[%s2532 + $0x159] sm:$0xff]
      %v11153 = vld [vmem:[%s2532 + $0x169] sm:$0xff]
      %v11154 = vld [vmem:[%s2532 + $0x171] sm:$0xff]
      %v11155 = vld [vmem:[%s2532 + $0x2] sm:$0xff]
      %v11156 = vld [vmem:[%s2532 + $0xa] sm:$0xff]
      %v11157 = vld [vmem:[%s2532 + $0x1a] sm:$0xff]
      %v11158 = vld [vmem:[%s2532 + $0x22] sm:$0xff]
      %v11159 = vld [vmem:[%s2532 + $0x32] sm:$0xff]
      %v11160 = vld [vmem:[%s2532 + $0x3a] sm:$0xff]
      %v11161 = vld [vmem:[%s2532 + $0x4a] sm:$0xff]
      %v11162 = vld [vmem:[%s2532 + $0x52] sm:$0xff]
      %v11163 = vld [vmem:[%s2532 + $0x62] sm:$0xff]
      %v11164 = vld [vmem:[%s2532 + $0x6a] sm:$0xff]
      %v11165 = vld [vmem:[%s2532 + $0x7a] sm:$0xff]
      %v11166 = vld [vmem:[%s2532 + $0x82] sm:$0xff]
      %v11167 = vld [vmem:[%s2532 + $0x92] sm:$0xff]
      %v11168 = vld [vmem:[%s2532 + $0x9a] sm:$0xff]
      %v11169 = vld [vmem:[%s2532 + $0xaa] sm:$0xff]
      %v11170 = vld [vmem:[%s2532 + $0xb2] sm:$0xff]
      %v11171 = vld [vmem:[%s2532 + $0xc2] sm:$0xff]
      %v11172 = vld [vmem:[%s2532 + $0xca] sm:$0xff]
      %v11173 = vld [vmem:[%s2532 + $0xda] sm:$0xff]
      %v11174 = vld [vmem:[%s2532 + $0xe2] sm:$0xff]
      %v11175 = vld [vmem:[%s2532 + $0xf2] sm:$0xff]
      %v11176 = vld [vmem:[%s2532 + $0xfa] sm:$0xff]
      %v11177 = vld [vmem:[%s2532 + $0x10a] sm:$0xff]
      %v11178 = vld [vmem:[%s2532 + $0x112] sm:$0xff]
      %v11179 = vld [vmem:[%s2532 + $0x122] sm:$0xff]
      %v11180 = vld [vmem:[%s2532 + $0x12a] sm:$0xff]
      %v11181 = vld [vmem:[%s2532 + $0x13a] sm:$0xff]
      %v11182 = vld [vmem:[%s2532 + $0x142] sm:$0xff]
      %v11183 = vld [vmem:[%s2532 + $0x152] sm:$0xff]
      %v11184 = vld [vmem:[%s2532 + $0x15a] sm:$0xff]
      %v11185 = vld [vmem:[%s2532 + $0x16a] sm:$0xff]
      %v11186 = vld [vmem:[%s2532 + $0x172] sm:$0xff]
      %v11187 = vld [vmem:[%s2918] sm:$0xff]
      %v11188 = vld [vmem:[%s2918 + $0x8] sm:$0xff]
      %v11189 = vld [vmem:[%s2918 + $0x18] sm:$0xff]
      %v11190 = vld [vmem:[%s2918 + $0x20] sm:$0xff]
      %v11191 = vld [vmem:[%s2918 + $0x30] sm:$0xff]
      %v11192 = vld [vmem:[%s2918 + $0x38] sm:$0xff]
      %v11193 = vld [vmem:[%s2918 + $0x48] sm:$0xff]
      %v11194 = vld [vmem:[%s2918 + $0x50] sm:$0xff]
      %v11195 = vld [vmem:[%s2918 + $0x60] sm:$0xff]
      %v11196 = vld [vmem:[%s2918 + $0x68] sm:$0xff]
      %v11197 = vld [vmem:[%s2918 + $0x78] sm:$0xff]
      %v11198 = vld [vmem:[%s2918 + $0x80] sm:$0xff]
      %v11199 = vld [vmem:[%s2918 + $0x90] sm:$0xff]
      %v11200 = vld [vmem:[%s2918 + $0x98] sm:$0xff]
      %v11201 = vld [vmem:[%s2918 + $0xa8] sm:$0xff]
      %v11202 = vld [vmem:[%s2918 + $0xb0] sm:$0xff]
      %v11203 = vld [vmem:[%s2918 + $0xc0] sm:$0xff]
      %v11204 = vld [vmem:[%s2918 + $0xc8] sm:$0xff]
      %v11205 = vld [vmem:[%s2918 + $0xd8] sm:$0xff]
      %v11206 = vld [vmem:[%s2918 + $0xe0] sm:$0xff]
      %v11207 = vld [vmem:[%s2918 + $0xf0] sm:$0xff]
      %v11208 = vld [vmem:[%s2918 + $0xf8] sm:$0xff]
      %v11209 = vld [vmem:[%s2918 + $0x108] sm:$0xff]
      %v11210 = vld [vmem:[%s2918 + $0x110] sm:$0xff]
      %v11211 = vld [vmem:[%s2918 + $0x120] sm:$0xff]
      %v11212 = vld [vmem:[%s2918 + $0x128] sm:$0xff]
      %v11213 = vld [vmem:[%s2918 + $0x138] sm:$0xff]
      %v11214 = vld [vmem:[%s2918 + $0x140] sm:$0xff]
      %v11215 = vld [vmem:[%s2918 + $0x150] sm:$0xff]
      %v11216 = vld [vmem:[%s2918 + $0x158] sm:$0xff]
      %v11217 = vld [vmem:[%s2918 + $0x168] sm:$0xff]
      %v11218 = vld [vmem:[%s2918 + $0x170] sm:$0xff]
      %v11219 = vld [vmem:[%s2918 + $0x1] sm:$0xff]
      %v11220 = vld [vmem:[%s2918 + $0x9] sm:$0xff]
      %v11221 = vld [vmem:[%s2918 + $0x19] sm:$0xff]
      %v11222 = vld [vmem:[%s2918 + $0x21] sm:$0xff]
      %v11223 = vld [vmem:[%s2918 + $0x31] sm:$0xff]
      %v11224 = vld [vmem:[%s2918 + $0x39] sm:$0xff]
      %v11225 = vld [vmem:[%s2918 + $0x49] sm:$0xff]
      %v11226 = vld [vmem:[%s2918 + $0x51] sm:$0xff]
      %v11227 = vld [vmem:[%s2918 + $0x61] sm:$0xff]
      %v11228 = vld [vmem:[%s2918 + $0x69] sm:$0xff]
      %v11229 = vld [vmem:[%s2918 + $0x79] sm:$0xff]
      %v11230 = vld [vmem:[%s2918 + $0x81] sm:$0xff]
      %v11231 = vld [vmem:[%s2918 + $0x91] sm:$0xff]
      %v11232 = vld [vmem:[%s2918 + $0x99] sm:$0xff]
      %v11233 = vld [vmem:[%s2918 + $0xa9] sm:$0xff]
      %v11234 = vld [vmem:[%s2918 + $0xb1] sm:$0xff]
      %v11235 = vld [vmem:[%s2918 + $0xc1] sm:$0xff]
      %v11236 = vld [vmem:[%s2918 + $0xc9] sm:$0xff]
      %v11237 = vld [vmem:[%s2918 + $0xd9] sm:$0xff]
      %v11238 = vld [vmem:[%s2918 + $0xe1] sm:$0xff]
      %v11239 = vld [vmem:[%s2918 + $0xf1] sm:$0xff]
      %v11240 = vld [vmem:[%s2918 + $0xf9] sm:$0xff]
      %v11241 = vld [vmem:[%s2918 + $0x109] sm:$0xff]
      %v11242 = vld [vmem:[%s2918 + $0x111] sm:$0xff]
      %v11243 = vld [vmem:[%s2918 + $0x121] sm:$0xff]
      %v11244 = vld [vmem:[%s2918 + $0x129] sm:$0xff]
      %v11245 = vld [vmem:[%s2918 + $0x139] sm:$0xff]
      %v11246 = vld [vmem:[%s2918 + $0x141] sm:$0xff]
      %v11247 = vld [vmem:[%s2918 + $0x151] sm:$0xff]
      %v11248 = vld [vmem:[%s2918 + $0x159] sm:$0xff]
      %v11249 = vld [vmem:[%s2918 + $0x169] sm:$0xff]
      %v11250 = vld [vmem:[%s2918 + $0x171] sm:$0xff]
      %v11251 = vld [vmem:[%s2918 + $0x2] sm:$0xff]
      %v11252 = vld [vmem:[%s2918 + $0xa] sm:$0xff]
      %v11253 = vld [vmem:[%s2918 + $0x1a] sm:$0xff]
      %v11254 = vld [vmem:[%s2918 + $0x22] sm:$0xff]
      %v11255 = vld [vmem:[%s2918 + $0x32] sm:$0xff]
      %v11256 = vld [vmem:[%s2918 + $0x3a] sm:$0xff]
      %v11257 = vld [vmem:[%s2918 + $0x4a] sm:$0xff]
      %v11258 = vld [vmem:[%s2918 + $0x52] sm:$0xff]
      %v11259 = vld [vmem:[%s2918 + $0x62] sm:$0xff]
      %v11260 = vld [vmem:[%s2918 + $0x6a] sm:$0xff]
      %v11261 = vld [vmem:[%s2918 + $0x7a] sm:$0xff]
      %v11262 = vld [vmem:[%s2918 + $0x82] sm:$0xff]
      %v11263 = vld [vmem:[%s2918 + $0x92] sm:$0xff]
      %v11264 = vld [vmem:[%s2918 + $0x9a] sm:$0xff]
      %v11265 = vld [vmem:[%s2918 + $0xaa] sm:$0xff]
      %v11266 = vld [vmem:[%s2918 + $0xb2] sm:$0xff]
      %v11267 = vld [vmem:[%s2918 + $0xc2] sm:$0xff]
      %v11268 = vld [vmem:[%s2918 + $0xca] sm:$0xff]
      %v11269 = vld [vmem:[%s2918 + $0xda] sm:$0xff]
      %v11270 = vld [vmem:[%s2918 + $0xe2] sm:$0xff]
      %v11271 = vld [vmem:[%s2918 + $0xf2] sm:$0xff]
      %v11272 = vld [vmem:[%s2918 + $0xfa] sm:$0xff]
      %v11273 = vld [vmem:[%s2918 + $0x10a] sm:$0xff]
      %v11274 = vld [vmem:[%s2918 + $0x112] sm:$0xff]
      %v11275 = vld [vmem:[%s2918 + $0x122] sm:$0xff]
      %v11276 = vld [vmem:[%s2918 + $0x12a] sm:$0xff]
      %v11277 = vld [vmem:[%s2918 + $0x13a] sm:$0xff]
      %v11278 = vld [vmem:[%s2918 + $0x142] sm:$0xff]
      %v11279 = vld [vmem:[%s2918 + $0x152] sm:$0xff]
      %v11280 = vld [vmem:[%s2918 + $0x15a] sm:$0xff]
      %v11281 = vld [vmem:[%s2918 + $0x16a] sm:$0xff]
      %v11282 = vld [vmem:[%s2918 + $0x172] sm:$0xff]
      %11315 = vrot.lane.b32.xlu0 %v11027, 48
      %v11316 = vpop.permute.xlu0 %11315
      %11317 = vrot.lane.b32.xlu0 %v11028, 48
      %v11318 = vpop.permute.xlu0 %11317
      %11319 = vrot.lane.b32.xlu0 %v11029, 48
      %v11320 = vpop.permute.xlu0 %11319
      %11321 = vrot.lane.b32.xlu0 %v11030, 48
      %v11322 = vpop.permute.xlu0 %11321
      %11323 = vrot.lane.b32.xlu0 %v11031, 48
      %v11324 = vpop.permute.xlu0 %11323
      %11325 = vrot.lane.b32.xlu0 %v11032, 48
      %v11326 = vpop.permute.xlu0 %11325
      %11327 = vrot.lane.b32.xlu0 %v11033, 48
      %v11328 = vpop.permute.xlu0 %11327
      %11329 = vrot.lane.b32.xlu0 %v11034, 48
      %v11330 = vpop.permute.xlu0 %11329
      %11331 = vrot.lane.b32.xlu0 %v11035, 48
      %v11332 = vpop.permute.xlu0 %11331
      %11333 = vrot.lane.b32.xlu0 %v11036, 48
      %v11334 = vpop.permute.xlu0 %11333
      %11335 = vrot.lane.b32.xlu0 %v11037, 48
      %v11336 = vpop.permute.xlu0 %11335
      %11337 = vrot.lane.b32.xlu0 %v11038, 48
      %v11338 = vpop.permute.xlu0 %11337
      %11339 = vrot.lane.b32.xlu0 %v11039, 48
      %v11340 = vpop.permute.xlu0 %11339
      %11341 = vrot.lane.b32.xlu0 %v11040, 48
      %v11342 = vpop.permute.xlu0 %11341
      %11343 = vrot.lane.b32.xlu0 %v11041, 48
      %v11344 = vpop.permute.xlu0 %11343
      %11345 = vrot.lane.b32.xlu0 %v11042, 48
      %v11346 = vpop.permute.xlu0 %11345
      %11347 = vrot.lane.b32.xlu0 %v11043, 48
      %v11348 = vpop.permute.xlu0 %11347
      %11349 = vrot.lane.b32.xlu0 %v11044, 48
      %v11350 = vpop.permute.xlu0 %11349
      %11351 = vrot.lane.b32.xlu0 %v11045, 48
      %v11352 = vpop.permute.xlu0 %11351
      %11353 = vrot.lane.b32.xlu0 %v11046, 48
      %v11354 = vpop.permute.xlu0 %11353
      %11355 = vrot.lane.b32.xlu0 %v11047, 48
      %v11356 = vpop.permute.xlu0 %11355
      %11357 = vrot.lane.b32.xlu0 %v11048, 48
      %v11358 = vpop.permute.xlu0 %11357
      %11359 = vrot.lane.b32.xlu0 %v11049, 48
      %v11360 = vpop.permute.xlu0 %11359
      %11361 = vrot.lane.b32.xlu0 %v11050, 48
      %v11362 = vpop.permute.xlu0 %11361
      %11363 = vrot.lane.b32.xlu0 %v11051, 48
      %v11364 = vpop.permute.xlu0 %11363
      %11365 = vrot.lane.b32.xlu0 %v11052, 48
      %v11366 = vpop.permute.xlu0 %11365
      %11367 = vrot.lane.b32.xlu0 %v11053, 48
      %v11368 = vpop.permute.xlu0 %11367
      %11369 = vrot.lane.b32.xlu0 %v11054, 48
      %v11370 = vpop.permute.xlu0 %11369
      %11371 = vrot.lane.b32.xlu0 %v11055, 48
      %v11372 = vpop.permute.xlu0 %11371
      %11373 = vrot.lane.b32.xlu0 %v11056, 48
      %v11374 = vpop.permute.xlu0 %11373
      %11375 = vrot.lane.b32.xlu0 %v11057, 48
      %v11376 = vpop.permute.xlu0 %11375
      %11377 = vrot.lane.b32.xlu0 %v11058, 48
      %v11378 = vpop.permute.xlu0 %11377
      %11443 = vrot.lane.b32.xlu0 %v11059, 96
      %v11444 = vpop.permute.xlu0 %11443
      %11445 = vrot.lane.b32.xlu0 %v11060, 96
      %v11446 = vpop.permute.xlu0 %11445
      %11447 = vrot.lane.b32.xlu0 %v11061, 96
      %v11448 = vpop.permute.xlu0 %11447
      %11449 = vrot.lane.b32.xlu0 %v11062, 96
      %v11450 = vpop.permute.xlu0 %11449
      %11451 = vrot.lane.b32.xlu0 %v11063, 96
      %v11452 = vpop.permute.xlu0 %11451
      %11453 = vrot.lane.b32.xlu0 %v11064, 96
      %v11454 = vpop.permute.xlu0 %11453
      %11455 = vrot.lane.b32.xlu0 %v11065, 96
      %v11456 = vpop.permute.xlu0 %11455
      %11457 = vrot.lane.b32.xlu0 %v11066, 96
      %v11458 = vpop.permute.xlu0 %11457
      %11459 = vrot.lane.b32.xlu0 %v11067, 96
      %v11460 = vpop.permute.xlu0 %11459
      %11461 = vrot.lane.b32.xlu0 %v11068, 96
      %v11462 = vpop.permute.xlu0 %11461
      %11463 = vrot.lane.b32.xlu0 %v11069, 96
      %v11464 = vpop.permute.xlu0 %11463
      %11465 = vrot.lane.b32.xlu0 %v11070, 96
      %v11466 = vpop.permute.xlu0 %11465
      %11467 = vrot.lane.b32.xlu0 %v11071, 96
      %v11468 = vpop.permute.xlu0 %11467
      %11469 = vrot.lane.b32.xlu0 %v11072, 96
      %v11470 = vpop.permute.xlu0 %11469
      %11471 = vrot.lane.b32.xlu0 %v11073, 96
      %v11472 = vpop.permute.xlu0 %11471
      %11473 = vrot.lane.b32.xlu0 %v11074, 96
      %v11474 = vpop.permute.xlu0 %11473
      %11475 = vrot.lane.b32.xlu0 %v11075, 96
      %v11476 = vpop.permute.xlu0 %11475
      %11477 = vrot.lane.b32.xlu0 %v11076, 96
      %v11478 = vpop.permute.xlu0 %11477
      %11479 = vrot.lane.b32.xlu0 %v11077, 96
      %v11480 = vpop.permute.xlu0 %11479
      %11481 = vrot.lane.b32.xlu0 %v11078, 96
      %v11482 = vpop.permute.xlu0 %11481
      %11483 = vrot.lane.b32.xlu0 %v11079, 96
      %v11484 = vpop.permute.xlu0 %11483
      %11485 = vrot.lane.b32.xlu0 %v11080, 96
      %v11486 = vpop.permute.xlu0 %11485
      %11487 = vrot.lane.b32.xlu0 %v11081, 96
      %v11488 = vpop.permute.xlu0 %11487
      %11489 = vrot.lane.b32.xlu0 %v11082, 96
      %v11490 = vpop.permute.xlu0 %11489
      %11491 = vrot.lane.b32.xlu0 %v11083, 96
      %v11492 = vpop.permute.xlu0 %11491
      %11493 = vrot.lane.b32.xlu0 %v11084, 96
      %v11494 = vpop.permute.xlu0 %11493
      %11495 = vrot.lane.b32.xlu0 %v11085, 96
      %v11496 = vpop.permute.xlu0 %11495
      %11497 = vrot.lane.b32.xlu0 %v11086, 96
      %v11498 = vpop.permute.xlu0 %11497
      %11499 = vrot.lane.b32.xlu0 %v11087, 96
      %v11500 = vpop.permute.xlu0 %11499
      %11501 = vrot.lane.b32.xlu0 %v11088, 96
      %v11502 = vpop.permute.xlu0 %11501
      %11503 = vrot.lane.b32.xlu0 %v11089, 96
      %v11504 = vpop.permute.xlu0 %11503
      %11505 = vrot.lane.b32.xlu0 %v11090, 96
      %v11506 = vpop.permute.xlu0 %11505
      %11571 = vrot.lane.b32.xlu0 %v11091, 16
      %v11572 = vpop.permute.xlu0 %11571
      %11573 = vrot.lane.b32.xlu0 %v11092, 16
      %v11574 = vpop.permute.xlu0 %11573
      %11575 = vrot.lane.b32.xlu0 %v11093, 16
      %v11576 = vpop.permute.xlu0 %11575
      %11577 = vrot.lane.b32.xlu0 %v11094, 16
      %v11578 = vpop.permute.xlu0 %11577
      %11579 = vrot.lane.b32.xlu0 %v11095, 16
      %v11580 = vpop.permute.xlu0 %11579
      %11581 = vrot.lane.b32.xlu0 %v11096, 16
      %v11582 = vpop.permute.xlu0 %11581
      %11583 = vrot.lane.b32.xlu0 %v11097, 16
      %v11584 = vpop.permute.xlu0 %11583
      %11585 = vrot.lane.b32.xlu0 %v11098, 16
      %v11586 = vpop.permute.xlu0 %11585
      %11587 = vrot.lane.b32.xlu0 %v11099, 16
      %v11588 = vpop.permute.xlu0 %11587
      %11589 = vrot.lane.b32.xlu0 %v11100, 16
      %v11590 = vpop.permute.xlu0 %11589
      %11591 = vrot.lane.b32.xlu0 %v11101, 16
      %v11592 = vpop.permute.xlu0 %11591
      %11593 = vrot.lane.b32.xlu0 %v11102, 16
      %v11594 = vpop.permute.xlu0 %11593
      %11595 = vrot.lane.b32.xlu0 %v11103, 16
      %v11596 = vpop.permute.xlu0 %11595
      %11597 = vrot.lane.b32.xlu0 %v11104, 16
      %v11598 = vpop.permute.xlu0 %11597
      %11599 = vrot.lane.b32.xlu0 %v11105, 16
      %v11600 = vpop.permute.xlu0 %11599
      %11601 = vrot.lane.b32.xlu0 %v11106, 16
      %v11602 = vpop.permute.xlu0 %11601
      %11603 = vrot.lane.b32.xlu0 %v11107, 16
      %v11604 = vpop.permute.xlu0 %11603
      %11605 = vrot.lane.b32.xlu0 %v11108, 16
      %v11606 = vpop.permute.xlu0 %11605
      %11607 = vrot.lane.b32.xlu0 %v11109, 16
      %v11608 = vpop.permute.xlu0 %11607
      %11609 = vrot.lane.b32.xlu0 %v11110, 16
      %v11610 = vpop.permute.xlu0 %11609
      %11611 = vrot.lane.b32.xlu0 %v11111, 16
      %v11612 = vpop.permute.xlu0 %11611
      %11613 = vrot.lane.b32.xlu0 %v11112, 16
      %v11614 = vpop.permute.xlu0 %11613
      %11615 = vrot.lane.b32.xlu0 %v11113, 16
      %v11616 = vpop.permute.xlu0 %11615
      %11617 = vrot.lane.b32.xlu0 %v11114, 16
      %v11618 = vpop.permute.xlu0 %11617
      %11619 = vrot.lane.b32.xlu0 %v11115, 16
      %v11620 = vpop.permute.xlu0 %11619
      %11621 = vrot.lane.b32.xlu0 %v11116, 16
      %v11622 = vpop.permute.xlu0 %11621
      %11623 = vrot.lane.b32.xlu0 %v11117, 16
      %v11624 = vpop.permute.xlu0 %11623
      %11625 = vrot.lane.b32.xlu0 %v11118, 16
      %v11626 = vpop.permute.xlu0 %11625
      %11627 = vrot.lane.b32.xlu0 %v11119, 16
      %v11628 = vpop.permute.xlu0 %11627
      %11629 = vrot.lane.b32.xlu0 %v11120, 16
      %v11630 = vpop.permute.xlu0 %11629
      %11631 = vrot.lane.b32.xlu0 %v11121, 16
      %v11632 = vpop.permute.xlu0 %11631
      %11633 = vrot.lane.b32.xlu0 %v11122, 16
      %v11634 = vpop.permute.xlu0 %11633
      %11699 = vrot.lane.b32.xlu0 %v11123, 64
      %v11700 = vpop.permute.xlu0 %11699
      %11701 = vrot.lane.b32.xlu0 %v11124, 64
      %v11702 = vpop.permute.xlu0 %11701
      %11703 = vrot.lane.b32.xlu0 %v11125, 64
      %v11704 = vpop.permute.xlu0 %11703
      %11705 = vrot.lane.b32.xlu0 %v11126, 64
      %v11706 = vpop.permute.xlu0 %11705
      %11707 = vrot.lane.b32.xlu0 %v11127, 64
      %v11708 = vpop.permute.xlu0 %11707
      %11709 = vrot.lane.b32.xlu0 %v11128, 64
      %v11710 = vpop.permute.xlu0 %11709
      %11711 = vrot.lane.b32.xlu0 %v11129, 64
      %v11712 = vpop.permute.xlu0 %11711
      %11713 = vrot.lane.b32.xlu0 %v11130, 64
      %v11714 = vpop.permute.xlu0 %11713
      %11715 = vrot.lane.b32.xlu0 %v11131, 64
      %v11716 = vpop.permute.xlu0 %11715
      %11717 = vrot.lane.b32.xlu0 %v11132, 64
      %v11718 = vpop.permute.xlu0 %11717
      %11719 = vrot.lane.b32.xlu0 %v11133, 64
      %v11720 = vpop.permute.xlu0 %11719
      %11721 = vrot.lane.b32.xlu0 %v11134, 64
      %v11722 = vpop.permute.xlu0 %11721
      %11723 = vrot.lane.b32.xlu0 %v11135, 64
      %v11724 = vpop.permute.xlu0 %11723
      %11725 = vrot.lane.b32.xlu0 %v11136, 64
      %v11726 = vpop.permute.xlu0 %11725
      %11727 = vrot.lane.b32.xlu0 %v11137, 64
      %v11728 = vpop.permute.xlu0 %11727
      %11729 = vrot.lane.b32.xlu0 %v11138, 64
      %v11730 = vpop.permute.xlu0 %11729
      %11731 = vrot.lane.b32.xlu0 %v11139, 64
      %v11732 = vpop.permute.xlu0 %11731
      %11733 = vrot.lane.b32.xlu0 %v11140, 64
      %v11734 = vpop.permute.xlu0 %11733
      %11735 = vrot.lane.b32.xlu0 %v11141, 64
      %v11736 = vpop.permute.xlu0 %11735
      %11737 = vrot.lane.b32.xlu0 %v11142, 64
      %v11738 = vpop.permute.xlu0 %11737
      %11739 = vrot.lane.b32.xlu0 %v11143, 64
      %v11740 = vpop.permute.xlu0 %11739
      %11741 = vrot.lane.b32.xlu0 %v11144, 64
      %v11742 = vpop.permute.xlu0 %11741
      %11743 = vrot.lane.b32.xlu0 %v11145, 64
      %v11744 = vpop.permute.xlu0 %11743
      %11745 = vrot.lane.b32.xlu0 %v11146, 64
      %v11746 = vpop.permute.xlu0 %11745
      %11747 = vrot.lane.b32.xlu0 %v11147, 64
      %v11748 = vpop.permute.xlu0 %11747
      %11749 = vrot.lane.b32.xlu0 %v11148, 64
      %v11750 = vpop.permute.xlu0 %11749
      %11751 = vrot.lane.b32.xlu0 %v11149, 64
      %v11752 = vpop.permute.xlu0 %11751
      %11753 = vrot.lane.b32.xlu0 %v11150, 64
      %v11754 = vpop.permute.xlu0 %11753
      %11755 = vrot.lane.b32.xlu0 %v11151, 64
      %v11756 = vpop.permute.xlu0 %11755
      %11757 = vrot.lane.b32.xlu0 %v11152, 64
      %v11758 = vpop.permute.xlu0 %11757
      %11759 = vrot.lane.b32.xlu0 %v11153, 64
      %v11760 = vpop.permute.xlu0 %11759
      %11761 = vrot.lane.b32.xlu0 %v11154, 64
      %v11762 = vpop.permute.xlu0 %11761
      %11827 = vrot.lane.b32.xlu0 %v11155, 112
      %v11828 = vpop.permute.xlu0 %11827
      %11829 = vrot.lane.b32.xlu0 %v11156, 112
      %v11830 = vpop.permute.xlu0 %11829
      %11831 = vrot.lane.b32.xlu0 %v11157, 112
      %v11832 = vpop.permute.xlu0 %11831
      %11833 = vrot.lane.b32.xlu0 %v11158, 112
      %v11834 = vpop.permute.xlu0 %11833
      %11835 = vrot.lane.b32.xlu0 %v11159, 112
      %v11836 = vpop.permute.xlu0 %11835
      %11837 = vrot.lane.b32.xlu0 %v11160, 112
      %v11838 = vpop.permute.xlu0 %11837
      %11839 = vrot.lane.b32.xlu0 %v11161, 112
      %v11840 = vpop.permute.xlu0 %11839
      %11841 = vrot.lane.b32.xlu0 %v11162, 112
      %v11842 = vpop.permute.xlu0 %11841
      %11843 = vrot.lane.b32.xlu0 %v11163, 112
      %v11844 = vpop.permute.xlu0 %11843
      %11845 = vrot.lane.b32.xlu0 %v11164, 112
      %v11846 = vpop.permute.xlu0 %11845
      %11847 = vrot.lane.b32.xlu0 %v11165, 112
      %v11848 = vpop.permute.xlu0 %11847
      %11849 = vrot.lane.b32.xlu0 %v11166, 112
      %v11850 = vpop.permute.xlu0 %11849
      %11851 = vrot.lane.b32.xlu0 %v11167, 112
      %v11852 = vpop.permute.xlu0 %11851
      %11853 = vrot.lane.b32.xlu0 %v11168, 112
      %v11854 = vpop.permute.xlu0 %11853
      %11855 = vrot.lane.b32.xlu0 %v11169, 112
      %v11856 = vpop.permute.xlu0 %11855
      %11857 = vrot.lane.b32.xlu0 %v11170, 112
      %v11858 = vpop.permute.xlu0 %11857
      %11859 = vrot.lane.b32.xlu0 %v11171, 112
      %v11860 = vpop.permute.xlu0 %11859
      %11861 = vrot.lane.b32.xlu0 %v11172, 112
      %v11862 = vpop.permute.xlu0 %11861
      %11863 = vrot.lane.b32.xlu0 %v11173, 112
      %v11864 = vpop.permute.xlu0 %11863
      %11865 = vrot.lane.b32.xlu0 %v11174, 112
      %v11866 = vpop.permute.xlu0 %11865
      %11867 = vrot.lane.b32.xlu0 %v11175, 112
      %v11868 = vpop.permute.xlu0 %11867
      %11869 = vrot.lane.b32.xlu0 %v11176, 112
      %v11870 = vpop.permute.xlu0 %11869
      %11871 = vrot.lane.b32.xlu0 %v11177, 112
      %v11872 = vpop.permute.xlu0 %11871
      %11873 = vrot.lane.b32.xlu0 %v11178, 112
      %v11874 = vpop.permute.xlu0 %11873
      %11875 = vrot.lane.b32.xlu0 %v11179, 112
      %v11876 = vpop.permute.xlu0 %11875
      %11877 = vrot.lane.b32.xlu0 %v11180, 112
      %v11878 = vpop.permute.xlu0 %11877
      %11879 = vrot.lane.b32.xlu0 %v11181, 112
      %v11880 = vpop.permute.xlu0 %11879
      %11881 = vrot.lane.b32.xlu0 %v11182, 112
      %v11882 = vpop.permute.xlu0 %11881
      %11883 = vrot.lane.b32.xlu0 %v11183, 112
      %v11884 = vpop.permute.xlu0 %11883
      %11885 = vrot.lane.b32.xlu0 %v11184, 112
      %v11886 = vpop.permute.xlu0 %11885
      %11887 = vrot.lane.b32.xlu0 %v11185, 112
      %v11888 = vpop.permute.xlu0 %11887
      %11889 = vrot.lane.b32.xlu0 %v11186, 112
      %v11890 = vpop.permute.xlu0 %11889
      %11955 = vrot.lane.b32.xlu0 %v11187, 32
      %v11956 = vpop.permute.xlu0 %11955
      %11957 = vrot.lane.b32.xlu0 %v11188, 32
      %v11958 = vpop.permute.xlu0 %11957
      %11959 = vrot.lane.b32.xlu0 %v11189, 32
      %v11960 = vpop.permute.xlu0 %11959
      %11961 = vrot.lane.b32.xlu0 %v11190, 32
      %v11962 = vpop.permute.xlu0 %11961
      %11963 = vrot.lane.b32.xlu0 %v11191, 32
      %v11964 = vpop.permute.xlu0 %11963
      %11965 = vrot.lane.b32.xlu0 %v11192, 32
      %v11966 = vpop.permute.xlu0 %11965
      %11967 = vrot.lane.b32.xlu0 %v11193, 32
      %v11968 = vpop.permute.xlu0 %11967
      %11969 = vrot.lane.b32.xlu0 %v11194, 32
      %v11970 = vpop.permute.xlu0 %11969
      %11971 = vrot.lane.b32.xlu0 %v11195, 32
      %v11972 = vpop.permute.xlu0 %11971
      %11973 = vrot.lane.b32.xlu0 %v11196, 32
      %v11974 = vpop.permute.xlu0 %11973
      %11975 = vrot.lane.b32.xlu0 %v11197, 32
      %v11976 = vpop.permute.xlu0 %11975
      %11977 = vrot.lane.b32.xlu0 %v11198, 32
      %v11978 = vpop.permute.xlu0 %11977
      %11979 = vrot.lane.b32.xlu0 %v11199, 32
      %v11980 = vpop.permute.xlu0 %11979
      %11981 = vrot.lane.b32.xlu0 %v11200, 32
      %v11982 = vpop.permute.xlu0 %11981
      %11983 = vrot.lane.b32.xlu0 %v11201, 32
      %v11984 = vpop.permute.xlu0 %11983
      %11985 = vrot.lane.b32.xlu0 %v11202, 32
      %v11986 = vpop.permute.xlu0 %11985
      %11987 = vrot.lane.b32.xlu0 %v11203, 32
      %v11988 = vpop.permute.xlu0 %11987
      %11989 = vrot.lane.b32.xlu0 %v11204, 32
      %v11990 = vpop.permute.xlu0 %11989
      %11991 = vrot.lane.b32.xlu0 %v11205, 32
      %v11992 = vpop.permute.xlu0 %11991
      %11993 = vrot.lane.b32.xlu0 %v11206, 32
      %v11994 = vpop.permute.xlu0 %11993
      %11995 = vrot.lane.b32.xlu0 %v11207, 32
      %v11996 = vpop.permute.xlu0 %11995
      %11997 = vrot.lane.b32.xlu0 %v11208, 32
      %v11998 = vpop.permute.xlu0 %11997
      %11999 = vrot.lane.b32.xlu0 %v11209, 32
      %v12000 = vpop.permute.xlu0 %11999
      %12001 = vrot.lane.b32.xlu0 %v11210, 32
      %v12002 = vpop.permute.xlu0 %12001
      %12003 = vrot.lane.b32.xlu0 %v11211, 32
      %v12004 = vpop.permute.xlu0 %12003
      %12005 = vrot.lane.b32.xlu0 %v11212, 32
      %v12006 = vpop.permute.xlu0 %12005
      %12007 = vrot.lane.b32.xlu0 %v11213, 32
      %v12008 = vpop.permute.xlu0 %12007
      %12009 = vrot.lane.b32.xlu0 %v11214, 32
      %v12010 = vpop.permute.xlu0 %12009
      %12011 = vrot.lane.b32.xlu0 %v11215, 32
      %v12012 = vpop.permute.xlu0 %12011
      %12013 = vrot.lane.b32.xlu0 %v11216, 32
      %v12014 = vpop.permute.xlu0 %12013
      %12015 = vrot.lane.b32.xlu0 %v11217, 32
      %v12016 = vpop.permute.xlu0 %12015
      %12017 = vrot.lane.b32.xlu0 %v11218, 32
      %v12018 = vpop.permute.xlu0 %12017
      %12083 = vrot.lane.b32.xlu0 %v11219, 80
      %v12084 = vpop.permute.xlu0 %12083
      %12085 = vrot.lane.b32.xlu0 %v11220, 80
      %v12086 = vpop.permute.xlu0 %12085
      %12087 = vrot.lane.b32.xlu0 %v11221, 80
      %v12088 = vpop.permute.xlu0 %12087
      %12089 = vrot.lane.b32.xlu0 %v11222, 80
      %v12090 = vpop.permute.xlu0 %12089
      %12091 = vrot.lane.b32.xlu0 %v11223, 80
      %v12092 = vpop.permute.xlu0 %12091
      %12093 = vrot.lane.b32.xlu0 %v11224, 80
      %v12094 = vpop.permute.xlu0 %12093
      %12095 = vrot.lane.b32.xlu0 %v11225, 80
      %v12096 = vpop.permute.xlu0 %12095
      %12097 = vrot.lane.b32.xlu0 %v11226, 80
      %v12098 = vpop.permute.xlu0 %12097
      %12099 = vrot.lane.b32.xlu0 %v11227, 80
      %v12100 = vpop.permute.xlu0 %12099
      %12101 = vrot.lane.b32.xlu0 %v11228, 80
      %v12102 = vpop.permute.xlu0 %12101
      %12103 = vrot.lane.b32.xlu0 %v11229, 80
      %v12104 = vpop.permute.xlu0 %12103
      %12105 = vrot.lane.b32.xlu0 %v11230, 80
      %v12106 = vpop.permute.xlu0 %12105
      %12107 = vrot.lane.b32.xlu0 %v11231, 80
      %v12108 = vpop.permute.xlu0 %12107
      %12109 = vrot.lane.b32.xlu0 %v11232, 80
      %v12110 = vpop.permute.xlu0 %12109
      %12111 = vrot.lane.b32.xlu0 %v11233, 80
      %v12112 = vpop.permute.xlu0 %12111
      %12113 = vrot.lane.b32.xlu0 %v11234, 80
      %v12114 = vpop.permute.xlu0 %12113
      %12115 = vrot.lane.b32.xlu0 %v11235, 80
      %v12116 = vpop.permute.xlu0 %12115
      %12117 = vrot.lane.b32.xlu0 %v11236, 80
      %v12118 = vpop.permute.xlu0 %12117
      %12119 = vrot.lane.b32.xlu0 %v11237, 80
      %v12120 = vpop.permute.xlu0 %12119
      %12121 = vrot.lane.b32.xlu0 %v11238, 80
      %v12122 = vpop.permute.xlu0 %12121
      %12123 = vrot.lane.b32.xlu0 %v11239, 80
      %v12124 = vpop.permute.xlu0 %12123
      %12125 = vrot.lane.b32.xlu0 %v11240, 80
      %v12126 = vpop.permute.xlu0 %12125
      %12127 = vrot.lane.b32.xlu0 %v11241, 80
      %v12128 = vpop.permute.xlu0 %12127
      %12129 = vrot.lane.b32.xlu0 %v11242, 80
      %v12130 = vpop.permute.xlu0 %12129
      %12131 = vrot.lane.b32.xlu0 %v11243, 80
      %v12132 = vpop.permute.xlu0 %12131
      %12133 = vrot.lane.b32.xlu0 %v11244, 80
      %v12134 = vpop.permute.xlu0 %12133
      %12135 = vrot.lane.b32.xlu0 %v11245, 80
      %v12136 = vpop.permute.xlu0 %12135
      %12137 = vrot.lane.b32.xlu0 %v11246, 80
      %v12138 = vpop.permute.xlu0 %12137
      %12139 = vrot.lane.b32.xlu0 %v11247, 80
      %v12140 = vpop.permute.xlu0 %12139
      %12141 = vrot.lane.b32.xlu0 %v11248, 80
      %v12142 = vpop.permute.xlu0 %12141
      %12143 = vrot.lane.b32.xlu0 %v11249, 80
      %v12144 = vpop.permute.xlu0 %12143
      %12145 = vrot.lane.b32.xlu0 %v11250, 80
      %v12146 = vpop.permute.xlu0 %12145
      %v12179 = vsel %vm497, %v10995, %v11316
      %v12180 = vsel %vm497, %v10996, %v11318
      %v12181 = vsel %vm497, %v10997, %v11320
      %v12182 = vsel %vm497, %v10998, %v11322
      %v12183 = vsel %vm497, %v10999, %v11324
      %v12184 = vsel %vm497, %v11000, %v11326
      %v12185 = vsel %vm497, %v11001, %v11328
      %v12186 = vsel %vm497, %v11002, %v11330
      %v12187 = vsel %vm497, %v11003, %v11332
      %v12188 = vsel %vm497, %v11004, %v11334
      %v12189 = vsel %vm497, %v11005, %v11336
      %v12190 = vsel %vm497, %v11006, %v11338
      %v12191 = vsel %vm497, %v11007, %v11340
      %v12192 = vsel %vm497, %v11008, %v11342
      %v12193 = vsel %vm497, %v11009, %v11344
      %v12194 = vsel %vm497, %v11010, %v11346
      %v12195 = vsel %vm497, %v11011, %v11348
      %v12196 = vsel %vm497, %v11012, %v11350
      %v12197 = vsel %vm497, %v11013, %v11352
      %v12198 = vsel %vm497, %v11014, %v11354
      %v12199 = vsel %vm497, %v11015, %v11356
      %v12200 = vsel %vm497, %v11016, %v11358
      %v12201 = vsel %vm497, %v11017, %v11360
      %v12202 = vsel %vm497, %v11018, %v11362
      %v12203 = vsel %vm497, %v11019, %v11364
      %v12204 = vsel %vm497, %v11020, %v11366
      %v12205 = vsel %vm497, %v11021, %v11368
      %v12206 = vsel %vm497, %v11022, %v11370
      %v12207 = vsel %vm497, %v11023, %v11372
      %v12208 = vsel %vm497, %v11024, %v11374
      %v12209 = vsel %vm497, %v11025, %v11376
      %v12210 = vsel %vm497, %v11026, %v11378
      %vm12211 = vcmask 785408
      %v12212 = vsel %vm12211, %v12179, %v11444
      %v12213 = vsel %vm12211, %v12180, %v11446
      %v12214 = vsel %vm12211, %v12181, %v11448
      %v12215 = vsel %vm12211, %v12182, %v11450
      %v12216 = vsel %vm12211, %v12183, %v11452
      %v12217 = vsel %vm12211, %v12184, %v11454
      %v12218 = vsel %vm12211, %v12185, %v11456
      %v12219 = vsel %vm12211, %v12186, %v11458
      %v12220 = vsel %vm12211, %v12187, %v11460
      %v12221 = vsel %vm12211, %v12188, %v11462
      %v12222 = vsel %vm12211, %v12189, %v11464
      %v12223 = vsel %vm12211, %v12190, %v11466
      %v12224 = vsel %vm12211, %v12191, %v11468
      %v12225 = vsel %vm12211, %v12192, %v11470
      %v12226 = vsel %vm12211, %v12193, %v11472
      %v12227 = vsel %vm12211, %v12194, %v11474
      %v12228 = vsel %vm12211, %v12195, %v11476
      %v12229 = vsel %vm12211, %v12196, %v11478
      %v12230 = vsel %vm12211, %v12197, %v11480
      %v12231 = vsel %vm12211, %v12198, %v11482
      %v12232 = vsel %vm12211, %v12199, %v11484
      %v12233 = vsel %vm12211, %v12200, %v11486
      %v12234 = vsel %vm12211, %v12201, %v11488
      %v12235 = vsel %vm12211, %v12202, %v11490
      %v12236 = vsel %vm12211, %v12203, %v11492
      %v12237 = vsel %vm12211, %v12204, %v11494
      %v12238 = vsel %vm12211, %v12205, %v11496
      %v12239 = vsel %vm12211, %v12206, %v11498
      %v12240 = vsel %vm12211, %v12207, %v11500
      %v12241 = vsel %vm12211, %v12208, %v11502
      %v12242 = vsel %vm12211, %v12209, %v11504
      %v12243 = vsel %vm12211, %v12210, %v11506
      %v12244 = vsel %vm2029, %v11444, %v11572
      %v12245 = vsel %vm2029, %v11446, %v11574
      %v12246 = vsel %vm2029, %v11448, %v11576
      %v12247 = vsel %vm2029, %v11450, %v11578
      %v12248 = vsel %vm2029, %v11452, %v11580
      %v12249 = vsel %vm2029, %v11454, %v11582
      %v12250 = vsel %vm2029, %v11456, %v11584
      %v12251 = vsel %vm2029, %v11458, %v11586
      %v12252 = vsel %vm2029, %v11460, %v11588
      %v12253 = vsel %vm2029, %v11462, %v11590
      %v12254 = vsel %vm2029, %v11464, %v11592
      %v12255 = vsel %vm2029, %v11466, %v11594
      %v12256 = vsel %vm2029, %v11468, %v11596
      %v12257 = vsel %vm2029, %v11470, %v11598
      %v12258 = vsel %vm2029, %v11472, %v11600
      %v12259 = vsel %vm2029, %v11474, %v11602
      %v12260 = vsel %vm2029, %v11476, %v11604
      %v12261 = vsel %vm2029, %v11478, %v11606
      %v12262 = vsel %vm2029, %v11480, %v11608
      %v12263 = vsel %vm2029, %v11482, %v11610
      %v12264 = vsel %vm2029, %v11484, %v11612
      %v12265 = vsel %vm2029, %v11486, %v11614
      %v12266 = vsel %vm2029, %v11488, %v11616
      %v12267 = vsel %vm2029, %v11490, %v11618
      %v12268 = vsel %vm2029, %v11492, %v11620
      %v12269 = vsel %vm2029, %v11494, %v11622
      %v12270 = vsel %vm2029, %v11496, %v11624
      %v12271 = vsel %vm2029, %v11498, %v11626
      %v12272 = vsel %vm2029, %v11500, %v11628
      %v12273 = vsel %vm2029, %v11502, %v11630
      %v12274 = vsel %vm2029, %v11504, %v11632
      %v12275 = vsel %vm2029, %v11506, %v11634
      %v12276 = vsel %vm4265, %v12244, %v11700
      %v12277 = vsel %vm4265, %v12245, %v11702
      %v12278 = vsel %vm4265, %v12246, %v11704
      %v12279 = vsel %vm4265, %v12247, %v11706
      %v12280 = vsel %vm4265, %v12248, %v11708
      %v12281 = vsel %vm4265, %v12249, %v11710
      %v12282 = vsel %vm4265, %v12250, %v11712
      %v12283 = vsel %vm4265, %v12251, %v11714
      %v12284 = vsel %vm4265, %v12252, %v11716
      %v12285 = vsel %vm4265, %v12253, %v11718
      %v12286 = vsel %vm4265, %v12254, %v11720
      %v12287 = vsel %vm4265, %v12255, %v11722
      %v12288 = vsel %vm4265, %v12256, %v11724
      %v12289 = vsel %vm4265, %v12257, %v11726
      %v12290 = vsel %vm4265, %v12258, %v11728
      %v12291 = vsel %vm4265, %v12259, %v11730
      %v12292 = vsel %vm4265, %v12260, %v11732
      %v12293 = vsel %vm4265, %v12261, %v11734
      %v12294 = vsel %vm4265, %v12262, %v11736
      %v12295 = vsel %vm4265, %v12263, %v11738
      %v12296 = vsel %vm4265, %v12264, %v11740
      %v12297 = vsel %vm4265, %v12265, %v11742
      %v12298 = vsel %vm4265, %v12266, %v11744
      %v12299 = vsel %vm4265, %v12267, %v11746
      %v12300 = vsel %vm4265, %v12268, %v11748
      %v12301 = vsel %vm4265, %v12269, %v11750
      %v12302 = vsel %vm4265, %v12270, %v11752
      %v12303 = vsel %vm4265, %v12271, %v11754
      %v12304 = vsel %vm4265, %v12272, %v11756
      %v12305 = vsel %vm4265, %v12273, %v11758
      %v12306 = vsel %vm4265, %v12274, %v11760
      %v12307 = vsel %vm4265, %v12275, %v11762
      %vm12308 = vcmask 916480
      %v12309 = vsel %vm12308, %v12276, %v11828
      %v12310 = vsel %vm12308, %v12277, %v11830
      %v12311 = vsel %vm12308, %v12278, %v11832
      %v12312 = vsel %vm12308, %v12279, %v11834
      %v12313 = vsel %vm12308, %v12280, %v11836
      %v12314 = vsel %vm12308, %v12281, %v11838
      %v12315 = vsel %vm12308, %v12282, %v11840
      %v12316 = vsel %vm12308, %v12283, %v11842
      %v12317 = vsel %vm12308, %v12284, %v11844
      %v12318 = vsel %vm12308, %v12285, %v11846
      %v12319 = vsel %vm12308, %v12286, %v11848
      %v12320 = vsel %vm12308, %v12287, %v11850
      %v12321 = vsel %vm12308, %v12288, %v11852
      %v12322 = vsel %vm12308, %v12289, %v11854
      %v12323 = vsel %vm12308, %v12290, %v11856
      %v12324 = vsel %vm12308, %v12291, %v11858
      %v12325 = vsel %vm12308, %v12292, %v11860
      %v12326 = vsel %vm12308, %v12293, %v11862
      %v12327 = vsel %vm12308, %v12294, %v11864
      %v12328 = vsel %vm12308, %v12295, %v11866
      %v12329 = vsel %vm12308, %v12296, %v11868
      %v12330 = vsel %vm12308, %v12297, %v11870
      %v12331 = vsel %vm12308, %v12298, %v11872
      %v12332 = vsel %vm12308, %v12299, %v11874
      %v12333 = vsel %vm12308, %v12300, %v11876
      %v12334 = vsel %vm12308, %v12301, %v11878
      %v12335 = vsel %vm12308, %v12302, %v11880
      %v12336 = vsel %vm12308, %v12303, %v11882
      %v12337 = vsel %vm12308, %v12304, %v11884
      %v12338 = vsel %vm12308, %v12305, %v11886
      %v12339 = vsel %vm12308, %v12306, %v11888
      %v12340 = vsel %vm12308, %v12307, %v11890
      %v12341 = vsel %vm2161, %v11828, %v11956
      %v12342 = vsel %vm2161, %v11830, %v11958
      %v12343 = vsel %vm2161, %v11832, %v11960
      %v12344 = vsel %vm2161, %v11834, %v11962
      %v12345 = vsel %vm2161, %v11836, %v11964
      %v12346 = vsel %vm2161, %v11838, %v11966
      %v12347 = vsel %vm2161, %v11840, %v11968
      %v12348 = vsel %vm2161, %v11842, %v11970
      %v12349 = vsel %vm2161, %v11844, %v11972
      %v12350 = vsel %vm2161, %v11846, %v11974
      %v12351 = vsel %vm2161, %v11848, %v11976
      %v12352 = vsel %vm2161, %v11850, %v11978
      %v12353 = vsel %vm2161, %v11852, %v11980
      %v12354 = vsel %vm2161, %v11854, %v11982
      %v12355 = vsel %vm2161, %v11856, %v11984
      %v12356 = vsel %vm2161, %v11858, %v11986
      %v12357 = vsel %vm2161, %v11860, %v11988
      %v12358 = vsel %vm2161, %v11862, %v11990
      %v12359 = vsel %vm2161, %v11864, %v11992
      %v12360 = vsel %vm2161, %v11866, %v11994
      %v12361 = vsel %vm2161, %v11868, %v11996
      %v12362 = vsel %vm2161, %v11870, %v11998
      %v12363 = vsel %vm2161, %v11872, %v12000
      %v12364 = vsel %vm2161, %v11874, %v12002
      %v12365 = vsel %vm2161, %v11876, %v12004
      %v12366 = vsel %vm2161, %v11878, %v12006
      %v12367 = vsel %vm2161, %v11880, %v12008
      %v12368 = vsel %vm2161, %v11882, %v12010
      %v12369 = vsel %vm2161, %v11884, %v12012
      %v12370 = vsel %vm2161, %v11886, %v12014
      %v12371 = vsel %vm2161, %v11888, %v12016
      %v12372 = vsel %vm2161, %v11890, %v12018
      %vm12373 = vcmask 654336
      %v12374 = vsel %vm12373, %v12341, %v12084
      %v12375 = vsel %vm12373, %v12342, %v12086
      %v12376 = vsel %vm12373, %v12343, %v12088
      %v12377 = vsel %vm12373, %v12344, %v12090
      %v12378 = vsel %vm12373, %v12345, %v12092
      %v12379 = vsel %vm12373, %v12346, %v12094
      %v12380 = vsel %vm12373, %v12347, %v12096
      %v12381 = vsel %vm12373, %v12348, %v12098
      %v12382 = vsel %vm12373, %v12349, %v12100
      %v12383 = vsel %vm12373, %v12350, %v12102
      %v12384 = vsel %vm12373, %v12351, %v12104
      %v12385 = vsel %vm12373, %v12352, %v12106
      %v12386 = vsel %vm12373, %v12353, %v12108
      %v12387 = vsel %vm12373, %v12354, %v12110
      %v12388 = vsel %vm12373, %v12355, %v12112
      %v12389 = vsel %vm12373, %v12356, %v12114
      %v12390 = vsel %vm12373, %v12357, %v12116
      %v12391 = vsel %vm12373, %v12358, %v12118
      %v12392 = vsel %vm12373, %v12359, %v12120
      %v12393 = vsel %vm12373, %v12360, %v12122
      %v12394 = vsel %vm12373, %v12361, %v12124
      %v12395 = vsel %vm12373, %v12362, %v12126
      %v12396 = vsel %vm12373, %v12363, %v12128
      %v12397 = vsel %vm12373, %v12364, %v12130
      %v12398 = vsel %vm12373, %v12365, %v12132
      %v12399 = vsel %vm12373, %v12366, %v12134
      %v12400 = vsel %vm12373, %v12367, %v12136
      %v12401 = vsel %vm12373, %v12368, %v12138
      %v12402 = vsel %vm12373, %v12369, %v12140
      %v12403 = vsel %vm12373, %v12370, %v12142
      %v12404 = vsel %vm12373, %v12371, %v12144
      %v12405 = vsel %vm12373, %v12372, %v12146
      %v12406 = vld [vmem:[%s11] sm:$0xff]
      %v12407 = vld [vmem:[%s11 + $0x8] sm:$0xff]
      %v12408 = vld [vmem:[%s11 + $0x10] sm:$0xff]
      %v12409 = vld [vmem:[%s11 + $0x18] sm:$0xff]
      %v12410 = vld [vmem:[%s11 + $0x20] sm:$0xff]
      %v12411 = vld [vmem:[%s11 + $0x28] sm:$0xff]
      %v12412 = vld [vmem:[%s11 + $0x30] sm:$0xff]
      %v12413 = vld [vmem:[%s11 + $0x38] sm:$0xff]
      %v12414 = vld [vmem:[%s11 + $0x40] sm:$0xff]
      %v12415 = vld [vmem:[%s11 + $0x48] sm:$0xff]
      %v12416 = vld [vmem:[%s11 + $0x50] sm:$0xff]
      %v12417 = vld [vmem:[%s11 + $0x58] sm:$0xff]
      %v12418 = vld [vmem:[%s11 + $0x60] sm:$0xff]
      %v12419 = vld [vmem:[%s11 + $0x68] sm:$0xff]
      %v12420 = vld [vmem:[%s11 + $0x70] sm:$0xff]
      %v12421 = vld [vmem:[%s11 + $0x78] sm:$0xff]
      %v12422 = vld [vmem:[%s11 + $0x80] sm:$0xff]
      %v12423 = vld [vmem:[%s11 + $0x88] sm:$0xff]
      %v12424 = vld [vmem:[%s11 + $0x90] sm:$0xff]
      %v12425 = vld [vmem:[%s11 + $0x98] sm:$0xff]
      %v12426 = vld [vmem:[%s11 + $0xa0] sm:$0xff]
      %v12427 = vld [vmem:[%s11 + $0xa8] sm:$0xff]
      %v12428 = vld [vmem:[%s11 + $0xb0] sm:$0xff]
      %v12429 = vld [vmem:[%s11 + $0xb8] sm:$0xff]
      %v12430 = vld [vmem:[%s11 + $0xc0] sm:$0xff]
      %v12431 = vld [vmem:[%s11 + $0xc8] sm:$0xff]
      %v12432 = vld [vmem:[%s11 + $0xd0] sm:$0xff]
      %v12433 = vld [vmem:[%s11 + $0xd8] sm:$0xff]
      %v12434 = vld [vmem:[%s11 + $0xe0] sm:$0xff]
      %v12435 = vld [vmem:[%s11 + $0xe8] sm:$0xff]
      %v12436 = vld [vmem:[%s11 + $0xf0] sm:$0xff]
      %v12437 = vld [vmem:[%s11 + $0xf8] sm:$0xff]
      %v12438 = vld [vmem:[%s11 + $0x100] sm:$0xff]
      %v12439 = vld [vmem:[%s11 + $0x108] sm:$0xff]
      %v12440 = vld [vmem:[%s11 + $0x110] sm:$0xff]
      %v12441 = vld [vmem:[%s11 + $0x118] sm:$0xff]
      %v12442 = vld [vmem:[%s11 + $0x120] sm:$0xff]
      %v12443 = vld [vmem:[%s11 + $0x128] sm:$0xff]
      %v12444 = vld [vmem:[%s11 + $0x130] sm:$0xff]
      %v12445 = vld [vmem:[%s11 + $0x138] sm:$0xff]
      %v12446 = vld [vmem:[%s11 + $0x140] sm:$0xff]
      %v12447 = vld [vmem:[%s11 + $0x148] sm:$0xff]
      %v12448 = vld [vmem:[%s11 + $0x150] sm:$0xff]
      %v12449 = vld [vmem:[%s11 + $0x158] sm:$0xff]
      %v12450 = vld [vmem:[%s11 + $0x160] sm:$0xff]
      %v12451 = vld [vmem:[%s11 + $0x168] sm:$0xff]
      %v12452 = vld [vmem:[%s11 + $0x170] sm:$0xff]
      %v12453 = vld [vmem:[%s11 + $0x178] sm:$0xff]
      %v12454 = vld [vmem:[%s11 + $0x180] sm:$0xff]
      %v12455 = vld [vmem:[%s11 + $0x188] sm:$0xff]
      %v12456 = vld [vmem:[%s11 + $0x190] sm:$0xff]
      %v12457 = vld [vmem:[%s11 + $0x198] sm:$0xff]
      %v12458 = vld [vmem:[%s11 + $0x1a0] sm:$0xff]
      %v12459 = vld [vmem:[%s11 + $0x1a8] sm:$0xff]
      %v12460 = vld [vmem:[%s12] sm:$0x1]
      %v12462 = vlaneseq
      %v12463 = vshrl.u32 %v12462, 7
      %v12464 = vsub.s32 0, %v12463
      %v12465 = vrot.slane %v12460, %v12464
      %v12468 = vsel %vm497, %v11251, 0
      %v12471 = vsel %vm497, %v11252, 0
      %v12474 = vsel %vm497, %v11253, 0
      %v12477 = vsel %vm497, %v11254, 0
      %v12480 = vsel %vm497, %v11255, 0
      %v12483 = vsel %vm497, %v11256, 0
      %v12486 = vsel %vm497, %v11257, 0
      %v12489 = vsel %vm497, %v11258, 0
      %v12492 = vsel %vm497, %v11259, 0
      %v12495 = vsel %vm497, %v11260, 0
      %v12498 = vsel %vm497, %v11261, 0
      %v12501 = vsel %vm497, %v11262, 0
      %v12504 = vsel %vm497, %v11263, 0
      %v12507 = vsel %vm497, %v11264, 0
      %v12510 = vsel %vm497, %v11265, 0
      %v12513 = vsel %vm497, %v11266, 0
      %v12516 = vsel %vm497, %v11267, 0
      %v12519 = vsel %vm497, %v11268, 0
      %v12522 = vsel %vm497, %v11269, 0
      %v12525 = vsel %vm497, %v11270, 0
      %v12528 = vsel %vm497, %v11271, 0
      %v12531 = vsel %vm497, %v11272, 0
      %v12534 = vsel %vm497, %v11273, 0
      %v12537 = vsel %vm497, %v11274, 0
      %v12540 = vsel %vm497, %v11275, 0
      %v12543 = vsel %vm497, %v11276, 0
      %v12546 = vsel %vm497, %v11277, 0
      %v12549 = vsel %vm497, %v11278, 0
      %v12552 = vsel %vm497, %v11279, 0
      %v12555 = vsel %vm497, %v11280, 0
      %v12558 = vsel %vm497, %v11281, 0
      %v12561 = vsel %vm497, %v11282, 0
      %12563 = vmatprep.subr.mxu0 0.0
      %12564 = vmatpush1.msra.mxu0 %v12406
      %12565 = vmatprep.subr.mxu0 0.0
      %12566 = vmatpush1.msra.mxu0 %v12407
      %12567 = vmatprep.subr.mxu0 0.0
      %12568 = vmatpush1.msra.mxu0 %v12408
      %12569 = vmatprep.subr.mxu0 0.0
      %12570 = vmatpush1.msra.mxu0 %v12409
      %12571 = vmatprep.subr.mxu0 0.0
      %12572 = vmatpush1.msra.mxu0 %v12410
      %12573 = vmatprep.subr.mxu0 0.0
      %12574 = vmatpush1.msra.mxu0 %v12411
      %12575 = vmatprep.subr.mxu0 0.0
      %12576 = vmatpush1.msra.mxu0 %v12412
      %12577 = vmatprep.subr.mxu0 0.0
      %12578 = vmatpush1.msra.mxu0 %v12413
      %12579 = vmatprep.subr.mxu0 0.0
      %12580 = vmatpush1.msra.mxu0 %v12414
      %12581 = vmatprep.subr.mxu0 0.0
      %12582 = vmatpush1.msra.mxu0 %v12415
      %12583 = vmatprep.subr.mxu0 0.0
      %12584 = vmatpush1.msra.mxu0 %v12416
      %12585 = vmatprep.subr.mxu0 0.0
      %12586 = vmatpush1.msra.mxu0 %v12417
      %12587 = vmatprep.subr.mxu0 0.0
      %12588 = vmatpush1.msra.mxu0 %v12418
      %12589 = vmatprep.subr.mxu0 0.0
      %12590 = vmatpush1.msra.mxu0 %v12419
      %12591 = vmatprep.subr.mxu0 0.0
      %12592 = vmatpush1.msra.mxu0 %v12420
      %12593 = vmatprep.subr.mxu0 0.0
      %12594 = vmatpush1.msra.mxu0 %v12421
      %12595 = vmatprep.subr.mxu0 0.0
      %12596 = vmatpush1.msra.mxu0 %v12422
      %12597 = vmatprep.subr.mxu0 0.0
      %12598 = vmatpush1.msra.mxu0 %v12423
      %12599 = vmatprep.subr.mxu0 0.0
      %12600 = vmatpush1.msra.mxu0 %v12424
      %12601 = vmatprep.subr.mxu0 0.0
      %12602 = vmatpush1.msra.mxu0 %v12425
      %12603 = vmatprep.subr.mxu0 0.0
      %12604 = vmatpush1.msra.mxu0 %v12426
      %12605 = vmatprep.subr.mxu0 0.0
      %12606 = vmatpush1.msra.mxu0 %v12427
      %12607 = vmatprep.subr.mxu0 0.0
      %12608 = vmatpush1.msra.mxu0 %v12428
      %12609 = vmatprep.subr.mxu0 0.0
      %12610 = vmatpush1.msra.mxu0 %v12429
      %12611 = vmatprep.subr.mxu0 0.0
      %12612 = vmatpush1.msra.mxu0 %v12430
      %12613 = vmatprep.subr.mxu0 0.0
      %12614 = vmatpush1.msra.mxu0 %v12431
      %12615 = vmatprep.subr.mxu0 0.0
      %12616 = vmatpush1.msra.mxu0 %v12432
      %12617 = vmatprep.subr.mxu0 0.0
      %12618 = vmatpush1.msra.mxu0 %v12433
      %12619 = vmatprep.subr.mxu0 0.0
      %12620 = vmatpush1.msra.mxu0 %v12434
      %12621 = vmatprep.subr.mxu0 0.0
      %12622 = vmatpush1.msra.mxu0 %v12435
      %12623 = vmatprep.subr.mxu0 0.0
      %12624 = vmatpush1.msra.mxu0 %v12436
      %12625 = vmatprep.subr.mxu0 0.0
      %12626 = vmatpush1.msra.mxu0 %v12437
      %12627 = vmatprep.mubr.f32.mxu0 %v12309
      %12628 = vmatmul.mubr.f32.gmra.mrb[0].mxu0 %v12212
      %v12629 = vpop.f32.mrb[0].mxu0
      %v12630 = vadd.f32 %v12465, %v12629
      %v12631 = vpop.f32.mrb[0].mxu0
      %12632 = vmatprep.mubr.f32.mxu0 %v12310
      %12633 = vmatmul.mubr.f32.gmra.mrb[0].mxu0 %v12213
      %v12634 = vpop.f32.mrb[0].mxu0
      %v12635 = vadd.f32 %v12465, %v12634
      %v12636 = vpop.f32.mrb[0].mxu0
      %12637 = vmatprep.mubr.f32.mxu0 %v12311
      %12638 = vmatmul.mubr.f32.gmra.mrb[0].mxu0 %v12214
      %v12639 = vpop.f32.mrb[0].mxu0
      %v12640 = vadd.f32 %v12465, %v12639
      %v12641 = vpop.f32.mrb[0].mxu0
      %12642 = vmatprep.mubr.f32.mxu0 %v12312
      %12643 = vmatmul.mubr.f32.gmra.mrb[0].mxu0 %v12215
      %v12644 = vpop.f32.mrb[0].mxu0
      %v12645 = vadd.f32 %v12465, %v12644
      %v12646 = vpop.f32.mrb[0].mxu0
      %12647 = vmatprep.mubr.f32.mxu0 %v12313
      %12648 = vmatmul.mubr.f32.gmra.mrb[0].mxu0 %v12216
      %v12649 = vpop.f32.mrb[0].mxu0
      %v12650 = vadd.f32 %v12465, %v12649
      %v12651 = vpop.f32.mrb[0].mxu0
      %12652 = vmatprep.mubr.f32.mxu0 %v12314
      %12653 = vmatmul.mubr.f32.gmra.mrb[0].mxu0 %v12217
      %v12654 = vpop.f32.mrb[0].mxu0
      %v12655 = vadd.f32 %v12465, %v12654
      %v12656 = vpop.f32.mrb[0].mxu0
      %12657 = vmatprep.mubr.f32.mxu0 %v12315
      %12658 = vmatmul.mubr.f32.gmra.mrb[0].mxu0 %v12218
      %v12659 = vpop.f32.mrb[0].mxu0
      %v12660 = vadd.f32 %v12465, %v12659
      %v12661 = vpop.f32.mrb[0].mxu0
      %12662 = vmatprep.mubr.f32.mxu0 %v12316
      %12663 = vmatmul.mubr.f32.gmra.mrb[0].mxu0 %v12219
      %v12664 = vpop.f32.mrb[0].mxu0
      %v12665 = vadd.f32 %v12465, %v12664
      %v12666 = vpop.f32.mrb[0].mxu0
      %12667 = vmatprep.mubr.f32.mxu0 %v12317
      %12668 = vmatmul.mubr.f32.gmra.mrb[0].mxu0 %v12220
      %v12669 = vpop.f32.mrb[0].mxu0
      %v12670 = vadd.f32 %v12465, %v12669
      %v12671 = vpop.f32.mrb[0].mxu0
      %12672 = vmatprep.mubr.f32.mxu0 %v12318
      %12673 = vmatmul.mubr.f32.gmra.mrb[0].mxu0 %v12221
      %v12674 = vpop.f32.mrb[0].mxu0
      %v12675 = vadd.f32 %v12465, %v12674
      %v12676 = vpop.f32.mrb[0].mxu0
      %12677 = vmatprep.mubr.f32.mxu0 %v12319
      %12678 = vmatmul.mubr.f32.gmra.mrb[0].mxu0 %v12222
      %v12679 = vpop.f32.mrb[0].mxu0
      %v12680 = vadd.f32 %v12465, %v12679
      %v12681 = vpop.f32.mrb[0].mxu0
      %12682 = vmatprep.mubr.f32.mxu0 %v12320
      %12683 = vmatmul.mubr.f32.gmra.mrb[0].mxu0 %v12223
      %v12684 = vpop.f32.mrb[0].mxu0
      %v12685 = vadd.f32 %v12465, %v12684
      %v12686 = vpop.f32.mrb[0].mxu0
      %12687 = vmatprep.mubr.f32.mxu0 %v12321
      %12688 = vmatmul.mubr.f32.gmra.mrb[0].mxu0 %v12224
      %v12689 = vpop.f32.mrb[0].mxu0
      %v12690 = vadd.f32 %v12465, %v12689
      %v12691 = vpop.f32.mrb[0].mxu0
      %12692 = vmatprep.mubr.f32.mxu0 %v12322
      %12693 = vmatmul.mubr.f32.gmra.mrb[0].mxu0 %v12225
      %v12694 = vpop.f32.mrb[0].mxu0
      %v12695 = vadd.f32 %v12465, %v12694
      %v12696 = vpop.f32.mrb[0].mxu0
      %12697 = vmatprep.mubr.f32.mxu0 %v12323
      %12698 = vmatmul.mubr.f32.gmra.mrb[0].mxu0 %v12226
      %v12699 = vpop.f32.mrb[0].mxu0
      %v12700 = vadd.f32 %v12465, %v12699
      %v12701 = vpop.f32.mrb[0].mxu0
      %12702 = vmatprep.mubr.f32.mxu0 %v12324
      %12703 = vmatmul.mubr.f32.gmra.mrb[0].mxu0 %v12227
      %v12704 = vpop.f32.mrb[0].mxu0
      %v12705 = vadd.f32 %v12465, %v12704
      %v12706 = vpop.f32.mrb[0].mxu0
      %12707 = vmatprep.mubr.f32.mxu0 %v12325
      %12708 = vmatmul.mubr.f32.gmra.mrb[0].mxu0 %v12228
      %v12709 = vpop.f32.mrb[0].mxu0
      %v12710 = vadd.f32 %v12465, %v12709
      %v12711 = vpop.f32.mrb[0].mxu0
      %12712 = vmatprep.mubr.f32.mxu0 %v12326
      %12713 = vmatmul.mubr.f32.gmra.mrb[0].mxu0 %v12229
      %v12714 = vpop.f32.mrb[0].mxu0
      %v12715 = vadd.f32 %v12465, %v12714
      %v12716 = vpop.f32.mrb[0].mxu0
      %12717 = vmatprep.mubr.f32.mxu0 %v12327
      %12718 = vmatmul.mubr.f32.gmra.mrb[0].mxu0 %v12230
      %v12719 = vpop.f32.mrb[0].mxu0
      %v12720 = vadd.f32 %v12465, %v12719
      %v12721 = vpop.f32.mrb[0].mxu0
      %12722 = vmatprep.mubr.f32.mxu0 %v12328
      %12723 = vmatmul.mubr.f32.gmra.mrb[0].mxu0 %v12231
      %v12724 = vpop.f32.mrb[0].mxu0
      %v12725 = vadd.f32 %v12465, %v12724
      %v12726 = vpop.f32.mrb[0].mxu0
      %12727 = vmatprep.mubr.f32.mxu0 %v12329
      %12728 = vmatmul.mubr.f32.gmra.mrb[0].mxu0 %v12232
      %v12729 = vpop.f32.mrb[0].mxu0
      %v12730 = vadd.f32 %v12465, %v12729
      %v12731 = vpop.f32.mrb[0].mxu0
      %12732 = vmatprep.mubr.f32.mxu0 %v12330
      %12733 = vmatmul.mubr.f32.gmra.mrb[0].mxu0 %v12233
      %v12734 = vpop.f32.mrb[0].mxu0
      %v12735 = vadd.f32 %v12465, %v12734
      %v12736 = vpop.f32.mrb[0].mxu0
      %12737 = vmatprep.mubr.f32.mxu0 %v12331
      %12738 = vmatmul.mubr.f32.gmra.mrb[0].mxu0 %v12234
      %v12739 = vpop.f32.mrb[0].mxu0
      %v12740 = vadd.f32 %v12465, %v12739
      %v12741 = vpop.f32.mrb[0].mxu0
      %12742 = vmatprep.mubr.f32.mxu0 %v12332
      %12743 = vmatmul.mubr.f32.gmra.mrb[0].mxu0 %v12235
      %v12744 = vpop.f32.mrb[0].mxu0
      %v12745 = vadd.f32 %v12465, %v12744
      %v12746 = vpop.f32.mrb[0].mxu0
      %12747 = vmatprep.mubr.f32.mxu0 %v12333
      %12748 = vmatmul.mubr.f32.gmra.mrb[0].mxu0 %v12236
      %v12749 = vpop.f32.mrb[0].mxu0
      %v12750 = vadd.f32 %v12465, %v12749
      %v12751 = vpop.f32.mrb[0].mxu0
      %12752 = vmatprep.mubr.f32.mxu0 %v12334
      %12753 = vmatmul.mubr.f32.gmra.mrb[0].mxu0 %v12237
      %v12754 = vpop.f32.mrb[0].mxu0
      %v12755 = vadd.f32 %v12465, %v12754
      %v12756 = vpop.f32.mrb[0].mxu0
      %12757 = vmatprep.mubr.f32.mxu0 %v12335
      %12758 = vmatmul.mubr.f32.gmra.mrb[0].mxu0 %v12238
      %v12759 = vpop.f32.mrb[0].mxu0
      %v12760 = vadd.f32 %v12465, %v12759
      %v12761 = vpop.f32.mrb[0].mxu0
      %12762 = vmatprep.mubr.f32.mxu0 %v12336
      %12763 = vmatmul.mubr.f32.gmra.mrb[0].mxu0 %v12239
      %v12764 = vpop.f32.mrb[0].mxu0
      %v12765 = vadd.f32 %v12465, %v12764
      %v12766 = vpop.f32.mrb[0].mxu0
      %12767 = vmatprep.mubr.f32.mxu0 %v12337
      %12768 = vmatmul.mubr.f32.gmra.mrb[0].mxu0 %v12240
      %v12769 = vpop.f32.mrb[0].mxu0
      %v12770 = vadd.f32 %v12465, %v12769
      %v12771 = vpop.f32.mrb[0].mxu0
      %12772 = vmatprep.mubr.f32.mxu0 %v12338
      %12773 = vmatmul.mubr.f32.gmra.mrb[0].mxu0 %v12241
      %v12774 = vpop.f32.mrb[0].mxu0
      %v12775 = vadd.f32 %v12465, %v12774
      %v12776 = vpop.f32.mrb[0].mxu0
      %12777 = vmatprep.mubr.f32.mxu0 %v12339
      %12778 = vmatmul.mubr.f32.gmra.mrb[0].mxu0 %v12242
      %v12779 = vpop.f32.mrb[0].mxu0
      %v12780 = vadd.f32 %v12465, %v12779
      %v12781 = vpop.f32.mrb[0].mxu0
      %12782 = vmatprep.mubr.f32.mxu0 %v12340
      %12783 = vmatmul.mubr.f32.gmra.mrb[0].mxu0 %v12243
      %v12784 = vpop.f32.mrb[0].mxu0
      %v12785 = vadd.f32 %v12465, %v12784
      %v12786 = vpop.f32.mrb[0].mxu0
      %12787 = vdwg.mxu0
      %12788 = vmatprep.subr.mxu0 0.0
      %12789 = vmatpush1.msra.mxu0 %v12438
      %12790 = vmatprep.subr.mxu0 0.0
      %12791 = vmatpush1.msra.mxu0 %v12439
      %12792 = vmatprep.subr.mxu0 0.0
      %12793 = vmatpush1.msra.mxu0 %v12440
      %12794 = vmatprep.subr.mxu0 0.0
      %12795 = vmatpush1.msra.mxu0 %v12441
      %12796 = vmatprep.subr.mxu0 0.0
      %12797 = vmatpush1.msra.mxu0 %v12442
      %12798 = vmatprep.subr.mxu0 0.0
      %12799 = vmatpush1.msra.mxu0 %v12443
      %12800 = vmatprep.subr.mxu0 0.0
      %12801 = vmatpush1.msra.mxu0 %v12444
      %12802 = vmatprep.subr.mxu0 0.0
      %12803 = vmatpush1.msra.mxu0 %v12445
      %12804 = vmatprep.subr.mxu0 0.0
      %12805 = vmatpush1.msra.mxu0 %v12446
      %12806 = vmatprep.subr.mxu0 0.0
      %12807 = vmatpush1.msra.mxu0 %v12447
      %12808 = vmatprep.subr.mxu0 0.0
      %12809 = vmatpush1.msra.mxu0 %v12448
      %12810 = vmatprep.subr.mxu0 0.0
      %12811 = vmatpush1.msra.mxu0 %v12449
      %12812 = vmatprep.subr.mxu0 0.0
      %12813 = vmatpush1.msra.mxu0 %v12450
      %12814 = vmatprep.subr.mxu0 0.0
      %12815 = vmatpush1.msra.mxu0 %v12451
      %12816 = vmatprep.subr.mxu0 0.0
      %12817 = vmatpush1.msra.mxu0 %v12452
      %12818 = vmatprep.subr.mxu0 0.0
      %12819 = vmatpush1.msra.mxu0 %v12453
      %12820 = vmatprep.subr.mxu0 0.0
      %12821 = vmatpush1.msra.mxu0 %v12454
      %12822 = vmatprep.subr.mxu0 0.0
      %12823 = vmatpush1.msra.mxu0 %v12455
      %12824 = vmatprep.subr.mxu0 0.0
      %12825 = vmatpush1.msra.mxu0 %v12456
      %12826 = vmatprep.subr.mxu0 0.0
      %12827 = vmatpush1.msra.mxu0 %v12457
      %12828 = vmatprep.subr.mxu0 0.0
      %12829 = vmatpush1.msra.mxu0 %v12458
      %12830 = vmatprep.subr.mxu0 0.0
      %12831 = vmatpush1.msra.mxu0 %v12459
      %12832 = vmatprep.subr.mxu0 0.0
      %12833 = vmatpush1.msra.mxu0 0.0
      %12834 = vmatprep.subr.mxu0 0.0
      %12835 = vmatpush1.msra.mxu0 0.0
      %12836 = vmatprep.subr.mxu0 0.0
      %12837 = vmatpush1.msra.mxu0 0.0
      %12838 = vmatprep.subr.mxu0 0.0
      %12839 = vmatpush1.msra.mxu0 0.0
      %12840 = vmatprep.subr.mxu0 0.0
      %12841 = vmatpush1.msra.mxu0 0.0
      %12842 = vmatprep.subr.mxu0 0.0
      %12843 = vmatpush1.msra.mxu0 0.0
      %12844 = vmatprep.subr.mxu0 0.0
      %12845 = vmatpush1.msra.mxu0 0.0
      %12846 = vmatprep.subr.mxu0 0.0
      %12847 = vmatpush1.msra.mxu0 0.0
      %12848 = vmatprep.subr.mxu0 0.0
      %12849 = vmatpush1.msra.mxu0 0.0
      %12850 = vmatprep.subr.mxu0 0.0
      %12851 = vmatpush1.msra.mxu0 0.0
      %12852 = vmatprep.mubr.f32.mxu0 %v12468
      %12853 = vmatmul.mubr.f32.gmra.mrb[0].mxu0 %v12374
      %v12854 = vpop.f32.mrb[0].mxu0
      %v12855 = vadd.f32 %v12630, %v12854
      %v12856 = vpop.f32.mrb[0].mxu0
      %12857 = vmatprep.mubr.f32.mxu0 %v12471
      %12858 = vmatmul.mubr.f32.gmra.mrb[0].mxu0 %v12375
      %v12859 = vpop.f32.mrb[0].mxu0
      %v12860 = vadd.f32 %v12635, %v12859
      %v12861 = vpop.f32.mrb[0].mxu0
      %12862 = vmatprep.mubr.f32.mxu0 %v12474
      %12863 = vmatmul.mubr.f32.gmra.mrb[0].mxu0 %v12376
      %v12864 = vpop.f32.mrb[0].mxu0
      %v12865 = vadd.f32 %v12640, %v12864
      %v12866 = vpop.f32.mrb[0].mxu0
      %12867 = vmatprep.mubr.f32.mxu0 %v12477
      %12868 = vmatmul.mubr.f32.gmra.mrb[0].mxu0 %v12377
      %v12869 = vpop.f32.mrb[0].mxu0
      %v12870 = vadd.f32 %v12645, %v12869
      %v12871 = vpop.f32.mrb[0].mxu0
      %12872 = vmatprep.mubr.f32.mxu0 %v12480
      %12873 = vmatmul.mubr.f32.gmra.mrb[0].mxu0 %v12378
      %v12874 = vpop.f32.mrb[0].mxu0
      %v12875 = vadd.f32 %v12650, %v12874
      %v12876 = vpop.f32.mrb[0].mxu0
      %12877 = vmatprep.mubr.f32.mxu0 %v12483
      %12878 = vmatmul.mubr.f32.gmra.mrb[0].mxu0 %v12379
      %v12879 = vpop.f32.mrb[0].mxu0
      %v12880 = vadd.f32 %v12655, %v12879
      %v12881 = vpop.f32.mrb[0].mxu0
      %12882 = vmatprep.mubr.f32.mxu0 %v12486
      %12883 = vmatmul.mubr.f32.gmra.mrb[0].mxu0 %v12380
      %v12884 = vpop.f32.mrb[0].mxu0
      %v12885 = vadd.f32 %v12660, %v12884
      %v12886 = vpop.f32.mrb[0].mxu0
      %12887 = vmatprep.mubr.f32.mxu0 %v12489
      %12888 = vmatmul.mubr.f32.gmra.mrb[0].mxu0 %v12381
      %v12889 = vpop.f32.mrb[0].mxu0
      %v12890 = vadd.f32 %v12665, %v12889
      %v12891 = vpop.f32.mrb[0].mxu0
      %12892 = vmatprep.mubr.f32.mxu0 %v12492
      %12893 = vmatmul.mubr.f32.gmra.mrb[0].mxu0 %v12382
      %v12894 = vpop.f32.mrb[0].mxu0
      %v12895 = vadd.f32 %v12670, %v12894
      %v12896 = vpop.f32.mrb[0].mxu0
      %12897 = vmatprep.mubr.f32.mxu0 %v12495
      %12898 = vmatmul.mubr.f32.gmra.mrb[0].mxu0 %v12383
      %v12899 = vpop.f32.mrb[0].mxu0
      %v12900 = vadd.f32 %v12675, %v12899
      %v12901 = vpop.f32.mrb[0].mxu0
      %12902 = vmatprep.mubr.f32.mxu0 %v12498
      %12903 = vmatmul.mubr.f32.gmra.mrb[0].mxu0 %v12384
      %v12904 = vpop.f32.mrb[0].mxu0
      %v12905 = vadd.f32 %v12680, %v12904
      %v12906 = vpop.f32.mrb[0].mxu0
      %12907 = vmatprep.mubr.f32.mxu0 %v12501
      %12908 = vmatmul.mubr.f32.gmra.mrb[0].mxu0 %v12385
      %v12909 = vpop.f32.mrb[0].mxu0
      %v12910 = vadd.f32 %v12685, %v12909
      %v12911 = vpop.f32.mrb[0].mxu0
      %12912 = vmatprep.mubr.f32.mxu0 %v12504
      %12913 = vmatmul.mubr.f32.gmra.mrb[0].mxu0 %v12386
      %v12914 = vpop.f32.mrb[0].mxu0
      %v12915 = vadd.f32 %v12690, %v12914
      %v12916 = vpop.f32.mrb[0].mxu0
      %12917 = vmatprep.mubr.f32.mxu0 %v12507
      %12918 = vmatmul.mubr.f32.gmra.mrb[0].mxu0 %v12387
      %v12919 = vpop.f32.mrb[0].mxu0
      %v12920 = vadd.f32 %v12695, %v12919
      %v12921 = vpop.f32.mrb[0].mxu0
      %12922 = vmatprep.mubr.f32.mxu0 %v12510
      %12923 = vmatmul.mubr.f32.gmra.mrb[0].mxu0 %v12388
      %v12924 = vpop.f32.mrb[0].mxu0
      %v12925 = vadd.f32 %v12700, %v12924
      %v12926 = vpop.f32.mrb[0].mxu0
      %12927 = vmatprep.mubr.f32.mxu0 %v12513
      %12928 = vmatmul.mubr.f32.gmra.mrb[0].mxu0 %v12389
      %v12929 = vpop.f32.mrb[0].mxu0
      %v12930 = vadd.f32 %v12705, %v12929
      %v12931 = vpop.f32.mrb[0].mxu0
      %12932 = vmatprep.mubr.f32.mxu0 %v12516
      %12933 = vmatmul.mubr.f32.gmra.mrb[0].mxu0 %v12390
      %v12934 = vpop.f32.mrb[0].mxu0
      %v12935 = vadd.f32 %v12710, %v12934
      %v12936 = vpop.f32.mrb[0].mxu0
      %12937 = vmatprep.mubr.f32.mxu0 %v12519
      %12938 = vmatmul.mubr.f32.gmra.mrb[0].mxu0 %v12391
      %v12939 = vpop.f32.mrb[0].mxu0
      %v12940 = vadd.f32 %v12715, %v12939
      %v12941 = vpop.f32.mrb[0].mxu0
      %12942 = vmatprep.mubr.f32.mxu0 %v12522
      %12943 = vmatmul.mubr.f32.gmra.mrb[0].mxu0 %v12392
      %v12944 = vpop.f32.mrb[0].mxu0
      %v12945 = vadd.f32 %v12720, %v12944
      %v12946 = vpop.f32.mrb[0].mxu0
      %12947 = vmatprep.mubr.f32.mxu0 %v12525
      %12948 = vmatmul.mubr.f32.gmra.mrb[0].mxu0 %v12393
      %v12949 = vpop.f32.mrb[0].mxu0
      %v12950 = vadd.f32 %v12725, %v12949
      %v12951 = vpop.f32.mrb[0].mxu0
      %12952 = vmatprep.mubr.f32.mxu0 %v12528
      %12953 = vmatmul.mubr.f32.gmra.mrb[0].mxu0 %v12394
      %v12954 = vpop.f32.mrb[0].mxu0
      %v12955 = vadd.f32 %v12730, %v12954
      %v12956 = vpop.f32.mrb[0].mxu0
      %12957 = vmatprep.mubr.f32.mxu0 %v12531
      %12958 = vmatmul.mubr.f32.gmra.mrb[0].mxu0 %v12395
      %v12959 = vpop.f32.mrb[0].mxu0
      %v12960 = vadd.f32 %v12735, %v12959
      %v12961 = vpop.f32.mrb[0].mxu0
      %12962 = vmatprep.mubr.f32.mxu0 %v12534
      %12963 = vmatmul.mubr.f32.gmra.mrb[0].mxu0 %v12396
      %v12964 = vpop.f32.mrb[0].mxu0
      %v12965 = vadd.f32 %v12740, %v12964
      %v12966 = vpop.f32.mrb[0].mxu0
      %12967 = vmatprep.mubr.f32.mxu0 %v12537
      %12968 = vmatmul.mubr.f32.gmra.mrb[0].mxu0 %v12397
      %v12969 = vpop.f32.mrb[0].mxu0
      %v12970 = vadd.f32 %v12745, %v12969
      %v12971 = vpop.f32.mrb[0].mxu0
      %12972 = vmatprep.mubr.f32.mxu0 %v12540
      %12973 = vmatmul.mubr.f32.gmra.mrb[0].mxu0 %v12398
      %v12974 = vpop.f32.mrb[0].mxu0
      %v12975 = vadd.f32 %v12750, %v12974
      %v12976 = vpop.f32.mrb[0].mxu0
      %12977 = vmatprep.mubr.f32.mxu0 %v12543
      %12978 = vmatmul.mubr.f32.gmra.mrb[0].mxu0 %v12399
      %v12979 = vpop.f32.mrb[0].mxu0
      %v12980 = vadd.f32 %v12755, %v12979
      %v12981 = vpop.f32.mrb[0].mxu0
      %12982 = vmatprep.mubr.f32.mxu0 %v12546
      %12983 = vmatmul.mubr.f32.gmra.mrb[0].mxu0 %v12400
      %v12984 = vpop.f32.mrb[0].mxu0
      %v12985 = vadd.f32 %v12760, %v12984
      %v12986 = vpop.f32.mrb[0].mxu0
      %12987 = vmatprep.mubr.f32.mxu0 %v12549
      %12988 = vmatmul.mubr.f32.gmra.mrb[0].mxu0 %v12401
      %v12989 = vpop.f32.mrb[0].mxu0
      %v12990 = vadd.f32 %v12765, %v12989
      %v12991 = vpop.f32.mrb[0].mxu0
      %12992 = vmatprep.mubr.f32.mxu0 %v12552
      %12993 = vmatmul.mubr.f32.gmra.mrb[0].mxu0 %v12402
      %v12994 = vpop.f32.mrb[0].mxu0
      %v12995 = vadd.f32 %v12770, %v12994
      %v12996 = vpop.f32.mrb[0].mxu0
      %12997 = vmatprep.mubr.f32.mxu0 %v12555
      %12998 = vmatmul.mubr.f32.gmra.mrb[0].mxu0 %v12403
      %v12999 = vpop.f32.mrb[0].mxu0
      %v13000 = vadd.f32 %v12775, %v12999
      %v13001 = vpop.f32.mrb[0].mxu0
      %13002 = vmatprep.mubr.f32.mxu0 %v12558
      %13003 = vmatmul.mubr.f32.gmra.mrb[0].mxu0 %v12404
      %v13004 = vpop.f32.mrb[0].mxu0
      %v13005 = vadd.f32 %v12780, %v13004
      %v13006 = vpop.f32.mrb[0].mxu0
      %13007 = vmatprep.mubr.f32.mxu0 %v12561
      %13008 = vmatmul.mubr.f32.gmra.mrb[0].mxu0 %v12405
      %v13009 = vpop.f32.mrb[0].mxu0
      %v13010 = vadd.f32 %v12785, %v13009
      %v13011 = vpop.f32.mrb[0].mxu0
      %13012 = vdwg.mxu0
      %13013 = vst.msk [vmem:[%s440] sm:$0xff] %vm1963, %v12855
      %13014 = vst.msk [vmem:[%s440 + $0x8] sm:$0xff] %vm1963, %v12860
      %13015 = vst.msk [vmem:[%s440 + $0x10] sm:$0xff] %vm1963, %v12865
      %13016 = vst.msk [vmem:[%s440 + $0x18] sm:$0xff] %vm1963, %v12870
      %13017 = vst.msk [vmem:[%s440 + $0x20] sm:$0xff] %vm1963, %v12875
      %13018 = vst.msk [vmem:[%s440 + $0x28] sm:$0xff] %vm1963, %v12880
      %13019 = vst.msk [vmem:[%s440 + $0x30] sm:$0xff] %vm1963, %v12885
      %13020 = vst.msk [vmem:[%s440 + $0x38] sm:$0xff] %vm1963, %v12890
      %13021 = vst.msk [vmem:[%s440 + $0x40] sm:$0xff] %vm1963, %v12895
      %13022 = vst.msk [vmem:[%s440 + $0x48] sm:$0xff] %vm1963, %v12900
      %13023 = vst.msk [vmem:[%s440 + $0x50] sm:$0xff] %vm1963, %v12905
      %13024 = vst.msk [vmem:[%s440 + $0x58] sm:$0xff] %vm1963, %v12910
      %13025 = vst.msk [vmem:[%s440 + $0x60] sm:$0xff] %vm1963, %v12915
      %13026 = vst.msk [vmem:[%s440 + $0x68] sm:$0xff] %vm1963, %v12920
      %13027 = vst.msk [vmem:[%s440 + $0x70] sm:$0xff] %vm1963, %v12925
      %13028 = vst.msk [vmem:[%s440 + $0x78] sm:$0xff] %vm1963, %v12930
      %13029 = vst.msk [vmem:[%s440 + $0x80] sm:$0xff] %vm1963, %v12935
      %13030 = vst.msk [vmem:[%s440 + $0x88] sm:$0xff] %vm1963, %v12940
      %13031 = vst.msk [vmem:[%s440 + $0x90] sm:$0xff] %vm1963, %v12945
      %13032 = vst.msk [vmem:[%s440 + $0x98] sm:$0xff] %vm1963, %v12950
      %13033 = vst.msk [vmem:[%s440 + $0xa0] sm:$0xff] %vm1963, %v12955
      %13034 = vst.msk [vmem:[%s440 + $0xa8] sm:$0xff] %vm1963, %v12960
      %13035 = vst.msk [vmem:[%s440 + $0xb0] sm:$0xff] %vm1963, %v12965
      %13036 = vst.msk [vmem:[%s440 + $0xb8] sm:$0xff] %vm1963, %v12970
      %13037 = vst.msk [vmem:[%s440 + $0xc0] sm:$0xff] %vm1963, %v12975
      %13038 = vst.msk [vmem:[%s440 + $0xc8] sm:$0xff] %vm1963, %v12980
      %13039 = vst.msk [vmem:[%s440 + $0xd0] sm:$0xff] %vm1963, %v12985
      %13040 = vst.msk [vmem:[%s440 + $0xd8] sm:$0xff] %vm1963, %v12990
      %13041 = vst.msk [vmem:[%s440 + $0xe0] sm:$0xff] %vm1963, %v12995
      %13042 = vst.msk [vmem:[%s440 + $0xe8] sm:$0xff] %vm1963, %v13000
      %13043 = vst.msk [vmem:[%s440 + $0xf0] sm:$0xff] %vm1963, %v13005
      %13044 = vst.msk [vmem:[%s440 + $0xf8] sm:$0xff] %vm1963, %v13010
      %p13045 = scmp.lt.s32.totalorder %s24, 1
      %s13046 = scalar_select %p13045, %s24, 1
      %s13047 = smul.addr %s13046, 32
      %s13048 = smul.addr %s13047, 8
      %s13049 = scalar_lea.vmem %s13, %s13048
      // Predicated region
      $region73: #{tpu_custom_call.1} parent=71 // pred_check
        %p13050 = pneg %p320
      $region74: #{tpu_custom_call.1} parent=71 // pred_check_branch
        %13052 = sbr.rel (%p13050) target = $region76
      $region75: #{tpu_custom_call.1} parent=71 // pred_region
        _
      $region76: #{tpu_custom_call.1} parent=71 // pred_fallthru
        _
    $region72: #{tpu_custom_call.1} parent=5 // pred_fallthru
      _
    %p13053 = scmp.le.s32.totalorder 2, %s19
    // Predicated region
    $region77: #{tpu_custom_call.1} parent=5 // pred_check
      %p13054 = pneg %p13053
    $region78: #{tpu_custom_call.1} parent=5 // pred_check_branch
      %13056 = sbr.rel (%p13054) target = $region80
    $region79: #{tpu_custom_call.1} parent=5 // pred_region
      %s13057 = ssub.s32 %s19, 2
      // Predicated region
      $region81: #{tpu_custom_call.1} parent=79 // pred_check
        %p13058 = pneg %p326
      $region82: #{tpu_custom_call.1} parent=79 // pred_check_branch
        %13060 = sbr.rel (%p13058) target = $region84
      $region83: #{tpu_custom_call.1} parent=79 // pred_region
        %p13061 = scmp.lt.s32.totalorder %s25, 1
        %s13062 = scalar_select %p13061, %s25, 1
        %s13063 = smul.addr %s13062, 32
        %s13064 = smul.addr %s13063, 8
        %s13065 = scalar_lea.vmem %s13, %s13064
      $region84: #{tpu_custom_call.1} parent=79 // pred_fallthru
        _
    $region80: #{tpu_custom_call.1} parent=5 // pred_fallthru
      _
  $region6: #{tpu_custom_call.1} parent=0 // loop_footer
    %s23 = sadd.s32 1, %s19
  $region7: #{tpu_custom_call.1} parent=0 // loop_footer_branch
    %18 = sbr.rel target = $region3
  $region8: #{tpu_custom_call.1} parent=0 // loop_exit
    _

</llo_original>
